<compile_context>
chip_gen: v5e
topology: v5e:2x2
jax: 0.10.0
libtpu: 0.0.40
codegen_flags: <defaults>
</compile_context>

<pallas_src>
import functools

import jax
import jax.numpy as jnp
from jax.experimental import pallas as pl
from jax.experimental.pallas import tpu as pltpu


def _ru(x, m):
    return ((x + m - 1) // m) * m


# ---------------------------------------------------------------------------
# Pallas kernels
# ---------------------------------------------------------------------------
def _mm_kernel(a_ref, w_ref, o_ref, *, act):
    acc = jnp.dot(a_ref[...], w_ref[...], preferred_element_type=jnp.float32)
    if act == "tanh":
        acc = jnp.tanh(acc)
    o_ref[...] = acc.astype(o_ref.dtype)


def _mm_stats_kernel(a_ref, w_ref, o_ref, s_ref, q_ref):
    acc = jnp.dot(a_ref[...], w_ref[...], preferred_element_type=jnp.float32)
    o_ref[...] = acc.astype(o_ref.dtype)
    # per-tile per-channel partial sums for BatchNorm (padded rows are zero).
    s_ref[...] = jnp.broadcast_to(jnp.sum(acc, axis=0)[None, None, :], s_ref.shape)
    q_ref[...] = jnp.broadcast_to(jnp.sum(acc * acc, axis=0)[None, None, :], q_ref.shape)


def _affine_relu_kernel(x_ref, s_ref, b_ref, o_ref):
    y = x_ref[...] * s_ref[...] + b_ref[...]
    o_ref[...] = jnp.maximum(y, 0.0).astype(o_ref.dtype)


def pallas_matmul(a, w_pad, n_true, *, act=None, out_dtype=jnp.float32,
                  with_stats=False, tile_m=512):
    """a: (M, K); w_pad: (Kp, Cp) bf16, pre-padded.  Returns y[:M, :n_true] in
    out_dtype, plus per-column (sum, sum-of-squares) over rows when with_stats."""
    M, K = a.shape
    Kp, Cp = w_pad.shape
    assert K <= Kp and n_true <= Cp
    tm = tile_m if M > tile_m else _ru(max(M, 8), 8)
    Mp = _ru(M, tm)
    n_tiles = Mp // tm
    a_p = jnp.pad(a.astype(jnp.bfloat16), ((0, Mp - M), (0, Kp - K)))

    cost = pl.CostEstimate(
        flops=2 * Mp * Kp * Cp,
        transcendentals=Mp * Cp if act == "tanh" else 0,
        bytes_accessed=2 * (Mp * Kp + Kp * Cp) + Mp * Cp * jnp.dtype(out_dtype).itemsize,
    )
    cparams = pltpu.CompilerParams(dimension_semantics=("parallel",))
    a_spec = pl.BlockSpec((tm, Kp), lambda i: (i, 0))
    w_spec = pl.BlockSpec((Kp, Cp), lambda i: (0, 0))
    y_spec = pl.BlockSpec((tm, Cp), lambda i: (i, 0))

    if not with_stats:
        out = pl.pallas_call(
            functools.partial(_mm_kernel, act=act),
            out_shape=jax.ShapeDtypeStruct((Mp, Cp), out_dtype),
            grid=(n_tiles,),
            in_specs=[a_spec, w_spec],
            out_specs=y_spec,
            compiler_params=cparams,
            cost_estimate=cost,
        )(a_p, w_pad)
        return out[:M, :n_true]

    out, s_part, q_part = pl.pallas_call(
        _mm_stats_kernel,
        out_shape=(
            jax.ShapeDtypeStruct((Mp, Cp), out_dtype),
            jax.ShapeDtypeStruct((n_tiles, 8, Cp), jnp.float32),
            jax.ShapeDtypeStruct((n_tiles, 8, Cp), jnp.float32),
        ),
        grid=(n_tiles,),
        in_specs=[a_spec, w_spec],
        out_specs=[
            y_spec,
            pl.BlockSpec((1, 8, Cp), lambda i: (i, 0, 0)),
            pl.BlockSpec((1, 8, Cp), lambda i: (i, 0, 0)),
        ],
        compiler_params=cparams,
        cost_estimate=cost,
    )(a_p, w_pad)
    sums = jnp.sum(s_part[:, 0, :n_true], axis=0)
    sqs = jnp.sum(q_part[:, 0, :n_true], axis=0)
    return out[:M, :n_true], sums, sqs


def pallas_affine_relu(x, scale, bias, *, out_dtype=jnp.bfloat16, tile_m=1024):
    """relu(x * scale + bias), per-channel scale/bias.  x: (M, C) f32 -> bf16."""
    M, C = x.shape
    Cp = _ru(C, 128)
    tm = tile_m if M > tile_m else _ru(max(M, 8), 8)
    Mp = _ru(M, tm)
    x_p = jnp.pad(x, ((0, Mp - M), (0, Cp - C)))
    s_p = jnp.pad(scale.astype(jnp.float32)[None, :], ((0, 0), (0, Cp - C)))
    b_p = jnp.pad(bias.astype(jnp.float32)[None, :], ((0, 0), (0, Cp - C)))
    out = pl.pallas_call(
        _affine_relu_kernel,
        out_shape=jax.ShapeDtypeStruct((Mp, Cp), out_dtype),
        grid=(Mp // tm,),
        in_specs=[
            pl.BlockSpec((tm, Cp), lambda i: (i, 0)),
            pl.BlockSpec((1, Cp), lambda i: (0, 0)),
            pl.BlockSpec((1, Cp), lambda i: (0, 0)),
        ],
        out_specs=pl.BlockSpec((tm, Cp), lambda i: (i, 0)),
        compiler_params=pltpu.CompilerParams(dimension_semantics=("parallel",)),
    )(x_p, s_p, b_p)
    return out[:M, :C]


# ---------------------------------------------------------------------------
# Conv / transposed-conv glue (layout + weight packing in plain JAX)
# ---------------------------------------------------------------------------
def _window_patches(xp, wh, ww):
    """xp: (N, Hp, Wp, C) -> im2col over all wh x ww windows: (N*Th*Tw, wh*ww*C)."""
    N, Hp, Wp, C = xp.shape
    Th, Tw = Hp - wh + 1, Wp - ww + 1
    cols = []
    for dh in range(wh):
        for dw in range(ww):
            cols.append(xp[:, dh:dh + Th, dw:dw + Tw, :])
    a = jnp.concatenate(cols, axis=-1)
    return a.reshape(N * Th * Tw, wh * ww * C), Th, Tw


def _phase_order(k, s, p):
    """Output phases of a transposed conv, ordered by first output index."""
    phases = []
    for r in range(s):
        u0 = -((r - p) // s)          # ceil((p - r) / s)
        y0 = u0 * s + r - p           # first output index of this phase
        phases.append((y0, r, u0))
    phases.sort()
    assert [y0 for y0, _, _ in phases] == list(range(s))
    return [(r, u0) for _, r, u0 in phases]


def _conv_weight_matrix(w):
    """Conv2d weight (Cout, Cin, kh, kw) -> (kh*kw*Cin, Cout)."""
    cout, cin, kh, kw = w.shape
    return jnp.transpose(w, (2, 3, 1, 0)).reshape(kh * kw * cin, cout)


def _deconv_weight_matrix(w_t, s, p):
    """ConvTranspose2d weight (Cin, Cout, k, k) -> combined sub-pixel weight
    (Qmax*Qmax*Cin, s*s*Cout); output-channel blocks ordered by output phase."""
    cin, cout, kh, kw = w_t.shape
    assert kh == kw
    k = kh
    q = -(-k // s)                    # ceil(k / s): window taps per axis
    order = _phase_order(k, s, p)
    wm = jnp.zeros((q, q, cin, s * s * cout), w_t.dtype)
    for ih, (rh, _) in enumerate(order):
        for iw, (rw, _) in enumerate(order):
            c0 = (ih * s + iw) * cout
            for jh in range(q):
                a = rh + (q - 1 - jh) * s
                if a >= k:
                    continue
                for jw in range(q):
                    b = rw + (q - 1 - jw) * s
                    if b >= k:
                        continue
                    wm = wm.at[jh, jw, :, c0:c0 + cout].set(w_t[:, :, a, b])
    return wm.reshape(q * q * cin, s * s * cout)


def _pad_weight(wm):
    K, C = wm.shape
    return jnp.pad(wm.astype(jnp.bfloat16), ((0, _ru(K, 128) - K), (0, _ru(C, 128) - C)))


def conv2d(x, w_pad, lcfg, *, act=None, out_dtype=jnp.float32, with_stats=False):
    """Stride-1 Conv2d on NHWC input; weight pre-packed to (k*k*Cin, Cout) + padded."""
    N, H, W, C = x.shape
    k, p, cout = lcfg["k"], lcfg["p"], lcfg["cout"]
    xp = jnp.pad(x, ((0, 0), (p, p), (p, p), (0, 0)))
    a, Ho, Wo = _window_patches(xp, k, k)
    if with_stats:
        y, sums, sqs = pallas_matmul(a, w_pad, cout, act=act, out_dtype=out_dtype,
                                     with_stats=True)
        return y.reshape(N, Ho, Wo, cout), sums, sqs
    y = pallas_matmul(a, w_pad, cout, act=act, out_dtype=out_dtype)
    return y.reshape(N, Ho, Wo, cout)


def conv_transpose2d(x, w_pad, lcfg, *, out_dtype=jnp.float32, with_stats=False):
    """ConvTranspose2d via sub-pixel phase decomposition: one matmul over
    ceil(k/s)^2 windows of the lightly-padded undilated input computes all
    stride*stride output phases; phases are cropped and interleaved afterwards."""
    N, H, W, C = x.shape
    k, s, p, cout = lcfg["k"], lcfg["s"], lcfg["p"], lcfg["cout"]
    Ho = (H - 1) * s + k - 2 * p
    Wo = (W - 1) * s + k - 2 * p
    assert Ho % s == 0 and Wo % s == 0, "phase decomposition requires (k - 2p) % s == 0"
    q = -(-k // s)
    order = _phase_order(k, s, p)

    def axis_meta(n_in, n_out):
        cnt = n_out // s
        pad_lo = max(0, max(q - 1 - u0 for _, u0 in order))
        pad_hi = max(0, max(u0 for _, u0 in order) + cnt - 1 - (n_in - 1))
        offs = [u0 - q + 1 + pad_lo for _, u0 in order]
        assert min(offs) >= 0
        return cnt, pad_lo, pad_hi, offs

    cnt_h, plh, phh, offs_h = axis_meta(H, Ho)
    cnt_w, plw, phw, offs_w = axis_meta(W, Wo)

    xp = jnp.pad(x, ((0, 0), (plh, phh), (plw, phw), (0, 0)))
    a, Th, Tw = _window_patches(xp, q, q)
    n_cols = s * s * cout

    fuse_stats = (with_stats and s == 1
                  and all(o == 0 for o in offs_h + offs_w)
                  and cnt_h == Th and cnt_w == Tw)
    if fuse_stats:
        y2d, sums, sqs = pallas_matmul(a, w_pad, n_cols, out_dtype=out_dtype,
                                       with_stats=True)
    else:
        y2d = pallas_matmul(a, w_pad, n_cols, out_dtype=out_dtype)

    yt = y2d.reshape(N, Th, Tw, n_cols)
    rows = []
    for ih in range(s):
        blocks = []
        for iw in range(s):
            c0 = (ih * s + iw) * cout
            blocks.append(yt[:, offs_h[ih]:offs_h[ih] + cnt_h,
                              offs_w[iw]:offs_w[iw] + cnt_w, c0:c0 + cout])
        rows.append(jnp.stack(blocks, axis=3))       # (N, cnt_h, cnt_w, s, cout)
    out = jnp.stack(rows, axis=2)                    # (N, cnt_h, s, cnt_w, s, cout)
    out = out.reshape(N, Ho, Wo, cout)

    if with_stats:
        if not fuse_stats:
            of = out.astype(jnp.float32)             # tiny tensors only (ct2)
            sums = jnp.sum(of, axis=(0, 1, 2))
            sqs = jnp.sum(of * of, axis=(0, 1, 2))
        return out, sums, sqs
    return out


def _bn_relu(y, sums, sqs, eps=1e-5):
    """Training-mode BatchNorm2d (gamma=1, beta=0) + ReLU from precomputed partials."""
    N, H, W, C = y.shape
    n = N * H * W
    mean = sums / n
    var = jnp.maximum(sqs / n - mean * mean, 0.0)    # biased batch variance
    inv = jax.lax.rsqrt(var + eps)
    act = pallas_affine_relu(y.reshape(n, C), inv, -mean * inv)  # bf16 out
    return act.reshape(N, H, W, C)


# ---------------------------------------------------------------------------
# Generator_2
# ---------------------------------------------------------------------------
def make_generator2(input_size, ngf):
    cfg = {
        "ct1":  dict(k=4, s=1, p=0, cin=input_size, cout=ngf * 8),
        "ct2":  dict(k=4, s=2, p=1, cin=ngf * 8, cout=ngf * 4),
        "uc3t": dict(k=4, s=2, p=1, cin=ngf * 4, cout=ngf * 2),
        "uc3c": dict(k=3, s=1, p=1, cin=ngf * 2, cout=ngf * 2),
        "uc4t": dict(k=4, s=2, p=1, cin=ngf * 2, cout=ngf),
        "uc4c": dict(k=3, s=1, p=1, cin=ngf, cout=ngf),
        "uc5t": dict(k=5, s=3, p=1, cin=ngf, cout=ngf),
        "uc5c": dict(k=3, s=1, p=1, cin=ngf, cout=3),
    }

    def prepare(raw):
        """Pack / pad the PyTorch-layout weights once (outside jit)."""
        return {
            "ct1":  _pad_weight(_deconv_weight_matrix(raw["ct1_tw"], 1, 0)),
            "ct2":  _pad_weight(_deconv_weight_matrix(raw["ct2_tw"], 2, 1)),
            "uc3t": _pad_weight(_deconv_weight_matrix(raw["uc3_tw"], 2, 1)),
            "uc3c": _pad_weight(_conv_weight_matrix(raw["uc3_cw"])),
            "uc4t": _pad_weight(_deconv_weight_matrix(raw["uc4_tw"], 2, 1)),
            "uc4c": _pad_weight(_conv_weight_matrix(raw["uc4_cw"])),
            "uc5t": _pad_weight(_deconv_weight_matrix(raw["uc5_tw"], 3, 1)),
            "uc5c": _pad_weight(_conv_weight_matrix(raw["uc5_cw"])),
        }

    def forward(x_nchw, w):
        x = jnp.transpose(x_nchw, (0, 2, 3, 1)).astype(jnp.bfloat16)   # NCHW -> NHWC

        # ct1: ConvTranspose(4,1,0) + BN + ReLU           (1x1 -> 4x4)
        y, sm, sq = conv_transpose2d(x, w["ct1"], cfg["ct1"],
                                     out_dtype=jnp.float32, with_stats=True)
        x = _bn_relu(y, sm, sq)
        # ct2: ConvTranspose(4,2,1) + BN + ReLU           (4 -> 8)
        y, sm, sq = conv_transpose2d(x, w["ct2"], cfg["ct2"],
                                     out_dtype=jnp.float32, with_stats=True)
        x = _bn_relu(y, sm, sq)
        # uc3: ConvTranspose(4,2,1) + Conv3x3 + BN + ReLU (8 -> 16)
        x = conv_transpose2d(x, w["uc3t"], cfg["uc3t"], out_dtype=jnp.bfloat16)
        y, sm, sq = conv2d(x, w["uc3c"], cfg["uc3c"],
                           out_dtype=jnp.float32, with_stats=True)
        x = _bn_relu(y, sm, sq)
        # uc4: ConvTranspose(4,2,1) + Conv3x3 + BN + ReLU (16 -> 32)
        x = conv_transpose2d(x, w["uc4t"], cfg["uc4t"], out_dtype=jnp.bfloat16)
        y, sm, sq = conv2d(x, w["uc4c"], cfg["uc4c"],
                           out_dtype=jnp.float32, with_stats=True)
        x = _bn_relu(y, sm, sq)
        # uc5: ConvTranspose(5,3,1) + Conv3x3 + Tanh      (32 -> 96)
        x = conv_transpose2d(x, w["uc5t"], cfg["uc5t"], out_dtype=jnp.bfloat16)
        x = conv2d(x, w["uc5c"], cfg["uc5c"], act="tanh", out_dtype=jnp.float32)

        return jnp.transpose(x, (0, 3, 1, 2))            # NHWC -> NCHW

    return prepare, forward


def init_params(key, input_size, ngf):
    ks = jax.random.split(key, 7)
    sc = 0.05
    # ConvTranspose2d weights: (Cin, Cout, kh, kw); Conv2d weights: (Cout, Cin, kh, kw)
    return {
        "ct1_tw": sc * jax.random.normal(ks[0], (input_size, ngf * 8, 4, 4), jnp.float32),
        "ct2_tw": sc * jax.random.normal(ks[1], (ngf * 8, ngf * 4, 4, 4), jnp.float32),
        "uc3_tw": sc * jax.random.normal(ks[2], (ngf * 4, ngf * 2, 4, 4), jnp.float32),
        "uc3_cw": sc * jax.random.normal(ks[3], (ngf * 2, ngf * 2, 3, 3), jnp.float32),
        "uc4_tw": sc * jax.random.normal(ks[4], (ngf * 2, ngf, 4, 4), jnp.float32),
        "uc4_cw": sc * jax.random.normal(ks[5], (ngf, ngf, 3, 3), jnp.float32),
        "uc5_tw": sc * jax.random.normal(ks[6], (ngf, ngf, 5, 5), jnp.float32),
        "uc5_cw": sc * jax.random.normal(jax.random.fold_in(key, 99), (3, ngf, 3, 3), jnp.float32),
    }


if __name__ == "__main__":
    key = jax.random.PRNGKey(0)
    input_size, ngf, batch = 4, 8, 2

    raw = init_params(key, input_size, ngf)
    prepare, forward = make_generator2(input_size, ngf)
    weights = prepare(raw)                     # weights packed/padded once, outside jit

    # DCGAN-style latent input: (N, input_size, 1, 1) in NCHW
    x = jax.random.normal(jax.random.fold_in(key, 1), (batch, input_size, 1, 1), jnp.float32)

    fwd = jax.jit(forward)
    y = fwd(x, weights)
    jax.block_until_ready(y)

    assert y.shape == (batch, 3, 96, 96), y.shape
    assert bool(jnp.all(jnp.isfinite(y)))
    assert bool(jnp.max(jnp.abs(y)) <= 1.0 + 1e-6)   # tanh range
    print("KERNEL_OK")
</pallas_src>

<mosaic_0001>
module attributes {stable_mosaic.version = 11 : i64} {
  func.func @_mm_stats_kernel(%arg0: i32, %arg1: memref<32x128xbf16, #tpu.memory_space<vmem>>, %arg2: memref<128x128xbf16, #tpu.memory_space<vmem>>, %arg3: memref<32x128xf32, #tpu.memory_space<vmem>>, %arg4: memref<1x8x128xf32, #tpu.memory_space<vmem>>, %arg5: memref<1x8x128xf32, #tpu.memory_space<vmem>>) attributes {dimension_semantics = [#tpu.dimension_semantics<parallel>], iteration_bounds = array<i64: 1>, scalar_prefetch = 0 : i64, scratch_operands = 0 : i64, tpu.core_type = #tpu.core_type<tc>, window_params = [{transform_indices = @transform_0, window_bounds = array<i64: 32, 128>}, {pipeline_mode = #tpu.pipeline_mode<synchronous>, transform_indices = @transform_1, window_bounds = array<i64: 128, 128>}, {transform_indices = @transform_2, window_bounds = array<i64: 32, 128>}, {transform_indices = @transform_3, window_bounds = array<i64: 1, 8, 128>}, {transform_indices = @transform_4, window_bounds = array<i64: 1, 8, 128>}]} {
    %c0 = arith.constant 0 : index
    %c0_0 = arith.constant 0 : index
    %0 = vector.load %arg1[%c0, %c0_0] : memref<32x128xbf16, #tpu.memory_space<vmem>>, vector<32x128xbf16>
    %c0_1 = arith.constant 0 : index
    %c0_2 = arith.constant 0 : index
    %1 = vector.load %arg2[%c0_1, %c0_2] : memref<128x128xbf16, #tpu.memory_space<vmem>>, vector<128x128xbf16>
    %cst = arith.constant dense<0.000000e+00> : vector<32x128xf32>
    %2 = tpu.matmul %0, %1, %cst {dimension_numbers = #tpu.dot_dimension_numbers<[1], [0], [0], [1], [0, 0, 1, 1], [], []>} : vector<32x128xbf16>, vector<128x128xbf16>, vector<32x128xf32> -> vector<32x128xf32>
    %c0_3 = arith.constant 0 : index
    %c0_4 = arith.constant 0 : index
    %3 = vector.load %arg3[%c0_3, %c0_4] : memref<32x128xf32, #tpu.memory_space<vmem>>, vector<32x128xf32>
    tpu.vector_store %arg3[%c0_3, %c0_4], %2 {strides = array<i32>} : memref<32x128xf32, #tpu.memory_space<vmem>>, vector<32x128xf32>,
    %cst_5 = arith.constant dense<0.000000e+00> : vector<128xf32>
    %4 = vector.multi_reduction <add>, %2, %cst_5 [0] : vector<32x128xf32> to vector<128xf32>
    %5 = vector.shape_cast %4 : vector<128xf32> to vector<1x1x128xf32>
    %6 = vector.shape_cast %5 : vector<1x1x128xf32> to vector<1x1x128xf32>
    %7 = vector.broadcast %6 : vector<1x1x128xf32> to vector<1x8x128xf32>
    %c0_6 = arith.constant 0 : index
    %c0_7 = arith.constant 0 : index
    %c0_8 = arith.constant 0 : index
    %8 = vector.load %arg4[%c0_6, %c0_7, %c0_8] : memref<1x8x128xf32, #tpu.memory_space<vmem>>, vector<1x8x128xf32>
    tpu.vector_store %arg4[%c0_6, %c0_7, %c0_8], %7 {strides = array<i32>} : memref<1x8x128xf32, #tpu.memory_space<vmem>>, vector<1x8x128xf32>,
    %9 = arith.mulf %2, %2 : vector<32x128xf32>
    %cst_9 = arith.constant dense<0.000000e+00> : vector<128xf32>
    %10 = vector.multi_reduction <add>, %9, %cst_9 [0] : vector<32x128xf32> to vector<128xf32>
    %11 = vector.shape_cast %10 : vector<128xf32> to vector<1x1x128xf32>
    %12 = vector.shape_cast %11 : vector<1x1x128xf32> to vector<1x1x128xf32>
    %13 = vector.broadcast %12 : vector<1x1x128xf32> to vector<1x8x128xf32>
    %c0_10 = arith.constant 0 : index
    %c0_11 = arith.constant 0 : index
    %c0_12 = arith.constant 0 : index
    %14 = vector.load %arg5[%c0_10, %c0_11, %c0_12] : memref<1x8x128xf32, #tpu.memory_space<vmem>>, vector<1x8x128xf32>
    tpu.vector_store %arg5[%c0_10, %c0_11, %c0_12], %13 {strides = array<i32>} : memref<1x8x128xf32, #tpu.memory_space<vmem>>, vector<1x8x128xf32>,
    return
  }
  func.func @transform_0(%arg0: i32) -> (i32, i32) {
    %c0_i32 = arith.constant 0 : i32
    %c0_i32_0 = arith.constant 0 : i32
    return %arg0, %c0_i32 : i32, i32
  }
  func.func @transform_1(%arg0: i32) -> (i32, i32) {
    %c0_i32 = arith.constant 0 : i32
    %c0_i32_0 = arith.constant 0 : i32
    %c0_i32_1 = arith.constant 0 : i32
    return %c0_i32, %c0_i32_0 : i32, i32
  }
  func.func @transform_2(%arg0: i32) -> (i32, i32) {
    %c0_i32 = arith.constant 0 : i32
    %c0_i32_0 = arith.constant 0 : i32
    return %arg0, %c0_i32 : i32, i32
  }
  func.func @transform_3(%arg0: i32) -> (i32, i32, i32) {
    %c0_i32 = arith.constant 0 : i32
    %c0_i32_0 = arith.constant 0 : i32
    %c0_i32_1 = arith.constant 0 : i32
    return %arg0, %c0_i32, %c0_i32_0 : i32, i32, i32
  }
  func.func @transform_4(%arg0: i32) -> (i32, i32, i32) {
    %c0_i32 = arith.constant 0 : i32
    %c0_i32_0 = arith.constant 0 : i32
    %c0_i32_1 = arith.constant 0 : i32
    return %arg0, %c0_i32, %c0_i32_0 : i32, i32, i32
  }
}

module attributes {stable_mosaic.version = 11 : i64} {
  func.func @_affine_relu_kernel(%arg0: i32, %arg1: memref<32x128xf32, #tpu.memory_space<vmem>>, %arg2: memref<1x128xf32, #tpu.memory_space<vmem>>, %arg3: memref<1x128xf32, #tpu.memory_space<vmem>>, %arg4: memref<32x128xbf16, #tpu.memory_space<vmem>>) attributes {dimension_semantics = [#tpu.dimension_semantics<parallel>], iteration_bounds = array<i64: 1>, scalar_prefetch = 0 : i64, scratch_operands = 0 : i64, tpu.core_type = #tpu.core_type<tc>, window_params = [{transform_indices = @transform_0, window_bounds = array<i64: 32, 128>}, {pipeline_mode = #tpu.pipeline_mode<synchronous>, transform_indices = @transform_1, window_bounds = array<i64: 1, 128>}, {pipeline_mode = #tpu.pipeline_mode<synchronous>, transform_indices = @transform_2, window_bounds = array<i64: 1, 128>}, {transform_indices = @transform_3, window_bounds = array<i64: 32, 128>}]} {
    %c0 = arith.constant 0 : index
    %c0_0 = arith.constant 0 : index
    %0 = vector.load %arg1[%c0, %c0_0] : memref<32x128xf32, #tpu.memory_space<vmem>>, vector<32x128xf32>
    %c0_1 = arith.constant 0 : index
    %c0_2 = arith.constant 0 : index
    %1 = vector.load %arg2[%c0_1, %c0_2] : memref<1x128xf32, #tpu.memory_space<vmem>>, vector<1x128xf32>
    %2 = vector.broadcast %1 : vector<1x128xf32> to vector<32x128xf32>
    %3 = arith.mulf %0, %2 : vector<32x128xf32>
    %c0_3 = arith.constant 0 : index
    %c0_4 = arith.constant 0 : index
    %4 = vector.load %arg3[%c0_3, %c0_4] : memref<1x128xf32, #tpu.memory_space<vmem>>, vector<1x128xf32>
    %5 = vector.broadcast %4 : vector<1x128xf32> to vector<32x128xf32>
    %6 = arith.addf %3, %5 : vector<32x128xf32>
    %cst = arith.constant 0.000000e+00 : f32
    %7 = vector.broadcast %cst : f32 to vector<32x128xf32>
    %8 = arith.maximumf %6, %7 : vector<32x128xf32>
    %9 = arith.truncf %8 : vector<32x128xf32> to vector<32x128xbf16>
    %c0_5 = arith.constant 0 : index
    %c0_6 = arith.constant 0 : index
    %10 = vector.load %arg4[%c0_5, %c0_6] : memref<32x128xbf16, #tpu.memory_space<vmem>>, vector<32x128xbf16>
    tpu.vector_store %arg4[%c0_5, %c0_6], %9 {strides = array<i32>} : memref<32x128xbf16, #tpu.memory_space<vmem>>, vector<32x128xbf16>,
    return
  }
  func.func @transform_0(%arg0: i32) -> (i32, i32) {
    %c0_i32 = arith.constant 0 : i32
    %c0_i32_0 = arith.constant 0 : i32
    return %arg0, %c0_i32 : i32, i32
  }
  func.func @transform_1(%arg0: i32) -> (i32, i32) {
    %c0_i32 = arith.constant 0 : i32
    %c0_i32_0 = arith.constant 0 : i32
    %c0_i32_1 = arith.constant 0 : i32
    return %c0_i32, %c0_i32_0 : i32, i32
  }
  func.func @transform_2(%arg0: i32) -> (i32, i32) {
    %c0_i32 = arith.constant 0 : i32
    %c0_i32_0 = arith.constant 0 : i32
    %c0_i32_1 = arith.constant 0 : i32
    return %c0_i32, %c0_i32_0 : i32, i32
  }
  func.func @transform_3(%arg0: i32) -> (i32, i32) {
    %c0_i32 = arith.constant 0 : i32
    %c0_i32_0 = arith.constant 0 : i32
    return %arg0, %c0_i32 : i32, i32
  }
}

module attributes {stable_mosaic.version = 11 : i64} {
  func.func @_mm_kernel(%arg0: i32, %arg1: memref<56x256xbf16, #tpu.memory_space<vmem>>, %arg2: memref<256x128xbf16, #tpu.memory_space<vmem>>, %arg3: memref<56x128xf32, #tpu.memory_space<vmem>>) attributes {dimension_semantics = [#tpu.dimension_semantics<parallel>], iteration_bounds = array<i64: 1>, scalar_prefetch = 0 : i64, scratch_operands = 0 : i64, tpu.core_type = #tpu.core_type<tc>, window_params = [{transform_indices = @transform_0, window_bounds = array<i64: 56, 256>}, {pipeline_mode = #tpu.pipeline_mode<synchronous>, transform_indices = @transform_1, window_bounds = array<i64: 256, 128>}, {transform_indices = @transform_2, window_bounds = array<i64: 56, 128>}]} {
    %c0 = arith.constant 0 : index
    %c0_0 = arith.constant 0 : index
    %0 = vector.load %arg1[%c0, %c0_0] : memref<56x256xbf16, #tpu.memory_space<vmem>>, vector<56x256xbf16>
    %c0_1 = arith.constant 0 : index
    %c0_2 = arith.constant 0 : index
    %1 = vector.load %arg2[%c0_1, %c0_2] : memref<256x128xbf16, #tpu.memory_space<vmem>>, vector<256x128xbf16>
    %cst = arith.constant dense<0.000000e+00> : vector<56x128xf32>
    %2 = tpu.matmul %0, %1, %cst {dimension_numbers = #tpu.dot_dimension_numbers<[1], [0], [0], [1], [0, 0, 1, 1], [], []>} : vector<56x256xbf16>, vector<256x128xbf16>, vector<56x128xf32> -> vector<56x128xf32>
    %c0_3 = arith.constant 0 : index
    %c0_4 = arith.constant 0 : index
    %3 = vector.load %arg3[%c0_3, %c0_4] : memref<56x128xf32, #tpu.memory_space<vmem>>, vector<56x128xf32>
    tpu.vector_store %arg3[%c0_3, %c0_4], %2 {strides = array<i32>} : memref<56x128xf32, #tpu.memory_space<vmem>>, vector<56x128xf32>,
    return
  }
  func.func @transform_0(%arg0: i32) -> (i32, i32) {
    %c0_i32 = arith.constant 0 : i32
    %c0_i32_0 = arith.constant 0 : i32
    return %arg0, %c0_i32 : i32, i32
  }
  func.func @transform_1(%arg0: i32) -> (i32, i32) {
    %c0_i32 = arith.constant 0 : i32
    %c0_i32_0 = arith.constant 0 : i32
    %c0_i32_1 = arith.constant 0 : i32
    return %c0_i32, %c0_i32_0 : i32, i32
  }
  func.func @transform_2(%arg0: i32) -> (i32, i32) {
    %c0_i32 = arith.constant 0 : i32
    %c0_i32_0 = arith.constant 0 : i32
    return %arg0, %c0_i32 : i32, i32
  }
}

module attributes {stable_mosaic.version = 11 : i64} {
  func.func @_affine_relu_kernel(%arg0: i32, %arg1: memref<128x128xf32, #tpu.memory_space<vmem>>, %arg2: memref<1x128xf32, #tpu.memory_space<vmem>>, %arg3: memref<1x128xf32, #tpu.memory_space<vmem>>, %arg4: memref<128x128xbf16, #tpu.memory_space<vmem>>) attributes {dimension_semantics = [#tpu.dimension_semantics<parallel>], iteration_bounds = array<i64: 1>, scalar_prefetch = 0 : i64, scratch_operands = 0 : i64, tpu.core_type = #tpu.core_type<tc>, window_params = [{transform_indices = @transform_0, window_bounds = array<i64: 128, 128>}, {pipeline_mode = #tpu.pipeline_mode<synchronous>, transform_indices = @transform_1, window_bounds = array<i64: 1, 128>}, {pipeline_mode = #tpu.pipeline_mode<synchronous>, transform_indices = @transform_2, window_bounds = array<i64: 1, 128>}, {transform_indices = @transform_3, window_bounds = array<i64: 128, 128>}]} {
    %c0 = arith.constant 0 : index
    %c0_0 = arith.constant 0 : index
    %0 = vector.load %arg1[%c0, %c0_0] : memref<128x128xf32, #tpu.memory_space<vmem>>, vector<128x128xf32>
    %c0_1 = arith.constant 0 : index
    %c0_2 = arith.constant 0 : index
    %1 = vector.load %arg2[%c0_1, %c0_2] : memref<1x128xf32, #tpu.memory_space<vmem>>, vector<1x128xf32>
    %2 = vector.broadcast %1 : vector<1x128xf32> to vector<128x128xf32>
    %3 = arith.mulf %0, %2 : vector<128x128xf32>
    %c0_3 = arith.constant 0 : index
    %c0_4 = arith.constant 0 : index
    %4 = vector.load %arg3[%c0_3, %c0_4] : memref<1x128xf32, #tpu.memory_space<vmem>>, vector<1x128xf32>
    %5 = vector.broadcast %4 : vector<1x128xf32> to vector<128x128xf32>
    %6 = arith.addf %3, %5 : vector<128x128xf32>
    %cst = arith.constant 0.000000e+00 : f32
    %7 = vector.broadcast %cst : f32 to vector<128x128xf32>
    %8 = arith.maximumf %6, %7 : vector<128x128xf32>
    %9 = arith.truncf %8 : vector<128x128xf32> to vector<128x128xbf16>
    %c0_5 = arith.constant 0 : index
    %c0_6 = arith.constant 0 : index
    %10 = vector.load %arg4[%c0_5, %c0_6] : memref<128x128xbf16, #tpu.memory_space<vmem>>, vector<128x128xbf16>
    tpu.vector_store %arg4[%c0_5, %c0_6], %9 {strides = array<i32>} : memref<128x128xbf16, #tpu.memory_space<vmem>>, vector<128x128xbf16>,
    return
  }
  func.func @transform_0(%arg0: i32) -> (i32, i32) {
    %c0_i32 = arith.constant 0 : i32
    %c0_i32_0 = arith.constant 0 : i32
    return %arg0, %c0_i32 : i32, i32
  }
  func.func @transform_1(%arg0: i32) -> (i32, i32) {
    %c0_i32 = arith.constant 0 : i32
    %c0_i32_0 = arith.constant 0 : i32
    %c0_i32_1 = arith.constant 0 : i32
    return %c0_i32, %c0_i32_0 : i32, i32
  }
  func.func @transform_2(%arg0: i32) -> (i32, i32) {
    %c0_i32 = arith.constant 0 : i32
    %c0_i32_0 = arith.constant 0 : i32
    %c0_i32_1 = arith.constant 0 : i32
    return %c0_i32, %c0_i32_0 : i32, i32
  }
  func.func @transform_3(%arg0: i32) -> (i32, i32) {
    %c0_i32 = arith.constant 0 : i32
    %c0_i32_0 = arith.constant 0 : i32
    return %arg0, %c0_i32 : i32, i32
  }
}

module attributes {stable_mosaic.version = 11 : i64} {
  func.func @_mm_kernel(%arg0: i32, %arg1: memref<168x128xbf16, #tpu.memory_space<vmem>>, %arg2: memref<128x128xbf16, #tpu.memory_space<vmem>>, %arg3: memref<168x128xbf16, #tpu.memory_space<vmem>>) attributes {dimension_semantics = [#tpu.dimension_semantics<parallel>], iteration_bounds = array<i64: 1>, scalar_prefetch = 0 : i64, scratch_operands = 0 : i64, tpu.core_type = #tpu.core_type<tc>, window_params = [{transform_indices = @transform_0, window_bounds = array<i64: 168, 128>}, {pipeline_mode = #tpu.pipeline_mode<synchronous>, transform_indices = @transform_1, window_bounds = array<i64: 128, 128>}, {transform_indices = @transform_2, window_bounds = array<i64: 168, 128>}]} {
    %c0 = arith.constant 0 : index
    %c0_0 = arith.constant 0 : index
    %0 = vector.load %arg1[%c0, %c0_0] : memref<168x128xbf16, #tpu.memory_space<vmem>>, vector<168x128xbf16>
    %c0_1 = arith.constant 0 : index
    %c0_2 = arith.constant 0 : index
    %1 = vector.load %arg2[%c0_1, %c0_2] : memref<128x128xbf16, #tpu.memory_space<vmem>>, vector<128x128xbf16>
    %cst = arith.constant dense<0.000000e+00> : vector<168x128xf32>
    %2 = tpu.matmul %0, %1, %cst {dimension_numbers = #tpu.dot_dimension_numbers<[1], [0], [0], [1], [0, 0, 1, 1], [], []>} : vector<168x128xbf16>, vector<128x128xbf16>, vector<168x128xf32> -> vector<168x128xf32>
    %3 = arith.truncf %2 : vector<168x128xf32> to vector<168x128xbf16>
    %c0_3 = arith.constant 0 : index
    %c0_4 = arith.constant 0 : index
    %4 = vector.load %arg3[%c0_3, %c0_4] : memref<168x128xbf16, #tpu.memory_space<vmem>>, vector<168x128xbf16>
    tpu.vector_store %arg3[%c0_3, %c0_4], %3 {strides = array<i32>} : memref<168x128xbf16, #tpu.memory_space<vmem>>, vector<168x128xbf16>,
    return
  }
  func.func @transform_0(%arg0: i32) -> (i32, i32) {
    %c0_i32 = arith.constant 0 : i32
    %c0_i32_0 = arith.constant 0 : i32
    return %arg0, %c0_i32 : i32, i32
  }
  func.func @transform_1(%arg0: i32) -> (i32, i32) {
    %c0_i32 = arith.constant 0 : i32
    %c0_i32_0 = arith.constant 0 : i32
    %c0_i32_1 = arith.constant 0 : i32
    return %c0_i32, %c0_i32_0 : i32, i32
  }
  func.func @transform_2(%arg0: i32) -> (i32, i32) {
    %c0_i32 = arith.constant 0 : i32
    %c0_i32_0 = arith.constant 0 : i32
    return %arg0, %c0_i32 : i32, i32
  }
}

module attributes {stable_mosaic.version = 11 : i64} {
  func.func @_mm_stats_kernel(%arg0: i32, %arg1: memref<512x256xbf16, #tpu.memory_space<vmem>>, %arg2: memref<256x128xbf16, #tpu.memory_space<vmem>>, %arg3: memref<512x128xf32, #tpu.memory_space<vmem>>, %arg4: memref<1x8x128xf32, #tpu.memory_space<vmem>>, %arg5: memref<1x8x128xf32, #tpu.memory_space<vmem>>) attributes {dimension_semantics = [#tpu.dimension_semantics<parallel>], iteration_bounds = array<i64: 1>, scalar_prefetch = 0 : i64, scratch_operands = 0 : i64, tpu.core_type = #tpu.core_type<tc>, window_params = [{transform_indices = @transform_0, window_bounds = array<i64: 512, 256>}, {pipeline_mode = #tpu.pipeline_mode<synchronous>, transform_indices = @transform_1, window_bounds = array<i64: 256, 128>}, {transform_indices = @transform_2, window_bounds = array<i64: 512, 128>}, {transform_indices = @transform_3, window_bounds = array<i64: 1, 8, 128>}, {transform_indices = @transform_4, window_bounds = array<i64: 1, 8, 128>}]} {
    %c0 = arith.constant 0 : index
    %c0_0 = arith.constant 0 : index
    %0 = vector.load %arg1[%c0, %c0_0] : memref<512x256xbf16, #tpu.memory_space<vmem>>, vector<512x256xbf16>
    %c0_1 = arith.constant 0 : index
    %c0_2 = arith.constant 0 : index
    %1 = vector.load %arg2[%c0_1, %c0_2] : memref<256x128xbf16, #tpu.memory_space<vmem>>, vector<256x128xbf16>
    %cst = arith.constant dense<0.000000e+00> : vector<512x128xf32>
    %2 = tpu.matmul %0, %1, %cst {dimension_numbers = #tpu.dot_dimension_numbers<[1], [0], [0], [1], [0, 0, 1, 1], [], []>} : vector<512x256xbf16>, vector<256x128xbf16>, vector<512x128xf32> -> vector<512x128xf32>
    %c0_3 = arith.constant 0 : index
    %c0_4 = arith.constant 0 : index
    %3 = vector.load %arg3[%c0_3, %c0_4] : memref<512x128xf32, #tpu.memory_space<vmem>>, vector<512x128xf32>
    tpu.vector_store %arg3[%c0_3, %c0_4], %2 {strides = array<i32>} : memref<512x128xf32, #tpu.memory_space<vmem>>, vector<512x128xf32>,
    %cst_5 = arith.constant dense<0.000000e+00> : vector<128xf32>
    %4 = vector.multi_reduction <add>, %2, %cst_5 [0] : vector<512x128xf32> to vector<128xf32>
    %5 = vector.shape_cast %4 : vector<128xf32> to vector<1x1x128xf32>
    %6 = vector.shape_cast %5 : vector<1x1x128xf32> to vector<1x1x128xf32>
    %7 = vector.broadcast %6 : vector<1x1x128xf32> to vector<1x8x128xf32>
    %c0_6 = arith.constant 0 : index
    %c0_7 = arith.constant 0 : index
    %c0_8 = arith.constant 0 : index
    %8 = vector.load %arg4[%c0_6, %c0_7, %c0_8] : memref<1x8x128xf32, #tpu.memory_space<vmem>>, vector<1x8x128xf32>
    tpu.vector_store %arg4[%c0_6, %c0_7, %c0_8], %7 {strides = array<i32>} : memref<1x8x128xf32, #tpu.memory_space<vmem>>, vector<1x8x128xf32>,
    %9 = arith.mulf %2, %2 : vector<512x128xf32>
    %cst_9 = arith.constant dense<0.000000e+00> : vector<128xf32>
    %10 = vector.multi_reduction <add>, %9, %cst_9 [0] : vector<512x128xf32> to vector<128xf32>
    %11 = vector.shape_cast %10 : vector<128xf32> to vector<1x1x128xf32>
    %12 = vector.shape_cast %11 : vector<1x1x128xf32> to vector<1x1x128xf32>
    %13 = vector.broadcast %12 : vector<1x1x128xf32> to vector<1x8x128xf32>
    %c0_10 = arith.constant 0 : index
    %c0_11 = arith.constant 0 : index
    %c0_12 = arith.constant 0 : index
    %14 = vector.load %arg5[%c0_10, %c0_11, %c0_12] : memref<1x8x128xf32, #tpu.memory_space<vmem>>, vector<1x8x128xf32>
    tpu.vector_store %arg5[%c0_10, %c0_11, %c0_12], %13 {strides = array<i32>} : memref<1x8x128xf32, #tpu.memory_space<vmem>>, vector<1x8x128xf32>,
    return
  }
  func.func @transform_0(%arg0: i32) -> (i32, i32) {
    %c0_i32 = arith.constant 0 : i32
    %c0_i32_0 = arith.constant 0 : i32
    return %arg0, %c0_i32 : i32, i32
  }
  func.func @transform_1(%arg0: i32) -> (i32, i32) {
    %c0_i32 = arith.constant 0 : i32
    %c0_i32_0 = arith.constant 0 : i32
    %c0_i32_1 = arith.constant 0 : i32
    return %c0_i32, %c0_i32_0 : i32, i32
  }
  func.func @transform_2(%arg0: i32) -> (i32, i32) {
    %c0_i32 = arith.constant 0 : i32
    %c0_i32_0 = arith.constant 0 : i32
    return %arg0, %c0_i32 : i32, i32
  }
  func.func @transform_3(%arg0: i32) -> (i32, i32, i32) {
    %c0_i32 = arith.constant 0 : i32
    %c0_i32_0 = arith.constant 0 : i32
    %c0_i32_1 = arith.constant 0 : i32
    return %arg0, %c0_i32, %c0_i32_0 : i32, i32, i32
  }
  func.func @transform_4(%arg0: i32) -> (i32, i32, i32) {
    %c0_i32 = arith.constant 0 : i32
    %c0_i32_0 = arith.constant 0 : i32
    %c0_i32_1 = arith.constant 0 : i32
    return %arg0, %c0_i32, %c0_i32_0 : i32, i32, i32
  }
}

module attributes {stable_mosaic.version = 11 : i64} {
  func.func @_affine_relu_kernel(%arg0: i32, %arg1: memref<512x128xf32, #tpu.memory_space<vmem>>, %arg2: memref<1x128xf32, #tpu.memory_space<vmem>>, %arg3: memref<1x128xf32, #tpu.memory_space<vmem>>, %arg4: memref<512x128xbf16, #tpu.memory_space<vmem>>) attributes {dimension_semantics = [#tpu.dimension_semantics<parallel>], iteration_bounds = array<i64: 1>, scalar_prefetch = 0 : i64, scratch_operands = 0 : i64, tpu.core_type = #tpu.core_type<tc>, window_params = [{transform_indices = @transform_0, window_bounds = array<i64: 512, 128>}, {pipeline_mode = #tpu.pipeline_mode<synchronous>, transform_indices = @transform_1, window_bounds = array<i64: 1, 128>}, {pipeline_mode = #tpu.pipeline_mode<synchronous>, transform_indices = @transform_2, window_bounds = array<i64: 1, 128>}, {transform_indices = @transform_3, window_bounds = array<i64: 512, 128>}]} {
    %c0 = arith.constant 0 : index
    %c0_0 = arith.constant 0 : index
    %0 = vector.load %arg1[%c0, %c0_0] : memref<512x128xf32, #tpu.memory_space<vmem>>, vector<512x128xf32>
    %c0_1 = arith.constant 0 : index
    %c0_2 = arith.constant 0 : index
    %1 = vector.load %arg2[%c0_1, %c0_2] : memref<1x128xf32, #tpu.memory_space<vmem>>, vector<1x128xf32>
    %2 = vector.broadcast %1 : vector<1x128xf32> to vector<512x128xf32>
    %3 = arith.mulf %0, %2 : vector<512x128xf32>
    %c0_3 = arith.constant 0 : index
    %c0_4 = arith.constant 0 : index
    %4 = vector.load %arg3[%c0_3, %c0_4] : memref<1x128xf32, #tpu.memory_space<vmem>>, vector<1x128xf32>
    %5 = vector.broadcast %4 : vector<1x128xf32> to vector<512x128xf32>
    %6 = arith.addf %3, %5 : vector<512x128xf32>
    %cst = arith.constant 0.000000e+00 : f32
    %7 = vector.broadcast %cst : f32 to vector<512x128xf32>
    %8 = arith.maximumf %6, %7 : vector<512x128xf32>
    %9 = arith.truncf %8 : vector<512x128xf32> to vector<512x128xbf16>
    %c0_5 = arith.constant 0 : index
    %c0_6 = arith.constant 0 : index
    %10 = vector.load %arg4[%c0_5, %c0_6] : memref<512x128xbf16, #tpu.memory_space<vmem>>, vector<512x128xbf16>
    tpu.vector_store %arg4[%c0_5, %c0_6], %9 {strides = array<i32>} : memref<512x128xbf16, #tpu.memory_space<vmem>>, vector<512x128xbf16>,
    return
  }
  func.func @transform_0(%arg0: i32) -> (i32, i32) {
    %c0_i32 = arith.constant 0 : i32
    %c0_i32_0 = arith.constant 0 : i32
    return %arg0, %c0_i32 : i32, i32
  }
  func.func @transform_1(%arg0: i32) -> (i32, i32) {
    %c0_i32 = arith.constant 0 : i32
    %c0_i32_0 = arith.constant 0 : i32
    %c0_i32_1 = arith.constant 0 : i32
    return %c0_i32, %c0_i32_0 : i32, i32
  }
  func.func @transform_2(%arg0: i32) -> (i32, i32) {
    %c0_i32 = arith.constant 0 : i32
    %c0_i32_0 = arith.constant 0 : i32
    %c0_i32_1 = arith.constant 0 : i32
    return %c0_i32, %c0_i32_0 : i32, i32
  }
  func.func @transform_3(%arg0: i32) -> (i32, i32) {
    %c0_i32 = arith.constant 0 : i32
    %c0_i32_0 = arith.constant 0 : i32
    return %arg0, %c0_i32 : i32, i32
  }
}

module attributes {stable_mosaic.version = 11 : i64} {
  func.func @_mm_kernel(%arg0: i32, %arg1: memref<512x128xbf16, #tpu.memory_space<vmem>>, %arg2: memref<128x128xbf16, #tpu.memory_space<vmem>>, %arg3: memref<512x128xbf16, #tpu.memory_space<vmem>>) attributes {dimension_semantics = [#tpu.dimension_semantics<parallel>], iteration_bounds = array<i64: 2>, scalar_prefetch = 0 : i64, scratch_operands = 0 : i64, tpu.core_type = #tpu.core_type<tc>, window_params = [{transform_indices = @transform_0, window_bounds = array<i64: 512, 128>}, {pipeline_mode = #tpu.pipeline_mode<synchronous>, transform_indices = @transform_1, window_bounds = array<i64: 128, 128>}, {transform_indices = @transform_2, window_bounds = array<i64: 512, 128>}]} {
    %c0 = arith.constant 0 : index
    %c0_0 = arith.constant 0 : index
    %0 = vector.load %arg1[%c0, %c0_0] : memref<512x128xbf16, #tpu.memory_space<vmem>>, vector<512x128xbf16>
    %c0_1 = arith.constant 0 : index
    %c0_2 = arith.constant 0 : index
    %1 = vector.load %arg2[%c0_1, %c0_2] : memref<128x128xbf16, #tpu.memory_space<vmem>>, vector<128x128xbf16>
    %cst = arith.constant dense<0.000000e+00> : vector<512x128xf32>
    %2 = tpu.matmul %0, %1, %cst {dimension_numbers = #tpu.dot_dimension_numbers<[1], [0], [0], [1], [0, 0, 1, 1], [], []>} : vector<512x128xbf16>, vector<128x128xbf16>, vector<512x128xf32> -> vector<512x128xf32>
    %3 = arith.truncf %2 : vector<512x128xf32> to vector<512x128xbf16>
    %c0_3 = arith.constant 0 : index
    %c0_4 = arith.constant 0 : index
    %4 = vector.load %arg3[%c0_3, %c0_4] : memref<512x128xbf16, #tpu.memory_space<vmem>>, vector<512x128xbf16>
    tpu.vector_store %arg3[%c0_3, %c0_4], %3 {strides = array<i32>} : memref<512x128xbf16, #tpu.memory_space<vmem>>, vector<512x128xbf16>,
    return
  }
  func.func @transform_0(%arg0: i32) -> (i32, i32) {
    %c0_i32 = arith.constant 0 : i32
    %c0_i32_0 = arith.constant 0 : i32
    return %arg0, %c0_i32 : i32, i32
  }
  func.func @transform_1(%arg0: i32) -> (i32, i32) {
    %c0_i32 = arith.constant 0 : i32
    %c0_i32_0 = arith.constant 0 : i32
    %c0_i32_1 = arith.constant 0 : i32
    return %c0_i32, %c0_i32_0 : i32, i32
  }
  func.func @transform_2(%arg0: i32) -> (i32, i32) {
    %c0_i32 = arith.constant 0 : i32
    %c0_i32_0 = arith.constant 0 : i32
    return %arg0, %c0_i32 : i32, i32
  }
}

module attributes {stable_mosaic.version = 11 : i64} {
  func.func @_mm_stats_kernel(%arg0: i32, %arg1: memref<512x128xbf16, #tpu.memory_space<vmem>>, %arg2: memref<128x128xbf16, #tpu.memory_space<vmem>>, %arg3: memref<512x128xf32, #tpu.memory_space<vmem>>, %arg4: memref<1x8x128xf32, #tpu.memory_space<vmem>>, %arg5: memref<1x8x128xf32, #tpu.memory_space<vmem>>) attributes {dimension_semantics = [#tpu.dimension_semantics<parallel>], iteration_bounds = array<i64: 4>, scalar_prefetch = 0 : i64, scratch_operands = 0 : i64, tpu.core_type = #tpu.core_type<tc>, window_params = [{transform_indices = @transform_0, window_bounds = array<i64: 512, 128>}, {pipeline_mode = #tpu.pipeline_mode<synchronous>, transform_indices = @transform_1, window_bounds = array<i64: 128, 128>}, {transform_indices = @transform_2, window_bounds = array<i64: 512, 128>}, {transform_indices = @transform_3, window_bounds = array<i64: 1, 8, 128>}, {transform_indices = @transform_4, window_bounds = array<i64: 1, 8, 128>}]} {
    %c0 = arith.constant 0 : index
    %c0_0 = arith.constant 0 : index
    %0 = vector.load %arg1[%c0, %c0_0] : memref<512x128xbf16, #tpu.memory_space<vmem>>, vector<512x128xbf16>
    %c0_1 = arith.constant 0 : index
    %c0_2 = arith.constant 0 : index
    %1 = vector.load %arg2[%c0_1, %c0_2] : memref<128x128xbf16, #tpu.memory_space<vmem>>, vector<128x128xbf16>
    %cst = arith.constant dense<0.000000e+00> : vector<512x128xf32>
    %2 = tpu.matmul %0, %1, %cst {dimension_numbers = #tpu.dot_dimension_numbers<[1], [0], [0], [1], [0, 0, 1, 1], [], []>} : vector<512x128xbf16>, vector<128x128xbf16>, vector<512x128xf32> -> vector<512x128xf32>
    %c0_3 = arith.constant 0 : index
    %c0_4 = arith.constant 0 : index
    %3 = vector.load %arg3[%c0_3, %c0_4] : memref<512x128xf32, #tpu.memory_space<vmem>>, vector<512x128xf32>
    tpu.vector_store %arg3[%c0_3, %c0_4], %2 {strides = array<i32>} : memref<512x128xf32, #tpu.memory_space<vmem>>, vector<512x128xf32>,
    %cst_5 = arith.constant dense<0.000000e+00> : vector<128xf32>
    %4 = vector.multi_reduction <add>, %2, %cst_5 [0] : vector<512x128xf32> to vector<128xf32>
    %5 = vector.shape_cast %4 : vector<128xf32> to vector<1x1x128xf32>
    %6 = vector.shape_cast %5 : vector<1x1x128xf32> to vector<1x1x128xf32>
    %7 = vector.broadcast %6 : vector<1x1x128xf32> to vector<1x8x128xf32>
    %c0_6 = arith.constant 0 : index
    %c0_7 = arith.constant 0 : index
    %c0_8 = arith.constant 0 : index
    %8 = vector.load %arg4[%c0_6, %c0_7, %c0_8] : memref<1x8x128xf32, #tpu.memory_space<vmem>>, vector<1x8x128xf32>
    tpu.vector_store %arg4[%c0_6, %c0_7, %c0_8], %7 {strides = array<i32>} : memref<1x8x128xf32, #tpu.memory_space<vmem>>, vector<1x8x128xf32>,
    %9 = arith.mulf %2, %2 : vector<512x128xf32>
    %cst_9 = arith.constant dense<0.000000e+00> : vector<128xf32>
    %10 = vector.multi_reduction <add>, %9, %cst_9 [0] : vector<512x128xf32> to vector<128xf32>
    %11 = vector.shape_cast %10 : vector<128xf32> to vector<1x1x128xf32>
    %12 = vector.shape_cast %11 : vector<1x1x128xf32> to vector<1x1x128xf32>
    %13 = vector.broadcast %12 : vector<1x1x128xf32> to vector<1x8x128xf32>
    %c0_10 = arith.constant 0 : index
    %c0_11 = arith.constant 0 : index
    %c0_12 = arith.constant 0 : index
    %14 = vector.load %arg5[%c0_10, %c0_11, %c0_12] : memref<1x8x128xf32, #tpu.memory_space<vmem>>, vector<1x8x128xf32>
    tpu.vector_store %arg5[%c0_10, %c0_11, %c0_12], %13 {strides = array<i32>} : memref<1x8x128xf32, #tpu.memory_space<vmem>>, vector<1x8x128xf32>,
    return
  }
  func.func @transform_0(%arg0: i32) -> (i32, i32) {
    %c0_i32 = arith.constant 0 : i32
    %c0_i32_0 = arith.constant 0 : i32
    return %arg0, %c0_i32 : i32, i32
  }
  func.func @transform_1(%arg0: i32) -> (i32, i32) {
    %c0_i32 = arith.constant 0 : i32
    %c0_i32_0 = arith.constant 0 : i32
    %c0_i32_1 = arith.constant 0 : i32
    return %c0_i32, %c0_i32_0 : i32, i32
  }
  func.func @transform_2(%arg0: i32) -> (i32, i32) {
    %c0_i32 = arith.constant 0 : i32
    %c0_i32_0 = arith.constant 0 : i32
    return %arg0, %c0_i32 : i32, i32
  }
  func.func @transform_3(%arg0: i32) -> (i32, i32, i32) {
    %c0_i32 = arith.constant 0 : i32
    %c0_i32_0 = arith.constant 0 : i32
    %c0_i32_1 = arith.constant 0 : i32
    return %arg0, %c0_i32, %c0_i32_0 : i32, i32, i32
  }
  func.func @transform_4(%arg0: i32) -> (i32, i32, i32) {
    %c0_i32 = arith.constant 0 : i32
    %c0_i32_0 = arith.constant 0 : i32
    %c0_i32_1 = arith.constant 0 : i32
    return %arg0, %c0_i32, %c0_i32_0 : i32, i32, i32
  }
}

module attributes {stable_mosaic.version = 11 : i64} {
  func.func @_affine_relu_kernel(%arg0: i32, %arg1: memref<1024x128xf32, #tpu.memory_space<vmem>>, %arg2: memref<1x128xf32, #tpu.memory_space<vmem>>, %arg3: memref<1x128xf32, #tpu.memory_space<vmem>>, %arg4: memref<1024x128xbf16, #tpu.memory_space<vmem>>) attributes {dimension_semantics = [#tpu.dimension_semantics<parallel>], iteration_bounds = array<i64: 2>, scalar_prefetch = 0 : i64, scratch_operands = 0 : i64, tpu.core_type = #tpu.core_type<tc>, window_params = [{transform_indices = @transform_0, window_bounds = array<i64: 1024, 128>}, {pipeline_mode = #tpu.pipeline_mode<synchronous>, transform_indices = @transform_1, window_bounds = array<i64: 1, 128>}, {pipeline_mode = #tpu.pipeline_mode<synchronous>, transform_indices = @transform_2, window_bounds = array<i64: 1, 128>}, {transform_indices = @transform_3, window_bounds = array<i64: 1024, 128>}]} {
    %c0 = arith.constant 0 : index
    %c0_0 = arith.constant 0 : index
    %0 = vector.load %arg1[%c0, %c0_0] : memref<1024x128xf32, #tpu.memory_space<vmem>>, vector<1024x128xf32>
    %c0_1 = arith.constant 0 : index
    %c0_2 = arith.constant 0 : index
    %1 = vector.load %arg2[%c0_1, %c0_2] : memref<1x128xf32, #tpu.memory_space<vmem>>, vector<1x128xf32>
    %2 = vector.broadcast %1 : vector<1x128xf32> to vector<1024x128xf32>
    %3 = arith.mulf %0, %2 : vector<1024x128xf32>
    %c0_3 = arith.constant 0 : index
    %c0_4 = arith.constant 0 : index
    %4 = vector.load %arg3[%c0_3, %c0_4] : memref<1x128xf32, #tpu.memory_space<vmem>>, vector<1x128xf32>
    %5 = vector.broadcast %4 : vector<1x128xf32> to vector<1024x128xf32>
    %6 = arith.addf %3, %5 : vector<1024x128xf32>
    %cst = arith.constant 0.000000e+00 : f32
    %7 = vector.broadcast %cst : f32 to vector<1024x128xf32>
    %8 = arith.maximumf %6, %7 : vector<1024x128xf32>
    %9 = arith.truncf %8 : vector<1024x128xf32> to vector<1024x128xbf16>
    %c0_5 = arith.constant 0 : index
    %c0_6 = arith.constant 0 : index
    %10 = vector.load %arg4[%c0_5, %c0_6] : memref<1024x128xbf16, #tpu.memory_space<vmem>>, vector<1024x128xbf16>
    tpu.vector_store %arg4[%c0_5, %c0_6], %9 {strides = array<i32>} : memref<1024x128xbf16, #tpu.memory_space<vmem>>, vector<1024x128xbf16>,
    return
  }
  func.func @transform_0(%arg0: i32) -> (i32, i32) {
    %c0_i32 = arith.constant 0 : i32
    %c0_i32_0 = arith.constant 0 : i32
    return %arg0, %c0_i32 : i32, i32
  }
  func.func @transform_1(%arg0: i32) -> (i32, i32) {
    %c0_i32 = arith.constant 0 : i32
    %c0_i32_0 = arith.constant 0 : i32
    %c0_i32_1 = arith.constant 0 : i32
    return %c0_i32, %c0_i32_0 : i32, i32
  }
  func.func @transform_2(%arg0: i32) -> (i32, i32) {
    %c0_i32 = arith.constant 0 : i32
    %c0_i32_0 = arith.constant 0 : i32
    %c0_i32_1 = arith.constant 0 : i32
    return %c0_i32, %c0_i32_0 : i32, i32
  }
  func.func @transform_3(%arg0: i32) -> (i32, i32) {
    %c0_i32 = arith.constant 0 : i32
    %c0_i32_0 = arith.constant 0 : i32
    return %arg0, %c0_i32 : i32, i32
  }
}

module attributes {stable_mosaic.version = 11 : i64} {
  func.func @_mm_kernel(%arg0: i32, %arg1: memref<512x128xbf16, #tpu.memory_space<vmem>>, %arg2: memref<128x128xbf16, #tpu.memory_space<vmem>>, %arg3: memref<512x128xbf16, #tpu.memory_space<vmem>>) attributes {dimension_semantics = [#tpu.dimension_semantics<parallel>], iteration_bounds = array<i64: 5>, scalar_prefetch = 0 : i64, scratch_operands = 0 : i64, tpu.core_type = #tpu.core_type<tc>, window_params = [{transform_indices = @transform_0, window_bounds = array<i64: 512, 128>}, {pipeline_mode = #tpu.pipeline_mode<synchronous>, transform_indices = @transform_1, window_bounds = array<i64: 128, 128>}, {transform_indices = @transform_2, window_bounds = array<i64: 512, 128>}]} {
    %c0 = arith.constant 0 : index
    %c0_0 = arith.constant 0 : index
    %0 = vector.load %arg1[%c0, %c0_0] : memref<512x128xbf16, #tpu.memory_space<vmem>>, vector<512x128xbf16>
    %c0_1 = arith.constant 0 : index
    %c0_2 = arith.constant 0 : index
    %1 = vector.load %arg2[%c0_1, %c0_2] : memref<128x128xbf16, #tpu.memory_space<vmem>>, vector<128x128xbf16>
    %cst = arith.constant dense<0.000000e+00> : vector<512x128xf32>
    %2 = tpu.matmul %0, %1, %cst {dimension_numbers = #tpu.dot_dimension_numbers<[1], [0], [0], [1], [0, 0, 1, 1], [], []>} : vector<512x128xbf16>, vector<128x128xbf16>, vector<512x128xf32> -> vector<512x128xf32>
    %3 = arith.truncf %2 : vector<512x128xf32> to vector<512x128xbf16>
    %c0_3 = arith.constant 0 : index
    %c0_4 = arith.constant 0 : index
    %4 = vector.load %arg3[%c0_3, %c0_4] : memref<512x128xbf16, #tpu.memory_space<vmem>>, vector<512x128xbf16>
    tpu.vector_store %arg3[%c0_3, %c0_4], %3 {strides = array<i32>} : memref<512x128xbf16, #tpu.memory_space<vmem>>, vector<512x128xbf16>,
    return
  }
  func.func @transform_0(%arg0: i32) -> (i32, i32) {
    %c0_i32 = arith.constant 0 : i32
    %c0_i32_0 = arith.constant 0 : i32
    return %arg0, %c0_i32 : i32, i32
  }
  func.func @transform_1(%arg0: i32) -> (i32, i32) {
    %c0_i32 = arith.constant 0 : i32
    %c0_i32_0 = arith.constant 0 : i32
    %c0_i32_1 = arith.constant 0 : i32
    return %c0_i32, %c0_i32_0 : i32, i32
  }
  func.func @transform_2(%arg0: i32) -> (i32, i32) {
    %c0_i32 = arith.constant 0 : i32
    %c0_i32_0 = arith.constant 0 : i32
    return %arg0, %c0_i32 : i32, i32
  }
}

module attributes {stable_mosaic.version = 11 : i64} {
  func.func @_mm_kernel(%arg0: i32, %arg1: memref<512x128xbf16, #tpu.memory_space<vmem>>, %arg2: memref<128x128xbf16, #tpu.memory_space<vmem>>, %arg3: memref<512x128xf32, #tpu.memory_space<vmem>>) attributes {dimension_semantics = [#tpu.dimension_semantics<parallel>], iteration_bounds = array<i64: 36>, scalar_prefetch = 0 : i64, scratch_operands = 0 : i64, tpu.core_type = #tpu.core_type<tc>, window_params = [{transform_indices = @transform_0, window_bounds = array<i64: 512, 128>}, {pipeline_mode = #tpu.pipeline_mode<synchronous>, transform_indices = @transform_1, window_bounds = array<i64: 128, 128>}, {transform_indices = @transform_2, window_bounds = array<i64: 512, 128>}]} {
    %c0 = arith.constant 0 : index
    %c0_0 = arith.constant 0 : index
    %0 = vector.load %arg1[%c0, %c0_0] : memref<512x128xbf16, #tpu.memory_space<vmem>>, vector<512x128xbf16>
    %c0_1 = arith.constant 0 : index
    %c0_2 = arith.constant 0 : index
    %1 = vector.load %arg2[%c0_1, %c0_2] : memref<128x128xbf16, #tpu.memory_space<vmem>>, vector<128x128xbf16>
    %cst = arith.constant dense<0.000000e+00> : vector<512x128xf32>
    %2 = tpu.matmul %0, %1, %cst {dimension_numbers = #tpu.dot_dimension_numbers<[1], [0], [0], [1], [0, 0, 1, 1], [], []>} : vector<512x128xbf16>, vector<128x128xbf16>, vector<512x128xf32> -> vector<512x128xf32>
    %3 = math.tanh %2 : vector<512x128xf32>
    %c0_3 = arith.constant 0 : index
    %c0_4 = arith.constant 0 : index
    %4 = vector.load %arg3[%c0_3, %c0_4] : memref<512x128xf32, #tpu.memory_space<vmem>>, vector<512x128xf32>
    tpu.vector_store %arg3[%c0_3, %c0_4], %3 {strides = array<i32>} : memref<512x128xf32, #tpu.memory_space<vmem>>, vector<512x128xf32>,
    return
  }
  func.func @transform_0(%arg0: i32) -> (i32, i32) {
    %c0_i32 = arith.constant 0 : i32
    %c0_i32_0 = arith.constant 0 : i32
    return %arg0, %c0_i32 : i32, i32
  }
  func.func @transform_1(%arg0: i32) -> (i32, i32) {
    %c0_i32 = arith.constant 0 : i32
    %c0_i32_0 = arith.constant 0 : i32
    %c0_i32_1 = arith.constant 0 : i32
    return %c0_i32, %c0_i32_0 : i32, i32
  }
  func.func @transform_2(%arg0: i32) -> (i32, i32) {
    %c0_i32 = arith.constant 0 : i32
    %c0_i32_0 = arith.constant 0 : i32
    return %arg0, %c0_i32 : i32, i32
  }
}

</mosaic_0001>

<llo_original>
// kernel: forward.13
$region0: #{forward.13}
  #allocation0 [shape = 'u32[]', space=smem, size = 0x4, offset = 0x4, fixed_abs, tag = 'smem constant byte address 0x4 - core index']
  #allocation1 [shape = 'u32[72,128]{1,0:T(1,128)}', space=vmem, size = 0x9000, scoped, tag = 'internal scratch']
  %s0 = inlined_call_operand.vmem [shape: f32[32,128], index: 0, kind: input, shape index: {}]
  %s1 = inlined_call_operand.vmem [shape: f32[1,128], index: 1, kind: input, shape index: {}]
  %s2 = inlined_call_operand.vmem [shape: f32[1,128], index: 2, kind: input, shape index: {}]
  %s3 = inlined_call_operand.vmem [shape: bf16[32,128], index: 3, kind: output, shape index: {}]
  %s4 = sld [smem:[#allocation0]]
  $region22: #{forward.13} parent=0
    _
  %s6 = ssub.s32 1, %s4
  %s7 = scalar_select 0, %s6, %s4
  // Predicated region
  $region2: #{forward.13} parent=0 // pred_check
    _
  $region3: #{forward.13} parent=0 // pred_check_branch
    %9 = sbr.rel (0) target = $region5
  $region4: #{forward.13} parent=0 // pred_region
    _
  $region5: #{forward.13} parent=0 // pred_fallthru
    _
  // Predicated region
  $region6: #{forward.13} parent=0 // pred_check
    _
  $region7: #{forward.13} parent=0 // pred_check_branch
    %11 = sbr.rel (0) target = $region9
  $region8: #{forward.13} parent=0 // pred_region
    _
  $region9: #{forward.13} parent=0 // pred_fallthru
    _
  // Predicated region
  $region10: #{forward.13} parent=0 // pred_check
    _
  $region11: #{forward.13} parent=0 // pred_check_branch
    %13 = sbr.rel (0) target = $region13
  $region12: #{forward.13} parent=0 // pred_region
    _
  $region13: #{forward.13} parent=0 // pred_fallthru
    _
  %v14 = vld [vmem:[%s0] sm:$0xff]
  %v15 = vld [vmem:[%s0 + $0x8] sm:$0xff]
  %v16 = vld [vmem:[%s0 + $0x10] sm:$0xff]
  %v17 = vld [vmem:[%s0 + $0x18] sm:$0xff]
  %v18 = vld [vmem:[%s1] sm:$0x1]
  %v20 = vperm.slane %v18, 0
  %v22 = vmul.f32 %v14, %v20
  %v23 = vmul.f32 %v15, %v20
  %v24 = vmul.f32 %v16, %v20
  %v25 = vmul.f32 %v17, %v20
  %v26 = vld [vmem:[%s2] sm:$0x1]
  %v28 = vperm.slane %v26, 0
  %v30 = vadd.f32 %v22, %v28
  %v31 = vadd.f32 %v23, %v28
  %v32 = vadd.f32 %v24, %v28
  %v33 = vadd.f32 %v25, %v28
  %v34 = vmax.f32 %v30, 0.0
  %v35 = vmax.f32 %v31, 0.0
  %v36 = vmax.f32 %v32, 0.0
  %v37 = vmax.f32 %v33, 0.0
  %v38 = vpack.c.bf16 %v34, %v34
  %v39 = vpack.c.bf16 %v35, %v35
  %v40 = vpack.c.bf16 %v36, %v36
  %v41 = vpack.c.bf16 %v37, %v37
  %42 = vst [vmem:[%s3] sm:$0xf] %v38
  %43 = vst [vmem:[%s3 + $0x4] sm:$0xf] %v39
  %44 = vst [vmem:[%s3 + $0x8] sm:$0xf] %v40
  %45 = vst [vmem:[%s3 + $0xc] sm:$0xf] %v41
  // Predicated region
  $region14: #{forward.13} parent=0 // pred_check
    _
  $region15: #{forward.13} parent=0 // pred_check_branch
    %47 = sbr.rel (0) target = $region17
  $region16: #{forward.13} parent=0 // pred_region
    _
  $region17: #{forward.13} parent=0 // pred_fallthru
    _
  // Predicated region
  $region18: #{forward.13} parent=0 // pred_check
    _
  $region19: #{forward.13} parent=0 // pred_check_branch
    %49 = sbr.rel (0) target = $region21
  $region20: #{forward.13} parent=0 // pred_region
    _
  $region21: #{forward.13} parent=0 // pred_fallthru
    _

// kernel: forward.12
$region0: #{forward.12}
  #allocation0 [shape = 'u32[]', space=smem, size = 0x4, offset = 0x4, fixed_abs, tag = 'smem constant byte address 0x4 - core index']
  #allocation1 [shape = 'u32[72,128]{1,0:T(1,128)}', space=vmem, size = 0x9000, scoped, tag = 'internal scratch']
  %s0 = inlined_call_operand.vmem [shape: bf16[32,128], index: 0, kind: input, shape index: {}]
  %s1 = inlined_call_operand.hbm [shape: bf16[128,128], index: 1, kind: input, shape index: {}]
  %s2 = inlined_call_operand.vmem [shape: f32[32,128], index: 2, kind: output, shape index: {0}]
  %s3 = inlined_call_operand.vmem [shape: f32[1,8,128], index: 3, kind: output, shape index: {1}]
  %s4 = inlined_call_operand.vmem [shape: f32[1,8,128], index: 4, kind: output, shape index: {2}]
  %5 = xla_tuple %s2, %s3, %s4
  %s6 = sld [smem:[#allocation0]]
  $region38: #{forward.12} parent=0
    _
  %s8 = ssub.s32 1, %s6
  %s9 = scalar_select 0, %s8, %s6
  $region1: #{forward.12} parent=0
    #allocation2 [shape = 'u8[32768]{0}', space=vmem, size = 0x8000, scoped, tag = 'input window, operand 1, single buffered']
    #allocation3 [shape = 's32[1]{0}', space=sflag, size = 0x4, scoped, tag = 'scoped memory for forward.12']
    %10 = vsyncpa [#allocation3], 0
    // Predicated region
    $region2: #{forward.12} parent=1 // pred_check
      _
    $region3: #{forward.12} parent=1 // pred_check_branch
      %12 = sbr.rel (0) target = $region5
    $region4: #{forward.12} parent=1 // pred_region
      _
    $region5: #{forward.12} parent=1 // pred_fallthru
      _
    // Predicated region
    $region6: #{forward.12} parent=1 // pred_check
      _
    $region7: #{forward.12} parent=1 // pred_check_branch
      %14 = sbr.rel (0) target = $region9
    $region8: #{forward.12} parent=1 // pred_region
      %16 = vsyncadd [#allocation3], 0
      %s17 = sshll.u32 %s1, 4
      %s18 = int_to_ptr.hbm [resolvable:$true] %s17
      %s19 = sshll.u32 [#allocation2], 4
      %s20 = int_to_ptr.vmem [resolvable:$true] %s19
      %25 = dma.hbm_to_vmem [thread:$0]  %s18, 1024, %s20, [#allocation3], 64, 64, 4
    $region9: #{forward.12} parent=1 // pred_fallthru
      _
    // Predicated region
    $region10: #{forward.12} parent=1 // pred_check
      _
    $region11: #{forward.12} parent=1 // pred_check_branch
      %27 = sbr.rel (0) target = $region13
    $region12: #{forward.12} parent=1 // pred_region
      %29 = dma.done [#allocation3], 1024
    $region13: #{forward.12} parent=1 // pred_fallthru
      _
    %v30 = vld [vmem:[%s0] sm:$0xf]
    %v31 = vld [vmem:[%s0 + $0x4] sm:$0xf]
    %v32 = vld [vmem:[%s0 + $0x8] sm:$0xf]
    %v33 = vld [vmem:[%s0 + $0xc] sm:$0xf]
    %v34 = vld [vmem:[#allocation2] sm:$0xf]
    %v35 = vld [vmem:[#allocation2 + $0x4] sm:$0xf]
    %v36 = vld [vmem:[#allocation2 + $0x8] sm:$0xf]
    %v37 = vld [vmem:[#allocation2 + $0xc] sm:$0xf]
    %v38 = vld [vmem:[#allocation2 + $0x10] sm:$0xf]
    %v39 = vld [vmem:[#allocation2 + $0x14] sm:$0xf]
    %v40 = vld [vmem:[#allocation2 + $0x18] sm:$0xf]
    %v41 = vld [vmem:[#allocation2 + $0x1c] sm:$0xf]
    %v42 = vld [vmem:[#allocation2 + $0x20] sm:$0xf]
    %v43 = vld [vmem:[#allocation2 + $0x24] sm:$0xf]
    %v44 = vld [vmem:[#allocation2 + $0x28] sm:$0xf]
    %v45 = vld [vmem:[#allocation2 + $0x2c] sm:$0xf]
    %v46 = vld [vmem:[#allocation2 + $0x30] sm:$0xf]
    %v47 = vld [vmem:[#allocation2 + $0x34] sm:$0xf]
    %v48 = vld [vmem:[#allocation2 + $0x38] sm:$0xf]
    %v49 = vld [vmem:[#allocation2 + $0x3c] sm:$0xf]
    %v54 = vunpack.c.l.b16 %v30
    %v55 = vunpack.c.l.b16 %v31
    %v56 = vunpack.c.l.b16 %v32
    %v57 = vunpack.c.l.b16 %v33
    %v58 = vpack.c.b16 %v55, %v54
    %v59 = vpack.c.b16 %v57, %v56
    %v78 = vunpack.c.l.b16 %v34
    %v79 = vunpack.c.l.b16 %v35
    %v80 = vunpack.c.l.b16 %v36
    %v81 = vunpack.c.l.b16 %v37
    %v82 = vunpack.c.l.b16 %v38
    %v83 = vunpack.c.l.b16 %v39
    %v84 = vunpack.c.l.b16 %v40
    %v85 = vunpack.c.l.b16 %v41
    %v86 = vunpack.c.l.b16 %v42
    %v87 = vunpack.c.l.b16 %v43
    %v88 = vunpack.c.l.b16 %v44
    %v89 = vunpack.c.l.b16 %v45
    %v90 = vunpack.c.l.b16 %v46
    %v91 = vunpack.c.l.b16 %v47
    %v92 = vunpack.c.l.b16 %v48
    %v93 = vunpack.c.l.b16 %v49
    %v94 = vpack.c.b16 %v79, %v78
    %v95 = vpack.c.b16 %v81, %v80
    %v96 = vpack.c.b16 %v83, %v82
    %v97 = vpack.c.b16 %v85, %v84
    %v98 = vpack.c.b16 %v87, %v86
    %v99 = vpack.c.b16 %v89, %v88
    %v100 = vpack.c.b16 %v91, %v90
    %v101 = vpack.c.b16 %v93, %v92
    %110 = vmatpush.bf16.msra.mxu0 %v101
    %111 = vmatpush.bf16.msra.mxu0 %v100
    %112 = vmatpush.bf16.msra.mxu0 %v99
    %113 = vmatpush.bf16.msra.mxu0 %v98
    %114 = vmatpush.bf16.msra.mxu0 %v97
    %115 = vmatpush.bf16.msra.mxu0 %v96
    %116 = vmatpush.bf16.msra.mxu0 %v95
    %117 = vmatpush.bf16.msra.mxu0 %v94
    %118 = vmatmul.bf16.gmra.mxu0 %v58
    %v119 = vpop.f32.mrf.mxu0
    %v120 = vadd.f32 0.0, %v119
    %v121 = vpop.f32.mrf.mxu0
    %v122 = vadd.f32 0.0, %v121
    %123 = vmatmul.bf16.gmra.mxu0 %v59
    %v124 = vpop.f32.mrf.mxu0
    %v125 = vadd.f32 0.0, %v124
    %v126 = vpop.f32.mrf.mxu0
    %v127 = vadd.f32 0.0, %v126
    %128 = vdwg.mxu0
    %129 = vst [vmem:[%s2] sm:$0xff] %v120
    %130 = vst [vmem:[%s2 + $0x8] sm:$0xff] %v122
    %131 = vst [vmem:[%s2 + $0x10] sm:$0xff] %v125
    %132 = vst [vmem:[%s2 + $0x18] sm:$0xff] %v127
    %v133 = vadd.f32 %v120, %v122
    %v134 = vadd.f32 %v133, %v125
    %v135 = vadd.f32 %v134, %v127
    %v136 = vrot.slane %v135, 4
    %v137 = vadd.f32 %v135, %v136
    %v138 = vrot.slane %v137, 2
    %v139 = vadd.f32 %v137, %v138
    %v140 = vrot.slane %v139, 1
    %v141 = vadd.f32 %v139, %v140
    %142 = vst [vmem:[%s3] sm:$0xff] %v141
    %v143 = vmul.f32 %v120, %v120
    %v144 = vmul.f32 %v122, %v122
    %v145 = vmul.f32 %v125, %v125
    %v146 = vmul.f32 %v127, %v127
    %v147 = vadd.f32 %v143, %v144
    %v148 = vadd.f32 %v147, %v145
    %v149 = vadd.f32 %v148, %v146
    %v150 = vrot.slane %v149, 4
    %v151 = vadd.f32 %v149, %v150
    %v152 = vrot.slane %v151, 2
    %v153 = vadd.f32 %v151, %v152
    %v154 = vrot.slane %v153, 1
    %v155 = vadd.f32 %v153, %v154
    %156 = vst [vmem:[%s4] sm:$0xff] %v155
    // Predicated region
    $region14: #{forward.12} parent=1 // pred_check
      _
    $region15: #{forward.12} parent=1 // pred_check_branch
      %158 = sbr.rel (0) target = $region17
    $region16: #{forward.12} parent=1 // pred_region
      _
    $region17: #{forward.12} parent=1 // pred_fallthru
      _
    // Predicated region
    $region18: #{forward.12} parent=1 // pred_check
      _
    $region19: #{forward.12} parent=1 // pred_check_branch
      %160 = sbr.rel (0) target = $region21
    $region20: #{forward.12} parent=1 // pred_region
      _
    $region21: #{forward.12} parent=1 // pred_fallthru
      _
    // Predicated region
    $region22: #{forward.12} parent=1 // pred_check
      _
    $region23: #{forward.12} parent=1 // pred_check_branch
      %162 = sbr.rel (0) target = $region25
    $region24: #{forward.12} parent=1 // pred_region
      _
    $region25: #{forward.12} parent=1 // pred_fallthru
      _
    // Predicated region
    $region26: #{forward.12} parent=1 // pred_check
      _
    $region27: #{forward.12} parent=1 // pred_check_branch
      %164 = sbr.rel (0) target = $region29
    $region28: #{forward.12} parent=1 // pred_region
      _
    $region29: #{forward.12} parent=1 // pred_fallthru
      _
    // Predicated region
    $region30: #{forward.12} parent=1 // pred_check
      _
    $region31: #{forward.12} parent=1 // pred_check_branch
      %166 = sbr.rel (0) target = $region33
    $region32: #{forward.12} parent=1 // pred_region
      _
    $region33: #{forward.12} parent=1 // pred_fallthru
      _
    // Predicated region
    $region34: #{forward.12} parent=1 // pred_check
      _
    $region35: #{forward.12} parent=1 // pred_check_branch
      %168 = sbr.rel (0) target = $region37
    $region36: #{forward.12} parent=1 // pred_region
      _
    $region37: #{forward.12} parent=1 // pred_fallthru
      _
    %169 = vsyncpa [#allocation3], 1

// kernel: forward.14
$region0: #{forward.14}
  #allocation0 [shape = 'u32[]', space=smem, size = 0x4, offset = 0x4, fixed_abs, tag = 'smem constant byte address 0x4 - core index']
  #allocation1 [shape = 'u32[72,128]{1,0:T(1,128)}', space=vmem, size = 0x9000, scoped, tag = 'internal scratch']
  %s0 = inlined_call_operand.vmem [shape: bf16[56,256], index: 0, kind: input, shape index: {}]
  %s1 = inlined_call_operand.hbm [shape: bf16[256,128], index: 1, kind: input, shape index: {}]
  %s2 = inlined_call_operand.vmem [shape: f32[56,128], index: 2, kind: output, shape index: {}]
  %s3 = sld [smem:[#allocation0]]
  $region22: #{forward.14} parent=0
    _
  %s5 = ssub.s32 1, %s3
  %s6 = scalar_select 0, %s5, %s3
  $region1: #{forward.14} parent=0
    #allocation2 [shape = 'u8[65536]{0}', space=vmem, size = 0x10000, scoped, tag = 'input window, operand 1, single buffered']
    #allocation3 [shape = 's32[1]{0}', space=sflag, size = 0x4, scoped, tag = 'scoped memory for forward.14']
    %7 = vsyncpa [#allocation3], 0
    // Predicated region
    $region2: #{forward.14} parent=1 // pred_check
      _
    $region3: #{forward.14} parent=1 // pred_check_branch
      %9 = sbr.rel (0) target = $region5
    $region4: #{forward.14} parent=1 // pred_region
      _
    $region5: #{forward.14} parent=1 // pred_fallthru
      _
    // Predicated region
    $region6: #{forward.14} parent=1 // pred_check
      _
    $region7: #{forward.14} parent=1 // pred_check_branch
      %11 = sbr.rel (0) target = $region9
    $region8: #{forward.14} parent=1 // pred_region
      %13 = vsyncadd [#allocation3], 0
      %s14 = sshll.u32 %s1, 4
      %s15 = int_to_ptr.hbm [resolvable:$true] %s14
      %s16 = sshll.u32 [#allocation2], 4
      %s17 = int_to_ptr.vmem [resolvable:$true] %s16
      %22 = dma.hbm_to_vmem [thread:$0]  %s15, 2048, %s17, [#allocation3], 64, 64, 4
    $region9: #{forward.14} parent=1 // pred_fallthru
      _
    // Predicated region
    $region10: #{forward.14} parent=1 // pred_check
      _
    $region11: #{forward.14} parent=1 // pred_check_branch
      %24 = sbr.rel (0) target = $region13
    $region12: #{forward.14} parent=1 // pred_region
      %26 = dma.done [#allocation3], 2048
    $region13: #{forward.14} parent=1 // pred_fallthru
      _
    %v27 = vld [vmem:[%s0] sm:$0xff]
    %v28 = vld [vmem:[%s0 + $0x8] sm:$0xff]
    %v29 = vld [vmem:[%s0 + $0x10] sm:$0xff]
    %v30 = vld [vmem:[%s0 + $0x18] sm:$0xff]
    %v31 = vld [vmem:[%s0 + $0x20] sm:$0xff]
    %v32 = vld [vmem:[%s0 + $0x28] sm:$0xff]
    %v33 = vld [vmem:[%s0 + $0x30] sm:$0xff]
    %v34 = vld [vmem:[#allocation2] sm:$0xf]
    %v35 = vld [vmem:[#allocation2 + $0x4] sm:$0xf]
    %v36 = vld [vmem:[#allocation2 + $0x8] sm:$0xf]
    %v37 = vld [vmem:[#allocation2 + $0xc] sm:$0xf]
    %v38 = vld [vmem:[#allocation2 + $0x10] sm:$0xf]
    %v39 = vld [vmem:[#allocation2 + $0x14] sm:$0xf]
    %v40 = vld [vmem:[#allocation2 + $0x18] sm:$0xf]
    %v41 = vld [vmem:[#allocation2 + $0x1c] sm:$0xf]
    %v42 = vld [vmem:[#allocation2 + $0x20] sm:$0xf]
    %v43 = vld [vmem:[#allocation2 + $0x24] sm:$0xf]
    %v44 = vld [vmem:[#allocation2 + $0x28] sm:$0xf]
    %v45 = vld [vmem:[#allocation2 + $0x2c] sm:$0xf]
    %v46 = vld [vmem:[#allocation2 + $0x30] sm:$0xf]
    %v47 = vld [vmem:[#allocation2 + $0x34] sm:$0xf]
    %v48 = vld [vmem:[#allocation2 + $0x38] sm:$0xf]
    %v49 = vld [vmem:[#allocation2 + $0x3c] sm:$0xf]
    %v50 = vld [vmem:[#allocation2 + $0x40] sm:$0xf]
    %v51 = vld [vmem:[#allocation2 + $0x44] sm:$0xf]
    %v52 = vld [vmem:[#allocation2 + $0x48] sm:$0xf]
    %v53 = vld [vmem:[#allocation2 + $0x4c] sm:$0xf]
    %v54 = vld [vmem:[#allocation2 + $0x50] sm:$0xf]
    %v55 = vld [vmem:[#allocation2 + $0x54] sm:$0xf]
    %v56 = vld [vmem:[#allocation2 + $0x58] sm:$0xf]
    %v57 = vld [vmem:[#allocation2 + $0x5c] sm:$0xf]
    %v58 = vld [vmem:[#allocation2 + $0x60] sm:$0xf]
    %v59 = vld [vmem:[#allocation2 + $0x64] sm:$0xf]
    %v60 = vld [vmem:[#allocation2 + $0x68] sm:$0xf]
    %v61 = vld [vmem:[#allocation2 + $0x6c] sm:$0xf]
    %v62 = vld [vmem:[#allocation2 + $0x70] sm:$0xf]
    %v63 = vld [vmem:[#allocation2 + $0x74] sm:$0xf]
    %v64 = vld [vmem:[#allocation2 + $0x78] sm:$0xf]
    %v65 = vld [vmem:[#allocation2 + $0x7c] sm:$0xf]
    %v73 = vunpack.c.l.b16 %v27
    %v74 = vunpack.c.h.b16 %v27
    %v75 = vunpack.c.l.b16 %v28
    %v76 = vunpack.c.h.b16 %v28
    %v77 = vunpack.c.l.b16 %v29
    %v78 = vunpack.c.h.b16 %v29
    %v79 = vunpack.c.l.b16 %v30
    %v80 = vunpack.c.h.b16 %v30
    %v81 = vunpack.c.l.b16 %v31
    %v82 = vunpack.c.h.b16 %v31
    %v83 = vunpack.c.l.b16 %v32
    %v84 = vunpack.c.h.b16 %v32
    %v85 = vunpack.c.l.b16 %v33
    %v86 = vunpack.c.h.b16 %v33
    %v87 = vpack.c.b16 %v75, %v73
    %v88 = vpack.c.b16 %v76, %v74
    %v89 = vpack.c.b16 %v79, %v77
    %v90 = vpack.c.b16 %v80, %v78
    %v91 = vpack.c.b16 %v83, %v81
    %v92 = vpack.c.b16 %v84, %v82
    %v93 = vpack.c.b16 %v85, %v85
    %v94 = vpack.c.b16 %v86, %v86
    %v135 = vunpack.c.l.b16 %v34
    %v136 = vunpack.c.l.b16 %v35
    %v137 = vunpack.c.l.b16 %v36
    %v138 = vunpack.c.l.b16 %v37
    %v139 = vunpack.c.l.b16 %v38
    %v140 = vunpack.c.l.b16 %v39
    %v141 = vunpack.c.l.b16 %v40
    %v142 = vunpack.c.l.b16 %v41
    %v143 = vunpack.c.l.b16 %v42
    %v144 = vunpack.c.l.b16 %v43
    %v145 = vunpack.c.l.b16 %v44
    %v146 = vunpack.c.l.b16 %v45
    %v147 = vunpack.c.l.b16 %v46
    %v148 = vunpack.c.l.b16 %v47
    %v149 = vunpack.c.l.b16 %v48
    %v150 = vunpack.c.l.b16 %v49
    %v151 = vunpack.c.l.b16 %v50
    %v152 = vunpack.c.l.b16 %v51
    %v153 = vunpack.c.l.b16 %v52
    %v154 = vunpack.c.l.b16 %v53
    %v155 = vunpack.c.l.b16 %v54
    %v156 = vunpack.c.l.b16 %v55
    %v157 = vunpack.c.l.b16 %v56
    %v158 = vunpack.c.l.b16 %v57
    %v159 = vunpack.c.l.b16 %v58
    %v160 = vunpack.c.l.b16 %v59
    %v161 = vunpack.c.l.b16 %v60
    %v162 = vunpack.c.l.b16 %v61
    %v163 = vunpack.c.l.b16 %v62
    %v164 = vunpack.c.l.b16 %v63
    %v165 = vunpack.c.l.b16 %v64
    %v166 = vunpack.c.l.b16 %v65
    %v167 = vpack.c.b16 %v136, %v135
    %v168 = vpack.c.b16 %v138, %v137
    %v169 = vpack.c.b16 %v140, %v139
    %v170 = vpack.c.b16 %v142, %v141
    %v171 = vpack.c.b16 %v144, %v143
    %v172 = vpack.c.b16 %v146, %v145
    %v173 = vpack.c.b16 %v148, %v147
    %v174 = vpack.c.b16 %v150, %v149
    %v175 = vpack.c.b16 %v152, %v151
    %v176 = vpack.c.b16 %v154, %v153
    %v177 = vpack.c.b16 %v156, %v155
    %v178 = vpack.c.b16 %v158, %v157
    %v179 = vpack.c.b16 %v160, %v159
    %v180 = vpack.c.b16 %v162, %v161
    %v181 = vpack.c.b16 %v164, %v163
    %v182 = vpack.c.b16 %v166, %v165
    %199 = vmatpush.bf16.msra.mxu0 %v174
    %200 = vmatpush.bf16.msra.mxu0 %v173
    %201 = vmatpush.bf16.msra.mxu0 %v172
    %202 = vmatpush.bf16.msra.mxu0 %v171
    %203 = vmatpush.bf16.msra.mxu0 %v170
    %204 = vmatpush.bf16.msra.mxu0 %v169
    %205 = vmatpush.bf16.msra.mxu0 %v168
    %206 = vmatpush.bf16.msra.mxu0 %v167
    %207 = vmatmul.bf16.gmra.mxu0 %v87
    %v208 = vpop.f32.mrf.mxu0
    %v209 = vadd.f32 0.0, %v208
    %v210 = vpop.f32.mrf.mxu0
    %v211 = vadd.f32 0.0, %v210
    %212 = vmatmul.bf16.gmra.mxu0 %v89
    %v213 = vpop.f32.mrf.mxu0
    %v214 = vadd.f32 0.0, %v213
    %v215 = vpop.f32.mrf.mxu0
    %v216 = vadd.f32 0.0, %v215
    %217 = vmatmul.bf16.gmra.mxu0 %v91
    %v218 = vpop.f32.mrf.mxu0
    %v219 = vadd.f32 0.0, %v218
    %v220 = vpop.f32.mrf.mxu0
    %v221 = vadd.f32 0.0, %v220
    %222 = vmatmul.bf16.gmra.mxu0 %v93
    %v223 = vpop.f32.mrf.mxu0
    %v224 = vadd.f32 0.0, %v223
    %v225 = vpop.f32.mrf.mxu0
    %226 = vdwg.mxu0
    %227 = vmatpush.bf16.msra.mxu0 %v182
    %228 = vmatpush.bf16.msra.mxu0 %v181
    %229 = vmatpush.bf16.msra.mxu0 %v180
    %230 = vmatpush.bf16.msra.mxu0 %v179
    %231 = vmatpush.bf16.msra.mxu0 %v178
    %232 = vmatpush.bf16.msra.mxu0 %v177
    %233 = vmatpush.bf16.msra.mxu0 %v176
    %234 = vmatpush.bf16.msra.mxu0 %v175
    %235 = vmatmul.bf16.gmra.mxu0 %v88
    %v236 = vpop.f32.mrf.mxu0
    %v237 = vadd.f32 %v209, %v236
    %v238 = vpop.f32.mrf.mxu0
    %v239 = vadd.f32 %v211, %v238
    %240 = vmatmul.bf16.gmra.mxu0 %v90
    %v241 = vpop.f32.mrf.mxu0
    %v242 = vadd.f32 %v214, %v241
    %v243 = vpop.f32.mrf.mxu0
    %v244 = vadd.f32 %v216, %v243
    %245 = vmatmul.bf16.gmra.mxu0 %v92
    %v246 = vpop.f32.mrf.mxu0
    %v247 = vadd.f32 %v219, %v246
    %v248 = vpop.f32.mrf.mxu0
    %v249 = vadd.f32 %v221, %v248
    %250 = vmatmul.bf16.gmra.mxu0 %v94
    %v251 = vpop.f32.mrf.mxu0
    %v252 = vadd.f32 %v224, %v251
    %v253 = vpop.f32.mrf.mxu0
    %254 = vdwg.mxu0
    %255 = vst [vmem:[%s2] sm:$0xff] %v237
    %256 = vst [vmem:[%s2 + $0x8] sm:$0xff] %v239
    %257 = vst [vmem:[%s2 + $0x10] sm:$0xff] %v242
    %258 = vst [vmem:[%s2 + $0x18] sm:$0xff] %v244
    %259 = vst [vmem:[%s2 + $0x20] sm:$0xff] %v247
    %260 = vst [vmem:[%s2 + $0x28] sm:$0xff] %v249
    %261 = vst [vmem:[%s2 + $0x30] sm:$0xff] %v252
    // Predicated region
    $region14: #{forward.14} parent=1 // pred_check
      _
    $region15: #{forward.14} parent=1 // pred_check_branch
      %263 = sbr.rel (0) target = $region17
    $region16: #{forward.14} parent=1 // pred_region
      _
    $region17: #{forward.14} parent=1 // pred_fallthru
      _
    // Predicated region
    $region18: #{forward.14} parent=1 // pred_check
      _
    $region19: #{forward.14} parent=1 // pred_check_branch
      %265 = sbr.rel (0) target = $region21
    $region20: #{forward.14} parent=1 // pred_region
      _
    $region21: #{forward.14} parent=1 // pred_fallthru
      _
    %266 = vsyncpa [#allocation3], 1

// kernel: forward.15
$region0: #{forward.15}
  #allocation0 [shape = 'u32[]', space=smem, size = 0x4, offset = 0x4, fixed_abs, tag = 'smem constant byte address 0x4 - core index']
  #allocation1 [shape = 'u32[72,128]{1,0:T(1,128)}', space=vmem, size = 0x9000, scoped, tag = 'internal scratch']
  %s0 = inlined_call_operand.vmem [shape: f32[128,128], index: 0, kind: input, shape index: {}]
  %s1 = inlined_call_operand.vmem [shape: f32[1,128], index: 1, kind: input, shape index: {}]
  %s2 = inlined_call_operand.vmem [shape: f32[1,128], index: 2, kind: input, shape index: {}]
  %s3 = inlined_call_operand.vmem [shape: bf16[128,128], index: 3, kind: output, shape index: {}]
  %s4 = sld [smem:[#allocation0]]
  $region22: #{forward.15} parent=0
    _
  %s6 = ssub.s32 1, %s4
  %s7 = scalar_select 0, %s6, %s4
  // Predicated region
  $region2: #{forward.15} parent=0 // pred_check
    _
  $region3: #{forward.15} parent=0 // pred_check_branch
    %9 = sbr.rel (0) target = $region5
  $region4: #{forward.15} parent=0 // pred_region
    _
  $region5: #{forward.15} parent=0 // pred_fallthru
    _
  // Predicated region
  $region6: #{forward.15} parent=0 // pred_check
    _
  $region7: #{forward.15} parent=0 // pred_check_branch
    %11 = sbr.rel (0) target = $region9
  $region8: #{forward.15} parent=0 // pred_region
    _
  $region9: #{forward.15} parent=0 // pred_fallthru
    _
  // Predicated region
  $region10: #{forward.15} parent=0 // pred_check
    _
  $region11: #{forward.15} parent=0 // pred_check_branch
    %13 = sbr.rel (0) target = $region13
  $region12: #{forward.15} parent=0 // pred_region
    _
  $region13: #{forward.15} parent=0 // pred_fallthru
    _
  %v14 = vld [vmem:[%s0] sm:$0xff]
  %v15 = vld [vmem:[%s0 + $0x8] sm:$0xff]
  %v16 = vld [vmem:[%s0 + $0x10] sm:$0xff]
  %v17 = vld [vmem:[%s0 + $0x18] sm:$0xff]
  %v18 = vld [vmem:[%s0 + $0x20] sm:$0xff]
  %v19 = vld [vmem:[%s0 + $0x28] sm:$0xff]
  %v20 = vld [vmem:[%s0 + $0x30] sm:$0xff]
  %v21 = vld [vmem:[%s0 + $0x38] sm:$0xff]
  %v22 = vld [vmem:[%s0 + $0x40] sm:$0xff]
  %v23 = vld [vmem:[%s0 + $0x48] sm:$0xff]
  %v24 = vld [vmem:[%s0 + $0x50] sm:$0xff]
  %v25 = vld [vmem:[%s0 + $0x58] sm:$0xff]
  %v26 = vld [vmem:[%s0 + $0x60] sm:$0xff]
  %v27 = vld [vmem:[%s0 + $0x68] sm:$0xff]
  %v28 = vld [vmem:[%s0 + $0x70] sm:$0xff]
  %v29 = vld [vmem:[%s0 + $0x78] sm:$0xff]
  %v30 = vld [vmem:[%s1] sm:$0x1]
  %v32 = vperm.slane %v30, 0
  %v34 = vmul.f32 %v14, %v32
  %v35 = vmul.f32 %v15, %v32
  %v36 = vmul.f32 %v16, %v32
  %v37 = vmul.f32 %v17, %v32
  %v38 = vmul.f32 %v18, %v32
  %v39 = vmul.f32 %v19, %v32
  %v40 = vmul.f32 %v20, %v32
  %v41 = vmul.f32 %v21, %v32
  %v42 = vmul.f32 %v22, %v32
  %v43 = vmul.f32 %v23, %v32
  %v44 = vmul.f32 %v24, %v32
  %v45 = vmul.f32 %v25, %v32
  %v46 = vmul.f32 %v26, %v32
  %v47 = vmul.f32 %v27, %v32
  %v48 = vmul.f32 %v28, %v32
  %v49 = vmul.f32 %v29, %v32
  %v50 = vld [vmem:[%s2] sm:$0x1]
  %v52 = vperm.slane %v50, 0
  %v54 = vadd.f32 %v34, %v52
  %v55 = vadd.f32 %v35, %v52
  %v56 = vadd.f32 %v36, %v52
  %v57 = vadd.f32 %v37, %v52
  %v58 = vadd.f32 %v38, %v52
  %v59 = vadd.f32 %v39, %v52
  %v60 = vadd.f32 %v40, %v52
  %v61 = vadd.f32 %v41, %v52
  %v62 = vadd.f32 %v42, %v52
  %v63 = vadd.f32 %v43, %v52
  %v64 = vadd.f32 %v44, %v52
  %v65 = vadd.f32 %v45, %v52
  %v66 = vadd.f32 %v46, %v52
  %v67 = vadd.f32 %v47, %v52
  %v68 = vadd.f32 %v48, %v52
  %v69 = vadd.f32 %v49, %v52
  %v70 = vmax.f32 %v54, 0.0
  %v71 = vmax.f32 %v55, 0.0
  %v72 = vmax.f32 %v56, 0.0
  %v73 = vmax.f32 %v57, 0.0
  %v74 = vmax.f32 %v58, 0.0
  %v75 = vmax.f32 %v59, 0.0
  %v76 = vmax.f32 %v60, 0.0
  %v77 = vmax.f32 %v61, 0.0
  %v78 = vmax.f32 %v62, 0.0
  %v79 = vmax.f32 %v63, 0.0
  %v80 = vmax.f32 %v64, 0.0
  %v81 = vmax.f32 %v65, 0.0
  %v82 = vmax.f32 %v66, 0.0
  %v83 = vmax.f32 %v67, 0.0
  %v84 = vmax.f32 %v68, 0.0
  %v85 = vmax.f32 %v69, 0.0
  %v86 = vpack.c.bf16 %v70, %v70
  %v87 = vpack.c.bf16 %v71, %v71
  %v88 = vpack.c.bf16 %v72, %v72
  %v89 = vpack.c.bf16 %v73, %v73
  %v90 = vpack.c.bf16 %v74, %v74
  %v91 = vpack.c.bf16 %v75, %v75
  %v92 = vpack.c.bf16 %v76, %v76
  %v93 = vpack.c.bf16 %v77, %v77
  %v94 = vpack.c.bf16 %v78, %v78
  %v95 = vpack.c.bf16 %v79, %v79
  %v96 = vpack.c.bf16 %v80, %v80
  %v97 = vpack.c.bf16 %v81, %v81
  %v98 = vpack.c.bf16 %v82, %v82
  %v99 = vpack.c.bf16 %v83, %v83
  %v100 = vpack.c.bf16 %v84, %v84
  %v101 = vpack.c.bf16 %v85, %v85
  %102 = vst [vmem:[%s3] sm:$0xf] %v86
  %103 = vst [vmem:[%s3 + $0x4] sm:$0xf] %v87
  %104 = vst [vmem:[%s3 + $0x8] sm:$0xf] %v88
  %105 = vst [vmem:[%s3 + $0xc] sm:$0xf] %v89
  %106 = vst [vmem:[%s3 + $0x10] sm:$0xf] %v90
  %107 = vst [vmem:[%s3 + $0x14] sm:$0xf] %v91
  %108 = vst [vmem:[%s3 + $0x18] sm:$0xf] %v92
  %109 = vst [vmem:[%s3 + $0x1c] sm:$0xf] %v93
  %110 = vst [vmem:[%s3 + $0x20] sm:$0xf] %v94
  %111 = vst [vmem:[%s3 + $0x24] sm:$0xf] %v95
  %112 = vst [vmem:[%s3 + $0x28] sm:$0xf] %v96
  %113 = vst [vmem:[%s3 + $0x2c] sm:$0xf] %v97
  %114 = vst [vmem:[%s3 + $0x30] sm:$0xf] %v98
  %115 = vst [vmem:[%s3 + $0x34] sm:$0xf] %v99
  %116 = vst [vmem:[%s3 + $0x38] sm:$0xf] %v100
  %117 = vst [vmem:[%s3 + $0x3c] sm:$0xf] %v101
  // Predicated region
  $region14: #{forward.15} parent=0 // pred_check
    _
  $region15: #{forward.15} parent=0 // pred_check_branch
    %119 = sbr.rel (0) target = $region17
  $region16: #{forward.15} parent=0 // pred_region
    _
  $region17: #{forward.15} parent=0 // pred_fallthru
    _
  // Predicated region
  $region18: #{forward.15} parent=0 // pred_check
    _
  $region19: #{forward.15} parent=0 // pred_check_branch
    %121 = sbr.rel (0) target = $region21
  $region20: #{forward.15} parent=0 // pred_region
    _
  $region21: #{forward.15} parent=0 // pred_fallthru
    _

// kernel: forward.16
$region0: #{forward.16}
  #allocation0 [shape = 'u32[]', space=smem, size = 0x4, offset = 0x4, fixed_abs, tag = 'smem constant byte address 0x4 - core index']
  #allocation1 [shape = 'u32[72,128]{1,0:T(1,128)}', space=vmem, size = 0x9000, scoped, tag = 'internal scratch']
  %s0 = inlined_call_operand.vmem [shape: bf16[168,128], index: 0, kind: input, shape index: {}]
  %s1 = inlined_call_operand.hbm [shape: bf16[128,128], index: 1, kind: input, shape index: {}]
  %s2 = inlined_call_operand.vmem [shape: bf16[168,128], index: 2, kind: output, shape index: {}]
  %s3 = sld [smem:[#allocation0]]
  $region22: #{forward.16} parent=0
    _
  %s5 = ssub.s32 1, %s3
  %s6 = scalar_select 0, %s5, %s3
  $region1: #{forward.16} parent=0
    #allocation2 [shape = 'u8[32768]{0}', space=vmem, size = 0x8000, scoped, tag = 'input window, operand 1, single buffered']
    #allocation3 [shape = 's32[1]{0}', space=sflag, size = 0x4, scoped, tag = 'scoped memory for forward.16']
    %7 = vsyncpa [#allocation3], 0
    // Predicated region
    $region2: #{forward.16} parent=1 // pred_check
      _
    $region3: #{forward.16} parent=1 // pred_check_branch
      %9 = sbr.rel (0) target = $region5
    $region4: #{forward.16} parent=1 // pred_region
      _
    $region5: #{forward.16} parent=1 // pred_fallthru
      _
    // Predicated region
    $region6: #{forward.16} parent=1 // pred_check
      _
    $region7: #{forward.16} parent=1 // pred_check_branch
      %11 = sbr.rel (0) target = $region9
    $region8: #{forward.16} parent=1 // pred_region
      %13 = vsyncadd [#allocation3], 0
      %s14 = sshll.u32 %s1, 4
      %s15 = int_to_ptr.hbm [resolvable:$true] %s14
      %s16 = sshll.u32 [#allocation2], 4
      %s17 = int_to_ptr.vmem [resolvable:$true] %s16
      %22 = dma.hbm_to_vmem [thread:$0]  %s15, 1024, %s17, [#allocation3], 64, 64, 4
    $region9: #{forward.16} parent=1 // pred_fallthru
      _
    // Predicated region
    $region10: #{forward.16} parent=1 // pred_check
      _
    $region11: #{forward.16} parent=1 // pred_check_branch
      %24 = sbr.rel (0) target = $region13
    $region12: #{forward.16} parent=1 // pred_region
      %26 = dma.done [#allocation3], 1024
    $region13: #{forward.16} parent=1 // pred_fallthru
      _
    %v27 = vld [vmem:[%s0] sm:$0xf]
    %v28 = vld [vmem:[%s0 + $0x4] sm:$0xf]
    %v29 = vld [vmem:[%s0 + $0x8] sm:$0xf]
    %v30 = vld [vmem:[%s0 + $0xc] sm:$0xf]
    %v31 = vld [vmem:[%s0 + $0x10] sm:$0xf]
    %v32 = vld [vmem:[%s0 + $0x14] sm:$0xf]
    %v33 = vld [vmem:[%s0 + $0x18] sm:$0xf]
    %v34 = vld [vmem:[%s0 + $0x1c] sm:$0xf]
    %v35 = vld [vmem:[%s0 + $0x20] sm:$0xf]
    %v36 = vld [vmem:[%s0 + $0x24] sm:$0xf]
    %v37 = vld [vmem:[%s0 + $0x28] sm:$0xf]
    %v38 = vld [vmem:[%s0 + $0x2c] sm:$0xf]
    %v39 = vld [vmem:[%s0 + $0x30] sm:$0xf]
    %v40 = vld [vmem:[%s0 + $0x34] sm:$0xf]
    %v41 = vld [vmem:[%s0 + $0x38] sm:$0xf]
    %v42 = vld [vmem:[%s0 + $0x3c] sm:$0xf]
    %v43 = vld [vmem:[%s0 + $0x40] sm:$0xf]
    %v44 = vld [vmem:[%s0 + $0x44] sm:$0xf]
    %v45 = vld [vmem:[%s0 + $0x48] sm:$0xf]
    %v46 = vld [vmem:[%s0 + $0x4c] sm:$0xf]
    %v47 = vld [vmem:[%s0 + $0x50] sm:$0xf]
    %v48 = vld [vmem:[#allocation2] sm:$0xf]
    %v49 = vld [vmem:[#allocation2 + $0x4] sm:$0xf]
    %v50 = vld [vmem:[#allocation2 + $0x8] sm:$0xf]
    %v51 = vld [vmem:[#allocation2 + $0xc] sm:$0xf]
    %v52 = vld [vmem:[#allocation2 + $0x10] sm:$0xf]
    %v53 = vld [vmem:[#allocation2 + $0x14] sm:$0xf]
    %v54 = vld [vmem:[#allocation2 + $0x18] sm:$0xf]
    %v55 = vld [vmem:[#allocation2 + $0x1c] sm:$0xf]
    %v56 = vld [vmem:[#allocation2 + $0x20] sm:$0xf]
    %v57 = vld [vmem:[#allocation2 + $0x24] sm:$0xf]
    %v58 = vld [vmem:[#allocation2 + $0x28] sm:$0xf]
    %v59 = vld [vmem:[#allocation2 + $0x2c] sm:$0xf]
    %v60 = vld [vmem:[#allocation2 + $0x30] sm:$0xf]
    %v61 = vld [vmem:[#allocation2 + $0x34] sm:$0xf]
    %v62 = vld [vmem:[#allocation2 + $0x38] sm:$0xf]
    %v63 = vld [vmem:[#allocation2 + $0x3c] sm:$0xf]
    %v85 = vunpack.c.l.b16 %v27
    %v86 = vunpack.c.l.b16 %v28
    %v87 = vunpack.c.l.b16 %v29
    %v88 = vunpack.c.l.b16 %v30
    %v89 = vunpack.c.l.b16 %v31
    %v90 = vunpack.c.l.b16 %v32
    %v91 = vunpack.c.l.b16 %v33
    %v92 = vunpack.c.l.b16 %v34
    %v93 = vunpack.c.l.b16 %v35
    %v94 = vunpack.c.l.b16 %v36
    %v95 = vunpack.c.l.b16 %v37
    %v96 = vunpack.c.l.b16 %v38
    %v97 = vunpack.c.l.b16 %v39
    %v98 = vunpack.c.l.b16 %v40
    %v99 = vunpack.c.l.b16 %v41
    %v100 = vunpack.c.l.b16 %v42
    %v101 = vunpack.c.l.b16 %v43
    %v102 = vunpack.c.l.b16 %v44
    %v103 = vunpack.c.l.b16 %v45
    %v104 = vunpack.c.l.b16 %v46
    %v105 = vunpack.c.l.b16 %v47
    %v106 = vpack.c.b16 %v86, %v85
    %v107 = vpack.c.b16 %v88, %v87
    %v108 = vpack.c.b16 %v90, %v89
    %v109 = vpack.c.b16 %v92, %v91
    %v110 = vpack.c.b16 %v94, %v93
    %v111 = vpack.c.b16 %v96, %v95
    %v112 = vpack.c.b16 %v98, %v97
    %v113 = vpack.c.b16 %v100, %v99
    %v114 = vpack.c.b16 %v102, %v101
    %v115 = vpack.c.b16 %v104, %v103
    %v116 = vpack.c.b16 %v105, %v105
    %v144 = vunpack.c.l.b16 %v48
    %v145 = vunpack.c.l.b16 %v49
    %v146 = vunpack.c.l.b16 %v50
    %v147 = vunpack.c.l.b16 %v51
    %v148 = vunpack.c.l.b16 %v52
    %v149 = vunpack.c.l.b16 %v53
    %v150 = vunpack.c.l.b16 %v54
    %v151 = vunpack.c.l.b16 %v55
    %v152 = vunpack.c.l.b16 %v56
    %v153 = vunpack.c.l.b16 %v57
    %v154 = vunpack.c.l.b16 %v58
    %v155 = vunpack.c.l.b16 %v59
    %v156 = vunpack.c.l.b16 %v60
    %v157 = vunpack.c.l.b16 %v61
    %v158 = vunpack.c.l.b16 %v62
    %v159 = vunpack.c.l.b16 %v63
    %v160 = vpack.c.b16 %v145, %v144
    %v161 = vpack.c.b16 %v147, %v146
    %v162 = vpack.c.b16 %v149, %v148
    %v163 = vpack.c.b16 %v151, %v150
    %v164 = vpack.c.b16 %v153, %v152
    %v165 = vpack.c.b16 %v155, %v154
    %v166 = vpack.c.b16 %v157, %v156
    %v167 = vpack.c.b16 %v159, %v158
    %176 = vmatpush.bf16.msra.mxu0 %v167
    %177 = vmatpush.bf16.msra.mxu0 %v166
    %178 = vmatpush.bf16.msra.mxu0 %v165
    %179 = vmatpush.bf16.msra.mxu0 %v164
    %180 = vmatpush.bf16.msra.mxu0 %v163
    %181 = vmatpush.bf16.msra.mxu0 %v162
    %182 = vmatpush.bf16.msra.mxu0 %v161
    %183 = vmatpush.bf16.msra.mxu0 %v160
    %184 = vmatmul.bf16.gmra.mxu0 %v106
    %v185 = vpop.f32.mrf.mxu0
    %v186 = vadd.f32 0.0, %v185
    %v187 = vpop.f32.mrf.mxu0
    %v188 = vadd.f32 0.0, %v187
    %189 = vmatmul.bf16.gmra.mxu0 %v107
    %v190 = vpop.f32.mrf.mxu0
    %v191 = vadd.f32 0.0, %v190
    %v192 = vpop.f32.mrf.mxu0
    %v193 = vadd.f32 0.0, %v192
    %194 = vmatmul.bf16.gmra.mxu0 %v108
    %v195 = vpop.f32.mrf.mxu0
    %v196 = vadd.f32 0.0, %v195
    %v197 = vpop.f32.mrf.mxu0
    %v198 = vadd.f32 0.0, %v197
    %199 = vmatmul.bf16.gmra.mxu0 %v109
    %v200 = vpop.f32.mrf.mxu0
    %v201 = vadd.f32 0.0, %v200
    %v202 = vpop.f32.mrf.mxu0
    %v203 = vadd.f32 0.0, %v202
    %204 = vmatmul.bf16.gmra.mxu0 %v110
    %v205 = vpop.f32.mrf.mxu0
    %v206 = vadd.f32 0.0, %v205
    %v207 = vpop.f32.mrf.mxu0
    %v208 = vadd.f32 0.0, %v207
    %209 = vmatmul.bf16.gmra.mxu0 %v111
    %v210 = vpop.f32.mrf.mxu0
    %v211 = vadd.f32 0.0, %v210
    %v212 = vpop.f32.mrf.mxu0
    %v213 = vadd.f32 0.0, %v212
    %214 = vmatmul.bf16.gmra.mxu0 %v112
    %v215 = vpop.f32.mrf.mxu0
    %v216 = vadd.f32 0.0, %v215
    %v217 = vpop.f32.mrf.mxu0
    %v218 = vadd.f32 0.0, %v217
    %219 = vmatmul.bf16.gmra.mxu0 %v113
    %v220 = vpop.f32.mrf.mxu0
    %v221 = vadd.f32 0.0, %v220
    %v222 = vpop.f32.mrf.mxu0
    %v223 = vadd.f32 0.0, %v222
    %224 = vmatmul.bf16.gmra.mxu0 %v114
    %v225 = vpop.f32.mrf.mxu0
    %v226 = vadd.f32 0.0, %v225
    %v227 = vpop.f32.mrf.mxu0
    %v228 = vadd.f32 0.0, %v227
    %229 = vmatmul.bf16.gmra.mxu0 %v115
    %v230 = vpop.f32.mrf.mxu0
    %v231 = vadd.f32 0.0, %v230
    %v232 = vpop.f32.mrf.mxu0
    %v233 = vadd.f32 0.0, %v232
    %234 = vmatmul.bf16.gmra.mxu0 %v116
    %v235 = vpop.f32.mrf.mxu0
    %v236 = vadd.f32 0.0, %v235
    %v237 = vpop.f32.mrf.mxu0
    %238 = vdwg.mxu0
    %v239 = vpack.c.bf16 %v186, %v186
    %v240 = vpack.c.bf16 %v188, %v188
    %v241 = vpack.c.bf16 %v191, %v191
    %v242 = vpack.c.bf16 %v193, %v193
    %v243 = vpack.c.bf16 %v196, %v196
    %v244 = vpack.c.bf16 %v198, %v198
    %v245 = vpack.c.bf16 %v201, %v201
    %v246 = vpack.c.bf16 %v203, %v203
    %v247 = vpack.c.bf16 %v206, %v206
    %v248 = vpack.c.bf16 %v208, %v208
    %v249 = vpack.c.bf16 %v211, %v211
    %v250 = vpack.c.bf16 %v213, %v213
    %v251 = vpack.c.bf16 %v216, %v216
    %v252 = vpack.c.bf16 %v218, %v218
    %v253 = vpack.c.bf16 %v221, %v221
    %v254 = vpack.c.bf16 %v223, %v223
    %v255 = vpack.c.bf16 %v226, %v226
    %v256 = vpack.c.bf16 %v228, %v228
    %v257 = vpack.c.bf16 %v231, %v231
    %v258 = vpack.c.bf16 %v233, %v233
    %v259 = vpack.c.bf16 %v236, %v236
    %260 = vst [vmem:[%s2] sm:$0xf] %v239
    %261 = vst [vmem:[%s2 + $0x4] sm:$0xf] %v240
    %262 = vst [vmem:[%s2 + $0x8] sm:$0xf] %v241
    %263 = vst [vmem:[%s2 + $0xc] sm:$0xf] %v242
    %264 = vst [vmem:[%s2 + $0x10] sm:$0xf] %v243
    %265 = vst [vmem:[%s2 + $0x14] sm:$0xf] %v244
    %266 = vst [vmem:[%s2 + $0x18] sm:$0xf] %v245
    %267 = vst [vmem:[%s2 + $0x1c] sm:$0xf] %v246
    %268 = vst [vmem:[%s2 + $0x20] sm:$0xf] %v247
    %269 = vst [vmem:[%s2 + $0x24] sm:$0xf] %v248
    %270 = vst [vmem:[%s2 + $0x28] sm:$0xf] %v249
    %271 = vst [vmem:[%s2 + $0x2c] sm:$0xf] %v250
    %272 = vst [vmem:[%s2 + $0x30] sm:$0xf] %v251
    %273 = vst [vmem:[%s2 + $0x34] sm:$0xf] %v252
    %274 = vst [vmem:[%s2 + $0x38] sm:$0xf] %v253
    %275 = vst [vmem:[%s2 + $0x3c] sm:$0xf] %v254
    %276 = vst [vmem:[%s2 + $0x40] sm:$0xf] %v255
    %277 = vst [vmem:[%s2 + $0x44] sm:$0xf] %v256
    %278 = vst [vmem:[%s2 + $0x48] sm:$0xf] %v257
    %279 = vst [vmem:[%s2 + $0x4c] sm:$0xf] %v258
    %280 = vst [vmem:[%s2 + $0x50] sm:$0xf] %v259
    // Predicated region
    $region14: #{forward.16} parent=1 // pred_check
      _
    $region15: #{forward.16} parent=1 // pred_check_branch
      %282 = sbr.rel (0) target = $region17
    $region16: #{forward.16} parent=1 // pred_region
      _
    $region17: #{forward.16} parent=1 // pred_fallthru
      _
    // Predicated region
    $region18: #{forward.16} parent=1 // pred_check
      _
    $region19: #{forward.16} parent=1 // pred_check_branch
      %284 = sbr.rel (0) target = $region21
    $region20: #{forward.16} parent=1 // pred_region
      _
    $region21: #{forward.16} parent=1 // pred_fallthru
      _
    %285 = vsyncpa [#allocation3], 1

// kernel: forward.17
$region0: #{forward.17}
  #allocation0 [shape = 'u32[]', space=smem, size = 0x4, offset = 0x4, fixed_abs, tag = 'smem constant byte address 0x4 - core index']
  #allocation1 [shape = 'u32[72,128]{1,0:T(1,128)}', space=vmem, size = 0x9000, scoped, tag = 'internal scratch']
  %s0 = inlined_call_operand.vmem [shape: bf16[512,256], index: 0, kind: input, shape index: {}]
  %s1 = inlined_call_operand.vmem [shape: bf16[256,128], index: 1, kind: input, shape index: {}]
  %s2 = inlined_call_operand.vmem [shape: f32[512,128], index: 2, kind: output, shape index: {0}]
  %s3 = inlined_call_operand.vmem [shape: f32[1,8,128], index: 3, kind: output, shape index: {1}]
  %s4 = inlined_call_operand.vmem [shape: f32[1,8,128], index: 4, kind: output, shape index: {2}]
  %5 = xla_tuple %s2, %s3, %s4
  %s6 = sld [smem:[#allocation0]]
  $region34: #{forward.17} parent=0
    _
  %s8 = ssub.s32 1, %s6
  %s9 = scalar_select 0, %s8, %s6
  // Predicated region
  $region2: #{forward.17} parent=0 // pred_check
    _
  $region3: #{forward.17} parent=0 // pred_check_branch
    %11 = sbr.rel (0) target = $region5
  $region4: #{forward.17} parent=0 // pred_region
    _
  $region5: #{forward.17} parent=0 // pred_fallthru
    _
  // Predicated region
  $region6: #{forward.17} parent=0 // pred_check
    _
  $region7: #{forward.17} parent=0 // pred_check_branch
    %13 = sbr.rel (0) target = $region9
  $region8: #{forward.17} parent=0 // pred_region
    _
  $region9: #{forward.17} parent=0 // pred_fallthru
    _
  %v14 = vld [vmem:[%s0] sm:$0xff]
  %v15 = vld [vmem:[%s0 + $0x8] sm:$0xff]
  %v16 = vld [vmem:[%s0 + $0x10] sm:$0xff]
  %v17 = vld [vmem:[%s0 + $0x18] sm:$0xff]
  %v18 = vld [vmem:[%s0 + $0x20] sm:$0xff]
  %v19 = vld [vmem:[%s0 + $0x28] sm:$0xff]
  %v20 = vld [vmem:[%s0 + $0x30] sm:$0xff]
  %v21 = vld [vmem:[%s0 + $0x38] sm:$0xff]
  %v22 = vld [vmem:[%s0 + $0x40] sm:$0xff]
  %v23 = vld [vmem:[%s0 + $0x48] sm:$0xff]
  %v24 = vld [vmem:[%s0 + $0x50] sm:$0xff]
  %v25 = vld [vmem:[%s0 + $0x58] sm:$0xff]
  %v26 = vld [vmem:[%s0 + $0x60] sm:$0xff]
  %v27 = vld [vmem:[%s0 + $0x68] sm:$0xff]
  %v28 = vld [vmem:[%s0 + $0x70] sm:$0xff]
  %v29 = vld [vmem:[%s0 + $0x78] sm:$0xff]
  %v30 = vld [vmem:[%s0 + $0x80] sm:$0xff]
  %v31 = vld [vmem:[%s0 + $0x88] sm:$0xff]
  %v32 = vld [vmem:[%s0 + $0x90] sm:$0xff]
  %v33 = vld [vmem:[%s0 + $0x98] sm:$0xff]
  %v34 = vld [vmem:[%s0 + $0xa0] sm:$0xff]
  %v35 = vld [vmem:[%s0 + $0xa8] sm:$0xff]
  %v36 = vld [vmem:[%s0 + $0xb0] sm:$0xff]
  %v37 = vld [vmem:[%s0 + $0xb8] sm:$0xff]
  %v38 = vld [vmem:[%s0 + $0xc0] sm:$0xff]
  %v39 = vld [vmem:[%s0 + $0xc8] sm:$0xff]
  %v40 = vld [vmem:[%s0 + $0xd0] sm:$0xff]
  %v41 = vld [vmem:[%s0 + $0xd8] sm:$0xff]
  %v42 = vld [vmem:[%s0 + $0xe0] sm:$0xff]
  %v43 = vld [vmem:[%s0 + $0xe8] sm:$0xff]
  %v44 = vld [vmem:[%s0 + $0xf0] sm:$0xff]
  %v45 = vld [vmem:[%s0 + $0xf8] sm:$0xff]
  %v46 = vld [vmem:[%s0 + $0x100] sm:$0xff]
  %v47 = vld [vmem:[%s0 + $0x108] sm:$0xff]
  %v48 = vld [vmem:[%s0 + $0x110] sm:$0xff]
  %v49 = vld [vmem:[%s0 + $0x118] sm:$0xff]
  %v50 = vld [vmem:[%s0 + $0x120] sm:$0xff]
  %v51 = vld [vmem:[%s0 + $0x128] sm:$0xff]
  %v52 = vld [vmem:[%s0 + $0x130] sm:$0xff]
  %v53 = vld [vmem:[%s0 + $0x138] sm:$0xff]
  %v54 = vld [vmem:[%s0 + $0x140] sm:$0xff]
  %v55 = vld [vmem:[%s0 + $0x148] sm:$0xff]
  %v56 = vld [vmem:[%s0 + $0x150] sm:$0xff]
  %v57 = vld [vmem:[%s0 + $0x158] sm:$0xff]
  %v58 = vld [vmem:[%s0 + $0x160] sm:$0xff]
  %v59 = vld [vmem:[%s0 + $0x168] sm:$0xff]
  %v60 = vld [vmem:[%s0 + $0x170] sm:$0xff]
  %v61 = vld [vmem:[%s0 + $0x178] sm:$0xff]
  %v62 = vld [vmem:[%s0 + $0x180] sm:$0xff]
  %v63 = vld [vmem:[%s0 + $0x188] sm:$0xff]
  %v64 = vld [vmem:[%s0 + $0x190] sm:$0xff]
  %v65 = vld [vmem:[%s0 + $0x198] sm:$0xff]
  %v66 = vld [vmem:[%s0 + $0x1a0] sm:$0xff]
  %v67 = vld [vmem:[%s0 + $0x1a8] sm:$0xff]
  %v68 = vld [vmem:[%s0 + $0x1b0] sm:$0xff]
  %v69 = vld [vmem:[%s0 + $0x1b8] sm:$0xff]
  %v70 = vld [vmem:[%s0 + $0x1c0] sm:$0xff]
  %v71 = vld [vmem:[%s0 + $0x1c8] sm:$0xff]
  %v72 = vld [vmem:[%s0 + $0x1d0] sm:$0xff]
  %v73 = vld [vmem:[%s0 + $0x1d8] sm:$0xff]
  %v74 = vld [vmem:[%s0 + $0x1e0] sm:$0xff]
  %v75 = vld [vmem:[%s0 + $0x1e8] sm:$0xff]
  %v76 = vld [vmem:[%s0 + $0x1f0] sm:$0xff]
  %v77 = vld [vmem:[%s0 + $0x1f8] sm:$0xff]
  %v78 = vld [vmem:[%s1] sm:$0xf]
  %v79 = vld [vmem:[%s1 + $0x4] sm:$0xf]
  %v80 = vld [vmem:[%s1 + $0x8] sm:$0xf]
  %v81 = vld [vmem:[%s1 + $0xc] sm:$0xf]
  %v82 = vld [vmem:[%s1 + $0x10] sm:$0xf]
  %v83 = vld [vmem:[%s1 + $0x14] sm:$0xf]
  %v84 = vld [vmem:[%s1 + $0x18] sm:$0xf]
  %v85 = vld [vmem:[%s1 + $0x1c] sm:$0xf]
  %v86 = vld [vmem:[%s1 + $0x20] sm:$0xf]
  %v87 = vld [vmem:[%s1 + $0x24] sm:$0xf]
  %v88 = vld [vmem:[%s1 + $0x28] sm:$0xf]
  %v89 = vld [vmem:[%s1 + $0x2c] sm:$0xf]
  %v90 = vld [vmem:[%s1 + $0x30] sm:$0xf]
  %v91 = vld [vmem:[%s1 + $0x34] sm:$0xf]
  %v92 = vld [vmem:[%s1 + $0x38] sm:$0xf]
  %v93 = vld [vmem:[%s1 + $0x3c] sm:$0xf]
  %v94 = vld [vmem:[%s1 + $0x40] sm:$0xf]
  %v95 = vld [vmem:[%s1 + $0x44] sm:$0xf]
  %v96 = vld [vmem:[%s1 + $0x48] sm:$0xf]
  %v97 = vld [vmem:[%s1 + $0x4c] sm:$0xf]
  %v98 = vld [vmem:[%s1 + $0x50] sm:$0xf]
  %v99 = vld [vmem:[%s1 + $0x54] sm:$0xf]
  %v100 = vld [vmem:[%s1 + $0x58] sm:$0xf]
  %v101 = vld [vmem:[%s1 + $0x5c] sm:$0xf]
  %v102 = vld [vmem:[%s1 + $0x60] sm:$0xf]
  %v103 = vld [vmem:[%s1 + $0x64] sm:$0xf]
  %v104 = vld [vmem:[%s1 + $0x68] sm:$0xf]
  %v105 = vld [vmem:[%s1 + $0x6c] sm:$0xf]
  %v106 = vld [vmem:[%s1 + $0x70] sm:$0xf]
  %v107 = vld [vmem:[%s1 + $0x74] sm:$0xf]
  %v108 = vld [vmem:[%s1 + $0x78] sm:$0xf]
  %v109 = vld [vmem:[%s1 + $0x7c] sm:$0xf]
  %v174 = vunpack.c.l.b16 %v14
  %v175 = vunpack.c.h.b16 %v14
  %v176 = vunpack.c.l.b16 %v15
  %v177 = vunpack.c.h.b16 %v15
  %v178 = vunpack.c.l.b16 %v16
  %v179 = vunpack.c.h.b16 %v16
  %v180 = vunpack.c.l.b16 %v17
  %v181 = vunpack.c.h.b16 %v17
  %v182 = vunpack.c.l.b16 %v18
  %v183 = vunpack.c.h.b16 %v18
  %v184 = vunpack.c.l.b16 %v19
  %v185 = vunpack.c.h.b16 %v19
  %v186 = vunpack.c.l.b16 %v20
  %v187 = vunpack.c.h.b16 %v20
  %v188 = vunpack.c.l.b16 %v21
  %v189 = vunpack.c.h.b16 %v21
  %v190 = vunpack.c.l.b16 %v22
  %v191 = vunpack.c.h.b16 %v22
  %v192 = vunpack.c.l.b16 %v23
  %v193 = vunpack.c.h.b16 %v23
  %v194 = vunpack.c.l.b16 %v24
  %v195 = vunpack.c.h.b16 %v24
  %v196 = vunpack.c.l.b16 %v25
  %v197 = vunpack.c.h.b16 %v25
  %v198 = vunpack.c.l.b16 %v26
  %v199 = vunpack.c.h.b16 %v26
  %v200 = vunpack.c.l.b16 %v27
  %v201 = vunpack.c.h.b16 %v27
  %v202 = vunpack.c.l.b16 %v28
  %v203 = vunpack.c.h.b16 %v28
  %v204 = vunpack.c.l.b16 %v29
  %v205 = vunpack.c.h.b16 %v29
  %v206 = vunpack.c.l.b16 %v30
  %v207 = vunpack.c.h.b16 %v30
  %v208 = vunpack.c.l.b16 %v31
  %v209 = vunpack.c.h.b16 %v31
  %v210 = vunpack.c.l.b16 %v32
  %v211 = vunpack.c.h.b16 %v32
  %v212 = vunpack.c.l.b16 %v33
  %v213 = vunpack.c.h.b16 %v33
  %v214 = vunpack.c.l.b16 %v34
  %v215 = vunpack.c.h.b16 %v34
  %v216 = vunpack.c.l.b16 %v35
  %v217 = vunpack.c.h.b16 %v35
  %v218 = vunpack.c.l.b16 %v36
  %v219 = vunpack.c.h.b16 %v36
  %v220 = vunpack.c.l.b16 %v37
  %v221 = vunpack.c.h.b16 %v37
  %v222 = vunpack.c.l.b16 %v38
  %v223 = vunpack.c.h.b16 %v38
  %v224 = vunpack.c.l.b16 %v39
  %v225 = vunpack.c.h.b16 %v39
  %v226 = vunpack.c.l.b16 %v40
  %v227 = vunpack.c.h.b16 %v40
  %v228 = vunpack.c.l.b16 %v41
  %v229 = vunpack.c.h.b16 %v41
  %v230 = vunpack.c.l.b16 %v42
  %v231 = vunpack.c.h.b16 %v42
  %v232 = vunpack.c.l.b16 %v43
  %v233 = vunpack.c.h.b16 %v43
  %v234 = vunpack.c.l.b16 %v44
  %v235 = vunpack.c.h.b16 %v44
  %v236 = vunpack.c.l.b16 %v45
  %v237 = vunpack.c.h.b16 %v45
  %v238 = vunpack.c.l.b16 %v46
  %v239 = vunpack.c.h.b16 %v46
  %v240 = vunpack.c.l.b16 %v47
  %v241 = vunpack.c.h.b16 %v47
  %v242 = vunpack.c.l.b16 %v48
  %v243 = vunpack.c.h.b16 %v48
  %v244 = vunpack.c.l.b16 %v49
  %v245 = vunpack.c.h.b16 %v49
  %v246 = vunpack.c.l.b16 %v50
  %v247 = vunpack.c.h.b16 %v50
  %v248 = vunpack.c.l.b16 %v51
  %v249 = vunpack.c.h.b16 %v51
  %v250 = vunpack.c.l.b16 %v52
  %v251 = vunpack.c.h.b16 %v52
  %v252 = vunpack.c.l.b16 %v53
  %v253 = vunpack.c.h.b16 %v53
  %v254 = vunpack.c.l.b16 %v54
  %v255 = vunpack.c.h.b16 %v54
  %v256 = vunpack.c.l.b16 %v55
  %v257 = vunpack.c.h.b16 %v55
  %v258 = vunpack.c.l.b16 %v56
  %v259 = vunpack.c.h.b16 %v56
  %v260 = vunpack.c.l.b16 %v57
  %v261 = vunpack.c.h.b16 %v57
  %v262 = vunpack.c.l.b16 %v58
  %v263 = vunpack.c.h.b16 %v58
  %v264 = vunpack.c.l.b16 %v59
  %v265 = vunpack.c.h.b16 %v59
  %v266 = vunpack.c.l.b16 %v60
  %v267 = vunpack.c.h.b16 %v60
  %v268 = vunpack.c.l.b16 %v61
  %v269 = vunpack.c.h.b16 %v61
  %v270 = vunpack.c.l.b16 %v62
  %v271 = vunpack.c.h.b16 %v62
  %v272 = vunpack.c.l.b16 %v63
  %v273 = vunpack.c.h.b16 %v63
  %v274 = vunpack.c.l.b16 %v64
  %v275 = vunpack.c.h.b16 %v64
  %v276 = vunpack.c.l.b16 %v65
  %v277 = vunpack.c.h.b16 %v65
  %v278 = vunpack.c.l.b16 %v66
  %v279 = vunpack.c.h.b16 %v66
  %v280 = vunpack.c.l.b16 %v67
  %v281 = vunpack.c.h.b16 %v67
  %v282 = vunpack.c.l.b16 %v68
  %v283 = vunpack.c.h.b16 %v68
  %v284 = vunpack.c.l.b16 %v69
  %v285 = vunpack.c.h.b16 %v69
  %v286 = vunpack.c.l.b16 %v70
  %v287 = vunpack.c.h.b16 %v70
  %v288 = vunpack.c.l.b16 %v71
  %v289 = vunpack.c.h.b16 %v71
  %v290 = vunpack.c.l.b16 %v72
  %v291 = vunpack.c.h.b16 %v72
  %v292 = vunpack.c.l.b16 %v73
  %v293 = vunpack.c.h.b16 %v73
  %v294 = vunpack.c.l.b16 %v74
  %v295 = vunpack.c.h.b16 %v74
  %v296 = vunpack.c.l.b16 %v75
  %v297 = vunpack.c.h.b16 %v75
  %v298 = vunpack.c.l.b16 %v76
  %v299 = vunpack.c.h.b16 %v76
  %v300 = vunpack.c.l.b16 %v77
  %v301 = vunpack.c.h.b16 %v77
  %v302 = vpack.c.b16 %v176, %v174
  %v303 = vpack.c.b16 %v177, %v175
  %v304 = vpack.c.b16 %v180, %v178
  %v305 = vpack.c.b16 %v181, %v179
  %v306 = vpack.c.b16 %v184, %v182
  %v307 = vpack.c.b16 %v185, %v183
  %v308 = vpack.c.b16 %v188, %v186
  %v309 = vpack.c.b16 %v189, %v187
  %v310 = vpack.c.b16 %v192, %v190
  %v311 = vpack.c.b16 %v193, %v191
  %v312 = vpack.c.b16 %v196, %v194
  %v313 = vpack.c.b16 %v197, %v195
  %v314 = vpack.c.b16 %v200, %v198
  %v315 = vpack.c.b16 %v201, %v199
  %v316 = vpack.c.b16 %v204, %v202
  %v317 = vpack.c.b16 %v205, %v203
  %v318 = vpack.c.b16 %v208, %v206
  %v319 = vpack.c.b16 %v209, %v207
  %v320 = vpack.c.b16 %v212, %v210
  %v321 = vpack.c.b16 %v213, %v211
  %v322 = vpack.c.b16 %v216, %v214
  %v323 = vpack.c.b16 %v217, %v215
  %v324 = vpack.c.b16 %v220, %v218
  %v325 = vpack.c.b16 %v221, %v219
  %v326 = vpack.c.b16 %v224, %v222
  %v327 = vpack.c.b16 %v225, %v223
  %v328 = vpack.c.b16 %v228, %v226
  %v329 = vpack.c.b16 %v229, %v227
  %v330 = vpack.c.b16 %v232, %v230
  %v331 = vpack.c.b16 %v233, %v231
  %v332 = vpack.c.b16 %v236, %v234
  %v333 = vpack.c.b16 %v237, %v235
  %v334 = vpack.c.b16 %v240, %v238
  %v335 = vpack.c.b16 %v241, %v239
  %v336 = vpack.c.b16 %v244, %v242
  %v337 = vpack.c.b16 %v245, %v243
  %v338 = vpack.c.b16 %v248, %v246
  %v339 = vpack.c.b16 %v249, %v247
  %v340 = vpack.c.b16 %v252, %v250
  %v341 = vpack.c.b16 %v253, %v251
  %v342 = vpack.c.b16 %v256, %v254
  %v343 = vpack.c.b16 %v257, %v255
  %v344 = vpack.c.b16 %v260, %v258
  %v345 = vpack.c.b16 %v261, %v259
  %v346 = vpack.c.b16 %v264, %v262
  %v347 = vpack.c.b16 %v265, %v263
  %v348 = vpack.c.b16 %v268, %v266
  %v349 = vpack.c.b16 %v269, %v267
  %v350 = vpack.c.b16 %v272, %v270
  %v351 = vpack.c.b16 %v273, %v271
  %v352 = vpack.c.b16 %v276, %v274
  %v353 = vpack.c.b16 %v277, %v275
  %v354 = vpack.c.b16 %v280, %v278
  %v355 = vpack.c.b16 %v281, %v279
  %v356 = vpack.c.b16 %v284, %v282
  %v357 = vpack.c.b16 %v285, %v283
  %v358 = vpack.c.b16 %v288, %v286
  %v359 = vpack.c.b16 %v289, %v287
  %v360 = vpack.c.b16 %v292, %v290
  %v361 = vpack.c.b16 %v293, %v291
  %v362 = vpack.c.b16 %v296, %v294
  %v363 = vpack.c.b16 %v297, %v295
  %v364 = vpack.c.b16 %v300, %v298
  %v365 = vpack.c.b16 %v301, %v299
  %v462 = vunpack.c.l.b16 %v78
  %v463 = vunpack.c.l.b16 %v79
  %v464 = vunpack.c.l.b16 %v80
  %v465 = vunpack.c.l.b16 %v81
  %v466 = vunpack.c.l.b16 %v82
  %v467 = vunpack.c.l.b16 %v83
  %v468 = vunpack.c.l.b16 %v84
  %v469 = vunpack.c.l.b16 %v85
  %v470 = vunpack.c.l.b16 %v86
  %v471 = vunpack.c.l.b16 %v87
  %v472 = vunpack.c.l.b16 %v88
  %v473 = vunpack.c.l.b16 %v89
  %v474 = vunpack.c.l.b16 %v90
  %v475 = vunpack.c.l.b16 %v91
  %v476 = vunpack.c.l.b16 %v92
  %v477 = vunpack.c.l.b16 %v93
  %v478 = vunpack.c.l.b16 %v94
  %v479 = vunpack.c.l.b16 %v95
  %v480 = vunpack.c.l.b16 %v96
  %v481 = vunpack.c.l.b16 %v97
  %v482 = vunpack.c.l.b16 %v98
  %v483 = vunpack.c.l.b16 %v99
  %v484 = vunpack.c.l.b16 %v100
  %v485 = vunpack.c.l.b16 %v101
  %v486 = vunpack.c.l.b16 %v102
  %v487 = vunpack.c.l.b16 %v103
  %v488 = vunpack.c.l.b16 %v104
  %v489 = vunpack.c.l.b16 %v105
  %v490 = vunpack.c.l.b16 %v106
  %v491 = vunpack.c.l.b16 %v107
  %v492 = vunpack.c.l.b16 %v108
  %v493 = vunpack.c.l.b16 %v109
  %v494 = vpack.c.b16 %v463, %v462
  %v495 = vpack.c.b16 %v465, %v464
  %v496 = vpack.c.b16 %v467, %v466
  %v497 = vpack.c.b16 %v469, %v468
  %v498 = vpack.c.b16 %v471, %v470
  %v499 = vpack.c.b16 %v473, %v472
  %v500 = vpack.c.b16 %v475, %v474
  %v501 = vpack.c.b16 %v477, %v476
  %v502 = vpack.c.b16 %v479, %v478
  %v503 = vpack.c.b16 %v481, %v480
  %v504 = vpack.c.b16 %v483, %v482
  %v505 = vpack.c.b16 %v485, %v484
  %v506 = vpack.c.b16 %v487, %v486
  %v507 = vpack.c.b16 %v489, %v488
  %v508 = vpack.c.b16 %v491, %v490
  %v509 = vpack.c.b16 %v493, %v492
  %526 = vmatpush.bf16.msra.mxu0 %v501
  %527 = vmatpush.bf16.msra.mxu0 %v500
  %528 = vmatpush.bf16.msra.mxu0 %v499
  %529 = vmatpush.bf16.msra.mxu0 %v498
  %530 = vmatpush.bf16.msra.mxu0 %v497
  %531 = vmatpush.bf16.msra.mxu0 %v496
  %532 = vmatpush.bf16.msra.mxu0 %v495
  %533 = vmatpush.bf16.msra.mxu0 %v494
  %534 = vmatmul.bf16.gmra.mxu0 %v302
  %v535 = vpop.f32.mrf.mxu0
  %v536 = vadd.f32 0.0, %v535
  %v537 = vpop.f32.mrf.mxu0
  %v538 = vadd.f32 0.0, %v537
  %539 = vmatmul.bf16.gmra.mxu0 %v304
  %v540 = vpop.f32.mrf.mxu0
  %v541 = vadd.f32 0.0, %v540
  %v542 = vpop.f32.mrf.mxu0
  %v543 = vadd.f32 0.0, %v542
  %544 = vmatmul.bf16.gmra.mxu0 %v306
  %v545 = vpop.f32.mrf.mxu0
  %v546 = vadd.f32 0.0, %v545
  %v547 = vpop.f32.mrf.mxu0
  %v548 = vadd.f32 0.0, %v547
  %549 = vmatmul.bf16.gmra.mxu0 %v308
  %v550 = vpop.f32.mrf.mxu0
  %v551 = vadd.f32 0.0, %v550
  %v552 = vpop.f32.mrf.mxu0
  %v553 = vadd.f32 0.0, %v552
  %554 = vmatmul.bf16.gmra.mxu0 %v310
  %v555 = vpop.f32.mrf.mxu0
  %v556 = vadd.f32 0.0, %v555
  %v557 = vpop.f32.mrf.mxu0
  %v558 = vadd.f32 0.0, %v557
  %559 = vmatmul.bf16.gmra.mxu0 %v312
  %v560 = vpop.f32.mrf.mxu0
  %v561 = vadd.f32 0.0, %v560
  %v562 = vpop.f32.mrf.mxu0
  %v563 = vadd.f32 0.0, %v562
  %564 = vmatmul.bf16.gmra.mxu0 %v314
  %v565 = vpop.f32.mrf.mxu0
  %v566 = vadd.f32 0.0, %v565
  %v567 = vpop.f32.mrf.mxu0
  %v568 = vadd.f32 0.0, %v567
  %569 = vmatmul.bf16.gmra.mxu0 %v316
  %v570 = vpop.f32.mrf.mxu0
  %v571 = vadd.f32 0.0, %v570
  %v572 = vpop.f32.mrf.mxu0
  %v573 = vadd.f32 0.0, %v572
  %574 = vmatmul.bf16.gmra.mxu0 %v318
  %v575 = vpop.f32.mrf.mxu0
  %v576 = vadd.f32 0.0, %v575
  %v577 = vpop.f32.mrf.mxu0
  %v578 = vadd.f32 0.0, %v577
  %579 = vmatmul.bf16.gmra.mxu0 %v320
  %v580 = vpop.f32.mrf.mxu0
  %v581 = vadd.f32 0.0, %v580
  %v582 = vpop.f32.mrf.mxu0
  %v583 = vadd.f32 0.0, %v582
  %584 = vmatmul.bf16.gmra.mxu0 %v322
  %v585 = vpop.f32.mrf.mxu0
  %v586 = vadd.f32 0.0, %v585
  %v587 = vpop.f32.mrf.mxu0
  %v588 = vadd.f32 0.0, %v587
  %589 = vmatmul.bf16.gmra.mxu0 %v324
  %v590 = vpop.f32.mrf.mxu0
  %v591 = vadd.f32 0.0, %v590
  %v592 = vpop.f32.mrf.mxu0
  %v593 = vadd.f32 0.0, %v592
  %594 = vmatmul.bf16.gmra.mxu0 %v326
  %v595 = vpop.f32.mrf.mxu0
  %v596 = vadd.f32 0.0, %v595
  %v597 = vpop.f32.mrf.mxu0
  %v598 = vadd.f32 0.0, %v597
  %599 = vmatmul.bf16.gmra.mxu0 %v328
  %v600 = vpop.f32.mrf.mxu0
  %v601 = vadd.f32 0.0, %v600
  %v602 = vpop.f32.mrf.mxu0
  %v603 = vadd.f32 0.0, %v602
  %604 = vmatmul.bf16.gmra.mxu0 %v330
  %v605 = vpop.f32.mrf.mxu0
  %v606 = vadd.f32 0.0, %v605
  %v607 = vpop.f32.mrf.mxu0
  %v608 = vadd.f32 0.0, %v607
  %609 = vmatmul.bf16.gmra.mxu0 %v332
  %v610 = vpop.f32.mrf.mxu0
  %v611 = vadd.f32 0.0, %v610
  %v612 = vpop.f32.mrf.mxu0
  %v613 = vadd.f32 0.0, %v612
  %614 = vmatmul.bf16.gmra.mxu0 %v334
  %v615 = vpop.f32.mrf.mxu0
  %v616 = vadd.f32 0.0, %v615
  %v617 = vpop.f32.mrf.mxu0
  %v618 = vadd.f32 0.0, %v617
  %619 = vmatmul.bf16.gmra.mxu0 %v336
  %v620 = vpop.f32.mrf.mxu0
  %v621 = vadd.f32 0.0, %v620
  %v622 = vpop.f32.mrf.mxu0
  %v623 = vadd.f32 0.0, %v622
  %624 = vmatmul.bf16.gmra.mxu0 %v338
  %v625 = vpop.f32.mrf.mxu0
  %v626 = vadd.f32 0.0, %v625
  %v627 = vpop.f32.mrf.mxu0
  %v628 = vadd.f32 0.0, %v627
  %629 = vmatmul.bf16.gmra.mxu0 %v340
  %v630 = vpop.f32.mrf.mxu0
  %v631 = vadd.f32 0.0, %v630
  %v632 = vpop.f32.mrf.mxu0
  %v633 = vadd.f32 0.0, %v632
  %634 = vmatmul.bf16.gmra.mxu0 %v342
  %v635 = vpop.f32.mrf.mxu0
  %v636 = vadd.f32 0.0, %v635
  %v637 = vpop.f32.mrf.mxu0
  %v638 = vadd.f32 0.0, %v637
  %639 = vmatmul.bf16.gmra.mxu0 %v344
  %v640 = vpop.f32.mrf.mxu0
  %v641 = vadd.f32 0.0, %v640
  %v642 = vpop.f32.mrf.mxu0
  %v643 = vadd.f32 0.0, %v642
  %644 = vmatmul.bf16.gmra.mxu0 %v346
  %v645 = vpop.f32.mrf.mxu0
  %v646 = vadd.f32 0.0, %v645
  %v647 = vpop.f32.mrf.mxu0
  %v648 = vadd.f32 0.0, %v647
  %649 = vmatmul.bf16.gmra.mxu0 %v348
  %v650 = vpop.f32.mrf.mxu0
  %v651 = vadd.f32 0.0, %v650
  %v652 = vpop.f32.mrf.mxu0
  %v653 = vadd.f32 0.0, %v652
  %654 = vmatmul.bf16.gmra.mxu0 %v350
  %v655 = vpop.f32.mrf.mxu0
  %v656 = vadd.f32 0.0, %v655
  %v657 = vpop.f32.mrf.mxu0
  %v658 = vadd.f32 0.0, %v657
  %659 = vmatmul.bf16.gmra.mxu0 %v352
  %v660 = vpop.f32.mrf.mxu0
  %v661 = vadd.f32 0.0, %v660
  %v662 = vpop.f32.mrf.mxu0
  %v663 = vadd.f32 0.0, %v662
  %664 = vmatmul.bf16.gmra.mxu0 %v354
  %v665 = vpop.f32.mrf.mxu0
  %v666 = vadd.f32 0.0, %v665
  %v667 = vpop.f32.mrf.mxu0
  %v668 = vadd.f32 0.0, %v667
  %669 = vmatmul.bf16.gmra.mxu0 %v356
  %v670 = vpop.f32.mrf.mxu0
  %v671 = vadd.f32 0.0, %v670
  %v672 = vpop.f32.mrf.mxu0
  %v673 = vadd.f32 0.0, %v672
  %674 = vmatmul.bf16.gmra.mxu0 %v358
  %v675 = vpop.f32.mrf.mxu0
  %v676 = vadd.f32 0.0, %v675
  %v677 = vpop.f32.mrf.mxu0
  %v678 = vadd.f32 0.0, %v677
  %679 = vmatmul.bf16.gmra.mxu0 %v360
  %v680 = vpop.f32.mrf.mxu0
  %v681 = vadd.f32 0.0, %v680
  %v682 = vpop.f32.mrf.mxu0
  %v683 = vadd.f32 0.0, %v682
  %684 = vmatmul.bf16.gmra.mxu0 %v362
  %v685 = vpop.f32.mrf.mxu0
  %v686 = vadd.f32 0.0, %v685
  %v687 = vpop.f32.mrf.mxu0
  %v688 = vadd.f32 0.0, %v687
  %689 = vmatmul.bf16.gmra.mxu0 %v364
  %v690 = vpop.f32.mrf.mxu0
  %v691 = vadd.f32 0.0, %v690
  %v692 = vpop.f32.mrf.mxu0
  %v693 = vadd.f32 0.0, %v692
  %694 = vdwg.mxu0
  %695 = vmatpush.bf16.msra.mxu0 %v509
  %696 = vmatpush.bf16.msra.mxu0 %v508
  %697 = vmatpush.bf16.msra.mxu0 %v507
  %698 = vmatpush.bf16.msra.mxu0 %v506
  %699 = vmatpush.bf16.msra.mxu0 %v505
  %700 = vmatpush.bf16.msra.mxu0 %v504
  %701 = vmatpush.bf16.msra.mxu0 %v503
  %702 = vmatpush.bf16.msra.mxu0 %v502
  %703 = vmatmul.bf16.gmra.mxu0 %v303
  %v704 = vpop.f32.mrf.mxu0
  %v705 = vadd.f32 %v536, %v704
  %v706 = vpop.f32.mrf.mxu0
  %v707 = vadd.f32 %v538, %v706
  %708 = vmatmul.bf16.gmra.mxu0 %v305
  %v709 = vpop.f32.mrf.mxu0
  %v710 = vadd.f32 %v541, %v709
  %v711 = vpop.f32.mrf.mxu0
  %v712 = vadd.f32 %v543, %v711
  %713 = vmatmul.bf16.gmra.mxu0 %v307
  %v714 = vpop.f32.mrf.mxu0
  %v715 = vadd.f32 %v546, %v714
  %v716 = vpop.f32.mrf.mxu0
  %v717 = vadd.f32 %v548, %v716
  %718 = vmatmul.bf16.gmra.mxu0 %v309
  %v719 = vpop.f32.mrf.mxu0
  %v720 = vadd.f32 %v551, %v719
  %v721 = vpop.f32.mrf.mxu0
  %v722 = vadd.f32 %v553, %v721
  %723 = vmatmul.bf16.gmra.mxu0 %v311
  %v724 = vpop.f32.mrf.mxu0
  %v725 = vadd.f32 %v556, %v724
  %v726 = vpop.f32.mrf.mxu0
  %v727 = vadd.f32 %v558, %v726
  %728 = vmatmul.bf16.gmra.mxu0 %v313
  %v729 = vpop.f32.mrf.mxu0
  %v730 = vadd.f32 %v561, %v729
  %v731 = vpop.f32.mrf.mxu0
  %v732 = vadd.f32 %v563, %v731
  %733 = vmatmul.bf16.gmra.mxu0 %v315
  %v734 = vpop.f32.mrf.mxu0
  %v735 = vadd.f32 %v566, %v734
  %v736 = vpop.f32.mrf.mxu0
  %v737 = vadd.f32 %v568, %v736
  %738 = vmatmul.bf16.gmra.mxu0 %v317
  %v739 = vpop.f32.mrf.mxu0
  %v740 = vadd.f32 %v571, %v739
  %v741 = vpop.f32.mrf.mxu0
  %v742 = vadd.f32 %v573, %v741
  %743 = vmatmul.bf16.gmra.mxu0 %v319
  %v744 = vpop.f32.mrf.mxu0
  %v745 = vadd.f32 %v576, %v744
  %v746 = vpop.f32.mrf.mxu0
  %v747 = vadd.f32 %v578, %v746
  %748 = vmatmul.bf16.gmra.mxu0 %v321
  %v749 = vpop.f32.mrf.mxu0
  %v750 = vadd.f32 %v581, %v749
  %v751 = vpop.f32.mrf.mxu0
  %v752 = vadd.f32 %v583, %v751
  %753 = vmatmul.bf16.gmra.mxu0 %v323
  %v754 = vpop.f32.mrf.mxu0
  %v755 = vadd.f32 %v586, %v754
  %v756 = vpop.f32.mrf.mxu0
  %v757 = vadd.f32 %v588, %v756
  %758 = vmatmul.bf16.gmra.mxu0 %v325
  %v759 = vpop.f32.mrf.mxu0
  %v760 = vadd.f32 %v591, %v759
  %v761 = vpop.f32.mrf.mxu0
  %v762 = vadd.f32 %v593, %v761
  %763 = vmatmul.bf16.gmra.mxu0 %v327
  %v764 = vpop.f32.mrf.mxu0
  %v765 = vadd.f32 %v596, %v764
  %v766 = vpop.f32.mrf.mxu0
  %v767 = vadd.f32 %v598, %v766
  %768 = vmatmul.bf16.gmra.mxu0 %v329
  %v769 = vpop.f32.mrf.mxu0
  %v770 = vadd.f32 %v601, %v769
  %v771 = vpop.f32.mrf.mxu0
  %v772 = vadd.f32 %v603, %v771
  %773 = vmatmul.bf16.gmra.mxu0 %v331
  %v774 = vpop.f32.mrf.mxu0
  %v775 = vadd.f32 %v606, %v774
  %v776 = vpop.f32.mrf.mxu0
  %v777 = vadd.f32 %v608, %v776
  %778 = vmatmul.bf16.gmra.mxu0 %v333
  %v779 = vpop.f32.mrf.mxu0
  %v780 = vadd.f32 %v611, %v779
  %v781 = vpop.f32.mrf.mxu0
  %v782 = vadd.f32 %v613, %v781
  %783 = vmatmul.bf16.gmra.mxu0 %v335
  %v784 = vpop.f32.mrf.mxu0
  %v785 = vadd.f32 %v616, %v784
  %v786 = vpop.f32.mrf.mxu0
  %v787 = vadd.f32 %v618, %v786
  %788 = vmatmul.bf16.gmra.mxu0 %v337
  %v789 = vpop.f32.mrf.mxu0
  %v790 = vadd.f32 %v621, %v789
  %v791 = vpop.f32.mrf.mxu0
  %v792 = vadd.f32 %v623, %v791
  %793 = vmatmul.bf16.gmra.mxu0 %v339
  %v794 = vpop.f32.mrf.mxu0
  %v795 = vadd.f32 %v626, %v794
  %v796 = vpop.f32.mrf.mxu0
  %v797 = vadd.f32 %v628, %v796
  %798 = vmatmul.bf16.gmra.mxu0 %v341
  %v799 = vpop.f32.mrf.mxu0
  %v800 = vadd.f32 %v631, %v799
  %v801 = vpop.f32.mrf.mxu0
  %v802 = vadd.f32 %v633, %v801
  %803 = vmatmul.bf16.gmra.mxu0 %v343
  %v804 = vpop.f32.mrf.mxu0
  %v805 = vadd.f32 %v636, %v804
  %v806 = vpop.f32.mrf.mxu0
  %v807 = vadd.f32 %v638, %v806
  %808 = vmatmul.bf16.gmra.mxu0 %v345
  %v809 = vpop.f32.mrf.mxu0
  %v810 = vadd.f32 %v641, %v809
  %v811 = vpop.f32.mrf.mxu0
  %v812 = vadd.f32 %v643, %v811
  %813 = vmatmul.bf16.gmra.mxu0 %v347
  %v814 = vpop.f32.mrf.mxu0
  %v815 = vadd.f32 %v646, %v814
  %v816 = vpop.f32.mrf.mxu0
  %v817 = vadd.f32 %v648, %v816
  %818 = vmatmul.bf16.gmra.mxu0 %v349
  %v819 = vpop.f32.mrf.mxu0
  %v820 = vadd.f32 %v651, %v819
  %v821 = vpop.f32.mrf.mxu0
  %v822 = vadd.f32 %v653, %v821
  %823 = vmatmul.bf16.gmra.mxu0 %v351
  %v824 = vpop.f32.mrf.mxu0
  %v825 = vadd.f32 %v656, %v824
  %v826 = vpop.f32.mrf.mxu0
  %v827 = vadd.f32 %v658, %v826
  %828 = vmatmul.bf16.gmra.mxu0 %v353
  %v829 = vpop.f32.mrf.mxu0
  %v830 = vadd.f32 %v661, %v829
  %v831 = vpop.f32.mrf.mxu0
  %v832 = vadd.f32 %v663, %v831
  %833 = vmatmul.bf16.gmra.mxu0 %v355
  %v834 = vpop.f32.mrf.mxu0
  %v835 = vadd.f32 %v666, %v834
  %v836 = vpop.f32.mrf.mxu0
  %v837 = vadd.f32 %v668, %v836
  %838 = vmatmul.bf16.gmra.mxu0 %v357
  %v839 = vpop.f32.mrf.mxu0
  %v840 = vadd.f32 %v671, %v839
  %v841 = vpop.f32.mrf.mxu0
  %v842 = vadd.f32 %v673, %v841
  %843 = vmatmul.bf16.gmra.mxu0 %v359
  %v844 = vpop.f32.mrf.mxu0
  %v845 = vadd.f32 %v676, %v844
  %v846 = vpop.f32.mrf.mxu0
  %v847 = vadd.f32 %v678, %v846
  %848 = vmatmul.bf16.gmra.mxu0 %v361
  %v849 = vpop.f32.mrf.mxu0
  %v850 = vadd.f32 %v681, %v849
  %v851 = vpop.f32.mrf.mxu0
  %v852 = vadd.f32 %v683, %v851
  %853 = vmatmul.bf16.gmra.mxu0 %v363
  %v854 = vpop.f32.mrf.mxu0
  %v855 = vadd.f32 %v686, %v854
  %v856 = vpop.f32.mrf.mxu0
  %v857 = vadd.f32 %v688, %v856
  %858 = vmatmul.bf16.gmra.mxu0 %v365
  %v859 = vpop.f32.mrf.mxu0
  %v860 = vadd.f32 %v691, %v859
  %v861 = vpop.f32.mrf.mxu0
  %v862 = vadd.f32 %v693, %v861
  %863 = vdwg.mxu0
  %864 = vst [vmem:[%s2] sm:$0xff] %v705
  %865 = vst [vmem:[%s2 + $0x8] sm:$0xff] %v707
  %866 = vst [vmem:[%s2 + $0x10] sm:$0xff] %v710
  %867 = vst [vmem:[%s2 + $0x18] sm:$0xff] %v712
  %868 = vst [vmem:[%s2 + $0x20] sm:$0xff] %v715
  %869 = vst [vmem:[%s2 + $0x28] sm:$0xff] %v717
  %870 = vst [vmem:[%s2 + $0x30] sm:$0xff] %v720
  %871 = vst [vmem:[%s2 + $0x38] sm:$0xff] %v722
  %872 = vst [vmem:[%s2 + $0x40] sm:$0xff] %v725
  %873 = vst [vmem:[%s2 + $0x48] sm:$0xff] %v727
  %874 = vst [vmem:[%s2 + $0x50] sm:$0xff] %v730
  %875 = vst [vmem:[%s2 + $0x58] sm:$0xff] %v732
  %876 = vst [vmem:[%s2 + $0x60] sm:$0xff] %v735
  %877 = vst [vmem:[%s2 + $0x68] sm:$0xff] %v737
  %878 = vst [vmem:[%s2 + $0x70] sm:$0xff] %v740
  %879 = vst [vmem:[%s2 + $0x78] sm:$0xff] %v742
  %880 = vst [vmem:[%s2 + $0x80] sm:$0xff] %v745
  %881 = vst [vmem:[%s2 + $0x88] sm:$0xff] %v747
  %882 = vst [vmem:[%s2 + $0x90] sm:$0xff] %v750
  %883 = vst [vmem:[%s2 + $0x98] sm:$0xff] %v752
  %884 = vst [vmem:[%s2 + $0xa0] sm:$0xff] %v755
  %885 = vst [vmem:[%s2 + $0xa8] sm:$0xff] %v757
  %886 = vst [vmem:[%s2 + $0xb0] sm:$0xff] %v760
  %887 = vst [vmem:[%s2 + $0xb8] sm:$0xff] %v762
  %888 = vst [vmem:[%s2 + $0xc0] sm:$0xff] %v765
  %889 = vst [vmem:[%s2 + $0xc8] sm:$0xff] %v767
  %890 = vst [vmem:[%s2 + $0xd0] sm:$0xff] %v770
  %891 = vst [vmem:[%s2 + $0xd8] sm:$0xff] %v772
  %892 = vst [vmem:[%s2 + $0xe0] sm:$0xff] %v775
  %893 = vst [vmem:[%s2 + $0xe8] sm:$0xff] %v777
  %894 = vst [vmem:[%s2 + $0xf0] sm:$0xff] %v780
  %895 = vst [vmem:[%s2 + $0xf8] sm:$0xff] %v782
  %896 = vst [vmem:[%s2 + $0x100] sm:$0xff] %v785
  %897 = vst [vmem:[%s2 + $0x108] sm:$0xff] %v787
  %898 = vst [vmem:[%s2 + $0x110] sm:$0xff] %v790
  %899 = vst [vmem:[%s2 + $0x118] sm:$0xff] %v792
  %900 = vst [vmem:[%s2 + $0x120] sm:$0xff] %v795
  %901 = vst [vmem:[%s2 + $0x128] sm:$0xff] %v797
  %902 = vst [vmem:[%s2 + $0x130] sm:$0xff] %v800
  %903 = vst [vmem:[%s2 + $0x138] sm:$0xff] %v802
  %904 = vst [vmem:[%s2 + $0x140] sm:$0xff] %v805
  %905 = vst [vmem:[%s2 + $0x148] sm:$0xff] %v807
  %906 = vst [vmem:[%s2 + $0x150] sm:$0xff] %v810
  %907 = vst [vmem:[%s2 + $0x158] sm:$0xff] %v812
  %908 = vst [vmem:[%s2 + $0x160] sm:$0xff] %v815
  %909 = vst [vmem:[%s2 + $0x168] sm:$0xff] %v817
  %910 = vst [vmem:[%s2 + $0x170] sm:$0xff] %v820
  %911 = vst [vmem:[%s2 + $0x178] sm:$0xff] %v822
  %912 = vst [vmem:[%s2 + $0x180] sm:$0xff] %v825
  %913 = vst [vmem:[%s2 + $0x188] sm:$0xff] %v827
  %914 = vst [vmem:[%s2 + $0x190] sm:$0xff] %v830
  %915 = vst [vmem:[%s2 + $0x198] sm:$0xff] %v832
  %916 = vst [vmem:[%s2 + $0x1a0] sm:$0xff] %v835
  %917 = vst [vmem:[%s2 + $0x1a8] sm:$0xff] %v837
  %918 = vst [vmem:[%s2 + $0x1b0] sm:$0xff] %v840
  %919 = vst [vmem:[%s2 + $0x1b8] sm:$0xff] %v842
  %920 = vst [vmem:[%s2 + $0x1c0] sm:$0xff] %v845
  %921 = vst [vmem:[%s2 + $0x1c8] sm:$0xff] %v847
  %922 = vst [vmem:[%s2 + $0x1d0] sm:$0xff] %v850
  %923 = vst [vmem:[%s2 + $0x1d8] sm:$0xff] %v852
  %924 = vst [vmem:[%s2 + $0x1e0] sm:$0xff] %v855
  %925 = vst [vmem:[%s2 + $0x1e8] sm:$0xff] %v857
  %926 = vst [vmem:[%s2 + $0x1f0] sm:$0xff] %v860
  %927 = vst [vmem:[%s2 + $0x1f8] sm:$0xff] %v862
  %v928 = vadd.f32 %v705, %v707
  %v929 = vadd.f32 %v928, %v710
  %v930 = vadd.f32 %v929, %v712
  %v931 = vadd.f32 %v930, %v715
  %v932 = vadd.f32 %v931, %v717
  %v933 = vadd.f32 %v932, %v720
  %v934 = vadd.f32 %v933, %v722
  %v935 = vadd.f32 %v934, %v725
  %v936 = vadd.f32 %v935, %v727
  %v937 = vadd.f32 %v936, %v730
  %v938 = vadd.f32 %v937, %v732
  %v939 = vadd.f32 %v938, %v735
  %v940 = vadd.f32 %v939, %v737
  %v941 = vadd.f32 %v940, %v740
  %v942 = vadd.f32 %v941, %v742
  %v943 = vadd.f32 %v942, %v745
  %v944 = vadd.f32 %v943, %v747
  %v945 = vadd.f32 %v944, %v750
  %v946 = vadd.f32 %v945, %v752
  %v947 = vadd.f32 %v946, %v755
  %v948 = vadd.f32 %v947, %v757
  %v949 = vadd.f32 %v948, %v760
  %v950 = vadd.f32 %v949, %v762
  %v951 = vadd.f32 %v950, %v765
  %v952 = vadd.f32 %v951, %v767
  %v953 = vadd.f32 %v952, %v770
  %v954 = vadd.f32 %v953, %v772
  %v955 = vadd.f32 %v954, %v775
  %v956 = vadd.f32 %v955, %v777
  %v957 = vadd.f32 %v956, %v780
  %v958 = vadd.f32 %v957, %v782
  %v959 = vadd.f32 %v958, %v785
  %v960 = vadd.f32 %v959, %v787
  %v961 = vadd.f32 %v960, %v790
  %v962 = vadd.f32 %v961, %v792
  %v963 = vadd.f32 %v962, %v795
  %v964 = vadd.f32 %v963, %v797
  %v965 = vadd.f32 %v964, %v800
  %v966 = vadd.f32 %v965, %v802
  %v967 = vadd.f32 %v966, %v805
  %v968 = vadd.f32 %v967, %v807
  %v969 = vadd.f32 %v968, %v810
  %v970 = vadd.f32 %v969, %v812
  %v971 = vadd.f32 %v970, %v815
  %v972 = vadd.f32 %v971, %v817
  %v973 = vadd.f32 %v972, %v820
  %v974 = vadd.f32 %v973, %v822
  %v975 = vadd.f32 %v974, %v825
  %v976 = vadd.f32 %v975, %v827
  %v977 = vadd.f32 %v976, %v830
  %v978 = vadd.f32 %v977, %v832
  %v979 = vadd.f32 %v978, %v835
  %v980 = vadd.f32 %v979, %v837
  %v981 = vadd.f32 %v980, %v840
  %v982 = vadd.f32 %v981, %v842
  %v983 = vadd.f32 %v982, %v845
  %v984 = vadd.f32 %v983, %v847
  %v985 = vadd.f32 %v984, %v850
  %v986 = vadd.f32 %v985, %v852
  %v987 = vadd.f32 %v986, %v855
  %v988 = vadd.f32 %v987, %v857
  %v989 = vadd.f32 %v988, %v860
  %v990 = vadd.f32 %v989, %v862
  %v991 = vrot.slane %v990, 4
  %v992 = vadd.f32 %v990, %v991
  %v993 = vrot.slane %v992, 2
  %v994 = vadd.f32 %v992, %v993
  %v995 = vrot.slane %v994, 1
  %v996 = vadd.f32 %v994, %v995
  %997 = vst [vmem:[%s3] sm:$0xff] %v996
  %v998 = vmul.f32 %v705, %v705
  %v999 = vmul.f32 %v707, %v707
  %v1000 = vmul.f32 %v710, %v710
  %v1001 = vmul.f32 %v712, %v712
  %v1002 = vmul.f32 %v715, %v715
  %v1003 = vmul.f32 %v717, %v717
  %v1004 = vmul.f32 %v720, %v720
  %v1005 = vmul.f32 %v722, %v722
  %v1006 = vmul.f32 %v725, %v725
  %v1007 = vmul.f32 %v727, %v727
  %v1008 = vmul.f32 %v730, %v730
  %v1009 = vmul.f32 %v732, %v732
  %v1010 = vmul.f32 %v735, %v735
  %v1011 = vmul.f32 %v737, %v737
  %v1012 = vmul.f32 %v740, %v740
  %v1013 = vmul.f32 %v742, %v742
  %v1014 = vmul.f32 %v745, %v745
  %v1015 = vmul.f32 %v747, %v747
  %v1016 = vmul.f32 %v750, %v750
  %v1017 = vmul.f32 %v752, %v752
  %v1018 = vmul.f32 %v755, %v755
  %v1019 = vmul.f32 %v757, %v757
  %v1020 = vmul.f32 %v760, %v760
  %v1021 = vmul.f32 %v762, %v762
  %v1022 = vmul.f32 %v765, %v765
  %v1023 = vmul.f32 %v767, %v767
  %v1024 = vmul.f32 %v770, %v770
  %v1025 = vmul.f32 %v772, %v772
  %v1026 = vmul.f32 %v775, %v775
  %v1027 = vmul.f32 %v777, %v777
  %v1028 = vmul.f32 %v780, %v780
  %v1029 = vmul.f32 %v782, %v782
  %v1030 = vmul.f32 %v785, %v785
  %v1031 = vmul.f32 %v787, %v787
  %v1032 = vmul.f32 %v790, %v790
  %v1033 = vmul.f32 %v792, %v792
  %v1034 = vmul.f32 %v795, %v795
  %v1035 = vmul.f32 %v797, %v797
  %v1036 = vmul.f32 %v800, %v800
  %v1037 = vmul.f32 %v802, %v802
  %v1038 = vmul.f32 %v805, %v805
  %v1039 = vmul.f32 %v807, %v807
  %v1040 = vmul.f32 %v810, %v810
  %v1041 = vmul.f32 %v812, %v812
  %v1042 = vmul.f32 %v815, %v815
  %v1043 = vmul.f32 %v817, %v817
  %v1044 = vmul.f32 %v820, %v820
  %v1045 = vmul.f32 %v822, %v822
  %v1046 = vmul.f32 %v825, %v825
  %v1047 = vmul.f32 %v827, %v827
  %v1048 = vmul.f32 %v830, %v830
  %v1049 = vmul.f32 %v832, %v832
  %v1050 = vmul.f32 %v835, %v835
  %v1051 = vmul.f32 %v837, %v837
  %v1052 = vmul.f32 %v840, %v840
  %v1053 = vmul.f32 %v842, %v842
  %v1054 = vmul.f32 %v845, %v845
  %v1055 = vmul.f32 %v847, %v847
  %v1056 = vmul.f32 %v850, %v850
  %v1057 = vmul.f32 %v852, %v852
  %v1058 = vmul.f32 %v855, %v855
  %v1059 = vmul.f32 %v857, %v857
  %v1060 = vmul.f32 %v860, %v860
  %v1061 = vmul.f32 %v862, %v862
  %v1062 = vadd.f32 %v998, %v999
  %v1063 = vadd.f32 %v1062, %v1000
  %v1064 = vadd.f32 %v1063, %v1001
  %v1065 = vadd.f32 %v1064, %v1002
  %v1066 = vadd.f32 %v1065, %v1003
  %v1067 = vadd.f32 %v1066, %v1004
  %v1068 = vadd.f32 %v1067, %v1005
  %v1069 = vadd.f32 %v1068, %v1006
  %v1070 = vadd.f32 %v1069, %v1007
  %v1071 = vadd.f32 %v1070, %v1008
  %v1072 = vadd.f32 %v1071, %v1009
  %v1073 = vadd.f32 %v1072, %v1010
  %v1074 = vadd.f32 %v1073, %v1011
  %v1075 = vadd.f32 %v1074, %v1012
  %v1076 = vadd.f32 %v1075, %v1013
  %v1077 = vadd.f32 %v1076, %v1014
  %v1078 = vadd.f32 %v1077, %v1015
  %v1079 = vadd.f32 %v1078, %v1016
  %v1080 = vadd.f32 %v1079, %v1017
  %v1081 = vadd.f32 %v1080, %v1018
  %v1082 = vadd.f32 %v1081, %v1019
  %v1083 = vadd.f32 %v1082, %v1020
  %v1084 = vadd.f32 %v1083, %v1021
  %v1085 = vadd.f32 %v1084, %v1022
  %v1086 = vadd.f32 %v1085, %v1023
  %v1087 = vadd.f32 %v1086, %v1024
  %v1088 = vadd.f32 %v1087, %v1025
  %v1089 = vadd.f32 %v1088, %v1026
  %v1090 = vadd.f32 %v1089, %v1027
  %v1091 = vadd.f32 %v1090, %v1028
  %v1092 = vadd.f32 %v1091, %v1029
  %v1093 = vadd.f32 %v1092, %v1030
  %v1094 = vadd.f32 %v1093, %v1031
  %v1095 = vadd.f32 %v1094, %v1032
  %v1096 = vadd.f32 %v1095, %v1033
  %v1097 = vadd.f32 %v1096, %v1034
  %v1098 = vadd.f32 %v1097, %v1035
  %v1099 = vadd.f32 %v1098, %v1036
  %v1100 = vadd.f32 %v1099, %v1037
  %v1101 = vadd.f32 %v1100, %v1038
  %v1102 = vadd.f32 %v1101, %v1039
  %v1103 = vadd.f32 %v1102, %v1040
  %v1104 = vadd.f32 %v1103, %v1041
  %v1105 = vadd.f32 %v1104, %v1042
  %v1106 = vadd.f32 %v1105, %v1043
  %v1107 = vadd.f32 %v1106, %v1044
  %v1108 = vadd.f32 %v1107, %v1045
  %v1109 = vadd.f32 %v1108, %v1046
  %v1110 = vadd.f32 %v1109, %v1047
  %v1111 = vadd.f32 %v1110, %v1048
  %v1112 = vadd.f32 %v1111, %v1049
  %v1113 = vadd.f32 %v1112, %v1050
  %v1114 = vadd.f32 %v1113, %v1051
  %v1115 = vadd.f32 %v1114, %v1052
  %v1116 = vadd.f32 %v1115, %v1053
  %v1117 = vadd.f32 %v1116, %v1054
  %v1118 = vadd.f32 %v1117, %v1055
  %v1119 = vadd.f32 %v1118, %v1056
  %v1120 = vadd.f32 %v1119, %v1057
  %v1121 = vadd.f32 %v1120, %v1058
  %v1122 = vadd.f32 %v1121, %v1059
  %v1123 = vadd.f32 %v1122, %v1060
  %v1124 = vadd.f32 %v1123, %v1061
  %v1125 = vrot.slane %v1124, 4
  %v1126 = vadd.f32 %v1124, %v1125
  %v1127 = vrot.slane %v1126, 2
  %v1128 = vadd.f32 %v1126, %v1127
  %v1129 = vrot.slane %v1128, 1
  %v1130 = vadd.f32 %v1128, %v1129
  %1131 = vst [vmem:[%s4] sm:$0xff] %v1130
  // Predicated region
  $region10: #{forward.17} parent=0 // pred_check
    _
  $region11: #{forward.17} parent=0 // pred_check_branch
    %1133 = sbr.rel (0) target = $region13
  $region12: #{forward.17} parent=0 // pred_region
    _
  $region13: #{forward.17} parent=0 // pred_fallthru
    _
  // Predicated region
  $region14: #{forward.17} parent=0 // pred_check
    _
  $region15: #{forward.17} parent=0 // pred_check_branch
    %1135 = sbr.rel (0) target = $region17
  $region16: #{forward.17} parent=0 // pred_region
    _
  $region17: #{forward.17} parent=0 // pred_fallthru
    _
  // Predicated region
  $region18: #{forward.17} parent=0 // pred_check
    _
  $region19: #{forward.17} parent=0 // pred_check_branch
    %1137 = sbr.rel (0) target = $region21
  $region20: #{forward.17} parent=0 // pred_region
    _
  $region21: #{forward.17} parent=0 // pred_fallthru
    _
  // Predicated region
  $region22: #{forward.17} parent=0 // pred_check
    _
  $region23: #{forward.17} parent=0 // pred_check_branch
    %1139 = sbr.rel (0) target = $region25
  $region24: #{forward.17} parent=0 // pred_region
    _
  $region25: #{forward.17} parent=0 // pred_fallthru
    _
  // Predicated region
  $region26: #{forward.17} parent=0 // pred_check
    _
  $region27: #{forward.17} parent=0 // pred_check_branch
    %1141 = sbr.rel (0) target = $region29
  $region28: #{forward.17} parent=0 // pred_region
    _
  $region29: #{forward.17} parent=0 // pred_fallthru
    _
  // Predicated region
  $region30: #{forward.17} parent=0 // pred_check
    _
  $region31: #{forward.17} parent=0 // pred_check_branch
    %1143 = sbr.rel (0) target = $region33
  $region32: #{forward.17} parent=0 // pred_region
    _
  $region33: #{forward.17} parent=0 // pred_fallthru
    _

// kernel: forward.18
$region0: #{forward.18}
  #allocation0 [shape = 'u32[]', space=smem, size = 0x4, offset = 0x4, fixed_abs, tag = 'smem constant byte address 0x4 - core index']
  #allocation1 [shape = 'u32[72,128]{1,0:T(1,128)}', space=vmem, size = 0x9000, scoped, tag = 'internal scratch']
  %s0 = inlined_call_operand.vmem [shape: f32[512,128], index: 0, kind: input, shape index: {}]
  %s1 = inlined_call_operand.vmem [shape: f32[1,128], index: 1, kind: input, shape index: {}]
  %s2 = inlined_call_operand.vmem [shape: f32[1,128], index: 2, kind: input, shape index: {}]
  %s3 = inlined_call_operand.vmem [shape: bf16[512,128], index: 3, kind: output, shape index: {}]
  %s4 = sld [smem:[#allocation0]]
  $region22: #{forward.18} parent=0
    _
  %s6 = ssub.s32 1, %s4
  %s7 = scalar_select 0, %s6, %s4
  // Predicated region
  $region2: #{forward.18} parent=0 // pred_check
    _
  $region3: #{forward.18} parent=0 // pred_check_branch
    %9 = sbr.rel (0) target = $region5
  $region4: #{forward.18} parent=0 // pred_region
    _
  $region5: #{forward.18} parent=0 // pred_fallthru
    _
  // Predicated region
  $region6: #{forward.18} parent=0 // pred_check
    _
  $region7: #{forward.18} parent=0 // pred_check_branch
    %11 = sbr.rel (0) target = $region9
  $region8: #{forward.18} parent=0 // pred_region
    _
  $region9: #{forward.18} parent=0 // pred_fallthru
    _
  // Predicated region
  $region10: #{forward.18} parent=0 // pred_check
    _
  $region11: #{forward.18} parent=0 // pred_check_branch
    %13 = sbr.rel (0) target = $region13
  $region12: #{forward.18} parent=0 // pred_region
    _
  $region13: #{forward.18} parent=0 // pred_fallthru
    _
  %v14 = vld [vmem:[%s0] sm:$0xff]
  %v15 = vld [vmem:[%s0 + $0x8] sm:$0xff]
  %v16 = vld [vmem:[%s0 + $0x10] sm:$0xff]
  %v17 = vld [vmem:[%s0 + $0x18] sm:$0xff]
  %v18 = vld [vmem:[%s0 + $0x20] sm:$0xff]
  %v19 = vld [vmem:[%s0 + $0x28] sm:$0xff]
  %v20 = vld [vmem:[%s0 + $0x30] sm:$0xff]
  %v21 = vld [vmem:[%s0 + $0x38] sm:$0xff]
  %v22 = vld [vmem:[%s0 + $0x40] sm:$0xff]
  %v23 = vld [vmem:[%s0 + $0x48] sm:$0xff]
  %v24 = vld [vmem:[%s0 + $0x50] sm:$0xff]
  %v25 = vld [vmem:[%s0 + $0x58] sm:$0xff]
  %v26 = vld [vmem:[%s0 + $0x60] sm:$0xff]
  %v27 = vld [vmem:[%s0 + $0x68] sm:$0xff]
  %v28 = vld [vmem:[%s0 + $0x70] sm:$0xff]
  %v29 = vld [vmem:[%s0 + $0x78] sm:$0xff]
  %v30 = vld [vmem:[%s0 + $0x80] sm:$0xff]
  %v31 = vld [vmem:[%s0 + $0x88] sm:$0xff]
  %v32 = vld [vmem:[%s0 + $0x90] sm:$0xff]
  %v33 = vld [vmem:[%s0 + $0x98] sm:$0xff]
  %v34 = vld [vmem:[%s0 + $0xa0] sm:$0xff]
  %v35 = vld [vmem:[%s0 + $0xa8] sm:$0xff]
  %v36 = vld [vmem:[%s0 + $0xb0] sm:$0xff]
  %v37 = vld [vmem:[%s0 + $0xb8] sm:$0xff]
  %v38 = vld [vmem:[%s0 + $0xc0] sm:$0xff]
  %v39 = vld [vmem:[%s0 + $0xc8] sm:$0xff]
  %v40 = vld [vmem:[%s0 + $0xd0] sm:$0xff]
  %v41 = vld [vmem:[%s0 + $0xd8] sm:$0xff]
  %v42 = vld [vmem:[%s0 + $0xe0] sm:$0xff]
  %v43 = vld [vmem:[%s0 + $0xe8] sm:$0xff]
  %v44 = vld [vmem:[%s0 + $0xf0] sm:$0xff]
  %v45 = vld [vmem:[%s0 + $0xf8] sm:$0xff]
  %v46 = vld [vmem:[%s0 + $0x100] sm:$0xff]
  %v47 = vld [vmem:[%s0 + $0x108] sm:$0xff]
  %v48 = vld [vmem:[%s0 + $0x110] sm:$0xff]
  %v49 = vld [vmem:[%s0 + $0x118] sm:$0xff]
  %v50 = vld [vmem:[%s0 + $0x120] sm:$0xff]
  %v51 = vld [vmem:[%s0 + $0x128] sm:$0xff]
  %v52 = vld [vmem:[%s0 + $0x130] sm:$0xff]
  %v53 = vld [vmem:[%s0 + $0x138] sm:$0xff]
  %v54 = vld [vmem:[%s0 + $0x140] sm:$0xff]
  %v55 = vld [vmem:[%s0 + $0x148] sm:$0xff]
  %v56 = vld [vmem:[%s0 + $0x150] sm:$0xff]
  %v57 = vld [vmem:[%s0 + $0x158] sm:$0xff]
  %v58 = vld [vmem:[%s0 + $0x160] sm:$0xff]
  %v59 = vld [vmem:[%s0 + $0x168] sm:$0xff]
  %v60 = vld [vmem:[%s0 + $0x170] sm:$0xff]
  %v61 = vld [vmem:[%s0 + $0x178] sm:$0xff]
  %v62 = vld [vmem:[%s0 + $0x180] sm:$0xff]
  %v63 = vld [vmem:[%s0 + $0x188] sm:$0xff]
  %v64 = vld [vmem:[%s0 + $0x190] sm:$0xff]
  %v65 = vld [vmem:[%s0 + $0x198] sm:$0xff]
  %v66 = vld [vmem:[%s0 + $0x1a0] sm:$0xff]
  %v67 = vld [vmem:[%s0 + $0x1a8] sm:$0xff]
  %v68 = vld [vmem:[%s0 + $0x1b0] sm:$0xff]
  %v69 = vld [vmem:[%s0 + $0x1b8] sm:$0xff]
  %v70 = vld [vmem:[%s0 + $0x1c0] sm:$0xff]
  %v71 = vld [vmem:[%s0 + $0x1c8] sm:$0xff]
  %v72 = vld [vmem:[%s0 + $0x1d0] sm:$0xff]
  %v73 = vld [vmem:[%s0 + $0x1d8] sm:$0xff]
  %v74 = vld [vmem:[%s0 + $0x1e0] sm:$0xff]
  %v75 = vld [vmem:[%s0 + $0x1e8] sm:$0xff]
  %v76 = vld [vmem:[%s0 + $0x1f0] sm:$0xff]
  %v77 = vld [vmem:[%s0 + $0x1f8] sm:$0xff]
  %v78 = vld [vmem:[%s1] sm:$0x1]
  %v80 = vperm.slane %v78, 0
  %v82 = vmul.f32 %v14, %v80
  %v83 = vmul.f32 %v15, %v80
  %v84 = vmul.f32 %v16, %v80
  %v85 = vmul.f32 %v17, %v80
  %v86 = vmul.f32 %v18, %v80
  %v87 = vmul.f32 %v19, %v80
  %v88 = vmul.f32 %v20, %v80
  %v89 = vmul.f32 %v21, %v80
  %v90 = vmul.f32 %v22, %v80
  %v91 = vmul.f32 %v23, %v80
  %v92 = vmul.f32 %v24, %v80
  %v93 = vmul.f32 %v25, %v80
  %v94 = vmul.f32 %v26, %v80
  %v95 = vmul.f32 %v27, %v80
  %v96 = vmul.f32 %v28, %v80
  %v97 = vmul.f32 %v29, %v80
  %v98 = vmul.f32 %v30, %v80
  %v99 = vmul.f32 %v31, %v80
  %v100 = vmul.f32 %v32, %v80
  %v101 = vmul.f32 %v33, %v80
  %v102 = vmul.f32 %v34, %v80
  %v103 = vmul.f32 %v35, %v80
  %v104 = vmul.f32 %v36, %v80
  %v105 = vmul.f32 %v37, %v80
  %v106 = vmul.f32 %v38, %v80
  %v107 = vmul.f32 %v39, %v80
  %v108 = vmul.f32 %v40, %v80
  %v109 = vmul.f32 %v41, %v80
  %v110 = vmul.f32 %v42, %v80
  %v111 = vmul.f32 %v43, %v80
  %v112 = vmul.f32 %v44, %v80
  %v113 = vmul.f32 %v45, %v80
  %v114 = vmul.f32 %v46, %v80
  %v115 = vmul.f32 %v47, %v80
  %v116 = vmul.f32 %v48, %v80
  %v117 = vmul.f32 %v49, %v80
  %v118 = vmul.f32 %v50, %v80
  %v119 = vmul.f32 %v51, %v80
  %v120 = vmul.f32 %v52, %v80
  %v121 = vmul.f32 %v53, %v80
  %v122 = vmul.f32 %v54, %v80
  %v123 = vmul.f32 %v55, %v80
  %v124 = vmul.f32 %v56, %v80
  %v125 = vmul.f32 %v57, %v80
  %v126 = vmul.f32 %v58, %v80
  %v127 = vmul.f32 %v59, %v80
  %v128 = vmul.f32 %v60, %v80
  %v129 = vmul.f32 %v61, %v80
  %v130 = vmul.f32 %v62, %v80
  %v131 = vmul.f32 %v63, %v80
  %v132 = vmul.f32 %v64, %v80
  %v133 = vmul.f32 %v65, %v80
  %v134 = vmul.f32 %v66, %v80
  %v135 = vmul.f32 %v67, %v80
  %v136 = vmul.f32 %v68, %v80
  %v137 = vmul.f32 %v69, %v80
  %v138 = vmul.f32 %v70, %v80
  %v139 = vmul.f32 %v71, %v80
  %v140 = vmul.f32 %v72, %v80
  %v141 = vmul.f32 %v73, %v80
  %v142 = vmul.f32 %v74, %v80
  %v143 = vmul.f32 %v75, %v80
  %v144 = vmul.f32 %v76, %v80
  %v145 = vmul.f32 %v77, %v80
  %v146 = vld [vmem:[%s2] sm:$0x1]
  %v148 = vperm.slane %v146, 0
  %v150 = vadd.f32 %v82, %v148
  %v151 = vadd.f32 %v83, %v148
  %v152 = vadd.f32 %v84, %v148
  %v153 = vadd.f32 %v85, %v148
  %v154 = vadd.f32 %v86, %v148
  %v155 = vadd.f32 %v87, %v148
  %v156 = vadd.f32 %v88, %v148
  %v157 = vadd.f32 %v89, %v148
  %v158 = vadd.f32 %v90, %v148
  %v159 = vadd.f32 %v91, %v148
  %v160 = vadd.f32 %v92, %v148
  %v161 = vadd.f32 %v93, %v148
  %v162 = vadd.f32 %v94, %v148
  %v163 = vadd.f32 %v95, %v148
  %v164 = vadd.f32 %v96, %v148
  %v165 = vadd.f32 %v97, %v148
  %v166 = vadd.f32 %v98, %v148
  %v167 = vadd.f32 %v99, %v148
  %v168 = vadd.f32 %v100, %v148
  %v169 = vadd.f32 %v101, %v148
  %v170 = vadd.f32 %v102, %v148
  %v171 = vadd.f32 %v103, %v148
  %v172 = vadd.f32 %v104, %v148
  %v173 = vadd.f32 %v105, %v148
  %v174 = vadd.f32 %v106, %v148
  %v175 = vadd.f32 %v107, %v148
  %v176 = vadd.f32 %v108, %v148
  %v177 = vadd.f32 %v109, %v148
  %v178 = vadd.f32 %v110, %v148
  %v179 = vadd.f32 %v111, %v148
  %v180 = vadd.f32 %v112, %v148
  %v181 = vadd.f32 %v113, %v148
  %v182 = vadd.f32 %v114, %v148
  %v183 = vadd.f32 %v115, %v148
  %v184 = vadd.f32 %v116, %v148
  %v185 = vadd.f32 %v117, %v148
  %v186 = vadd.f32 %v118, %v148
  %v187 = vadd.f32 %v119, %v148
  %v188 = vadd.f32 %v120, %v148
  %v189 = vadd.f32 %v121, %v148
  %v190 = vadd.f32 %v122, %v148
  %v191 = vadd.f32 %v123, %v148
  %v192 = vadd.f32 %v124, %v148
  %v193 = vadd.f32 %v125, %v148
  %v194 = vadd.f32 %v126, %v148
  %v195 = vadd.f32 %v127, %v148
  %v196 = vadd.f32 %v128, %v148
  %v197 = vadd.f32 %v129, %v148
  %v198 = vadd.f32 %v130, %v148
  %v199 = vadd.f32 %v131, %v148
  %v200 = vadd.f32 %v132, %v148
  %v201 = vadd.f32 %v133, %v148
  %v202 = vadd.f32 %v134, %v148
  %v203 = vadd.f32 %v135, %v148
  %v204 = vadd.f32 %v136, %v148
  %v205 = vadd.f32 %v137, %v148
  %v206 = vadd.f32 %v138, %v148
  %v207 = vadd.f32 %v139, %v148
  %v208 = vadd.f32 %v140, %v148
  %v209 = vadd.f32 %v141, %v148
  %v210 = vadd.f32 %v142, %v148
  %v211 = vadd.f32 %v143, %v148
  %v212 = vadd.f32 %v144, %v148
  %v213 = vadd.f32 %v145, %v148
  %v214 = vmax.f32 %v150, 0.0
  %v215 = vmax.f32 %v151, 0.0
  %v216 = vmax.f32 %v152, 0.0
  %v217 = vmax.f32 %v153, 0.0
  %v218 = vmax.f32 %v154, 0.0
  %v219 = vmax.f32 %v155, 0.0
  %v220 = vmax.f32 %v156, 0.0
  %v221 = vmax.f32 %v157, 0.0
  %v222 = vmax.f32 %v158, 0.0
  %v223 = vmax.f32 %v159, 0.0
  %v224 = vmax.f32 %v160, 0.0
  %v225 = vmax.f32 %v161, 0.0
  %v226 = vmax.f32 %v162, 0.0
  %v227 = vmax.f32 %v163, 0.0
  %v228 = vmax.f32 %v164, 0.0
  %v229 = vmax.f32 %v165, 0.0
  %v230 = vmax.f32 %v166, 0.0
  %v231 = vmax.f32 %v167, 0.0
  %v232 = vmax.f32 %v168, 0.0
  %v233 = vmax.f32 %v169, 0.0
  %v234 = vmax.f32 %v170, 0.0
  %v235 = vmax.f32 %v171, 0.0
  %v236 = vmax.f32 %v172, 0.0
  %v237 = vmax.f32 %v173, 0.0
  %v238 = vmax.f32 %v174, 0.0
  %v239 = vmax.f32 %v175, 0.0
  %v240 = vmax.f32 %v176, 0.0
  %v241 = vmax.f32 %v177, 0.0
  %v242 = vmax.f32 %v178, 0.0
  %v243 = vmax.f32 %v179, 0.0
  %v244 = vmax.f32 %v180, 0.0
  %v245 = vmax.f32 %v181, 0.0
  %v246 = vmax.f32 %v182, 0.0
  %v247 = vmax.f32 %v183, 0.0
  %v248 = vmax.f32 %v184, 0.0
  %v249 = vmax.f32 %v185, 0.0
  %v250 = vmax.f32 %v186, 0.0
  %v251 = vmax.f32 %v187, 0.0
  %v252 = vmax.f32 %v188, 0.0
  %v253 = vmax.f32 %v189, 0.0
  %v254 = vmax.f32 %v190, 0.0
  %v255 = vmax.f32 %v191, 0.0
  %v256 = vmax.f32 %v192, 0.0
  %v257 = vmax.f32 %v193, 0.0
  %v258 = vmax.f32 %v194, 0.0
  %v259 = vmax.f32 %v195, 0.0
  %v260 = vmax.f32 %v196, 0.0
  %v261 = vmax.f32 %v197, 0.0
  %v262 = vmax.f32 %v198, 0.0
  %v263 = vmax.f32 %v199, 0.0
  %v264 = vmax.f32 %v200, 0.0
  %v265 = vmax.f32 %v201, 0.0
  %v266 = vmax.f32 %v202, 0.0
  %v267 = vmax.f32 %v203, 0.0
  %v268 = vmax.f32 %v204, 0.0
  %v269 = vmax.f32 %v205, 0.0
  %v270 = vmax.f32 %v206, 0.0
  %v271 = vmax.f32 %v207, 0.0
  %v272 = vmax.f32 %v208, 0.0
  %v273 = vmax.f32 %v209, 0.0
  %v274 = vmax.f32 %v210, 0.0
  %v275 = vmax.f32 %v211, 0.0
  %v276 = vmax.f32 %v212, 0.0
  %v277 = vmax.f32 %v213, 0.0
  %v278 = vpack.c.bf16 %v214, %v214
  %v279 = vpack.c.bf16 %v215, %v215
  %v280 = vpack.c.bf16 %v216, %v216
  %v281 = vpack.c.bf16 %v217, %v217
  %v282 = vpack.c.bf16 %v218, %v218
  %v283 = vpack.c.bf16 %v219, %v219
  %v284 = vpack.c.bf16 %v220, %v220
  %v285 = vpack.c.bf16 %v221, %v221
  %v286 = vpack.c.bf16 %v222, %v222
  %v287 = vpack.c.bf16 %v223, %v223
  %v288 = vpack.c.bf16 %v224, %v224
  %v289 = vpack.c.bf16 %v225, %v225
  %v290 = vpack.c.bf16 %v226, %v226
  %v291 = vpack.c.bf16 %v227, %v227
  %v292 = vpack.c.bf16 %v228, %v228
  %v293 = vpack.c.bf16 %v229, %v229
  %v294 = vpack.c.bf16 %v230, %v230
  %v295 = vpack.c.bf16 %v231, %v231
  %v296 = vpack.c.bf16 %v232, %v232
  %v297 = vpack.c.bf16 %v233, %v233
  %v298 = vpack.c.bf16 %v234, %v234
  %v299 = vpack.c.bf16 %v235, %v235
  %v300 = vpack.c.bf16 %v236, %v236
  %v301 = vpack.c.bf16 %v237, %v237
  %v302 = vpack.c.bf16 %v238, %v238
  %v303 = vpack.c.bf16 %v239, %v239
  %v304 = vpack.c.bf16 %v240, %v240
  %v305 = vpack.c.bf16 %v241, %v241
  %v306 = vpack.c.bf16 %v242, %v242
  %v307 = vpack.c.bf16 %v243, %v243
  %v308 = vpack.c.bf16 %v244, %v244
  %v309 = vpack.c.bf16 %v245, %v245
  %v310 = vpack.c.bf16 %v246, %v246
  %v311 = vpack.c.bf16 %v247, %v247
  %v312 = vpack.c.bf16 %v248, %v248
  %v313 = vpack.c.bf16 %v249, %v249
  %v314 = vpack.c.bf16 %v250, %v250
  %v315 = vpack.c.bf16 %v251, %v251
  %v316 = vpack.c.bf16 %v252, %v252
  %v317 = vpack.c.bf16 %v253, %v253
  %v318 = vpack.c.bf16 %v254, %v254
  %v319 = vpack.c.bf16 %v255, %v255
  %v320 = vpack.c.bf16 %v256, %v256
  %v321 = vpack.c.bf16 %v257, %v257
  %v322 = vpack.c.bf16 %v258, %v258
  %v323 = vpack.c.bf16 %v259, %v259
  %v324 = vpack.c.bf16 %v260, %v260
  %v325 = vpack.c.bf16 %v261, %v261
  %v326 = vpack.c.bf16 %v262, %v262
  %v327 = vpack.c.bf16 %v263, %v263
  %v328 = vpack.c.bf16 %v264, %v264
  %v329 = vpack.c.bf16 %v265, %v265
  %v330 = vpack.c.bf16 %v266, %v266
  %v331 = vpack.c.bf16 %v267, %v267
  %v332 = vpack.c.bf16 %v268, %v268
  %v333 = vpack.c.bf16 %v269, %v269
  %v334 = vpack.c.bf16 %v270, %v270
  %v335 = vpack.c.bf16 %v271, %v271
  %v336 = vpack.c.bf16 %v272, %v272
  %v337 = vpack.c.bf16 %v273, %v273
  %v338 = vpack.c.bf16 %v274, %v274
  %v339 = vpack.c.bf16 %v275, %v275
  %v340 = vpack.c.bf16 %v276, %v276
  %v341 = vpack.c.bf16 %v277, %v277
  %342 = vst [vmem:[%s3] sm:$0xf] %v278
  %343 = vst [vmem:[%s3 + $0x4] sm:$0xf] %v279
  %344 = vst [vmem:[%s3 + $0x8] sm:$0xf] %v280
  %345 = vst [vmem:[%s3 + $0xc] sm:$0xf] %v281
  %346 = vst [vmem:[%s3 + $0x10] sm:$0xf] %v282
  %347 = vst [vmem:[%s3 + $0x14] sm:$0xf] %v283
  %348 = vst [vmem:[%s3 + $0x18] sm:$0xf] %v284
  %349 = vst [vmem:[%s3 + $0x1c] sm:$0xf] %v285
  %350 = vst [vmem:[%s3 + $0x20] sm:$0xf] %v286
  %351 = vst [vmem:[%s3 + $0x24] sm:$0xf] %v287
  %352 = vst [vmem:[%s3 + $0x28] sm:$0xf] %v288
  %353 = vst [vmem:[%s3 + $0x2c] sm:$0xf] %v289
  %354 = vst [vmem:[%s3 + $0x30] sm:$0xf] %v290
  %355 = vst [vmem:[%s3 + $0x34] sm:$0xf] %v291
  %356 = vst [vmem:[%s3 + $0x38] sm:$0xf] %v292
  %357 = vst [vmem:[%s3 + $0x3c] sm:$0xf] %v293
  %358 = vst [vmem:[%s3 + $0x40] sm:$0xf] %v294
  %359 = vst [vmem:[%s3 + $0x44] sm:$0xf] %v295
  %360 = vst [vmem:[%s3 + $0x48] sm:$0xf] %v296
  %361 = vst [vmem:[%s3 + $0x4c] sm:$0xf] %v297
  %362 = vst [vmem:[%s3 + $0x50] sm:$0xf] %v298
  %363 = vst [vmem:[%s3 + $0x54] sm:$0xf] %v299
  %364 = vst [vmem:[%s3 + $0x58] sm:$0xf] %v300
  %365 = vst [vmem:[%s3 + $0x5c] sm:$0xf] %v301
  %366 = vst [vmem:[%s3 + $0x60] sm:$0xf] %v302
  %367 = vst [vmem:[%s3 + $0x64] sm:$0xf] %v303
  %368 = vst [vmem:[%s3 + $0x68] sm:$0xf] %v304
  %369 = vst [vmem:[%s3 + $0x6c] sm:$0xf] %v305
  %370 = vst [vmem:[%s3 + $0x70] sm:$0xf] %v306
  %371 = vst [vmem:[%s3 + $0x74] sm:$0xf] %v307
  %372 = vst [vmem:[%s3 + $0x78] sm:$0xf] %v308
  %373 = vst [vmem:[%s3 + $0x7c] sm:$0xf] %v309
  %374 = vst [vmem:[%s3 + $0x80] sm:$0xf] %v310
  %375 = vst [vmem:[%s3 + $0x84] sm:$0xf] %v311
  %376 = vst [vmem:[%s3 + $0x88] sm:$0xf] %v312
  %377 = vst [vmem:[%s3 + $0x8c] sm:$0xf] %v313
  %378 = vst [vmem:[%s3 + $0x90] sm:$0xf] %v314
  %379 = vst [vmem:[%s3 + $0x94] sm:$0xf] %v315
  %380 = vst [vmem:[%s3 + $0x98] sm:$0xf] %v316
  %381 = vst [vmem:[%s3 + $0x9c] sm:$0xf] %v317
  %382 = vst [vmem:[%s3 + $0xa0] sm:$0xf] %v318
  %383 = vst [vmem:[%s3 + $0xa4] sm:$0xf] %v319
  %384 = vst [vmem:[%s3 + $0xa8] sm:$0xf] %v320
  %385 = vst [vmem:[%s3 + $0xac] sm:$0xf] %v321
  %386 = vst [vmem:[%s3 + $0xb0] sm:$0xf] %v322
  %387 = vst [vmem:[%s3 + $0xb4] sm:$0xf] %v323
  %388 = vst [vmem:[%s3 + $0xb8] sm:$0xf] %v324
  %389 = vst [vmem:[%s3 + $0xbc] sm:$0xf] %v325
  %390 = vst [vmem:[%s3 + $0xc0] sm:$0xf] %v326
  %391 = vst [vmem:[%s3 + $0xc4] sm:$0xf] %v327
  %392 = vst [vmem:[%s3 + $0xc8] sm:$0xf] %v328
  %393 = vst [vmem:[%s3 + $0xcc] sm:$0xf] %v329
  %394 = vst [vmem:[%s3 + $0xd0] sm:$0xf] %v330
  %395 = vst [vmem:[%s3 + $0xd4] sm:$0xf] %v331
  %396 = vst [vmem:[%s3 + $0xd8] sm:$0xf] %v332
  %397 = vst [vmem:[%s3 + $0xdc] sm:$0xf] %v333
  %398 = vst [vmem:[%s3 + $0xe0] sm:$0xf] %v334
  %399 = vst [vmem:[%s3 + $0xe4] sm:$0xf] %v335
  %400 = vst [vmem:[%s3 + $0xe8] sm:$0xf] %v336
  %401 = vst [vmem:[%s3 + $0xec] sm:$0xf] %v337
  %402 = vst [vmem:[%s3 + $0xf0] sm:$0xf] %v338
  %403 = vst [vmem:[%s3 + $0xf4] sm:$0xf] %v339
  %404 = vst [vmem:[%s3 + $0xf8] sm:$0xf] %v340
  %405 = vst [vmem:[%s3 + $0xfc] sm:$0xf] %v341
  // Predicated region
  $region14: #{forward.18} parent=0 // pred_check
    _
  $region15: #{forward.18} parent=0 // pred_check_branch
    %407 = sbr.rel (0) target = $region17
  $region16: #{forward.18} parent=0 // pred_region
    _
  $region17: #{forward.18} parent=0 // pred_fallthru
    _
  // Predicated region
  $region18: #{forward.18} parent=0 // pred_check
    _
  $region19: #{forward.18} parent=0 // pred_check_branch
    %409 = sbr.rel (0) target = $region21
  $region20: #{forward.18} parent=0 // pred_region
    _
  $region21: #{forward.18} parent=0 // pred_fallthru
    _

// kernel: forward.19
$region0: #{forward.19}
  #allocation0 [shape = 'u32[]', space=smem, size = 0x4, offset = 0x4, fixed_abs, tag = 'smem constant byte address 0x4 - core index']
  #allocation1 [shape = 'u32[72,128]{1,0:T(1,128)}', space=vmem, size = 0x9000, scoped, tag = 'internal scratch']
  %s0 = inlined_call_operand.vmem [shape: bf16[1024,128], index: 0, kind: input, shape index: {}]
  %s1 = inlined_call_operand.vmem [shape: bf16[128,128], index: 1, kind: input, shape index: {}]
  %s2 = inlined_call_operand.vmem [shape: bf16[1024,128], index: 2, kind: output, shape index: {}]
  %s3 = sld [smem:[#allocation0]]
  $region41: #{forward.19} parent=0
    _
  %s5 = ssub.s32 1, %s3
  %s6 = scalar_select 0, %s5, %s3
  loop: start=0, step=1, limit=4
  $region2: #{forward.19} parent=0 // loop_pre_header
    _
  $region3: #{forward.19} parent=0 // loop_header
    %s8 = sphi 0, %s12
    %p9 = scmp.ge.s32.totalorder %s8, 4
    %s18 = sphi 0, %s20
    %s21 = sphi 0, %s18
    %s22 = sphi 0, %s21
    %s38 = sphi 0, %s22
    %s42 = sphi 0, %s42
    %s44 = sphi 0, %s42
    %s45 = sphi 0, %s44
    %s59 = sphi 0, %s45
    %s65 = sphi 0, %s67
    %s68 = sphi 0, %s65
    %s69 = sphi 0, %s68
    %s85 = sphi 0, %s69
  $region4: #{forward.19} parent=0 // loop_header_branch
    %11 = sbr.rel (%p9) target = $region8
  $region5: #{forward.19} parent=0 // loop_body
    %s13 = ssub.s32 %s8, 1
    %s14 = ssub.s32 %s8, 2
    %s15 = sadd.s32 %s8, 1
    %s16 = ssub.s32 %s8, %s15
    %p17 = scmp.eq.s32.totalorder %s16, 0
    %s19 = sadd.s32 %s18, 1
    %s20 = scalar_select %p17, %s18, %s19
    %p23 = pneg %p17
    %p24 = scmp.eq.s32.totalorder %s8, 1
    %p25 = por %p23, %p24
    %p26 = scmp.ne.s32.totalorder %s18, %s21
    %p27 = scmp.eq.s32.totalorder %s8, 0
    %p28 = por %p26, %p27
    %p29 = scmp.ne.s32.totalorder %s18, %s21
    %p30 = scmp.eq.s32.totalorder %s13, 1
    %p31 = por %p29, %p30
    %p32 = scmp.ne.s32.totalorder %s21, %s22
    %p33 = scmp.eq.s32.totalorder %s13, 0
    %p34 = por %p32, %p33
    %p35 = scmp.ne.s32.totalorder %s21, %s22
    %p36 = scmp.eq.s32.totalorder %s14, 1
    %p37 = por %p35, %p36
    %p39 = scmp.ne.s32.totalorder %s22, %s38
    %p40 = scmp.eq.s32.totalorder %s14, 0
    %p41 = por %p39, %p40
    %s43 = sadd.s32 %s42, 1
    %p46 = scmp.eq.s32.totalorder %s8, 1
    %p47 = scmp.ne.s32.totalorder %s42, %s44
    %p48 = scmp.eq.s32.totalorder %s8, 0
    %p49 = por %p47, %p48
    %p50 = scmp.ne.s32.totalorder %s42, %s44
    %p51 = scmp.eq.s32.totalorder %s13, 1
    %p52 = por %p50, %p51
    %p53 = scmp.ne.s32.totalorder %s44, %s45
    %p54 = scmp.eq.s32.totalorder %s13, 0
    %p55 = por %p53, %p54
    %p56 = scmp.ne.s32.totalorder %s44, %s45
    %p57 = scmp.eq.s32.totalorder %s14, 1
    %p58 = por %p56, %p57
    %p60 = scmp.ne.s32.totalorder %s45, %s59
    %p61 = scmp.eq.s32.totalorder %s14, 0
    %p62 = por %p60, %p61
    %s63 = ssub.s32 %s8, %s15
    %p64 = scmp.eq.s32.totalorder %s63, 0
    %s66 = sadd.s32 %s65, 1
    %s67 = scalar_select %p64, %s65, %s66
    %p70 = pneg %p64
    %p71 = scmp.eq.s32.totalorder %s8, 1
    %p72 = por %p70, %p71
    %p73 = scmp.ne.s32.totalorder %s65, %s68
    %p74 = scmp.eq.s32.totalorder %s8, 0
    %p75 = por %p73, %p74
    %p76 = scmp.ne.s32.totalorder %s65, %s68
    %p77 = scmp.eq.s32.totalorder %s13, 1
    %p78 = por %p76, %p77
    %p79 = scmp.ne.s32.totalorder %s68, %s69
    %p80 = scmp.eq.s32.totalorder %s13, 0
    %p81 = por %p79, %p80
    %p82 = scmp.ne.s32.totalorder %s68, %s69
    %p83 = scmp.eq.s32.totalorder %s14, 1
    %p84 = por %p82, %p83
    %p86 = scmp.ne.s32.totalorder %s69, %s85
    %p87 = scmp.eq.s32.totalorder %s14, 0
    %p88 = por %p86, %p87
    %p89 = scmp.le.s32.totalorder 1, %s8
    %p90 = scmp.lt.s32.totalorder %s8, 3
    %p91 = pnand %p89, %p90
    %p92 = pneg %p91
    // Predicated region
    $region9: #{forward.19} parent=5 // pred_check
      _
    $region10: #{forward.19} parent=5 // pred_check_branch
      %94 = sbr.rel (%p91) target = $region12
    $region11: #{forward.19} parent=5 // pred_region
      %s95 = ssub.s32 %s8, 1
      // Predicated region
      $region13: #{forward.19} parent=11 // pred_check
        %p96 = pneg %p55
      $region14: #{forward.19} parent=11 // pred_check_branch
        %98 = sbr.rel (%p96) target = $region16
      $region15: #{forward.19} parent=11 // pred_region
        _
      $region16: #{forward.19} parent=11 // pred_fallthru
        _
    $region12: #{forward.19} parent=5 // pred_fallthru
      _
    %p99 = scmp.lt.s32.totalorder %s8, 2
    // Predicated region
    $region17: #{forward.19} parent=5 // pred_check
      %p100 = pneg %p99
    $region18: #{forward.19} parent=5 // pred_check_branch
      %102 = sbr.rel (%p100) target = $region20
    $region19: #{forward.19} parent=5 // pred_region
      // Predicated region
      $region21: #{forward.19} parent=19 // pred_check
        %p103 = pneg %p28
      $region22: #{forward.19} parent=19 // pred_check_branch
        %105 = sbr.rel (%p103) target = $region24
      $region23: #{forward.19} parent=19 // pred_region
        %s106 = smul.u32 64, %s8
        %p107 = scmp.lt.s32.totalorder %s106, 127
        %s108 = scalar_select %p107, %s106, 127
        %s109 = smul.addr %s108, 4
        %s110 = scalar_lea.vmem %s0, %s109
        %s111 = smul.u32 64, %s8
      $region24: #{forward.19} parent=19 // pred_fallthru
        _
    $region20: #{forward.19} parent=5 // pred_fallthru
      _
    %p112 = scmp.le.s32.totalorder 1, %s8
    %p113 = scmp.lt.s32.totalorder %s8, 3
    %p114 = pnand %p112, %p113
    %p115 = pneg %p114
    // Predicated region
    $region25: #{forward.19} parent=5 // pred_check
      _
    $region26: #{forward.19} parent=5 // pred_check_branch
      %117 = sbr.rel (%p114) target = $region28
    $region27: #{forward.19} parent=5 // pred_region
      %s118 = ssub.s32 %s8, 1
      %s119 = smul.u32 64, %s13
      %p120 = scmp.lt.s32.totalorder %s119, 127
      %s121 = scalar_select %p120, %s119, 127
      %s122 = smul.addr %s121, 4
      %s123 = scalar_lea.vmem %s0, %s122
      %p124 = pneg %p34
      %p125 = pneg %p31
      %p126 = pneg %p55
      %p127 = pneg %p52
      %p128 = pneg %p81
      %p129 = pneg %p78
      %s130 = smul.u32 64, %s13
      %p131 = scmp.lt.s32.totalorder %s130, 127
      %s132 = scalar_select %p131, %s130, 127
      %s133 = smul.addr %s132, 4
      %s134 = scalar_lea.vmem %s2, %s133
      %s135 = smul.u32 64, %s13
      %p136 = scmp.lt.s32.totalorder %s135, 127
      %s137 = scalar_select %p136, %s135, 127
      %s138 = smul.addr %s137, 4
      %s139 = scalar_lea.vmem %s0, %s138
      %s140 = smul.u32 64, %s13
      %s141 = smul.u32 64, %s13
      %p142 = scmp.lt.s32.totalorder %s141, 127
      %s143 = scalar_select %p142, %s141, 127
      %s144 = smul.addr %s143, 4
      %s145 = scalar_lea.vmem %s2, %s144
      %s146 = smul.u32 64, %s13
      %v147 = vld [vmem:[%s139] sm:$0xf]
      %v148 = vld [vmem:[%s139 + $0x4] sm:$0xf]
      %v149 = vld [vmem:[%s139 + $0x8] sm:$0xf]
      %v150 = vld [vmem:[%s139 + $0xc] sm:$0xf]
      %v151 = vld [vmem:[%s139 + $0x10] sm:$0xf]
      %v152 = vld [vmem:[%s139 + $0x14] sm:$0xf]
      %v153 = vld [vmem:[%s139 + $0x18] sm:$0xf]
      %v154 = vld [vmem:[%s139 + $0x1c] sm:$0xf]
      %v155 = vld [vmem:[%s139 + $0x20] sm:$0xf]
      %v156 = vld [vmem:[%s139 + $0x24] sm:$0xf]
      %v157 = vld [vmem:[%s139 + $0x28] sm:$0xf]
      %v158 = vld [vmem:[%s139 + $0x2c] sm:$0xf]
      %v159 = vld [vmem:[%s139 + $0x30] sm:$0xf]
      %v160 = vld [vmem:[%s139 + $0x34] sm:$0xf]
      %v161 = vld [vmem:[%s139 + $0x38] sm:$0xf]
      %v162 = vld [vmem:[%s139 + $0x3c] sm:$0xf]
      %v163 = vld [vmem:[%s139 + $0x40] sm:$0xf]
      %v164 = vld [vmem:[%s139 + $0x44] sm:$0xf]
      %v165 = vld [vmem:[%s139 + $0x48] sm:$0xf]
      %v166 = vld [vmem:[%s139 + $0x4c] sm:$0xf]
      %v167 = vld [vmem:[%s139 + $0x50] sm:$0xf]
      %v168 = vld [vmem:[%s139 + $0x54] sm:$0xf]
      %v169 = vld [vmem:[%s139 + $0x58] sm:$0xf]
      %v170 = vld [vmem:[%s139 + $0x5c] sm:$0xf]
      %v171 = vld [vmem:[%s139 + $0x60] sm:$0xf]
      %v172 = vld [vmem:[%s139 + $0x64] sm:$0xf]
      %v173 = vld [vmem:[%s139 + $0x68] sm:$0xf]
      %v174 = vld [vmem:[%s139 + $0x6c] sm:$0xf]
      %v175 = vld [vmem:[%s139 + $0x70] sm:$0xf]
      %v176 = vld [vmem:[%s139 + $0x74] sm:$0xf]
      %v177 = vld [vmem:[%s139 + $0x78] sm:$0xf]
      %v178 = vld [vmem:[%s139 + $0x7c] sm:$0xf]
      %v179 = vld [vmem:[%s139 + $0x80] sm:$0xf]
      %v180 = vld [vmem:[%s139 + $0x84] sm:$0xf]
      %v181 = vld [vmem:[%s139 + $0x88] sm:$0xf]
      %v182 = vld [vmem:[%s139 + $0x8c] sm:$0xf]
      %v183 = vld [vmem:[%s139 + $0x90] sm:$0xf]
      %v184 = vld [vmem:[%s139 + $0x94] sm:$0xf]
      %v185 = vld [vmem:[%s139 + $0x98] sm:$0xf]
      %v186 = vld [vmem:[%s139 + $0x9c] sm:$0xf]
      %v187 = vld [vmem:[%s139 + $0xa0] sm:$0xf]
      %v188 = vld [vmem:[%s139 + $0xa4] sm:$0xf]
      %v189 = vld [vmem:[%s139 + $0xa8] sm:$0xf]
      %v190 = vld [vmem:[%s139 + $0xac] sm:$0xf]
      %v191 = vld [vmem:[%s139 + $0xb0] sm:$0xf]
      %v192 = vld [vmem:[%s139 + $0xb4] sm:$0xf]
      %v193 = vld [vmem:[%s139 + $0xb8] sm:$0xf]
      %v194 = vld [vmem:[%s139 + $0xbc] sm:$0xf]
      %v195 = vld [vmem:[%s139 + $0xc0] sm:$0xf]
      %v196 = vld [vmem:[%s139 + $0xc4] sm:$0xf]
      %v197 = vld [vmem:[%s139 + $0xc8] sm:$0xf]
      %v198 = vld [vmem:[%s139 + $0xcc] sm:$0xf]
      %v199 = vld [vmem:[%s139 + $0xd0] sm:$0xf]
      %v200 = vld [vmem:[%s139 + $0xd4] sm:$0xf]
      %v201 = vld [vmem:[%s139 + $0xd8] sm:$0xf]
      %v202 = vld [vmem:[%s139 + $0xdc] sm:$0xf]
      %v203 = vld [vmem:[%s139 + $0xe0] sm:$0xf]
      %v204 = vld [vmem:[%s139 + $0xe4] sm:$0xf]
      %v205 = vld [vmem:[%s139 + $0xe8] sm:$0xf]
      %v206 = vld [vmem:[%s139 + $0xec] sm:$0xf]
      %v207 = vld [vmem:[%s139 + $0xf0] sm:$0xf]
      %v208 = vld [vmem:[%s139 + $0xf4] sm:$0xf]
      %v209 = vld [vmem:[%s139 + $0xf8] sm:$0xf]
      %v210 = vld [vmem:[%s139 + $0xfc] sm:$0xf]
      %v211 = vld [vmem:[%s1] sm:$0xf]
      %v212 = vld [vmem:[%s1 + $0x4] sm:$0xf]
      %v213 = vld [vmem:[%s1 + $0x8] sm:$0xf]
      %v214 = vld [vmem:[%s1 + $0xc] sm:$0xf]
      %v215 = vld [vmem:[%s1 + $0x10] sm:$0xf]
      %v216 = vld [vmem:[%s1 + $0x14] sm:$0xf]
      %v217 = vld [vmem:[%s1 + $0x18] sm:$0xf]
      %v218 = vld [vmem:[%s1 + $0x1c] sm:$0xf]
      %v219 = vld [vmem:[%s1 + $0x20] sm:$0xf]
      %v220 = vld [vmem:[%s1 + $0x24] sm:$0xf]
      %v221 = vld [vmem:[%s1 + $0x28] sm:$0xf]
      %v222 = vld [vmem:[%s1 + $0x2c] sm:$0xf]
      %v223 = vld [vmem:[%s1 + $0x30] sm:$0xf]
      %v224 = vld [vmem:[%s1 + $0x34] sm:$0xf]
      %v225 = vld [vmem:[%s1 + $0x38] sm:$0xf]
      %v226 = vld [vmem:[%s1 + $0x3c] sm:$0xf]
      %v291 = vunpack.c.l.b16 %v147
      %v292 = vunpack.c.l.b16 %v148
      %v293 = vunpack.c.l.b16 %v149
      %v294 = vunpack.c.l.b16 %v150
      %v295 = vunpack.c.l.b16 %v151
      %v296 = vunpack.c.l.b16 %v152
      %v297 = vunpack.c.l.b16 %v153
      %v298 = vunpack.c.l.b16 %v154
      %v299 = vunpack.c.l.b16 %v155
      %v300 = vunpack.c.l.b16 %v156
      %v301 = vunpack.c.l.b16 %v157
      %v302 = vunpack.c.l.b16 %v158
      %v303 = vunpack.c.l.b16 %v159
      %v304 = vunpack.c.l.b16 %v160
      %v305 = vunpack.c.l.b16 %v161
      %v306 = vunpack.c.l.b16 %v162
      %v307 = vunpack.c.l.b16 %v163
      %v308 = vunpack.c.l.b16 %v164
      %v309 = vunpack.c.l.b16 %v165
      %v310 = vunpack.c.l.b16 %v166
      %v311 = vunpack.c.l.b16 %v167
      %v312 = vunpack.c.l.b16 %v168
      %v313 = vunpack.c.l.b16 %v169
      %v314 = vunpack.c.l.b16 %v170
      %v315 = vunpack.c.l.b16 %v171
      %v316 = vunpack.c.l.b16 %v172
      %v317 = vunpack.c.l.b16 %v173
      %v318 = vunpack.c.l.b16 %v174
      %v319 = vunpack.c.l.b16 %v175
      %v320 = vunpack.c.l.b16 %v176
      %v321 = vunpack.c.l.b16 %v177
      %v322 = vunpack.c.l.b16 %v178
      %v323 = vunpack.c.l.b16 %v179
      %v324 = vunpack.c.l.b16 %v180
      %v325 = vunpack.c.l.b16 %v181
      %v326 = vunpack.c.l.b16 %v182
      %v327 = vunpack.c.l.b16 %v183
      %v328 = vunpack.c.l.b16 %v184
      %v329 = vunpack.c.l.b16 %v185
      %v330 = vunpack.c.l.b16 %v186
      %v331 = vunpack.c.l.b16 %v187
      %v332 = vunpack.c.l.b16 %v188
      %v333 = vunpack.c.l.b16 %v189
      %v334 = vunpack.c.l.b16 %v190
      %v335 = vunpack.c.l.b16 %v191
      %v336 = vunpack.c.l.b16 %v192
      %v337 = vunpack.c.l.b16 %v193
      %v338 = vunpack.c.l.b16 %v194
      %v339 = vunpack.c.l.b16 %v195
      %v340 = vunpack.c.l.b16 %v196
      %v341 = vunpack.c.l.b16 %v197
      %v342 = vunpack.c.l.b16 %v198
      %v343 = vunpack.c.l.b16 %v199
      %v344 = vunpack.c.l.b16 %v200
      %v345 = vunpack.c.l.b16 %v201
      %v346 = vunpack.c.l.b16 %v202
      %v347 = vunpack.c.l.b16 %v203
      %v348 = vunpack.c.l.b16 %v204
      %v349 = vunpack.c.l.b16 %v205
      %v350 = vunpack.c.l.b16 %v206
      %v351 = vunpack.c.l.b16 %v207
      %v352 = vunpack.c.l.b16 %v208
      %v353 = vunpack.c.l.b16 %v209
      %v354 = vunpack.c.l.b16 %v210
      %v355 = vpack.c.b16 %v292, %v291
      %v356 = vpack.c.b16 %v294, %v293
      %v357 = vpack.c.b16 %v296, %v295
      %v358 = vpack.c.b16 %v298, %v297
      %v359 = vpack.c.b16 %v300, %v299
      %v360 = vpack.c.b16 %v302, %v301
      %v361 = vpack.c.b16 %v304, %v303
      %v362 = vpack.c.b16 %v306, %v305
      %v363 = vpack.c.b16 %v308, %v307
      %v364 = vpack.c.b16 %v310, %v309
      %v365 = vpack.c.b16 %v312, %v311
      %v366 = vpack.c.b16 %v314, %v313
      %v367 = vpack.c.b16 %v316, %v315
      %v368 = vpack.c.b16 %v318, %v317
      %v369 = vpack.c.b16 %v320, %v319
      %v370 = vpack.c.b16 %v322, %v321
      %v371 = vpack.c.b16 %v324, %v323
      %v372 = vpack.c.b16 %v326, %v325
      %v373 = vpack.c.b16 %v328, %v327
      %v374 = vpack.c.b16 %v330, %v329
      %v375 = vpack.c.b16 %v332, %v331
      %v376 = vpack.c.b16 %v334, %v333
      %v377 = vpack.c.b16 %v336, %v335
      %v378 = vpack.c.b16 %v338, %v337
      %v379 = vpack.c.b16 %v340, %v339
      %v380 = vpack.c.b16 %v342, %v341
      %v381 = vpack.c.b16 %v344, %v343
      %v382 = vpack.c.b16 %v346, %v345
      %v383 = vpack.c.b16 %v348, %v347
      %v384 = vpack.c.b16 %v350, %v349
      %v385 = vpack.c.b16 %v352, %v351
      %v386 = vpack.c.b16 %v354, %v353
      %v435 = vunpack.c.l.b16 %v211
      %v436 = vunpack.c.l.b16 %v212
      %v437 = vunpack.c.l.b16 %v213
      %v438 = vunpack.c.l.b16 %v214
      %v439 = vunpack.c.l.b16 %v215
      %v440 = vunpack.c.l.b16 %v216
      %v441 = vunpack.c.l.b16 %v217
      %v442 = vunpack.c.l.b16 %v218
      %v443 = vunpack.c.l.b16 %v219
      %v444 = vunpack.c.l.b16 %v220
      %v445 = vunpack.c.l.b16 %v221
      %v446 = vunpack.c.l.b16 %v222
      %v447 = vunpack.c.l.b16 %v223
      %v448 = vunpack.c.l.b16 %v224
      %v449 = vunpack.c.l.b16 %v225
      %v450 = vunpack.c.l.b16 %v226
      %v451 = vpack.c.b16 %v436, %v435
      %v452 = vpack.c.b16 %v438, %v437
      %v453 = vpack.c.b16 %v440, %v439
      %v454 = vpack.c.b16 %v442, %v441
      %v455 = vpack.c.b16 %v444, %v443
      %v456 = vpack.c.b16 %v446, %v445
      %v457 = vpack.c.b16 %v448, %v447
      %v458 = vpack.c.b16 %v450, %v449
      %467 = vmatpush.bf16.msra.mxu0 %v458
      %468 = vmatpush.bf16.msra.mxu0 %v457
      %469 = vmatpush.bf16.msra.mxu0 %v456
      %470 = vmatpush.bf16.msra.mxu0 %v455
      %471 = vmatpush.bf16.msra.mxu0 %v454
      %472 = vmatpush.bf16.msra.mxu0 %v453
      %473 = vmatpush.bf16.msra.mxu0 %v452
      %474 = vmatpush.bf16.msra.mxu0 %v451
      %475 = vmatmul.bf16.gmra.mxu0 %v355
      %v476 = vpop.f32.mrf.mxu0
      %v477 = vadd.f32 0.0, %v476
      %v478 = vpop.f32.mrf.mxu0
      %v479 = vadd.f32 0.0, %v478
      %480 = vmatmul.bf16.gmra.mxu0 %v356
      %v481 = vpop.f32.mrf.mxu0
      %v482 = vadd.f32 0.0, %v481
      %v483 = vpop.f32.mrf.mxu0
      %v484 = vadd.f32 0.0, %v483
      %485 = vmatmul.bf16.gmra.mxu0 %v357
      %v486 = vpop.f32.mrf.mxu0
      %v487 = vadd.f32 0.0, %v486
      %v488 = vpop.f32.mrf.mxu0
      %v489 = vadd.f32 0.0, %v488
      %490 = vmatmul.bf16.gmra.mxu0 %v358
      %v491 = vpop.f32.mrf.mxu0
      %v492 = vadd.f32 0.0, %v491
      %v493 = vpop.f32.mrf.mxu0
      %v494 = vadd.f32 0.0, %v493
      %495 = vmatmul.bf16.gmra.mxu0 %v359
      %v496 = vpop.f32.mrf.mxu0
      %v497 = vadd.f32 0.0, %v496
      %v498 = vpop.f32.mrf.mxu0
      %v499 = vadd.f32 0.0, %v498
      %500 = vmatmul.bf16.gmra.mxu0 %v360
      %v501 = vpop.f32.mrf.mxu0
      %v502 = vadd.f32 0.0, %v501
      %v503 = vpop.f32.mrf.mxu0
      %v504 = vadd.f32 0.0, %v503
      %505 = vmatmul.bf16.gmra.mxu0 %v361
      %v506 = vpop.f32.mrf.mxu0
      %v507 = vadd.f32 0.0, %v506
      %v508 = vpop.f32.mrf.mxu0
      %v509 = vadd.f32 0.0, %v508
      %510 = vmatmul.bf16.gmra.mxu0 %v362
      %v511 = vpop.f32.mrf.mxu0
      %v512 = vadd.f32 0.0, %v511
      %v513 = vpop.f32.mrf.mxu0
      %v514 = vadd.f32 0.0, %v513
      %515 = vmatmul.bf16.gmra.mxu0 %v363
      %v516 = vpop.f32.mrf.mxu0
      %v517 = vadd.f32 0.0, %v516
      %v518 = vpop.f32.mrf.mxu0
      %v519 = vadd.f32 0.0, %v518
      %520 = vmatmul.bf16.gmra.mxu0 %v364
      %v521 = vpop.f32.mrf.mxu0
      %v522 = vadd.f32 0.0, %v521
      %v523 = vpop.f32.mrf.mxu0
      %v524 = vadd.f32 0.0, %v523
      %525 = vmatmul.bf16.gmra.mxu0 %v365
      %v526 = vpop.f32.mrf.mxu0
      %v527 = vadd.f32 0.0, %v526
      %v528 = vpop.f32.mrf.mxu0
      %v529 = vadd.f32 0.0, %v528
      %530 = vmatmul.bf16.gmra.mxu0 %v366
      %v531 = vpop.f32.mrf.mxu0
      %v532 = vadd.f32 0.0, %v531
      %v533 = vpop.f32.mrf.mxu0
      %v534 = vadd.f32 0.0, %v533
      %535 = vmatmul.bf16.gmra.mxu0 %v367
      %v536 = vpop.f32.mrf.mxu0
      %v537 = vadd.f32 0.0, %v536
      %v538 = vpop.f32.mrf.mxu0
      %v539 = vadd.f32 0.0, %v538
      %540 = vmatmul.bf16.gmra.mxu0 %v368
      %v541 = vpop.f32.mrf.mxu0
      %v542 = vadd.f32 0.0, %v541
      %v543 = vpop.f32.mrf.mxu0
      %v544 = vadd.f32 0.0, %v543
      %545 = vmatmul.bf16.gmra.mxu0 %v369
      %v546 = vpop.f32.mrf.mxu0
      %v547 = vadd.f32 0.0, %v546
      %v548 = vpop.f32.mrf.mxu0
      %v549 = vadd.f32 0.0, %v548
      %550 = vmatmul.bf16.gmra.mxu0 %v370
      %v551 = vpop.f32.mrf.mxu0
      %v552 = vadd.f32 0.0, %v551
      %v553 = vpop.f32.mrf.mxu0
      %v554 = vadd.f32 0.0, %v553
      %555 = vmatmul.bf16.gmra.mxu0 %v371
      %v556 = vpop.f32.mrf.mxu0
      %v557 = vadd.f32 0.0, %v556
      %v558 = vpop.f32.mrf.mxu0
      %v559 = vadd.f32 0.0, %v558
      %560 = vmatmul.bf16.gmra.mxu0 %v372
      %v561 = vpop.f32.mrf.mxu0
      %v562 = vadd.f32 0.0, %v561
      %v563 = vpop.f32.mrf.mxu0
      %v564 = vadd.f32 0.0, %v563
      %565 = vmatmul.bf16.gmra.mxu0 %v373
      %v566 = vpop.f32.mrf.mxu0
      %v567 = vadd.f32 0.0, %v566
      %v568 = vpop.f32.mrf.mxu0
      %v569 = vadd.f32 0.0, %v568
      %570 = vmatmul.bf16.gmra.mxu0 %v374
      %v571 = vpop.f32.mrf.mxu0
      %v572 = vadd.f32 0.0, %v571
      %v573 = vpop.f32.mrf.mxu0
      %v574 = vadd.f32 0.0, %v573
      %575 = vmatmul.bf16.gmra.mxu0 %v375
      %v576 = vpop.f32.mrf.mxu0
      %v577 = vadd.f32 0.0, %v576
      %v578 = vpop.f32.mrf.mxu0
      %v579 = vadd.f32 0.0, %v578
      %580 = vmatmul.bf16.gmra.mxu0 %v376
      %v581 = vpop.f32.mrf.mxu0
      %v582 = vadd.f32 0.0, %v581
      %v583 = vpop.f32.mrf.mxu0
      %v584 = vadd.f32 0.0, %v583
      %585 = vmatmul.bf16.gmra.mxu0 %v377
      %v586 = vpop.f32.mrf.mxu0
      %v587 = vadd.f32 0.0, %v586
      %v588 = vpop.f32.mrf.mxu0
      %v589 = vadd.f32 0.0, %v588
      %590 = vmatmul.bf16.gmra.mxu0 %v378
      %v591 = vpop.f32.mrf.mxu0
      %v592 = vadd.f32 0.0, %v591
      %v593 = vpop.f32.mrf.mxu0
      %v594 = vadd.f32 0.0, %v593
      %595 = vmatmul.bf16.gmra.mxu0 %v379
      %v596 = vpop.f32.mrf.mxu0
      %v597 = vadd.f32 0.0, %v596
      %v598 = vpop.f32.mrf.mxu0
      %v599 = vadd.f32 0.0, %v598
      %600 = vmatmul.bf16.gmra.mxu0 %v380
      %v601 = vpop.f32.mrf.mxu0
      %v602 = vadd.f32 0.0, %v601
      %v603 = vpop.f32.mrf.mxu0
      %v604 = vadd.f32 0.0, %v603
      %605 = vmatmul.bf16.gmra.mxu0 %v381
      %v606 = vpop.f32.mrf.mxu0
      %v607 = vadd.f32 0.0, %v606
      %v608 = vpop.f32.mrf.mxu0
      %v609 = vadd.f32 0.0, %v608
      %610 = vmatmul.bf16.gmra.mxu0 %v382
      %v611 = vpop.f32.mrf.mxu0
      %v612 = vadd.f32 0.0, %v611
      %v613 = vpop.f32.mrf.mxu0
      %v614 = vadd.f32 0.0, %v613
      %615 = vmatmul.bf16.gmra.mxu0 %v383
      %v616 = vpop.f32.mrf.mxu0
      %v617 = vadd.f32 0.0, %v616
      %v618 = vpop.f32.mrf.mxu0
      %v619 = vadd.f32 0.0, %v618
      %620 = vmatmul.bf16.gmra.mxu0 %v384
      %v621 = vpop.f32.mrf.mxu0
      %v622 = vadd.f32 0.0, %v621
      %v623 = vpop.f32.mrf.mxu0
      %v624 = vadd.f32 0.0, %v623
      %625 = vmatmul.bf16.gmra.mxu0 %v385
      %v626 = vpop.f32.mrf.mxu0
      %v627 = vadd.f32 0.0, %v626
      %v628 = vpop.f32.mrf.mxu0
      %v629 = vadd.f32 0.0, %v628
      %630 = vmatmul.bf16.gmra.mxu0 %v386
      %v631 = vpop.f32.mrf.mxu0
      %v632 = vadd.f32 0.0, %v631
      %v633 = vpop.f32.mrf.mxu0
      %v634 = vadd.f32 0.0, %v633
      %635 = vdwg.mxu0
      %v636 = vpack.c.bf16 %v477, %v477
      %v637 = vpack.c.bf16 %v479, %v479
      %v638 = vpack.c.bf16 %v482, %v482
      %v639 = vpack.c.bf16 %v484, %v484
      %v640 = vpack.c.bf16 %v487, %v487
      %v641 = vpack.c.bf16 %v489, %v489
      %v642 = vpack.c.bf16 %v492, %v492
      %v643 = vpack.c.bf16 %v494, %v494
      %v644 = vpack.c.bf16 %v497, %v497
      %v645 = vpack.c.bf16 %v499, %v499
      %v646 = vpack.c.bf16 %v502, %v502
      %v647 = vpack.c.bf16 %v504, %v504
      %v648 = vpack.c.bf16 %v507, %v507
      %v649 = vpack.c.bf16 %v509, %v509
      %v650 = vpack.c.bf16 %v512, %v512
      %v651 = vpack.c.bf16 %v514, %v514
      %v652 = vpack.c.bf16 %v517, %v517
      %v653 = vpack.c.bf16 %v519, %v519
      %v654 = vpack.c.bf16 %v522, %v522
      %v655 = vpack.c.bf16 %v524, %v524
      %v656 = vpack.c.bf16 %v527, %v527
      %v657 = vpack.c.bf16 %v529, %v529
      %v658 = vpack.c.bf16 %v532, %v532
      %v659 = vpack.c.bf16 %v534, %v534
      %v660 = vpack.c.bf16 %v537, %v537
      %v661 = vpack.c.bf16 %v539, %v539
      %v662 = vpack.c.bf16 %v542, %v542
      %v663 = vpack.c.bf16 %v544, %v544
      %v664 = vpack.c.bf16 %v547, %v547
      %v665 = vpack.c.bf16 %v549, %v549
      %v666 = vpack.c.bf16 %v552, %v552
      %v667 = vpack.c.bf16 %v554, %v554
      %v668 = vpack.c.bf16 %v557, %v557
      %v669 = vpack.c.bf16 %v559, %v559
      %v670 = vpack.c.bf16 %v562, %v562
      %v671 = vpack.c.bf16 %v564, %v564
      %v672 = vpack.c.bf16 %v567, %v567
      %v673 = vpack.c.bf16 %v569, %v569
      %v674 = vpack.c.bf16 %v572, %v572
      %v675 = vpack.c.bf16 %v574, %v574
      %v676 = vpack.c.bf16 %v577, %v577
      %v677 = vpack.c.bf16 %v579, %v579
      %v678 = vpack.c.bf16 %v582, %v582
      %v679 = vpack.c.bf16 %v584, %v584
      %v680 = vpack.c.bf16 %v587, %v587
      %v681 = vpack.c.bf16 %v589, %v589
      %v682 = vpack.c.bf16 %v592, %v592
      %v683 = vpack.c.bf16 %v594, %v594
      %v684 = vpack.c.bf16 %v597, %v597
      %v685 = vpack.c.bf16 %v599, %v599
      %v686 = vpack.c.bf16 %v602, %v602
      %v687 = vpack.c.bf16 %v604, %v604
      %v688 = vpack.c.bf16 %v607, %v607
      %v689 = vpack.c.bf16 %v609, %v609
      %v690 = vpack.c.bf16 %v612, %v612
      %v691 = vpack.c.bf16 %v614, %v614
      %v692 = vpack.c.bf16 %v617, %v617
      %v693 = vpack.c.bf16 %v619, %v619
      %v694 = vpack.c.bf16 %v622, %v622
      %v695 = vpack.c.bf16 %v624, %v624
      %v696 = vpack.c.bf16 %v627, %v627
      %v697 = vpack.c.bf16 %v629, %v629
      %v698 = vpack.c.bf16 %v632, %v632
      %v699 = vpack.c.bf16 %v634, %v634
      %700 = vst [vmem:[%s145] sm:$0xf] %v636
      %701 = vst [vmem:[%s145 + $0x4] sm:$0xf] %v637
      %702 = vst [vmem:[%s145 + $0x8] sm:$0xf] %v638
      %703 = vst [vmem:[%s145 + $0xc] sm:$0xf] %v639
      %704 = vst [vmem:[%s145 + $0x10] sm:$0xf] %v640
      %705 = vst [vmem:[%s145 + $0x14] sm:$0xf] %v641
      %706 = vst [vmem:[%s145 + $0x18] sm:$0xf] %v642
      %707 = vst [vmem:[%s145 + $0x1c] sm:$0xf] %v643
      %708 = vst [vmem:[%s145 + $0x20] sm:$0xf] %v644
      %709 = vst [vmem:[%s145 + $0x24] sm:$0xf] %v645
      %710 = vst [vmem:[%s145 + $0x28] sm:$0xf] %v646
      %711 = vst [vmem:[%s145 + $0x2c] sm:$0xf] %v647
      %712 = vst [vmem:[%s145 + $0x30] sm:$0xf] %v648
      %713 = vst [vmem:[%s145 + $0x34] sm:$0xf] %v649
      %714 = vst [vmem:[%s145 + $0x38] sm:$0xf] %v650
      %715 = vst [vmem:[%s145 + $0x3c] sm:$0xf] %v651
      %716 = vst [vmem:[%s145 + $0x40] sm:$0xf] %v652
      %717 = vst [vmem:[%s145 + $0x44] sm:$0xf] %v653
      %718 = vst [vmem:[%s145 + $0x48] sm:$0xf] %v654
      %719 = vst [vmem:[%s145 + $0x4c] sm:$0xf] %v655
      %720 = vst [vmem:[%s145 + $0x50] sm:$0xf] %v656
      %721 = vst [vmem:[%s145 + $0x54] sm:$0xf] %v657
      %722 = vst [vmem:[%s145 + $0x58] sm:$0xf] %v658
      %723 = vst [vmem:[%s145 + $0x5c] sm:$0xf] %v659
      %724 = vst [vmem:[%s145 + $0x60] sm:$0xf] %v660
      %725 = vst [vmem:[%s145 + $0x64] sm:$0xf] %v661
      %726 = vst [vmem:[%s145 + $0x68] sm:$0xf] %v662
      %727 = vst [vmem:[%s145 + $0x6c] sm:$0xf] %v663
      %728 = vst [vmem:[%s145 + $0x70] sm:$0xf] %v664
      %729 = vst [vmem:[%s145 + $0x74] sm:$0xf] %v665
      %730 = vst [vmem:[%s145 + $0x78] sm:$0xf] %v666
      %731 = vst [vmem:[%s145 + $0x7c] sm:$0xf] %v667
      %732 = vst [vmem:[%s145 + $0x80] sm:$0xf] %v668
      %733 = vst [vmem:[%s145 + $0x84] sm:$0xf] %v669
      %734 = vst [vmem:[%s145 + $0x88] sm:$0xf] %v670
      %735 = vst [vmem:[%s145 + $0x8c] sm:$0xf] %v671
      %736 = vst [vmem:[%s145 + $0x90] sm:$0xf] %v672
      %737 = vst [vmem:[%s145 + $0x94] sm:$0xf] %v673
      %738 = vst [vmem:[%s145 + $0x98] sm:$0xf] %v674
      %739 = vst [vmem:[%s145 + $0x9c] sm:$0xf] %v675
      %740 = vst [vmem:[%s145 + $0xa0] sm:$0xf] %v676
      %741 = vst [vmem:[%s145 + $0xa4] sm:$0xf] %v677
      %742 = vst [vmem:[%s145 + $0xa8] sm:$0xf] %v678
      %743 = vst [vmem:[%s145 + $0xac] sm:$0xf] %v679
      %744 = vst [vmem:[%s145 + $0xb0] sm:$0xf] %v680
      %745 = vst [vmem:[%s145 + $0xb4] sm:$0xf] %v681
      %746 = vst [vmem:[%s145 + $0xb8] sm:$0xf] %v682
      %747 = vst [vmem:[%s145 + $0xbc] sm:$0xf] %v683
      %748 = vst [vmem:[%s145 + $0xc0] sm:$0xf] %v684
      %749 = vst [vmem:[%s145 + $0xc4] sm:$0xf] %v685
      %750 = vst [vmem:[%s145 + $0xc8] sm:$0xf] %v686
      %751 = vst [vmem:[%s145 + $0xcc] sm:$0xf] %v687
      %752 = vst [vmem:[%s145 + $0xd0] sm:$0xf] %v688
      %753 = vst [vmem:[%s145 + $0xd4] sm:$0xf] %v689
      %754 = vst [vmem:[%s145 + $0xd8] sm:$0xf] %v690
      %755 = vst [vmem:[%s145 + $0xdc] sm:$0xf] %v691
      %756 = vst [vmem:[%s145 + $0xe0] sm:$0xf] %v692
      %757 = vst [vmem:[%s145 + $0xe4] sm:$0xf] %v693
      %758 = vst [vmem:[%s145 + $0xe8] sm:$0xf] %v694
      %759 = vst [vmem:[%s145 + $0xec] sm:$0xf] %v695
      %760 = vst [vmem:[%s145 + $0xf0] sm:$0xf] %v696
      %761 = vst [vmem:[%s145 + $0xf4] sm:$0xf] %v697
      %762 = vst [vmem:[%s145 + $0xf8] sm:$0xf] %v698
      %763 = vst [vmem:[%s145 + $0xfc] sm:$0xf] %v699
      %s764 = smul.u32 64, %s13
      %p765 = scmp.lt.s32.totalorder %s764, 127
      %s766 = scalar_select %p765, %s764, 127
      %s767 = smul.addr %s766, 4
      %s768 = scalar_lea.vmem %s2, %s767
      // Predicated region
      $region29: #{forward.19} parent=27 // pred_check
        %p769 = pneg %p78
      $region30: #{forward.19} parent=27 // pred_check_branch
        %771 = sbr.rel (%p769) target = $region32
      $region31: #{forward.19} parent=27 // pred_region
        %s772 = smul.u32 64, %s13
      $region32: #{forward.19} parent=27 // pred_fallthru
        _
    $region28: #{forward.19} parent=5 // pred_fallthru
      _
    %p773 = scmp.le.s32.totalorder 2, %s8
    // Predicated region
    $region33: #{forward.19} parent=5 // pred_check
      %p774 = pneg %p773
    $region34: #{forward.19} parent=5 // pred_check_branch
      %776 = sbr.rel (%p774) target = $region36
    $region35: #{forward.19} parent=5 // pred_region
      %s777 = ssub.s32 %s8, 2
      // Predicated region
      $region37: #{forward.19} parent=35 // pred_check
        %p778 = pneg %p84
      $region38: #{forward.19} parent=35 // pred_check_branch
        %780 = sbr.rel (%p778) target = $region40
      $region39: #{forward.19} parent=35 // pred_region
        %s781 = smul.u32 64, %s14
        %p782 = scmp.lt.s32.totalorder %s781, 127
        %s783 = scalar_select %p782, %s781, 127
        %s784 = smul.addr %s783, 4
        %s785 = scalar_lea.vmem %s2, %s784
      $region40: #{forward.19} parent=35 // pred_fallthru
        _
    $region36: #{forward.19} parent=5 // pred_fallthru
      _
  $region6: #{forward.19} parent=0 // loop_footer
    %s12 = sadd.s32 1, %s8
  $region7: #{forward.19} parent=0 // loop_footer_branch
    %7 = sbr.rel target = $region3
  $region8: #{forward.19} parent=0 // loop_exit
    _

// kernel: forward.20
$region0: #{forward.20}
  #allocation0 [shape = 'u32[]', space=smem, size = 0x4, offset = 0x4, fixed_abs, tag = 'smem constant byte address 0x4 - core index']
  #allocation1 [shape = 'u32[72,128]{1,0:T(1,128)}', space=vmem, size = 0x9000, scoped, tag = 'internal scratch']
  %s0 = inlined_call_operand.vmem [shape: bf16[2048,128], index: 0, kind: input, shape index: {}]
  %s1 = inlined_call_operand.vmem [shape: bf16[128,128], index: 1, kind: input, shape index: {}]
  %s2 = inlined_call_operand.vmem [shape: f32[2048,128], index: 2, kind: output, shape index: {0}]
  %s3 = inlined_call_operand.vmem [shape: f32[4,8,128], index: 3, kind: output, shape index: {1}]
  %s4 = inlined_call_operand.vmem [shape: f32[4,8,128], index: 4, kind: output, shape index: {2}]
  %5 = xla_tuple %s2, %s3, %s4
  %s6 = sld [smem:[#allocation0]]
  $region57: #{forward.20} parent=0
    _
  %s8 = ssub.s32 1, %s6
  %s9 = scalar_select 0, %s8, %s6
  loop: start=0, step=1, limit=6
  $region2: #{forward.20} parent=0 // loop_pre_header
    _
  $region3: #{forward.20} parent=0 // loop_header
    %s11 = sphi 0, %s15
    %p12 = scmp.ge.s32.totalorder %s11, 6
    %s21 = sphi 0, %s23
    %s24 = sphi 0, %s21
    %s25 = sphi 0, %s24
    %s41 = sphi 0, %s25
    %s45 = sphi 0, %s45
    %s47 = sphi 0, %s45
    %s48 = sphi 0, %s47
    %s62 = sphi 0, %s48
    %s68 = sphi 0, %s70
    %s71 = sphi 0, %s68
    %s72 = sphi 0, %s71
    %s88 = sphi 0, %s72
    %s94 = sphi 0, %s96
    %s97 = sphi 0, %s94
    %s98 = sphi 0, %s97
    %s114 = sphi 0, %s98
    %s120 = sphi 0, %s122
    %s123 = sphi 0, %s120
    %s124 = sphi 0, %s123
    %s140 = sphi 0, %s124
  $region4: #{forward.20} parent=0 // loop_header_branch
    %14 = sbr.rel (%p12) target = $region8
  $region5: #{forward.20} parent=0 // loop_body
    %s16 = ssub.s32 %s11, 1
    %s17 = ssub.s32 %s11, 2
    %s18 = sadd.s32 %s11, 1
    %s19 = ssub.s32 %s11, %s18
    %p20 = scmp.eq.s32.totalorder %s19, 0
    %s22 = sadd.s32 %s21, 1
    %s23 = scalar_select %p20, %s21, %s22
    %p26 = pneg %p20
    %p27 = scmp.eq.s32.totalorder %s11, 3
    %p28 = por %p26, %p27
    %p29 = scmp.ne.s32.totalorder %s21, %s24
    %p30 = scmp.eq.s32.totalorder %s11, 0
    %p31 = por %p29, %p30
    %p32 = scmp.ne.s32.totalorder %s21, %s24
    %p33 = scmp.eq.s32.totalorder %s16, 3
    %p34 = por %p32, %p33
    %p35 = scmp.ne.s32.totalorder %s24, %s25
    %p36 = scmp.eq.s32.totalorder %s16, 0
    %p37 = por %p35, %p36
    %p38 = scmp.ne.s32.totalorder %s24, %s25
    %p39 = scmp.eq.s32.totalorder %s17, 3
    %p40 = por %p38, %p39
    %p42 = scmp.ne.s32.totalorder %s25, %s41
    %p43 = scmp.eq.s32.totalorder %s17, 0
    %p44 = por %p42, %p43
    %s46 = sadd.s32 %s45, 1
    %p49 = scmp.eq.s32.totalorder %s11, 3
    %p50 = scmp.ne.s32.totalorder %s45, %s47
    %p51 = scmp.eq.s32.totalorder %s11, 0
    %p52 = por %p50, %p51
    %p53 = scmp.ne.s32.totalorder %s45, %s47
    %p54 = scmp.eq.s32.totalorder %s16, 3
    %p55 = por %p53, %p54
    %p56 = scmp.ne.s32.totalorder %s47, %s48
    %p57 = scmp.eq.s32.totalorder %s16, 0
    %p58 = por %p56, %p57
    %p59 = scmp.ne.s32.totalorder %s47, %s48
    %p60 = scmp.eq.s32.totalorder %s17, 3
    %p61 = por %p59, %p60
    %p63 = scmp.ne.s32.totalorder %s48, %s62
    %p64 = scmp.eq.s32.totalorder %s17, 0
    %p65 = por %p63, %p64
    %s66 = ssub.s32 %s11, %s18
    %p67 = scmp.eq.s32.totalorder %s66, 0
    %s69 = sadd.s32 %s68, 1
    %s70 = scalar_select %p67, %s68, %s69
    %p73 = pneg %p67
    %p74 = scmp.eq.s32.totalorder %s11, 3
    %p75 = por %p73, %p74
    %p76 = scmp.ne.s32.totalorder %s68, %s71
    %p77 = scmp.eq.s32.totalorder %s11, 0
    %p78 = por %p76, %p77
    %p79 = scmp.ne.s32.totalorder %s68, %s71
    %p80 = scmp.eq.s32.totalorder %s16, 3
    %p81 = por %p79, %p80
    %p82 = scmp.ne.s32.totalorder %s71, %s72
    %p83 = scmp.eq.s32.totalorder %s16, 0
    %p84 = por %p82, %p83
    %p85 = scmp.ne.s32.totalorder %s71, %s72
    %p86 = scmp.eq.s32.totalorder %s17, 3
    %p87 = por %p85, %p86
    %p89 = scmp.ne.s32.totalorder %s72, %s88
    %p90 = scmp.eq.s32.totalorder %s17, 0
    %p91 = por %p89, %p90
    %s92 = ssub.s32 %s11, %s18
    %p93 = scmp.eq.s32.totalorder %s92, 0
    %s95 = sadd.s32 %s94, 1
    %s96 = scalar_select %p93, %s94, %s95
    %p99 = pneg %p93
    %p100 = scmp.eq.s32.totalorder %s11, 3
    %p101 = por %p99, %p100
    %p102 = scmp.ne.s32.totalorder %s94, %s97
    %p103 = scmp.eq.s32.totalorder %s11, 0
    %p104 = por %p102, %p103
    %p105 = scmp.ne.s32.totalorder %s94, %s97
    %p106 = scmp.eq.s32.totalorder %s16, 3
    %p107 = por %p105, %p106
    %p108 = scmp.ne.s32.totalorder %s97, %s98
    %p109 = scmp.eq.s32.totalorder %s16, 0
    %p110 = por %p108, %p109
    %p111 = scmp.ne.s32.totalorder %s97, %s98
    %p112 = scmp.eq.s32.totalorder %s17, 3
    %p113 = por %p111, %p112
    %p115 = scmp.ne.s32.totalorder %s98, %s114
    %p116 = scmp.eq.s32.totalorder %s17, 0
    %p117 = por %p115, %p116
    %s118 = ssub.s32 %s11, %s18
    %p119 = scmp.eq.s32.totalorder %s118, 0
    %s121 = sadd.s32 %s120, 1
    %s122 = scalar_select %p119, %s120, %s121
    %p125 = pneg %p119
    %p126 = scmp.eq.s32.totalorder %s11, 3
    %p127 = por %p125, %p126
    %p128 = scmp.ne.s32.totalorder %s120, %s123
    %p129 = scmp.eq.s32.totalorder %s11, 0
    %p130 = por %p128, %p129
    %p131 = scmp.ne.s32.totalorder %s120, %s123
    %p132 = scmp.eq.s32.totalorder %s16, 3
    %p133 = por %p131, %p132
    %p134 = scmp.ne.s32.totalorder %s123, %s124
    %p135 = scmp.eq.s32.totalorder %s16, 0
    %p136 = por %p134, %p135
    %p137 = scmp.ne.s32.totalorder %s123, %s124
    %p138 = scmp.eq.s32.totalorder %s17, 3
    %p139 = por %p137, %p138
    %p141 = scmp.ne.s32.totalorder %s124, %s140
    %p142 = scmp.eq.s32.totalorder %s17, 0
    %p143 = por %p141, %p142
    %p144 = scmp.le.s32.totalorder 1, %s11
    %p145 = scmp.lt.s32.totalorder %s11, 5
    %p146 = pnand %p144, %p145
    %p147 = pneg %p146
    // Predicated region
    $region9: #{forward.20} parent=5 // pred_check
      _
    $region10: #{forward.20} parent=5 // pred_check_branch
      %149 = sbr.rel (%p146) target = $region12
    $region11: #{forward.20} parent=5 // pred_region
      %s150 = ssub.s32 %s11, 1
      // Predicated region
      $region13: #{forward.20} parent=11 // pred_check
        %p151 = pneg %p58
      $region14: #{forward.20} parent=11 // pred_check_branch
        %153 = sbr.rel (%p151) target = $region16
      $region15: #{forward.20} parent=11 // pred_region
        _
      $region16: #{forward.20} parent=11 // pred_fallthru
        _
    $region12: #{forward.20} parent=5 // pred_fallthru
      _
    %p154 = scmp.lt.s32.totalorder %s11, 4
    // Predicated region
    $region17: #{forward.20} parent=5 // pred_check
      %p155 = pneg %p154
    $region18: #{forward.20} parent=5 // pred_check_branch
      %157 = sbr.rel (%p155) target = $region20
    $region19: #{forward.20} parent=5 // pred_region
      // Predicated region
      $region21: #{forward.20} parent=19 // pred_check
        %p158 = pneg %p31
      $region22: #{forward.20} parent=19 // pred_check_branch
        %160 = sbr.rel (%p158) target = $region24
      $region23: #{forward.20} parent=19 // pred_region
        %s161 = smul.u32 64, %s11
        %p162 = scmp.lt.s32.totalorder %s161, 255
        %s163 = scalar_select %p162, %s161, 255
        %s164 = smul.addr %s163, 4
        %s165 = scalar_lea.vmem %s0, %s164
        %s166 = smul.u32 64, %s11
      $region24: #{forward.20} parent=19 // pred_fallthru
        _
    $region20: #{forward.20} parent=5 // pred_fallthru
      _
    %p167 = scmp.le.s32.totalorder 1, %s11
    %p168 = scmp.lt.s32.totalorder %s11, 5
    %p169 = pnand %p167, %p168
    %p170 = pneg %p169
    // Predicated region
    $region25: #{forward.20} parent=5 // pred_check
      _
    $region26: #{forward.20} parent=5 // pred_check_branch
      %172 = sbr.rel (%p169) target = $region28
    $region27: #{forward.20} parent=5 // pred_region
      %s173 = ssub.s32 %s11, 1
      %s174 = smul.u32 64, %s16
      %p175 = scmp.lt.s32.totalorder %s174, 255
      %s176 = scalar_select %p175, %s174, 255
      %s177 = smul.addr %s176, 4
      %s178 = scalar_lea.vmem %s0, %s177
      %p179 = pneg %p37
      %p180 = pneg %p34
      %p181 = pneg %p58
      %p182 = pneg %p55
      %p183 = pneg %p84
      %p184 = pneg %p81
      %s185 = smul.u32 64, %s16
      %p186 = scmp.lt.s32.totalorder %s185, 255
      %s187 = scalar_select %p186, %s185, 255
      %s188 = smul.addr %s187, 8
      %s189 = scalar_lea.vmem %s2, %s188
      %p190 = pneg %p110
      %p191 = pneg %p107
      %p192 = scmp.lt.s32.totalorder %s16, 3
      %s193 = scalar_select %p192, %s16, 3
      %s194 = smul.addr %s193, 8
      %s195 = scalar_lea.vmem %s3, %s194
      %p196 = pneg %p136
      %p197 = pneg %p133
      %p198 = scmp.lt.s32.totalorder %s16, 3
      %s199 = scalar_select %p198, %s16, 3
      %s200 = smul.addr %s199, 8
      %s201 = scalar_lea.vmem %s4, %s200
      %s202 = smul.u32 64, %s16
      %p203 = scmp.lt.s32.totalorder %s202, 255
      %s204 = scalar_select %p203, %s202, 255
      %s205 = smul.addr %s204, 4
      %s206 = scalar_lea.vmem %s0, %s205
      %s207 = smul.u32 64, %s16
      %s208 = smul.u32 64, %s16
      %p209 = scmp.lt.s32.totalorder %s208, 255
      %s210 = scalar_select %p209, %s208, 255
      %s211 = smul.addr %s210, 8
      %s212 = scalar_lea.vmem %s2, %s211
      %s213 = smul.u32 64, %s16
      %p214 = scmp.lt.s32.totalorder %s16, 3
      %s215 = scalar_select %p214, %s16, 3
      %s216 = smul.addr %s215, 8
      %s217 = scalar_lea.vmem %s3, %s216
      %p218 = scmp.lt.s32.totalorder %s16, 3
      %s219 = scalar_select %p218, %s16, 3
      %s220 = smul.addr %s219, 8
      %s221 = scalar_lea.vmem %s4, %s220
      %v222 = vld [vmem:[%s206] sm:$0xf]
      %v223 = vld [vmem:[%s206 + $0x4] sm:$0xf]
      %v224 = vld [vmem:[%s206 + $0x8] sm:$0xf]
      %v225 = vld [vmem:[%s206 + $0xc] sm:$0xf]
      %v226 = vld [vmem:[%s206 + $0x10] sm:$0xf]
      %v227 = vld [vmem:[%s206 + $0x14] sm:$0xf]
      %v228 = vld [vmem:[%s206 + $0x18] sm:$0xf]
      %v229 = vld [vmem:[%s206 + $0x1c] sm:$0xf]
      %v230 = vld [vmem:[%s206 + $0x20] sm:$0xf]
      %v231 = vld [vmem:[%s206 + $0x24] sm:$0xf]
      %v232 = vld [vmem:[%s206 + $0x28] sm:$0xf]
      %v233 = vld [vmem:[%s206 + $0x2c] sm:$0xf]
      %v234 = vld [vmem:[%s206 + $0x30] sm:$0xf]
      %v235 = vld [vmem:[%s206 + $0x34] sm:$0xf]
      %v236 = vld [vmem:[%s206 + $0x38] sm:$0xf]
      %v237 = vld [vmem:[%s206 + $0x3c] sm:$0xf]
      %v238 = vld [vmem:[%s206 + $0x40] sm:$0xf]
      %v239 = vld [vmem:[%s206 + $0x44] sm:$0xf]
      %v240 = vld [vmem:[%s206 + $0x48] sm:$0xf]
      %v241 = vld [vmem:[%s206 + $0x4c] sm:$0xf]
      %v242 = vld [vmem:[%s206 + $0x50] sm:$0xf]
      %v243 = vld [vmem:[%s206 + $0x54] sm:$0xf]
      %v244 = vld [vmem:[%s206 + $0x58] sm:$0xf]
      %v245 = vld [vmem:[%s206 + $0x5c] sm:$0xf]
      %v246 = vld [vmem:[%s206 + $0x60] sm:$0xf]
      %v247 = vld [vmem:[%s206 + $0x64] sm:$0xf]
      %v248 = vld [vmem:[%s206 + $0x68] sm:$0xf]
      %v249 = vld [vmem:[%s206 + $0x6c] sm:$0xf]
      %v250 = vld [vmem:[%s206 + $0x70] sm:$0xf]
      %v251 = vld [vmem:[%s206 + $0x74] sm:$0xf]
      %v252 = vld [vmem:[%s206 + $0x78] sm:$0xf]
      %v253 = vld [vmem:[%s206 + $0x7c] sm:$0xf]
      %v254 = vld [vmem:[%s206 + $0x80] sm:$0xf]
      %v255 = vld [vmem:[%s206 + $0x84] sm:$0xf]
      %v256 = vld [vmem:[%s206 + $0x88] sm:$0xf]
      %v257 = vld [vmem:[%s206 + $0x8c] sm:$0xf]
      %v258 = vld [vmem:[%s206 + $0x90] sm:$0xf]
      %v259 = vld [vmem:[%s206 + $0x94] sm:$0xf]
      %v260 = vld [vmem:[%s206 + $0x98] sm:$0xf]
      %v261 = vld [vmem:[%s206 + $0x9c] sm:$0xf]
      %v262 = vld [vmem:[%s206 + $0xa0] sm:$0xf]
      %v263 = vld [vmem:[%s206 + $0xa4] sm:$0xf]
      %v264 = vld [vmem:[%s206 + $0xa8] sm:$0xf]
      %v265 = vld [vmem:[%s206 + $0xac] sm:$0xf]
      %v266 = vld [vmem:[%s206 + $0xb0] sm:$0xf]
      %v267 = vld [vmem:[%s206 + $0xb4] sm:$0xf]
      %v268 = vld [vmem:[%s206 + $0xb8] sm:$0xf]
      %v269 = vld [vmem:[%s206 + $0xbc] sm:$0xf]
      %v270 = vld [vmem:[%s206 + $0xc0] sm:$0xf]
      %v271 = vld [vmem:[%s206 + $0xc4] sm:$0xf]
      %v272 = vld [vmem:[%s206 + $0xc8] sm:$0xf]
      %v273 = vld [vmem:[%s206 + $0xcc] sm:$0xf]
      %v274 = vld [vmem:[%s206 + $0xd0] sm:$0xf]
      %v275 = vld [vmem:[%s206 + $0xd4] sm:$0xf]
      %v276 = vld [vmem:[%s206 + $0xd8] sm:$0xf]
      %v277 = vld [vmem:[%s206 + $0xdc] sm:$0xf]
      %v278 = vld [vmem:[%s206 + $0xe0] sm:$0xf]
      %v279 = vld [vmem:[%s206 + $0xe4] sm:$0xf]
      %v280 = vld [vmem:[%s206 + $0xe8] sm:$0xf]
      %v281 = vld [vmem:[%s206 + $0xec] sm:$0xf]
      %v282 = vld [vmem:[%s206 + $0xf0] sm:$0xf]
      %v283 = vld [vmem:[%s206 + $0xf4] sm:$0xf]
      %v284 = vld [vmem:[%s206 + $0xf8] sm:$0xf]
      %v285 = vld [vmem:[%s206 + $0xfc] sm:$0xf]
      %v286 = vld [vmem:[%s1] sm:$0xf]
      %v287 = vld [vmem:[%s1 + $0x4] sm:$0xf]
      %v288 = vld [vmem:[%s1 + $0x8] sm:$0xf]
      %v289 = vld [vmem:[%s1 + $0xc] sm:$0xf]
      %v290 = vld [vmem:[%s1 + $0x10] sm:$0xf]
      %v291 = vld [vmem:[%s1 + $0x14] sm:$0xf]
      %v292 = vld [vmem:[%s1 + $0x18] sm:$0xf]
      %v293 = vld [vmem:[%s1 + $0x1c] sm:$0xf]
      %v294 = vld [vmem:[%s1 + $0x20] sm:$0xf]
      %v295 = vld [vmem:[%s1 + $0x24] sm:$0xf]
      %v296 = vld [vmem:[%s1 + $0x28] sm:$0xf]
      %v297 = vld [vmem:[%s1 + $0x2c] sm:$0xf]
      %v298 = vld [vmem:[%s1 + $0x30] sm:$0xf]
      %v299 = vld [vmem:[%s1 + $0x34] sm:$0xf]
      %v300 = vld [vmem:[%s1 + $0x38] sm:$0xf]
      %v301 = vld [vmem:[%s1 + $0x3c] sm:$0xf]
      %v366 = vunpack.c.l.b16 %v222
      %v367 = vunpack.c.l.b16 %v223
      %v368 = vunpack.c.l.b16 %v224
      %v369 = vunpack.c.l.b16 %v225
      %v370 = vunpack.c.l.b16 %v226
      %v371 = vunpack.c.l.b16 %v227
      %v372 = vunpack.c.l.b16 %v228
      %v373 = vunpack.c.l.b16 %v229
      %v374 = vunpack.c.l.b16 %v230
      %v375 = vunpack.c.l.b16 %v231
      %v376 = vunpack.c.l.b16 %v232
      %v377 = vunpack.c.l.b16 %v233
      %v378 = vunpack.c.l.b16 %v234
      %v379 = vunpack.c.l.b16 %v235
      %v380 = vunpack.c.l.b16 %v236
      %v381 = vunpack.c.l.b16 %v237
      %v382 = vunpack.c.l.b16 %v238
      %v383 = vunpack.c.l.b16 %v239
      %v384 = vunpack.c.l.b16 %v240
      %v385 = vunpack.c.l.b16 %v241
      %v386 = vunpack.c.l.b16 %v242
      %v387 = vunpack.c.l.b16 %v243
      %v388 = vunpack.c.l.b16 %v244
      %v389 = vunpack.c.l.b16 %v245
      %v390 = vunpack.c.l.b16 %v246
      %v391 = vunpack.c.l.b16 %v247
      %v392 = vunpack.c.l.b16 %v248
      %v393 = vunpack.c.l.b16 %v249
      %v394 = vunpack.c.l.b16 %v250
      %v395 = vunpack.c.l.b16 %v251
      %v396 = vunpack.c.l.b16 %v252
      %v397 = vunpack.c.l.b16 %v253
      %v398 = vunpack.c.l.b16 %v254
      %v399 = vunpack.c.l.b16 %v255
      %v400 = vunpack.c.l.b16 %v256
      %v401 = vunpack.c.l.b16 %v257
      %v402 = vunpack.c.l.b16 %v258
      %v403 = vunpack.c.l.b16 %v259
      %v404 = vunpack.c.l.b16 %v260
      %v405 = vunpack.c.l.b16 %v261
      %v406 = vunpack.c.l.b16 %v262
      %v407 = vunpack.c.l.b16 %v263
      %v408 = vunpack.c.l.b16 %v264
      %v409 = vunpack.c.l.b16 %v265
      %v410 = vunpack.c.l.b16 %v266
      %v411 = vunpack.c.l.b16 %v267
      %v412 = vunpack.c.l.b16 %v268
      %v413 = vunpack.c.l.b16 %v269
      %v414 = vunpack.c.l.b16 %v270
      %v415 = vunpack.c.l.b16 %v271
      %v416 = vunpack.c.l.b16 %v272
      %v417 = vunpack.c.l.b16 %v273
      %v418 = vunpack.c.l.b16 %v274
      %v419 = vunpack.c.l.b16 %v275
      %v420 = vunpack.c.l.b16 %v276
      %v421 = vunpack.c.l.b16 %v277
      %v422 = vunpack.c.l.b16 %v278
      %v423 = vunpack.c.l.b16 %v279
      %v424 = vunpack.c.l.b16 %v280
      %v425 = vunpack.c.l.b16 %v281
      %v426 = vunpack.c.l.b16 %v282
      %v427 = vunpack.c.l.b16 %v283
      %v428 = vunpack.c.l.b16 %v284
      %v429 = vunpack.c.l.b16 %v285
      %v430 = vpack.c.b16 %v367, %v366
      %v431 = vpack.c.b16 %v369, %v368
      %v432 = vpack.c.b16 %v371, %v370
      %v433 = vpack.c.b16 %v373, %v372
      %v434 = vpack.c.b16 %v375, %v374
      %v435 = vpack.c.b16 %v377, %v376
      %v436 = vpack.c.b16 %v379, %v378
      %v437 = vpack.c.b16 %v381, %v380
      %v438 = vpack.c.b16 %v383, %v382
      %v439 = vpack.c.b16 %v385, %v384
      %v440 = vpack.c.b16 %v387, %v386
      %v441 = vpack.c.b16 %v389, %v388
      %v442 = vpack.c.b16 %v391, %v390
      %v443 = vpack.c.b16 %v393, %v392
      %v444 = vpack.c.b16 %v395, %v394
      %v445 = vpack.c.b16 %v397, %v396
      %v446 = vpack.c.b16 %v399, %v398
      %v447 = vpack.c.b16 %v401, %v400
      %v448 = vpack.c.b16 %v403, %v402
      %v449 = vpack.c.b16 %v405, %v404
      %v450 = vpack.c.b16 %v407, %v406
      %v451 = vpack.c.b16 %v409, %v408
      %v452 = vpack.c.b16 %v411, %v410
      %v453 = vpack.c.b16 %v413, %v412
      %v454 = vpack.c.b16 %v415, %v414
      %v455 = vpack.c.b16 %v417, %v416
      %v456 = vpack.c.b16 %v419, %v418
      %v457 = vpack.c.b16 %v421, %v420
      %v458 = vpack.c.b16 %v423, %v422
      %v459 = vpack.c.b16 %v425, %v424
      %v460 = vpack.c.b16 %v427, %v426
      %v461 = vpack.c.b16 %v429, %v428
      %v510 = vunpack.c.l.b16 %v286
      %v511 = vunpack.c.l.b16 %v287
      %v512 = vunpack.c.l.b16 %v288
      %v513 = vunpack.c.l.b16 %v289
      %v514 = vunpack.c.l.b16 %v290
      %v515 = vunpack.c.l.b16 %v291
      %v516 = vunpack.c.l.b16 %v292
      %v517 = vunpack.c.l.b16 %v293
      %v518 = vunpack.c.l.b16 %v294
      %v519 = vunpack.c.l.b16 %v295
      %v520 = vunpack.c.l.b16 %v296
      %v521 = vunpack.c.l.b16 %v297
      %v522 = vunpack.c.l.b16 %v298
      %v523 = vunpack.c.l.b16 %v299
      %v524 = vunpack.c.l.b16 %v300
      %v525 = vunpack.c.l.b16 %v301
      %v526 = vpack.c.b16 %v511, %v510
      %v527 = vpack.c.b16 %v513, %v512
      %v528 = vpack.c.b16 %v515, %v514
      %v529 = vpack.c.b16 %v517, %v516
      %v530 = vpack.c.b16 %v519, %v518
      %v531 = vpack.c.b16 %v521, %v520
      %v532 = vpack.c.b16 %v523, %v522
      %v533 = vpack.c.b16 %v525, %v524
      %542 = vmatpush.bf16.msra.mxu0 %v533
      %543 = vmatpush.bf16.msra.mxu0 %v532
      %544 = vmatpush.bf16.msra.mxu0 %v531
      %545 = vmatpush.bf16.msra.mxu0 %v530
      %546 = vmatpush.bf16.msra.mxu0 %v529
      %547 = vmatpush.bf16.msra.mxu0 %v528
      %548 = vmatpush.bf16.msra.mxu0 %v527
      %549 = vmatpush.bf16.msra.mxu0 %v526
      %550 = vmatmul.bf16.gmra.mxu0 %v430
      %v551 = vpop.f32.mrf.mxu0
      %v552 = vadd.f32 0.0, %v551
      %v553 = vpop.f32.mrf.mxu0
      %v554 = vadd.f32 0.0, %v553
      %555 = vmatmul.bf16.gmra.mxu0 %v431
      %v556 = vpop.f32.mrf.mxu0
      %v557 = vadd.f32 0.0, %v556
      %v558 = vpop.f32.mrf.mxu0
      %v559 = vadd.f32 0.0, %v558
      %560 = vmatmul.bf16.gmra.mxu0 %v432
      %v561 = vpop.f32.mrf.mxu0
      %v562 = vadd.f32 0.0, %v561
      %v563 = vpop.f32.mrf.mxu0
      %v564 = vadd.f32 0.0, %v563
      %565 = vmatmul.bf16.gmra.mxu0 %v433
      %v566 = vpop.f32.mrf.mxu0
      %v567 = vadd.f32 0.0, %v566
      %v568 = vpop.f32.mrf.mxu0
      %v569 = vadd.f32 0.0, %v568
      %570 = vmatmul.bf16.gmra.mxu0 %v434
      %v571 = vpop.f32.mrf.mxu0
      %v572 = vadd.f32 0.0, %v571
      %v573 = vpop.f32.mrf.mxu0
      %v574 = vadd.f32 0.0, %v573
      %575 = vmatmul.bf16.gmra.mxu0 %v435
      %v576 = vpop.f32.mrf.mxu0
      %v577 = vadd.f32 0.0, %v576
      %v578 = vpop.f32.mrf.mxu0
      %v579 = vadd.f32 0.0, %v578
      %580 = vmatmul.bf16.gmra.mxu0 %v436
      %v581 = vpop.f32.mrf.mxu0
      %v582 = vadd.f32 0.0, %v581
      %v583 = vpop.f32.mrf.mxu0
      %v584 = vadd.f32 0.0, %v583
      %585 = vmatmul.bf16.gmra.mxu0 %v437
      %v586 = vpop.f32.mrf.mxu0
      %v587 = vadd.f32 0.0, %v586
      %v588 = vpop.f32.mrf.mxu0
      %v589 = vadd.f32 0.0, %v588
      %590 = vmatmul.bf16.gmra.mxu0 %v438
      %v591 = vpop.f32.mrf.mxu0
      %v592 = vadd.f32 0.0, %v591
      %v593 = vpop.f32.mrf.mxu0
      %v594 = vadd.f32 0.0, %v593
      %595 = vmatmul.bf16.gmra.mxu0 %v439
      %v596 = vpop.f32.mrf.mxu0
      %v597 = vadd.f32 0.0, %v596
      %v598 = vpop.f32.mrf.mxu0
      %v599 = vadd.f32 0.0, %v598
      %600 = vmatmul.bf16.gmra.mxu0 %v440
      %v601 = vpop.f32.mrf.mxu0
      %v602 = vadd.f32 0.0, %v601
      %v603 = vpop.f32.mrf.mxu0
      %v604 = vadd.f32 0.0, %v603
      %605 = vmatmul.bf16.gmra.mxu0 %v441
      %v606 = vpop.f32.mrf.mxu0
      %v607 = vadd.f32 0.0, %v606
      %v608 = vpop.f32.mrf.mxu0
      %v609 = vadd.f32 0.0, %v608
      %610 = vmatmul.bf16.gmra.mxu0 %v442
      %v611 = vpop.f32.mrf.mxu0
      %v612 = vadd.f32 0.0, %v611
      %v613 = vpop.f32.mrf.mxu0
      %v614 = vadd.f32 0.0, %v613
      %615 = vmatmul.bf16.gmra.mxu0 %v443
      %v616 = vpop.f32.mrf.mxu0
      %v617 = vadd.f32 0.0, %v616
      %v618 = vpop.f32.mrf.mxu0
      %v619 = vadd.f32 0.0, %v618
      %620 = vmatmul.bf16.gmra.mxu0 %v444
      %v621 = vpop.f32.mrf.mxu0
      %v622 = vadd.f32 0.0, %v621
      %v623 = vpop.f32.mrf.mxu0
      %v624 = vadd.f32 0.0, %v623
      %625 = vmatmul.bf16.gmra.mxu0 %v445
      %v626 = vpop.f32.mrf.mxu0
      %v627 = vadd.f32 0.0, %v626
      %v628 = vpop.f32.mrf.mxu0
      %v629 = vadd.f32 0.0, %v628
      %630 = vmatmul.bf16.gmra.mxu0 %v446
      %v631 = vpop.f32.mrf.mxu0
      %v632 = vadd.f32 0.0, %v631
      %v633 = vpop.f32.mrf.mxu0
      %v634 = vadd.f32 0.0, %v633
      %635 = vmatmul.bf16.gmra.mxu0 %v447
      %v636 = vpop.f32.mrf.mxu0
      %v637 = vadd.f32 0.0, %v636
      %v638 = vpop.f32.mrf.mxu0
      %v639 = vadd.f32 0.0, %v638
      %640 = vmatmul.bf16.gmra.mxu0 %v448
      %v641 = vpop.f32.mrf.mxu0
      %v642 = vadd.f32 0.0, %v641
      %v643 = vpop.f32.mrf.mxu0
      %v644 = vadd.f32 0.0, %v643
      %645 = vmatmul.bf16.gmra.mxu0 %v449
      %v646 = vpop.f32.mrf.mxu0
      %v647 = vadd.f32 0.0, %v646
      %v648 = vpop.f32.mrf.mxu0
      %v649 = vadd.f32 0.0, %v648
      %650 = vmatmul.bf16.gmra.mxu0 %v450
      %v651 = vpop.f32.mrf.mxu0
      %v652 = vadd.f32 0.0, %v651
      %v653 = vpop.f32.mrf.mxu0
      %v654 = vadd.f32 0.0, %v653
      %655 = vmatmul.bf16.gmra.mxu0 %v451
      %v656 = vpop.f32.mrf.mxu0
      %v657 = vadd.f32 0.0, %v656
      %v658 = vpop.f32.mrf.mxu0
      %v659 = vadd.f32 0.0, %v658
      %660 = vmatmul.bf16.gmra.mxu0 %v452
      %v661 = vpop.f32.mrf.mxu0
      %v662 = vadd.f32 0.0, %v661
      %v663 = vpop.f32.mrf.mxu0
      %v664 = vadd.f32 0.0, %v663
      %665 = vmatmul.bf16.gmra.mxu0 %v453
      %v666 = vpop.f32.mrf.mxu0
      %v667 = vadd.f32 0.0, %v666
      %v668 = vpop.f32.mrf.mxu0
      %v669 = vadd.f32 0.0, %v668
      %670 = vmatmul.bf16.gmra.mxu0 %v454
      %v671 = vpop.f32.mrf.mxu0
      %v672 = vadd.f32 0.0, %v671
      %v673 = vpop.f32.mrf.mxu0
      %v674 = vadd.f32 0.0, %v673
      %675 = vmatmul.bf16.gmra.mxu0 %v455
      %v676 = vpop.f32.mrf.mxu0
      %v677 = vadd.f32 0.0, %v676
      %v678 = vpop.f32.mrf.mxu0
      %v679 = vadd.f32 0.0, %v678
      %680 = vmatmul.bf16.gmra.mxu0 %v456
      %v681 = vpop.f32.mrf.mxu0
      %v682 = vadd.f32 0.0, %v681
      %v683 = vpop.f32.mrf.mxu0
      %v684 = vadd.f32 0.0, %v683
      %685 = vmatmul.bf16.gmra.mxu0 %v457
      %v686 = vpop.f32.mrf.mxu0
      %v687 = vadd.f32 0.0, %v686
      %v688 = vpop.f32.mrf.mxu0
      %v689 = vadd.f32 0.0, %v688
      %690 = vmatmul.bf16.gmra.mxu0 %v458
      %v691 = vpop.f32.mrf.mxu0
      %v692 = vadd.f32 0.0, %v691
      %v693 = vpop.f32.mrf.mxu0
      %v694 = vadd.f32 0.0, %v693
      %695 = vmatmul.bf16.gmra.mxu0 %v459
      %v696 = vpop.f32.mrf.mxu0
      %v697 = vadd.f32 0.0, %v696
      %v698 = vpop.f32.mrf.mxu0
      %v699 = vadd.f32 0.0, %v698
      %700 = vmatmul.bf16.gmra.mxu0 %v460
      %v701 = vpop.f32.mrf.mxu0
      %v702 = vadd.f32 0.0, %v701
      %v703 = vpop.f32.mrf.mxu0
      %v704 = vadd.f32 0.0, %v703
      %705 = vmatmul.bf16.gmra.mxu0 %v461
      %v706 = vpop.f32.mrf.mxu0
      %v707 = vadd.f32 0.0, %v706
      %v708 = vpop.f32.mrf.mxu0
      %v709 = vadd.f32 0.0, %v708
      %710 = vdwg.mxu0
      %711 = vst [vmem:[%s212] sm:$0xff] %v552
      %712 = vst [vmem:[%s212 + $0x8] sm:$0xff] %v554
      %713 = vst [vmem:[%s212 + $0x10] sm:$0xff] %v557
      %714 = vst [vmem:[%s212 + $0x18] sm:$0xff] %v559
      %715 = vst [vmem:[%s212 + $0x20] sm:$0xff] %v562
      %716 = vst [vmem:[%s212 + $0x28] sm:$0xff] %v564
      %717 = vst [vmem:[%s212 + $0x30] sm:$0xff] %v567
      %718 = vst [vmem:[%s212 + $0x38] sm:$0xff] %v569
      %719 = vst [vmem:[%s212 + $0x40] sm:$0xff] %v572
      %720 = vst [vmem:[%s212 + $0x48] sm:$0xff] %v574
      %721 = vst [vmem:[%s212 + $0x50] sm:$0xff] %v577
      %722 = vst [vmem:[%s212 + $0x58] sm:$0xff] %v579
      %723 = vst [vmem:[%s212 + $0x60] sm:$0xff] %v582
      %724 = vst [vmem:[%s212 + $0x68] sm:$0xff] %v584
      %725 = vst [vmem:[%s212 + $0x70] sm:$0xff] %v587
      %726 = vst [vmem:[%s212 + $0x78] sm:$0xff] %v589
      %727 = vst [vmem:[%s212 + $0x80] sm:$0xff] %v592
      %728 = vst [vmem:[%s212 + $0x88] sm:$0xff] %v594
      %729 = vst [vmem:[%s212 + $0x90] sm:$0xff] %v597
      %730 = vst [vmem:[%s212 + $0x98] sm:$0xff] %v599
      %731 = vst [vmem:[%s212 + $0xa0] sm:$0xff] %v602
      %732 = vst [vmem:[%s212 + $0xa8] sm:$0xff] %v604
      %733 = vst [vmem:[%s212 + $0xb0] sm:$0xff] %v607
      %734 = vst [vmem:[%s212 + $0xb8] sm:$0xff] %v609
      %735 = vst [vmem:[%s212 + $0xc0] sm:$0xff] %v612
      %736 = vst [vmem:[%s212 + $0xc8] sm:$0xff] %v614
      %737 = vst [vmem:[%s212 + $0xd0] sm:$0xff] %v617
      %738 = vst [vmem:[%s212 + $0xd8] sm:$0xff] %v619
      %739 = vst [vmem:[%s212 + $0xe0] sm:$0xff] %v622
      %740 = vst [vmem:[%s212 + $0xe8] sm:$0xff] %v624
      %741 = vst [vmem:[%s212 + $0xf0] sm:$0xff] %v627
      %742 = vst [vmem:[%s212 + $0xf8] sm:$0xff] %v629
      %743 = vst [vmem:[%s212 + $0x100] sm:$0xff] %v632
      %744 = vst [vmem:[%s212 + $0x108] sm:$0xff] %v634
      %745 = vst [vmem:[%s212 + $0x110] sm:$0xff] %v637
      %746 = vst [vmem:[%s212 + $0x118] sm:$0xff] %v639
      %747 = vst [vmem:[%s212 + $0x120] sm:$0xff] %v642
      %748 = vst [vmem:[%s212 + $0x128] sm:$0xff] %v644
      %749 = vst [vmem:[%s212 + $0x130] sm:$0xff] %v647
      %750 = vst [vmem:[%s212 + $0x138] sm:$0xff] %v649
      %751 = vst [vmem:[%s212 + $0x140] sm:$0xff] %v652
      %752 = vst [vmem:[%s212 + $0x148] sm:$0xff] %v654
      %753 = vst [vmem:[%s212 + $0x150] sm:$0xff] %v657
      %754 = vst [vmem:[%s212 + $0x158] sm:$0xff] %v659
      %755 = vst [vmem:[%s212 + $0x160] sm:$0xff] %v662
      %756 = vst [vmem:[%s212 + $0x168] sm:$0xff] %v664
      %757 = vst [vmem:[%s212 + $0x170] sm:$0xff] %v667
      %758 = vst [vmem:[%s212 + $0x178] sm:$0xff] %v669
      %759 = vst [vmem:[%s212 + $0x180] sm:$0xff] %v672
      %760 = vst [vmem:[%s212 + $0x188] sm:$0xff] %v674
      %761 = vst [vmem:[%s212 + $0x190] sm:$0xff] %v677
      %762 = vst [vmem:[%s212 + $0x198] sm:$0xff] %v679
      %763 = vst [vmem:[%s212 + $0x1a0] sm:$0xff] %v682
      %764 = vst [vmem:[%s212 + $0x1a8] sm:$0xff] %v684
      %765 = vst [vmem:[%s212 + $0x1b0] sm:$0xff] %v687
      %766 = vst [vmem:[%s212 + $0x1b8] sm:$0xff] %v689
      %767 = vst [vmem:[%s212 + $0x1c0] sm:$0xff] %v692
      %768 = vst [vmem:[%s212 + $0x1c8] sm:$0xff] %v694
      %769 = vst [vmem:[%s212 + $0x1d0] sm:$0xff] %v697
      %770 = vst [vmem:[%s212 + $0x1d8] sm:$0xff] %v699
      %771 = vst [vmem:[%s212 + $0x1e0] sm:$0xff] %v702
      %772 = vst [vmem:[%s212 + $0x1e8] sm:$0xff] %v704
      %773 = vst [vmem:[%s212 + $0x1f0] sm:$0xff] %v707
      %774 = vst [vmem:[%s212 + $0x1f8] sm:$0xff] %v709
      %v775 = vadd.f32 %v552, %v554
      %v776 = vadd.f32 %v775, %v557
      %v777 = vadd.f32 %v776, %v559
      %v778 = vadd.f32 %v777, %v562
      %v779 = vadd.f32 %v778, %v564
      %v780 = vadd.f32 %v779, %v567
      %v781 = vadd.f32 %v780, %v569
      %v782 = vadd.f32 %v781, %v572
      %v783 = vadd.f32 %v782, %v574
      %v784 = vadd.f32 %v783, %v577
      %v785 = vadd.f32 %v784, %v579
      %v786 = vadd.f32 %v785, %v582
      %v787 = vadd.f32 %v786, %v584
      %v788 = vadd.f32 %v787, %v587
      %v789 = vadd.f32 %v788, %v589
      %v790 = vadd.f32 %v789, %v592
      %v791 = vadd.f32 %v790, %v594
      %v792 = vadd.f32 %v791, %v597
      %v793 = vadd.f32 %v792, %v599
      %v794 = vadd.f32 %v793, %v602
      %v795 = vadd.f32 %v794, %v604
      %v796 = vadd.f32 %v795, %v607
      %v797 = vadd.f32 %v796, %v609
      %v798 = vadd.f32 %v797, %v612
      %v799 = vadd.f32 %v798, %v614
      %v800 = vadd.f32 %v799, %v617
      %v801 = vadd.f32 %v800, %v619
      %v802 = vadd.f32 %v801, %v622
      %v803 = vadd.f32 %v802, %v624
      %v804 = vadd.f32 %v803, %v627
      %v805 = vadd.f32 %v804, %v629
      %v806 = vadd.f32 %v805, %v632
      %v807 = vadd.f32 %v806, %v634
      %v808 = vadd.f32 %v807, %v637
      %v809 = vadd.f32 %v808, %v639
      %v810 = vadd.f32 %v809, %v642
      %v811 = vadd.f32 %v810, %v644
      %v812 = vadd.f32 %v811, %v647
      %v813 = vadd.f32 %v812, %v649
      %v814 = vadd.f32 %v813, %v652
      %v815 = vadd.f32 %v814, %v654
      %v816 = vadd.f32 %v815, %v657
      %v817 = vadd.f32 %v816, %v659
      %v818 = vadd.f32 %v817, %v662
      %v819 = vadd.f32 %v818, %v664
      %v820 = vadd.f32 %v819, %v667
      %v821 = vadd.f32 %v820, %v669
      %v822 = vadd.f32 %v821, %v672
      %v823 = vadd.f32 %v822, %v674
      %v824 = vadd.f32 %v823, %v677
      %v825 = vadd.f32 %v824, %v679
      %v826 = vadd.f32 %v825, %v682
      %v827 = vadd.f32 %v826, %v684
      %v828 = vadd.f32 %v827, %v687
      %v829 = vadd.f32 %v828, %v689
      %v830 = vadd.f32 %v829, %v692
      %v831 = vadd.f32 %v830, %v694
      %v832 = vadd.f32 %v831, %v697
      %v833 = vadd.f32 %v832, %v699
      %v834 = vadd.f32 %v833, %v702
      %v835 = vadd.f32 %v834, %v704
      %v836 = vadd.f32 %v835, %v707
      %v837 = vadd.f32 %v836, %v709
      %v838 = vrot.slane %v837, 4
      %v839 = vadd.f32 %v837, %v838
      %v840 = vrot.slane %v839, 2
      %v841 = vadd.f32 %v839, %v840
      %v842 = vrot.slane %v841, 1
      %v843 = vadd.f32 %v841, %v842
      %844 = vst [vmem:[%s217] sm:$0xff] %v843
      %v845 = vmul.f32 %v552, %v552
      %v846 = vmul.f32 %v554, %v554
      %v847 = vmul.f32 %v557, %v557
      %v848 = vmul.f32 %v559, %v559
      %v849 = vmul.f32 %v562, %v562
      %v850 = vmul.f32 %v564, %v564
      %v851 = vmul.f32 %v567, %v567
      %v852 = vmul.f32 %v569, %v569
      %v853 = vmul.f32 %v572, %v572
      %v854 = vmul.f32 %v574, %v574
      %v855 = vmul.f32 %v577, %v577
      %v856 = vmul.f32 %v579, %v579
      %v857 = vmul.f32 %v582, %v582
      %v858 = vmul.f32 %v584, %v584
      %v859 = vmul.f32 %v587, %v587
      %v860 = vmul.f32 %v589, %v589
      %v861 = vmul.f32 %v592, %v592
      %v862 = vmul.f32 %v594, %v594
      %v863 = vmul.f32 %v597, %v597
      %v864 = vmul.f32 %v599, %v599
      %v865 = vmul.f32 %v602, %v602
      %v866 = vmul.f32 %v604, %v604
      %v867 = vmul.f32 %v607, %v607
      %v868 = vmul.f32 %v609, %v609
      %v869 = vmul.f32 %v612, %v612
      %v870 = vmul.f32 %v614, %v614
      %v871 = vmul.f32 %v617, %v617
      %v872 = vmul.f32 %v619, %v619
      %v873 = vmul.f32 %v622, %v622
      %v874 = vmul.f32 %v624, %v624
      %v875 = vmul.f32 %v627, %v627
      %v876 = vmul.f32 %v629, %v629
      %v877 = vmul.f32 %v632, %v632
      %v878 = vmul.f32 %v634, %v634
      %v879 = vmul.f32 %v637, %v637
      %v880 = vmul.f32 %v639, %v639
      %v881 = vmul.f32 %v642, %v642
      %v882 = vmul.f32 %v644, %v644
      %v883 = vmul.f32 %v647, %v647
      %v884 = vmul.f32 %v649, %v649
      %v885 = vmul.f32 %v652, %v652
      %v886 = vmul.f32 %v654, %v654
      %v887 = vmul.f32 %v657, %v657
      %v888 = vmul.f32 %v659, %v659
      %v889 = vmul.f32 %v662, %v662
      %v890 = vmul.f32 %v664, %v664
      %v891 = vmul.f32 %v667, %v667
      %v892 = vmul.f32 %v669, %v669
      %v893 = vmul.f32 %v672, %v672
      %v894 = vmul.f32 %v674, %v674
      %v895 = vmul.f32 %v677, %v677
      %v896 = vmul.f32 %v679, %v679
      %v897 = vmul.f32 %v682, %v682
      %v898 = vmul.f32 %v684, %v684
      %v899 = vmul.f32 %v687, %v687
      %v900 = vmul.f32 %v689, %v689
      %v901 = vmul.f32 %v692, %v692
      %v902 = vmul.f32 %v694, %v694
      %v903 = vmul.f32 %v697, %v697
      %v904 = vmul.f32 %v699, %v699
      %v905 = vmul.f32 %v702, %v702
      %v906 = vmul.f32 %v704, %v704
      %v907 = vmul.f32 %v707, %v707
      %v908 = vmul.f32 %v709, %v709
      %v909 = vadd.f32 %v845, %v846
      %v910 = vadd.f32 %v909, %v847
      %v911 = vadd.f32 %v910, %v848
      %v912 = vadd.f32 %v911, %v849
      %v913 = vadd.f32 %v912, %v850
      %v914 = vadd.f32 %v913, %v851
      %v915 = vadd.f32 %v914, %v852
      %v916 = vadd.f32 %v915, %v853
      %v917 = vadd.f32 %v916, %v854
      %v918 = vadd.f32 %v917, %v855
      %v919 = vadd.f32 %v918, %v856
      %v920 = vadd.f32 %v919, %v857
      %v921 = vadd.f32 %v920, %v858
      %v922 = vadd.f32 %v921, %v859
      %v923 = vadd.f32 %v922, %v860
      %v924 = vadd.f32 %v923, %v861
      %v925 = vadd.f32 %v924, %v862
      %v926 = vadd.f32 %v925, %v863
      %v927 = vadd.f32 %v926, %v864
      %v928 = vadd.f32 %v927, %v865
      %v929 = vadd.f32 %v928, %v866
      %v930 = vadd.f32 %v929, %v867
      %v931 = vadd.f32 %v930, %v868
      %v932 = vadd.f32 %v931, %v869
      %v933 = vadd.f32 %v932, %v870
      %v934 = vadd.f32 %v933, %v871
      %v935 = vadd.f32 %v934, %v872
      %v936 = vadd.f32 %v935, %v873
      %v937 = vadd.f32 %v936, %v874
      %v938 = vadd.f32 %v937, %v875
      %v939 = vadd.f32 %v938, %v876
      %v940 = vadd.f32 %v939, %v877
      %v941 = vadd.f32 %v940, %v878
      %v942 = vadd.f32 %v941, %v879
      %v943 = vadd.f32 %v942, %v880
      %v944 = vadd.f32 %v943, %v881
      %v945 = vadd.f32 %v944, %v882
      %v946 = vadd.f32 %v945, %v883
      %v947 = vadd.f32 %v946, %v884
      %v948 = vadd.f32 %v947, %v885
      %v949 = vadd.f32 %v948, %v886
      %v950 = vadd.f32 %v949, %v887
      %v951 = vadd.f32 %v950, %v888
      %v952 = vadd.f32 %v951, %v889
      %v953 = vadd.f32 %v952, %v890
      %v954 = vadd.f32 %v953, %v891
      %v955 = vadd.f32 %v954, %v892
      %v956 = vadd.f32 %v955, %v893
      %v957 = vadd.f32 %v956, %v894
      %v958 = vadd.f32 %v957, %v895
      %v959 = vadd.f32 %v958, %v896
      %v960 = vadd.f32 %v959, %v897
      %v961 = vadd.f32 %v960, %v898
      %v962 = vadd.f32 %v961, %v899
      %v963 = vadd.f32 %v962, %v900
      %v964 = vadd.f32 %v963, %v901
      %v965 = vadd.f32 %v964, %v902
      %v966 = vadd.f32 %v965, %v903
      %v967 = vadd.f32 %v966, %v904
      %v968 = vadd.f32 %v967, %v905
      %v969 = vadd.f32 %v968, %v906
      %v970 = vadd.f32 %v969, %v907
      %v971 = vadd.f32 %v970, %v908
      %v972 = vrot.slane %v971, 4
      %v973 = vadd.f32 %v971, %v972
      %v974 = vrot.slane %v973, 2
      %v975 = vadd.f32 %v973, %v974
      %v976 = vrot.slane %v975, 1
      %v977 = vadd.f32 %v975, %v976
      %978 = vst [vmem:[%s221] sm:$0xff] %v977
      %s979 = smul.u32 64, %s16
      %p980 = scmp.lt.s32.totalorder %s979, 255
      %s981 = scalar_select %p980, %s979, 255
      %s982 = smul.addr %s981, 8
      %s983 = scalar_lea.vmem %s2, %s982
      %p984 = scmp.lt.s32.totalorder %s16, 3
      %s985 = scalar_select %p984, %s16, 3
      %s986 = smul.addr %s985, 8
      %s987 = scalar_lea.vmem %s3, %s986
      %p988 = scmp.lt.s32.totalorder %s16, 3
      %s989 = scalar_select %p988, %s16, 3
      %s990 = smul.addr %s989, 8
      %s991 = scalar_lea.vmem %s4, %s990
      // Predicated region
      $region29: #{forward.20} parent=27 // pred_check
        %p992 = pneg %p81
      $region30: #{forward.20} parent=27 // pred_check_branch
        %994 = sbr.rel (%p992) target = $region32
      $region31: #{forward.20} parent=27 // pred_region
        %s995 = smul.u32 64, %s16
      $region32: #{forward.20} parent=27 // pred_fallthru
        _
      // Predicated region
      $region33: #{forward.20} parent=27 // pred_check
        %p996 = pneg %p107
      $region34: #{forward.20} parent=27 // pred_check_branch
        %998 = sbr.rel (%p996) target = $region36
      $region35: #{forward.20} parent=27 // pred_region
        _
      $region36: #{forward.20} parent=27 // pred_fallthru
        _
      // Predicated region
      $region37: #{forward.20} parent=27 // pred_check
        %p999 = pneg %p133
      $region38: #{forward.20} parent=27 // pred_check_branch
        %1001 = sbr.rel (%p999) target = $region40
      $region39: #{forward.20} parent=27 // pred_region
        _
      $region40: #{forward.20} parent=27 // pred_fallthru
        _
    $region28: #{forward.20} parent=5 // pred_fallthru
      _
    %p1002 = scmp.le.s32.totalorder 2, %s11
    // Predicated region
    $region41: #{forward.20} parent=5 // pred_check
      %p1003 = pneg %p1002
    $region42: #{forward.20} parent=5 // pred_check_branch
      %1005 = sbr.rel (%p1003) target = $region44
    $region43: #{forward.20} parent=5 // pred_region
      %s1006 = ssub.s32 %s11, 2
      // Predicated region
      $region45: #{forward.20} parent=43 // pred_check
        %p1007 = pneg %p87
      $region46: #{forward.20} parent=43 // pred_check_branch
        %1009 = sbr.rel (%p1007) target = $region48
      $region47: #{forward.20} parent=43 // pred_region
        %s1010 = smul.u32 64, %s17
        %p1011 = scmp.lt.s32.totalorder %s1010, 255
        %s1012 = scalar_select %p1011, %s1010, 255
        %s1013 = smul.addr %s1012, 8
        %s1014 = scalar_lea.vmem %s2, %s1013
      $region48: #{forward.20} parent=43 // pred_fallthru
        _
      // Predicated region
      $region49: #{forward.20} parent=43 // pred_check
        %p1015 = pneg %p113
      $region50: #{forward.20} parent=43 // pred_check_branch
        %1017 = sbr.rel (%p1015) target = $region52
      $region51: #{forward.20} parent=43 // pred_region
        %p1018 = scmp.lt.s32.totalorder %s17, 3
        %s1019 = scalar_select %p1018, %s17, 3
        %s1020 = smul.addr %s1019, 8
        %s1021 = scalar_lea.vmem %s3, %s1020
      $region52: #{forward.20} parent=43 // pred_fallthru
        _
      // Predicated region
      $region53: #{forward.20} parent=43 // pred_check
        %p1022 = pneg %p139
      $region54: #{forward.20} parent=43 // pred_check_branch
        %1024 = sbr.rel (%p1022) target = $region56
      $region55: #{forward.20} parent=43 // pred_region
        %p1025 = scmp.lt.s32.totalorder %s17, 3
        %s1026 = scalar_select %p1025, %s17, 3
        %s1027 = smul.addr %s1026, 8
        %s1028 = scalar_lea.vmem %s4, %s1027
      $region56: #{forward.20} parent=43 // pred_fallthru
        _
    $region44: #{forward.20} parent=5 // pred_fallthru
      _
  $region6: #{forward.20} parent=0 // loop_footer
    %s15 = sadd.s32 1, %s11
  $region7: #{forward.20} parent=0 // loop_footer_branch
    %10 = sbr.rel target = $region3
  $region8: #{forward.20} parent=0 // loop_exit
    _

// kernel: forward.21
$region0: #{forward.21}
  #allocation0 [shape = 'u32[]', space=smem, size = 0x4, offset = 0x4, fixed_abs, tag = 'smem constant byte address 0x4 - core index']
  #allocation1 [shape = 'u32[72,128]{1,0:T(1,128)}', space=vmem, size = 0x9000, scoped, tag = 'internal scratch']
  %s0 = inlined_call_operand.vmem [shape: f32[2048,128], index: 0, kind: input, shape index: {}]
  %s1 = inlined_call_operand.vmem [shape: f32[1,128], index: 1, kind: input, shape index: {}]
  %s2 = inlined_call_operand.vmem [shape: f32[1,128], index: 2, kind: input, shape index: {}]
  %s3 = inlined_call_operand.vmem [shape: bf16[2048,128], index: 3, kind: output, shape index: {}]
  %s4 = sld [smem:[#allocation0]]
  $region45: #{forward.21} parent=0
    _
  %s6 = ssub.s32 1, %s4
  %s7 = scalar_select 0, %s6, %s4
  loop: start=0, step=1, limit=4
  $region2: #{forward.21} parent=0 // loop_pre_header
    _
  $region3: #{forward.21} parent=0 // loop_header
    %s9 = sphi 0, %s13
    %p10 = scmp.ge.s32.totalorder %s9, 4
    %s19 = sphi 0, %s21
    %s22 = sphi 0, %s19
    %s23 = sphi 0, %s22
    %s39 = sphi 0, %s23
    %s43 = sphi 0, %s43
    %s45 = sphi 0, %s43
    %s46 = sphi 0, %s45
    %s60 = sphi 0, %s46
    %s64 = sphi 0, %s64
    %s66 = sphi 0, %s64
    %s67 = sphi 0, %s66
    %s81 = sphi 0, %s67
    %s87 = sphi 0, %s89
    %s90 = sphi 0, %s87
    %s91 = sphi 0, %s90
    %s107 = sphi 0, %s91
  $region4: #{forward.21} parent=0 // loop_header_branch
    %12 = sbr.rel (%p10) target = $region8
  $region5: #{forward.21} parent=0 // loop_body
    %s14 = ssub.s32 %s9, 1
    %s15 = ssub.s32 %s9, 2
    %s16 = sadd.s32 %s9, 1
    %s17 = ssub.s32 %s9, %s16
    %p18 = scmp.eq.s32.totalorder %s17, 0
    %s20 = sadd.s32 %s19, 1
    %s21 = scalar_select %p18, %s19, %s20
    %p24 = pneg %p18
    %p25 = scmp.eq.s32.totalorder %s9, 1
    %p26 = por %p24, %p25
    %p27 = scmp.ne.s32.totalorder %s19, %s22
    %p28 = scmp.eq.s32.totalorder %s9, 0
    %p29 = por %p27, %p28
    %p30 = scmp.ne.s32.totalorder %s19, %s22
    %p31 = scmp.eq.s32.totalorder %s14, 1
    %p32 = por %p30, %p31
    %p33 = scmp.ne.s32.totalorder %s22, %s23
    %p34 = scmp.eq.s32.totalorder %s14, 0
    %p35 = por %p33, %p34
    %p36 = scmp.ne.s32.totalorder %s22, %s23
    %p37 = scmp.eq.s32.totalorder %s15, 1
    %p38 = por %p36, %p37
    %p40 = scmp.ne.s32.totalorder %s23, %s39
    %p41 = scmp.eq.s32.totalorder %s15, 0
    %p42 = por %p40, %p41
    %s44 = sadd.s32 %s43, 1
    %p47 = scmp.eq.s32.totalorder %s9, 1
    %p48 = scmp.ne.s32.totalorder %s43, %s45
    %p49 = scmp.eq.s32.totalorder %s9, 0
    %p50 = por %p48, %p49
    %p51 = scmp.ne.s32.totalorder %s43, %s45
    %p52 = scmp.eq.s32.totalorder %s14, 1
    %p53 = por %p51, %p52
    %p54 = scmp.ne.s32.totalorder %s45, %s46
    %p55 = scmp.eq.s32.totalorder %s14, 0
    %p56 = por %p54, %p55
    %p57 = scmp.ne.s32.totalorder %s45, %s46
    %p58 = scmp.eq.s32.totalorder %s15, 1
    %p59 = por %p57, %p58
    %p61 = scmp.ne.s32.totalorder %s46, %s60
    %p62 = scmp.eq.s32.totalorder %s15, 0
    %p63 = por %p61, %p62
    %s65 = sadd.s32 %s64, 1
    %p68 = scmp.eq.s32.totalorder %s9, 1
    %p69 = scmp.ne.s32.totalorder %s64, %s66
    %p70 = scmp.eq.s32.totalorder %s9, 0
    %p71 = por %p69, %p70
    %p72 = scmp.ne.s32.totalorder %s64, %s66
    %p73 = scmp.eq.s32.totalorder %s14, 1
    %p74 = por %p72, %p73
    %p75 = scmp.ne.s32.totalorder %s66, %s67
    %p76 = scmp.eq.s32.totalorder %s14, 0
    %p77 = por %p75, %p76
    %p78 = scmp.ne.s32.totalorder %s66, %s67
    %p79 = scmp.eq.s32.totalorder %s15, 1
    %p80 = por %p78, %p79
    %p82 = scmp.ne.s32.totalorder %s67, %s81
    %p83 = scmp.eq.s32.totalorder %s15, 0
    %p84 = por %p82, %p83
    %s85 = ssub.s32 %s9, %s16
    %p86 = scmp.eq.s32.totalorder %s85, 0
    %s88 = sadd.s32 %s87, 1
    %s89 = scalar_select %p86, %s87, %s88
    %p92 = pneg %p86
    %p93 = scmp.eq.s32.totalorder %s9, 1
    %p94 = por %p92, %p93
    %p95 = scmp.ne.s32.totalorder %s87, %s90
    %p96 = scmp.eq.s32.totalorder %s9, 0
    %p97 = por %p95, %p96
    %p98 = scmp.ne.s32.totalorder %s87, %s90
    %p99 = scmp.eq.s32.totalorder %s14, 1
    %p100 = por %p98, %p99
    %p101 = scmp.ne.s32.totalorder %s90, %s91
    %p102 = scmp.eq.s32.totalorder %s14, 0
    %p103 = por %p101, %p102
    %p104 = scmp.ne.s32.totalorder %s90, %s91
    %p105 = scmp.eq.s32.totalorder %s15, 1
    %p106 = por %p104, %p105
    %p108 = scmp.ne.s32.totalorder %s91, %s107
    %p109 = scmp.eq.s32.totalorder %s15, 0
    %p110 = por %p108, %p109
    %p111 = scmp.le.s32.totalorder 1, %s9
    %p112 = scmp.lt.s32.totalorder %s9, 3
    %p113 = pnand %p111, %p112
    %p114 = pneg %p113
    // Predicated region
    $region9: #{forward.21} parent=5 // pred_check
      _
    $region10: #{forward.21} parent=5 // pred_check_branch
      %116 = sbr.rel (%p113) target = $region12
    $region11: #{forward.21} parent=5 // pred_region
      %s117 = ssub.s32 %s9, 1
      // Predicated region
      $region13: #{forward.21} parent=11 // pred_check
        %p118 = pneg %p56
      $region14: #{forward.21} parent=11 // pred_check_branch
        %120 = sbr.rel (%p118) target = $region16
      $region15: #{forward.21} parent=11 // pred_region
        _
      $region16: #{forward.21} parent=11 // pred_fallthru
        _
      // Predicated region
      $region17: #{forward.21} parent=11 // pred_check
        %p121 = pneg %p77
      $region18: #{forward.21} parent=11 // pred_check_branch
        %123 = sbr.rel (%p121) target = $region20
      $region19: #{forward.21} parent=11 // pred_region
        _
      $region20: #{forward.21} parent=11 // pred_fallthru
        _
    $region12: #{forward.21} parent=5 // pred_fallthru
      _
    %p124 = scmp.lt.s32.totalorder %s9, 2
    // Predicated region
    $region21: #{forward.21} parent=5 // pred_check
      %p125 = pneg %p124
    $region22: #{forward.21} parent=5 // pred_check_branch
      %127 = sbr.rel (%p125) target = $region24
    $region23: #{forward.21} parent=5 // pred_region
      // Predicated region
      $region25: #{forward.21} parent=23 // pred_check
        %p128 = pneg %p29
      $region26: #{forward.21} parent=23 // pred_check_branch
        %130 = sbr.rel (%p128) target = $region28
      $region27: #{forward.21} parent=23 // pred_region
        %s131 = smul.u32 128, %s9
        %p132 = scmp.lt.s32.totalorder %s131, 255
        %s133 = scalar_select %p132, %s131, 255
        %s134 = smul.addr %s133, 8
        %s135 = scalar_lea.vmem %s0, %s134
        %s136 = smul.u32 128, %s9
      $region28: #{forward.21} parent=23 // pred_fallthru
        _
    $region24: #{forward.21} parent=5 // pred_fallthru
      _
    %p137 = scmp.le.s32.totalorder 1, %s9
    %p138 = scmp.lt.s32.totalorder %s9, 3
    %p139 = pnand %p137, %p138
    %p140 = pneg %p139
    // Predicated region
    $region29: #{forward.21} parent=5 // pred_check
      _
    $region30: #{forward.21} parent=5 // pred_check_branch
      %142 = sbr.rel (%p139) target = $region32
    $region31: #{forward.21} parent=5 // pred_region
      %s143 = ssub.s32 %s9, 1
      %s144 = smul.u32 128, %s14
      %p145 = scmp.lt.s32.totalorder %s144, 255
      %s146 = scalar_select %p145, %s144, 255
      %s147 = smul.addr %s146, 8
      %s148 = scalar_lea.vmem %s0, %s147
      %p149 = pneg %p35
      %p150 = pneg %p32
      %p151 = pneg %p56
      %p152 = pneg %p53
      %p153 = pneg %p77
      %p154 = pneg %p74
      %p155 = pneg %p103
      %p156 = pneg %p100
      %s157 = smul.u32 128, %s14
      %p158 = scmp.lt.s32.totalorder %s157, 255
      %s159 = scalar_select %p158, %s157, 255
      %s160 = smul.addr %s159, 4
      %s161 = scalar_lea.vmem %s3, %s160
      %s162 = smul.u32 128, %s14
      %p163 = scmp.lt.s32.totalorder %s162, 255
      %s164 = scalar_select %p163, %s162, 255
      %s165 = smul.addr %s164, 8
      %s166 = scalar_lea.vmem %s0, %s165
      %s167 = smul.u32 128, %s14
      %s168 = smul.u32 128, %s14
      %p169 = scmp.lt.s32.totalorder %s168, 255
      %s170 = scalar_select %p169, %s168, 255
      %s171 = smul.addr %s170, 4
      %s172 = scalar_lea.vmem %s3, %s171
      %s173 = smul.u32 128, %s14
      %v174 = vld [vmem:[%s166] sm:$0xff]
      %v175 = vld [vmem:[%s166 + $0x8] sm:$0xff]
      %v176 = vld [vmem:[%s166 + $0x10] sm:$0xff]
      %v177 = vld [vmem:[%s166 + $0x18] sm:$0xff]
      %v178 = vld [vmem:[%s166 + $0x20] sm:$0xff]
      %v179 = vld [vmem:[%s166 + $0x28] sm:$0xff]
      %v180 = vld [vmem:[%s166 + $0x30] sm:$0xff]
      %v181 = vld [vmem:[%s166 + $0x38] sm:$0xff]
      %v182 = vld [vmem:[%s166 + $0x40] sm:$0xff]
      %v183 = vld [vmem:[%s166 + $0x48] sm:$0xff]
      %v184 = vld [vmem:[%s166 + $0x50] sm:$0xff]
      %v185 = vld [vmem:[%s166 + $0x58] sm:$0xff]
      %v186 = vld [vmem:[%s166 + $0x60] sm:$0xff]
      %v187 = vld [vmem:[%s166 + $0x68] sm:$0xff]
      %v188 = vld [vmem:[%s166 + $0x70] sm:$0xff]
      %v189 = vld [vmem:[%s166 + $0x78] sm:$0xff]
      %v190 = vld [vmem:[%s166 + $0x80] sm:$0xff]
      %v191 = vld [vmem:[%s166 + $0x88] sm:$0xff]
      %v192 = vld [vmem:[%s166 + $0x90] sm:$0xff]
      %v193 = vld [vmem:[%s166 + $0x98] sm:$0xff]
      %v194 = vld [vmem:[%s166 + $0xa0] sm:$0xff]
      %v195 = vld [vmem:[%s166 + $0xa8] sm:$0xff]
      %v196 = vld [vmem:[%s166 + $0xb0] sm:$0xff]
      %v197 = vld [vmem:[%s166 + $0xb8] sm:$0xff]
      %v198 = vld [vmem:[%s166 + $0xc0] sm:$0xff]
      %v199 = vld [vmem:[%s166 + $0xc8] sm:$0xff]
      %v200 = vld [vmem:[%s166 + $0xd0] sm:$0xff]
      %v201 = vld [vmem:[%s166 + $0xd8] sm:$0xff]
      %v202 = vld [vmem:[%s166 + $0xe0] sm:$0xff]
      %v203 = vld [vmem:[%s166 + $0xe8] sm:$0xff]
      %v204 = vld [vmem:[%s166 + $0xf0] sm:$0xff]
      %v205 = vld [vmem:[%s166 + $0xf8] sm:$0xff]
      %v206 = vld [vmem:[%s166 + $0x100] sm:$0xff]
      %v207 = vld [vmem:[%s166 + $0x108] sm:$0xff]
      %v208 = vld [vmem:[%s166 + $0x110] sm:$0xff]
      %v209 = vld [vmem:[%s166 + $0x118] sm:$0xff]
      %v210 = vld [vmem:[%s166 + $0x120] sm:$0xff]
      %v211 = vld [vmem:[%s166 + $0x128] sm:$0xff]
      %v212 = vld [vmem:[%s166 + $0x130] sm:$0xff]
      %v213 = vld [vmem:[%s166 + $0x138] sm:$0xff]
      %v214 = vld [vmem:[%s166 + $0x140] sm:$0xff]
      %v215 = vld [vmem:[%s166 + $0x148] sm:$0xff]
      %v216 = vld [vmem:[%s166 + $0x150] sm:$0xff]
      %v217 = vld [vmem:[%s166 + $0x158] sm:$0xff]
      %v218 = vld [vmem:[%s166 + $0x160] sm:$0xff]
      %v219 = vld [vmem:[%s166 + $0x168] sm:$0xff]
      %v220 = vld [vmem:[%s166 + $0x170] sm:$0xff]
      %v221 = vld [vmem:[%s166 + $0x178] sm:$0xff]
      %v222 = vld [vmem:[%s166 + $0x180] sm:$0xff]
      %v223 = vld [vmem:[%s166 + $0x188] sm:$0xff]
      %v224 = vld [vmem:[%s166 + $0x190] sm:$0xff]
      %v225 = vld [vmem:[%s166 + $0x198] sm:$0xff]
      %v226 = vld [vmem:[%s166 + $0x1a0] sm:$0xff]
      %v227 = vld [vmem:[%s166 + $0x1a8] sm:$0xff]
      %v228 = vld [vmem:[%s166 + $0x1b0] sm:$0xff]
      %v229 = vld [vmem:[%s166 + $0x1b8] sm:$0xff]
      %v230 = vld [vmem:[%s166 + $0x1c0] sm:$0xff]
      %v231 = vld [vmem:[%s166 + $0x1c8] sm:$0xff]
      %v232 = vld [vmem:[%s166 + $0x1d0] sm:$0xff]
      %v233 = vld [vmem:[%s166 + $0x1d8] sm:$0xff]
      %v234 = vld [vmem:[%s166 + $0x1e0] sm:$0xff]
      %v235 = vld [vmem:[%s166 + $0x1e8] sm:$0xff]
      %v236 = vld [vmem:[%s166 + $0x1f0] sm:$0xff]
      %v237 = vld [vmem:[%s166 + $0x1f8] sm:$0xff]
      %v238 = vld [vmem:[%s166 + $0x200] sm:$0xff]
      %v239 = vld [vmem:[%s166 + $0x208] sm:$0xff]
      %v240 = vld [vmem:[%s166 + $0x210] sm:$0xff]
      %v241 = vld [vmem:[%s166 + $0x218] sm:$0xff]
      %v242 = vld [vmem:[%s166 + $0x220] sm:$0xff]
      %v243 = vld [vmem:[%s166 + $0x228] sm:$0xff]
      %v244 = vld [vmem:[%s166 + $0x230] sm:$0xff]
      %v245 = vld [vmem:[%s166 + $0x238] sm:$0xff]
      %v246 = vld [vmem:[%s166 + $0x240] sm:$0xff]
      %v247 = vld [vmem:[%s166 + $0x248] sm:$0xff]
      %v248 = vld [vmem:[%s166 + $0x250] sm:$0xff]
      %v249 = vld [vmem:[%s166 + $0x258] sm:$0xff]
      %v250 = vld [vmem:[%s166 + $0x260] sm:$0xff]
      %v251 = vld [vmem:[%s166 + $0x268] sm:$0xff]
      %v252 = vld [vmem:[%s166 + $0x270] sm:$0xff]
      %v253 = vld [vmem:[%s166 + $0x278] sm:$0xff]
      %v254 = vld [vmem:[%s166 + $0x280] sm:$0xff]
      %v255 = vld [vmem:[%s166 + $0x288] sm:$0xff]
      %v256 = vld [vmem:[%s166 + $0x290] sm:$0xff]
      %v257 = vld [vmem:[%s166 + $0x298] sm:$0xff]
      %v258 = vld [vmem:[%s166 + $0x2a0] sm:$0xff]
      %v259 = vld [vmem:[%s166 + $0x2a8] sm:$0xff]
      %v260 = vld [vmem:[%s166 + $0x2b0] sm:$0xff]
      %v261 = vld [vmem:[%s166 + $0x2b8] sm:$0xff]
      %v262 = vld [vmem:[%s166 + $0x2c0] sm:$0xff]
      %v263 = vld [vmem:[%s166 + $0x2c8] sm:$0xff]
      %v264 = vld [vmem:[%s166 + $0x2d0] sm:$0xff]
      %v265 = vld [vmem:[%s166 + $0x2d8] sm:$0xff]
      %v266 = vld [vmem:[%s166 + $0x2e0] sm:$0xff]
      %v267 = vld [vmem:[%s166 + $0x2e8] sm:$0xff]
      %v268 = vld [vmem:[%s166 + $0x2f0] sm:$0xff]
      %v269 = vld [vmem:[%s166 + $0x2f8] sm:$0xff]
      %v270 = vld [vmem:[%s166 + $0x300] sm:$0xff]
      %v271 = vld [vmem:[%s166 + $0x308] sm:$0xff]
      %v272 = vld [vmem:[%s166 + $0x310] sm:$0xff]
      %v273 = vld [vmem:[%s166 + $0x318] sm:$0xff]
      %v274 = vld [vmem:[%s166 + $0x320] sm:$0xff]
      %v275 = vld [vmem:[%s166 + $0x328] sm:$0xff]
      %v276 = vld [vmem:[%s166 + $0x330] sm:$0xff]
      %v277 = vld [vmem:[%s166 + $0x338] sm:$0xff]
      %v278 = vld [vmem:[%s166 + $0x340] sm:$0xff]
      %v279 = vld [vmem:[%s166 + $0x348] sm:$0xff]
      %v280 = vld [vmem:[%s166 + $0x350] sm:$0xff]
      %v281 = vld [vmem:[%s166 + $0x358] sm:$0xff]
      %v282 = vld [vmem:[%s166 + $0x360] sm:$0xff]
      %v283 = vld [vmem:[%s166 + $0x368] sm:$0xff]
      %v284 = vld [vmem:[%s166 + $0x370] sm:$0xff]
      %v285 = vld [vmem:[%s166 + $0x378] sm:$0xff]
      %v286 = vld [vmem:[%s166 + $0x380] sm:$0xff]
      %v287 = vld [vmem:[%s166 + $0x388] sm:$0xff]
      %v288 = vld [vmem:[%s166 + $0x390] sm:$0xff]
      %v289 = vld [vmem:[%s166 + $0x398] sm:$0xff]
      %v290 = vld [vmem:[%s166 + $0x3a0] sm:$0xff]
      %v291 = vld [vmem:[%s166 + $0x3a8] sm:$0xff]
      %v292 = vld [vmem:[%s166 + $0x3b0] sm:$0xff]
      %v293 = vld [vmem:[%s166 + $0x3b8] sm:$0xff]
      %v294 = vld [vmem:[%s166 + $0x3c0] sm:$0xff]
      %v295 = vld [vmem:[%s166 + $0x3c8] sm:$0xff]
      %v296 = vld [vmem:[%s166 + $0x3d0] sm:$0xff]
      %v297 = vld [vmem:[%s166 + $0x3d8] sm:$0xff]
      %v298 = vld [vmem:[%s166 + $0x3e0] sm:$0xff]
      %v299 = vld [vmem:[%s166 + $0x3e8] sm:$0xff]
      %v300 = vld [vmem:[%s166 + $0x3f0] sm:$0xff]
      %v301 = vld [vmem:[%s166 + $0x3f8] sm:$0xff]
      %v302 = vld [vmem:[%s1] sm:$0x1]
      %v304 = vperm.slane %v302, 0
      %v306 = vmul.f32 %v174, %v304
      %v307 = vmul.f32 %v175, %v304
      %v308 = vmul.f32 %v176, %v304
      %v309 = vmul.f32 %v177, %v304
      %v310 = vmul.f32 %v178, %v304
      %v311 = vmul.f32 %v179, %v304
      %v312 = vmul.f32 %v180, %v304
      %v313 = vmul.f32 %v181, %v304
      %v314 = vmul.f32 %v182, %v304
      %v315 = vmul.f32 %v183, %v304
      %v316 = vmul.f32 %v184, %v304
      %v317 = vmul.f32 %v185, %v304
      %v318 = vmul.f32 %v186, %v304
      %v319 = vmul.f32 %v187, %v304
      %v320 = vmul.f32 %v188, %v304
      %v321 = vmul.f32 %v189, %v304
      %v322 = vmul.f32 %v190, %v304
      %v323 = vmul.f32 %v191, %v304
      %v324 = vmul.f32 %v192, %v304
      %v325 = vmul.f32 %v193, %v304
      %v326 = vmul.f32 %v194, %v304
      %v327 = vmul.f32 %v195, %v304
      %v328 = vmul.f32 %v196, %v304
      %v329 = vmul.f32 %v197, %v304
      %v330 = vmul.f32 %v198, %v304
      %v331 = vmul.f32 %v199, %v304
      %v332 = vmul.f32 %v200, %v304
      %v333 = vmul.f32 %v201, %v304
      %v334 = vmul.f32 %v202, %v304
      %v335 = vmul.f32 %v203, %v304
      %v336 = vmul.f32 %v204, %v304
      %v337 = vmul.f32 %v205, %v304
      %v338 = vmul.f32 %v206, %v304
      %v339 = vmul.f32 %v207, %v304
      %v340 = vmul.f32 %v208, %v304
      %v341 = vmul.f32 %v209, %v304
      %v342 = vmul.f32 %v210, %v304
      %v343 = vmul.f32 %v211, %v304
      %v344 = vmul.f32 %v212, %v304
      %v345 = vmul.f32 %v213, %v304
      %v346 = vmul.f32 %v214, %v304
      %v347 = vmul.f32 %v215, %v304
      %v348 = vmul.f32 %v216, %v304
      %v349 = vmul.f32 %v217, %v304
      %v350 = vmul.f32 %v218, %v304
      %v351 = vmul.f32 %v219, %v304
      %v352 = vmul.f32 %v220, %v304
      %v353 = vmul.f32 %v221, %v304
      %v354 = vmul.f32 %v222, %v304
      %v355 = vmul.f32 %v223, %v304
      %v356 = vmul.f32 %v224, %v304
      %v357 = vmul.f32 %v225, %v304
      %v358 = vmul.f32 %v226, %v304
      %v359 = vmul.f32 %v227, %v304
      %v360 = vmul.f32 %v228, %v304
      %v361 = vmul.f32 %v229, %v304
      %v362 = vmul.f32 %v230, %v304
      %v363 = vmul.f32 %v231, %v304
      %v364 = vmul.f32 %v232, %v304
      %v365 = vmul.f32 %v233, %v304
      %v366 = vmul.f32 %v234, %v304
      %v367 = vmul.f32 %v235, %v304
      %v368 = vmul.f32 %v236, %v304
      %v369 = vmul.f32 %v237, %v304
      %v370 = vmul.f32 %v238, %v304
      %v371 = vmul.f32 %v239, %v304
      %v372 = vmul.f32 %v240, %v304
      %v373 = vmul.f32 %v241, %v304
      %v374 = vmul.f32 %v242, %v304
      %v375 = vmul.f32 %v243, %v304
      %v376 = vmul.f32 %v244, %v304
      %v377 = vmul.f32 %v245, %v304
      %v378 = vmul.f32 %v246, %v304
      %v379 = vmul.f32 %v247, %v304
      %v380 = vmul.f32 %v248, %v304
      %v381 = vmul.f32 %v249, %v304
      %v382 = vmul.f32 %v250, %v304
      %v383 = vmul.f32 %v251, %v304
      %v384 = vmul.f32 %v252, %v304
      %v385 = vmul.f32 %v253, %v304
      %v386 = vmul.f32 %v254, %v304
      %v387 = vmul.f32 %v255, %v304
      %v388 = vmul.f32 %v256, %v304
      %v389 = vmul.f32 %v257, %v304
      %v390 = vmul.f32 %v258, %v304
      %v391 = vmul.f32 %v259, %v304
      %v392 = vmul.f32 %v260, %v304
      %v393 = vmul.f32 %v261, %v304
      %v394 = vmul.f32 %v262, %v304
      %v395 = vmul.f32 %v263, %v304
      %v396 = vmul.f32 %v264, %v304
      %v397 = vmul.f32 %v265, %v304
      %v398 = vmul.f32 %v266, %v304
      %v399 = vmul.f32 %v267, %v304
      %v400 = vmul.f32 %v268, %v304
      %v401 = vmul.f32 %v269, %v304
      %v402 = vmul.f32 %v270, %v304
      %v403 = vmul.f32 %v271, %v304
      %v404 = vmul.f32 %v272, %v304
      %v405 = vmul.f32 %v273, %v304
      %v406 = vmul.f32 %v274, %v304
      %v407 = vmul.f32 %v275, %v304
      %v408 = vmul.f32 %v276, %v304
      %v409 = vmul.f32 %v277, %v304
      %v410 = vmul.f32 %v278, %v304
      %v411 = vmul.f32 %v279, %v304
      %v412 = vmul.f32 %v280, %v304
      %v413 = vmul.f32 %v281, %v304
      %v414 = vmul.f32 %v282, %v304
      %v415 = vmul.f32 %v283, %v304
      %v416 = vmul.f32 %v284, %v304
      %v417 = vmul.f32 %v285, %v304
      %v418 = vmul.f32 %v286, %v304
      %v419 = vmul.f32 %v287, %v304
      %v420 = vmul.f32 %v288, %v304
      %v421 = vmul.f32 %v289, %v304
      %v422 = vmul.f32 %v290, %v304
      %v423 = vmul.f32 %v291, %v304
      %v424 = vmul.f32 %v292, %v304
      %v425 = vmul.f32 %v293, %v304
      %v426 = vmul.f32 %v294, %v304
      %v427 = vmul.f32 %v295, %v304
      %v428 = vmul.f32 %v296, %v304
      %v429 = vmul.f32 %v297, %v304
      %v430 = vmul.f32 %v298, %v304
      %v431 = vmul.f32 %v299, %v304
      %v432 = vmul.f32 %v300, %v304
      %v433 = vmul.f32 %v301, %v304
      %v434 = vld [vmem:[%s2] sm:$0x1]
      %v436 = vperm.slane %v434, 0
      %v438 = vadd.f32 %v306, %v436
      %v439 = vadd.f32 %v307, %v436
      %v440 = vadd.f32 %v308, %v436
      %v441 = vadd.f32 %v309, %v436
      %v442 = vadd.f32 %v310, %v436
      %v443 = vadd.f32 %v311, %v436
      %v444 = vadd.f32 %v312, %v436
      %v445 = vadd.f32 %v313, %v436
      %v446 = vadd.f32 %v314, %v436
      %v447 = vadd.f32 %v315, %v436
      %v448 = vadd.f32 %v316, %v436
      %v449 = vadd.f32 %v317, %v436
      %v450 = vadd.f32 %v318, %v436
      %v451 = vadd.f32 %v319, %v436
      %v452 = vadd.f32 %v320, %v436
      %v453 = vadd.f32 %v321, %v436
      %v454 = vadd.f32 %v322, %v436
      %v455 = vadd.f32 %v323, %v436
      %v456 = vadd.f32 %v324, %v436
      %v457 = vadd.f32 %v325, %v436
      %v458 = vadd.f32 %v326, %v436
      %v459 = vadd.f32 %v327, %v436
      %v460 = vadd.f32 %v328, %v436
      %v461 = vadd.f32 %v329, %v436
      %v462 = vadd.f32 %v330, %v436
      %v463 = vadd.f32 %v331, %v436
      %v464 = vadd.f32 %v332, %v436
      %v465 = vadd.f32 %v333, %v436
      %v466 = vadd.f32 %v334, %v436
      %v467 = vadd.f32 %v335, %v436
      %v468 = vadd.f32 %v336, %v436
      %v469 = vadd.f32 %v337, %v436
      %v470 = vadd.f32 %v338, %v436
      %v471 = vadd.f32 %v339, %v436
      %v472 = vadd.f32 %v340, %v436
      %v473 = vadd.f32 %v341, %v436
      %v474 = vadd.f32 %v342, %v436
      %v475 = vadd.f32 %v343, %v436
      %v476 = vadd.f32 %v344, %v436
      %v477 = vadd.f32 %v345, %v436
      %v478 = vadd.f32 %v346, %v436
      %v479 = vadd.f32 %v347, %v436
      %v480 = vadd.f32 %v348, %v436
      %v481 = vadd.f32 %v349, %v436
      %v482 = vadd.f32 %v350, %v436
      %v483 = vadd.f32 %v351, %v436
      %v484 = vadd.f32 %v352, %v436
      %v485 = vadd.f32 %v353, %v436
      %v486 = vadd.f32 %v354, %v436
      %v487 = vadd.f32 %v355, %v436
      %v488 = vadd.f32 %v356, %v436
      %v489 = vadd.f32 %v357, %v436
      %v490 = vadd.f32 %v358, %v436
      %v491 = vadd.f32 %v359, %v436
      %v492 = vadd.f32 %v360, %v436
      %v493 = vadd.f32 %v361, %v436
      %v494 = vadd.f32 %v362, %v436
      %v495 = vadd.f32 %v363, %v436
      %v496 = vadd.f32 %v364, %v436
      %v497 = vadd.f32 %v365, %v436
      %v498 = vadd.f32 %v366, %v436
      %v499 = vadd.f32 %v367, %v436
      %v500 = vadd.f32 %v368, %v436
      %v501 = vadd.f32 %v369, %v436
      %v502 = vadd.f32 %v370, %v436
      %v503 = vadd.f32 %v371, %v436
      %v504 = vadd.f32 %v372, %v436
      %v505 = vadd.f32 %v373, %v436
      %v506 = vadd.f32 %v374, %v436
      %v507 = vadd.f32 %v375, %v436
      %v508 = vadd.f32 %v376, %v436
      %v509 = vadd.f32 %v377, %v436
      %v510 = vadd.f32 %v378, %v436
      %v511 = vadd.f32 %v379, %v436
      %v512 = vadd.f32 %v380, %v436
      %v513 = vadd.f32 %v381, %v436
      %v514 = vadd.f32 %v382, %v436
      %v515 = vadd.f32 %v383, %v436
      %v516 = vadd.f32 %v384, %v436
      %v517 = vadd.f32 %v385, %v436
      %v518 = vadd.f32 %v386, %v436
      %v519 = vadd.f32 %v387, %v436
      %v520 = vadd.f32 %v388, %v436
      %v521 = vadd.f32 %v389, %v436
      %v522 = vadd.f32 %v390, %v436
      %v523 = vadd.f32 %v391, %v436
      %v524 = vadd.f32 %v392, %v436
      %v525 = vadd.f32 %v393, %v436
      %v526 = vadd.f32 %v394, %v436
      %v527 = vadd.f32 %v395, %v436
      %v528 = vadd.f32 %v396, %v436
      %v529 = vadd.f32 %v397, %v436
      %v530 = vadd.f32 %v398, %v436
      %v531 = vadd.f32 %v399, %v436
      %v532 = vadd.f32 %v400, %v436
      %v533 = vadd.f32 %v401, %v436
      %v534 = vadd.f32 %v402, %v436
      %v535 = vadd.f32 %v403, %v436
      %v536 = vadd.f32 %v404, %v436
      %v537 = vadd.f32 %v405, %v436
      %v538 = vadd.f32 %v406, %v436
      %v539 = vadd.f32 %v407, %v436
      %v540 = vadd.f32 %v408, %v436
      %v541 = vadd.f32 %v409, %v436
      %v542 = vadd.f32 %v410, %v436
      %v543 = vadd.f32 %v411, %v436
      %v544 = vadd.f32 %v412, %v436
      %v545 = vadd.f32 %v413, %v436
      %v546 = vadd.f32 %v414, %v436
      %v547 = vadd.f32 %v415, %v436
      %v548 = vadd.f32 %v416, %v436
      %v549 = vadd.f32 %v417, %v436
      %v550 = vadd.f32 %v418, %v436
      %v551 = vadd.f32 %v419, %v436
      %v552 = vadd.f32 %v420, %v436
      %v553 = vadd.f32 %v421, %v436
      %v554 = vadd.f32 %v422, %v436
      %v555 = vadd.f32 %v423, %v436
      %v556 = vadd.f32 %v424, %v436
      %v557 = vadd.f32 %v425, %v436
      %v558 = vadd.f32 %v426, %v436
      %v559 = vadd.f32 %v427, %v436
      %v560 = vadd.f32 %v428, %v436
      %v561 = vadd.f32 %v429, %v436
      %v562 = vadd.f32 %v430, %v436
      %v563 = vadd.f32 %v431, %v436
      %v564 = vadd.f32 %v432, %v436
      %v565 = vadd.f32 %v433, %v436
      %v566 = vmax.f32 %v438, 0.0
      %v567 = vmax.f32 %v439, 0.0
      %v568 = vmax.f32 %v440, 0.0
      %v569 = vmax.f32 %v441, 0.0
      %v570 = vmax.f32 %v442, 0.0
      %v571 = vmax.f32 %v443, 0.0
      %v572 = vmax.f32 %v444, 0.0
      %v573 = vmax.f32 %v445, 0.0
      %v574 = vmax.f32 %v446, 0.0
      %v575 = vmax.f32 %v447, 0.0
      %v576 = vmax.f32 %v448, 0.0
      %v577 = vmax.f32 %v449, 0.0
      %v578 = vmax.f32 %v450, 0.0
      %v579 = vmax.f32 %v451, 0.0
      %v580 = vmax.f32 %v452, 0.0
      %v581 = vmax.f32 %v453, 0.0
      %v582 = vmax.f32 %v454, 0.0
      %v583 = vmax.f32 %v455, 0.0
      %v584 = vmax.f32 %v456, 0.0
      %v585 = vmax.f32 %v457, 0.0
      %v586 = vmax.f32 %v458, 0.0
      %v587 = vmax.f32 %v459, 0.0
      %v588 = vmax.f32 %v460, 0.0
      %v589 = vmax.f32 %v461, 0.0
      %v590 = vmax.f32 %v462, 0.0
      %v591 = vmax.f32 %v463, 0.0
      %v592 = vmax.f32 %v464, 0.0
      %v593 = vmax.f32 %v465, 0.0
      %v594 = vmax.f32 %v466, 0.0
      %v595 = vmax.f32 %v467, 0.0
      %v596 = vmax.f32 %v468, 0.0
      %v597 = vmax.f32 %v469, 0.0
      %v598 = vmax.f32 %v470, 0.0
      %v599 = vmax.f32 %v471, 0.0
      %v600 = vmax.f32 %v472, 0.0
      %v601 = vmax.f32 %v473, 0.0
      %v602 = vmax.f32 %v474, 0.0
      %v603 = vmax.f32 %v475, 0.0
      %v604 = vmax.f32 %v476, 0.0
      %v605 = vmax.f32 %v477, 0.0
      %v606 = vmax.f32 %v478, 0.0
      %v607 = vmax.f32 %v479, 0.0
      %v608 = vmax.f32 %v480, 0.0
      %v609 = vmax.f32 %v481, 0.0
      %v610 = vmax.f32 %v482, 0.0
      %v611 = vmax.f32 %v483, 0.0
      %v612 = vmax.f32 %v484, 0.0
      %v613 = vmax.f32 %v485, 0.0
      %v614 = vmax.f32 %v486, 0.0
      %v615 = vmax.f32 %v487, 0.0
      %v616 = vmax.f32 %v488, 0.0
      %v617 = vmax.f32 %v489, 0.0
      %v618 = vmax.f32 %v490, 0.0
      %v619 = vmax.f32 %v491, 0.0
      %v620 = vmax.f32 %v492, 0.0
      %v621 = vmax.f32 %v493, 0.0
      %v622 = vmax.f32 %v494, 0.0
      %v623 = vmax.f32 %v495, 0.0
      %v624 = vmax.f32 %v496, 0.0
      %v625 = vmax.f32 %v497, 0.0
      %v626 = vmax.f32 %v498, 0.0
      %v627 = vmax.f32 %v499, 0.0
      %v628 = vmax.f32 %v500, 0.0
      %v629 = vmax.f32 %v501, 0.0
      %v630 = vmax.f32 %v502, 0.0
      %v631 = vmax.f32 %v503, 0.0
      %v632 = vmax.f32 %v504, 0.0
      %v633 = vmax.f32 %v505, 0.0
      %v634 = vmax.f32 %v506, 0.0
      %v635 = vmax.f32 %v507, 0.0
      %v636 = vmax.f32 %v508, 0.0
      %v637 = vmax.f32 %v509, 0.0
      %v638 = vmax.f32 %v510, 0.0
      %v639 = vmax.f32 %v511, 0.0
      %v640 = vmax.f32 %v512, 0.0
      %v641 = vmax.f32 %v513, 0.0
      %v642 = vmax.f32 %v514, 0.0
      %v643 = vmax.f32 %v515, 0.0
      %v644 = vmax.f32 %v516, 0.0
      %v645 = vmax.f32 %v517, 0.0
      %v646 = vmax.f32 %v518, 0.0
      %v647 = vmax.f32 %v519, 0.0
      %v648 = vmax.f32 %v520, 0.0
      %v649 = vmax.f32 %v521, 0.0
      %v650 = vmax.f32 %v522, 0.0
      %v651 = vmax.f32 %v523, 0.0
      %v652 = vmax.f32 %v524, 0.0
      %v653 = vmax.f32 %v525, 0.0
      %v654 = vmax.f32 %v526, 0.0
      %v655 = vmax.f32 %v527, 0.0
      %v656 = vmax.f32 %v528, 0.0
      %v657 = vmax.f32 %v529, 0.0
      %v658 = vmax.f32 %v530, 0.0
      %v659 = vmax.f32 %v531, 0.0
      %v660 = vmax.f32 %v532, 0.0
      %v661 = vmax.f32 %v533, 0.0
      %v662 = vmax.f32 %v534, 0.0
      %v663 = vmax.f32 %v535, 0.0
      %v664 = vmax.f32 %v536, 0.0
      %v665 = vmax.f32 %v537, 0.0
      %v666 = vmax.f32 %v538, 0.0
      %v667 = vmax.f32 %v539, 0.0
      %v668 = vmax.f32 %v540, 0.0
      %v669 = vmax.f32 %v541, 0.0
      %v670 = vmax.f32 %v542, 0.0
      %v671 = vmax.f32 %v543, 0.0
      %v672 = vmax.f32 %v544, 0.0
      %v673 = vmax.f32 %v545, 0.0
      %v674 = vmax.f32 %v546, 0.0
      %v675 = vmax.f32 %v547, 0.0
      %v676 = vmax.f32 %v548, 0.0
      %v677 = vmax.f32 %v549, 0.0
      %v678 = vmax.f32 %v550, 0.0
      %v679 = vmax.f32 %v551, 0.0
      %v680 = vmax.f32 %v552, 0.0
      %v681 = vmax.f32 %v553, 0.0
      %v682 = vmax.f32 %v554, 0.0
      %v683 = vmax.f32 %v555, 0.0
      %v684 = vmax.f32 %v556, 0.0
      %v685 = vmax.f32 %v557, 0.0
      %v686 = vmax.f32 %v558, 0.0
      %v687 = vmax.f32 %v559, 0.0
      %v688 = vmax.f32 %v560, 0.0
      %v689 = vmax.f32 %v561, 0.0
      %v690 = vmax.f32 %v562, 0.0
      %v691 = vmax.f32 %v563, 0.0
      %v692 = vmax.f32 %v564, 0.0
      %v693 = vmax.f32 %v565, 0.0
      %v694 = vpack.c.bf16 %v566, %v566
      %v695 = vpack.c.bf16 %v567, %v567
      %v696 = vpack.c.bf16 %v568, %v568
      %v697 = vpack.c.bf16 %v569, %v569
      %v698 = vpack.c.bf16 %v570, %v570
      %v699 = vpack.c.bf16 %v571, %v571
      %v700 = vpack.c.bf16 %v572, %v572
      %v701 = vpack.c.bf16 %v573, %v573
      %v702 = vpack.c.bf16 %v574, %v574
      %v703 = vpack.c.bf16 %v575, %v575
      %v704 = vpack.c.bf16 %v576, %v576
      %v705 = vpack.c.bf16 %v577, %v577
      %v706 = vpack.c.bf16 %v578, %v578
      %v707 = vpack.c.bf16 %v579, %v579
      %v708 = vpack.c.bf16 %v580, %v580
      %v709 = vpack.c.bf16 %v581, %v581
      %v710 = vpack.c.bf16 %v582, %v582
      %v711 = vpack.c.bf16 %v583, %v583
      %v712 = vpack.c.bf16 %v584, %v584
      %v713 = vpack.c.bf16 %v585, %v585
      %v714 = vpack.c.bf16 %v586, %v586
      %v715 = vpack.c.bf16 %v587, %v587
      %v716 = vpack.c.bf16 %v588, %v588
      %v717 = vpack.c.bf16 %v589, %v589
      %v718 = vpack.c.bf16 %v590, %v590
      %v719 = vpack.c.bf16 %v591, %v591
      %v720 = vpack.c.bf16 %v592, %v592
      %v721 = vpack.c.bf16 %v593, %v593
      %v722 = vpack.c.bf16 %v594, %v594
      %v723 = vpack.c.bf16 %v595, %v595
      %v724 = vpack.c.bf16 %v596, %v596
      %v725 = vpack.c.bf16 %v597, %v597
      %v726 = vpack.c.bf16 %v598, %v598
      %v727 = vpack.c.bf16 %v599, %v599
      %v728 = vpack.c.bf16 %v600, %v600
      %v729 = vpack.c.bf16 %v601, %v601
      %v730 = vpack.c.bf16 %v602, %v602
      %v731 = vpack.c.bf16 %v603, %v603
      %v732 = vpack.c.bf16 %v604, %v604
      %v733 = vpack.c.bf16 %v605, %v605
      %v734 = vpack.c.bf16 %v606, %v606
      %v735 = vpack.c.bf16 %v607, %v607
      %v736 = vpack.c.bf16 %v608, %v608
      %v737 = vpack.c.bf16 %v609, %v609
      %v738 = vpack.c.bf16 %v610, %v610
      %v739 = vpack.c.bf16 %v611, %v611
      %v740 = vpack.c.bf16 %v612, %v612
      %v741 = vpack.c.bf16 %v613, %v613
      %v742 = vpack.c.bf16 %v614, %v614
      %v743 = vpack.c.bf16 %v615, %v615
      %v744 = vpack.c.bf16 %v616, %v616
      %v745 = vpack.c.bf16 %v617, %v617
      %v746 = vpack.c.bf16 %v618, %v618
      %v747 = vpack.c.bf16 %v619, %v619
      %v748 = vpack.c.bf16 %v620, %v620
      %v749 = vpack.c.bf16 %v621, %v621
      %v750 = vpack.c.bf16 %v622, %v622
      %v751 = vpack.c.bf16 %v623, %v623
      %v752 = vpack.c.bf16 %v624, %v624
      %v753 = vpack.c.bf16 %v625, %v625
      %v754 = vpack.c.bf16 %v626, %v626
      %v755 = vpack.c.bf16 %v627, %v627
      %v756 = vpack.c.bf16 %v628, %v628
      %v757 = vpack.c.bf16 %v629, %v629
      %v758 = vpack.c.bf16 %v630, %v630
      %v759 = vpack.c.bf16 %v631, %v631
      %v760 = vpack.c.bf16 %v632, %v632
      %v761 = vpack.c.bf16 %v633, %v633
      %v762 = vpack.c.bf16 %v634, %v634
      %v763 = vpack.c.bf16 %v635, %v635
      %v764 = vpack.c.bf16 %v636, %v636
      %v765 = vpack.c.bf16 %v637, %v637
      %v766 = vpack.c.bf16 %v638, %v638
      %v767 = vpack.c.bf16 %v639, %v639
      %v768 = vpack.c.bf16 %v640, %v640
      %v769 = vpack.c.bf16 %v641, %v641
      %v770 = vpack.c.bf16 %v642, %v642
      %v771 = vpack.c.bf16 %v643, %v643
      %v772 = vpack.c.bf16 %v644, %v644
      %v773 = vpack.c.bf16 %v645, %v645
      %v774 = vpack.c.bf16 %v646, %v646
      %v775 = vpack.c.bf16 %v647, %v647
      %v776 = vpack.c.bf16 %v648, %v648
      %v777 = vpack.c.bf16 %v649, %v649
      %v778 = vpack.c.bf16 %v650, %v650
      %v779 = vpack.c.bf16 %v651, %v651
      %v780 = vpack.c.bf16 %v652, %v652
      %v781 = vpack.c.bf16 %v653, %v653
      %v782 = vpack.c.bf16 %v654, %v654
      %v783 = vpack.c.bf16 %v655, %v655
      %v784 = vpack.c.bf16 %v656, %v656
      %v785 = vpack.c.bf16 %v657, %v657
      %v786 = vpack.c.bf16 %v658, %v658
      %v787 = vpack.c.bf16 %v659, %v659
      %v788 = vpack.c.bf16 %v660, %v660
      %v789 = vpack.c.bf16 %v661, %v661
      %v790 = vpack.c.bf16 %v662, %v662
      %v791 = vpack.c.bf16 %v663, %v663
      %v792 = vpack.c.bf16 %v664, %v664
      %v793 = vpack.c.bf16 %v665, %v665
      %v794 = vpack.c.bf16 %v666, %v666
      %v795 = vpack.c.bf16 %v667, %v667
      %v796 = vpack.c.bf16 %v668, %v668
      %v797 = vpack.c.bf16 %v669, %v669
      %v798 = vpack.c.bf16 %v670, %v670
      %v799 = vpack.c.bf16 %v671, %v671
      %v800 = vpack.c.bf16 %v672, %v672
      %v801 = vpack.c.bf16 %v673, %v673
      %v802 = vpack.c.bf16 %v674, %v674
      %v803 = vpack.c.bf16 %v675, %v675
      %v804 = vpack.c.bf16 %v676, %v676
      %v805 = vpack.c.bf16 %v677, %v677
      %v806 = vpack.c.bf16 %v678, %v678
      %v807 = vpack.c.bf16 %v679, %v679
      %v808 = vpack.c.bf16 %v680, %v680
      %v809 = vpack.c.bf16 %v681, %v681
      %v810 = vpack.c.bf16 %v682, %v682
      %v811 = vpack.c.bf16 %v683, %v683
      %v812 = vpack.c.bf16 %v684, %v684
      %v813 = vpack.c.bf16 %v685, %v685
      %v814 = vpack.c.bf16 %v686, %v686
      %v815 = vpack.c.bf16 %v687, %v687
      %v816 = vpack.c.bf16 %v688, %v688
      %v817 = vpack.c.bf16 %v689, %v689
      %v818 = vpack.c.bf16 %v690, %v690
      %v819 = vpack.c.bf16 %v691, %v691
      %v820 = vpack.c.bf16 %v692, %v692
      %v821 = vpack.c.bf16 %v693, %v693
      %822 = vst [vmem:[%s172] sm:$0xf] %v694
      %823 = vst [vmem:[%s172 + $0x4] sm:$0xf] %v695
      %824 = vst [vmem:[%s172 + $0x8] sm:$0xf] %v696
      %825 = vst [vmem:[%s172 + $0xc] sm:$0xf] %v697
      %826 = vst [vmem:[%s172 + $0x10] sm:$0xf] %v698
      %827 = vst [vmem:[%s172 + $0x14] sm:$0xf] %v699
      %828 = vst [vmem:[%s172 + $0x18] sm:$0xf] %v700
      %829 = vst [vmem:[%s172 + $0x1c] sm:$0xf] %v701
      %830 = vst [vmem:[%s172 + $0x20] sm:$0xf] %v702
      %831 = vst [vmem:[%s172 + $0x24] sm:$0xf] %v703
      %832 = vst [vmem:[%s172 + $0x28] sm:$0xf] %v704
      %833 = vst [vmem:[%s172 + $0x2c] sm:$0xf] %v705
      %834 = vst [vmem:[%s172 + $0x30] sm:$0xf] %v706
      %835 = vst [vmem:[%s172 + $0x34] sm:$0xf] %v707
      %836 = vst [vmem:[%s172 + $0x38] sm:$0xf] %v708
      %837 = vst [vmem:[%s172 + $0x3c] sm:$0xf] %v709
      %838 = vst [vmem:[%s172 + $0x40] sm:$0xf] %v710
      %839 = vst [vmem:[%s172 + $0x44] sm:$0xf] %v711
      %840 = vst [vmem:[%s172 + $0x48] sm:$0xf] %v712
      %841 = vst [vmem:[%s172 + $0x4c] sm:$0xf] %v713
      %842 = vst [vmem:[%s172 + $0x50] sm:$0xf] %v714
      %843 = vst [vmem:[%s172 + $0x54] sm:$0xf] %v715
      %844 = vst [vmem:[%s172 + $0x58] sm:$0xf] %v716
      %845 = vst [vmem:[%s172 + $0x5c] sm:$0xf] %v717
      %846 = vst [vmem:[%s172 + $0x60] sm:$0xf] %v718
      %847 = vst [vmem:[%s172 + $0x64] sm:$0xf] %v719
      %848 = vst [vmem:[%s172 + $0x68] sm:$0xf] %v720
      %849 = vst [vmem:[%s172 + $0x6c] sm:$0xf] %v721
      %850 = vst [vmem:[%s172 + $0x70] sm:$0xf] %v722
      %851 = vst [vmem:[%s172 + $0x74] sm:$0xf] %v723
      %852 = vst [vmem:[%s172 + $0x78] sm:$0xf] %v724
      %853 = vst [vmem:[%s172 + $0x7c] sm:$0xf] %v725
      %854 = vst [vmem:[%s172 + $0x80] sm:$0xf] %v726
      %855 = vst [vmem:[%s172 + $0x84] sm:$0xf] %v727
      %856 = vst [vmem:[%s172 + $0x88] sm:$0xf] %v728
      %857 = vst [vmem:[%s172 + $0x8c] sm:$0xf] %v729
      %858 = vst [vmem:[%s172 + $0x90] sm:$0xf] %v730
      %859 = vst [vmem:[%s172 + $0x94] sm:$0xf] %v731
      %860 = vst [vmem:[%s172 + $0x98] sm:$0xf] %v732
      %861 = vst [vmem:[%s172 + $0x9c] sm:$0xf] %v733
      %862 = vst [vmem:[%s172 + $0xa0] sm:$0xf] %v734
      %863 = vst [vmem:[%s172 + $0xa4] sm:$0xf] %v735
      %864 = vst [vmem:[%s172 + $0xa8] sm:$0xf] %v736
      %865 = vst [vmem:[%s172 + $0xac] sm:$0xf] %v737
      %866 = vst [vmem:[%s172 + $0xb0] sm:$0xf] %v738
      %867 = vst [vmem:[%s172 + $0xb4] sm:$0xf] %v739
      %868 = vst [vmem:[%s172 + $0xb8] sm:$0xf] %v740
      %869 = vst [vmem:[%s172 + $0xbc] sm:$0xf] %v741
      %870 = vst [vmem:[%s172 + $0xc0] sm:$0xf] %v742
      %871 = vst [vmem:[%s172 + $0xc4] sm:$0xf] %v743
      %872 = vst [vmem:[%s172 + $0xc8] sm:$0xf] %v744
      %873 = vst [vmem:[%s172 + $0xcc] sm:$0xf] %v745
      %874 = vst [vmem:[%s172 + $0xd0] sm:$0xf] %v746
      %875 = vst [vmem:[%s172 + $0xd4] sm:$0xf] %v747
      %876 = vst [vmem:[%s172 + $0xd8] sm:$0xf] %v748
      %877 = vst [vmem:[%s172 + $0xdc] sm:$0xf] %v749
      %878 = vst [vmem:[%s172 + $0xe0] sm:$0xf] %v750
      %879 = vst [vmem:[%s172 + $0xe4] sm:$0xf] %v751
      %880 = vst [vmem:[%s172 + $0xe8] sm:$0xf] %v752
      %881 = vst [vmem:[%s172 + $0xec] sm:$0xf] %v753
      %882 = vst [vmem:[%s172 + $0xf0] sm:$0xf] %v754
      %883 = vst [vmem:[%s172 + $0xf4] sm:$0xf] %v755
      %884 = vst [vmem:[%s172 + $0xf8] sm:$0xf] %v756
      %885 = vst [vmem:[%s172 + $0xfc] sm:$0xf] %v757
      %886 = vst [vmem:[%s172 + $0x100] sm:$0xf] %v758
      %887 = vst [vmem:[%s172 + $0x104] sm:$0xf] %v759
      %888 = vst [vmem:[%s172 + $0x108] sm:$0xf] %v760
      %889 = vst [vmem:[%s172 + $0x10c] sm:$0xf] %v761
      %890 = vst [vmem:[%s172 + $0x110] sm:$0xf] %v762
      %891 = vst [vmem:[%s172 + $0x114] sm:$0xf] %v763
      %892 = vst [vmem:[%s172 + $0x118] sm:$0xf] %v764
      %893 = vst [vmem:[%s172 + $0x11c] sm:$0xf] %v765
      %894 = vst [vmem:[%s172 + $0x120] sm:$0xf] %v766
      %895 = vst [vmem:[%s172 + $0x124] sm:$0xf] %v767
      %896 = vst [vmem:[%s172 + $0x128] sm:$0xf] %v768
      %897 = vst [vmem:[%s172 + $0x12c] sm:$0xf] %v769
      %898 = vst [vmem:[%s172 + $0x130] sm:$0xf] %v770
      %899 = vst [vmem:[%s172 + $0x134] sm:$0xf] %v771
      %900 = vst [vmem:[%s172 + $0x138] sm:$0xf] %v772
      %901 = vst [vmem:[%s172 + $0x13c] sm:$0xf] %v773
      %902 = vst [vmem:[%s172 + $0x140] sm:$0xf] %v774
      %903 = vst [vmem:[%s172 + $0x144] sm:$0xf] %v775
      %904 = vst [vmem:[%s172 + $0x148] sm:$0xf] %v776
      %905 = vst [vmem:[%s172 + $0x14c] sm:$0xf] %v777
      %906 = vst [vmem:[%s172 + $0x150] sm:$0xf] %v778
      %907 = vst [vmem:[%s172 + $0x154] sm:$0xf] %v779
      %908 = vst [vmem:[%s172 + $0x158] sm:$0xf] %v780
      %909 = vst [vmem:[%s172 + $0x15c] sm:$0xf] %v781
      %910 = vst [vmem:[%s172 + $0x160] sm:$0xf] %v782
      %911 = vst [vmem:[%s172 + $0x164] sm:$0xf] %v783
      %912 = vst [vmem:[%s172 + $0x168] sm:$0xf] %v784
      %913 = vst [vmem:[%s172 + $0x16c] sm:$0xf] %v785
      %914 = vst [vmem:[%s172 + $0x170] sm:$0xf] %v786
      %915 = vst [vmem:[%s172 + $0x174] sm:$0xf] %v787
      %916 = vst [vmem:[%s172 + $0x178] sm:$0xf] %v788
      %917 = vst [vmem:[%s172 + $0x17c] sm:$0xf] %v789
      %918 = vst [vmem:[%s172 + $0x180] sm:$0xf] %v790
      %919 = vst [vmem:[%s172 + $0x184] sm:$0xf] %v791
      %920 = vst [vmem:[%s172 + $0x188] sm:$0xf] %v792
      %921 = vst [vmem:[%s172 + $0x18c] sm:$0xf] %v793
      %922 = vst [vmem:[%s172 + $0x190] sm:$0xf] %v794
      %923 = vst [vmem:[%s172 + $0x194] sm:$0xf] %v795
      %924 = vst [vmem:[%s172 + $0x198] sm:$0xf] %v796
      %925 = vst [vmem:[%s172 + $0x19c] sm:$0xf] %v797
      %926 = vst [vmem:[%s172 + $0x1a0] sm:$0xf] %v798
      %927 = vst [vmem:[%s172 + $0x1a4] sm:$0xf] %v799
      %928 = vst [vmem:[%s172 + $0x1a8] sm:$0xf] %v800
      %929 = vst [vmem:[%s172 + $0x1ac] sm:$0xf] %v801
      %930 = vst [vmem:[%s172 + $0x1b0] sm:$0xf] %v802
      %931 = vst [vmem:[%s172 + $0x1b4] sm:$0xf] %v803
      %932 = vst [vmem:[%s172 + $0x1b8] sm:$0xf] %v804
      %933 = vst [vmem:[%s172 + $0x1bc] sm:$0xf] %v805
      %934 = vst [vmem:[%s172 + $0x1c0] sm:$0xf] %v806
      %935 = vst [vmem:[%s172 + $0x1c4] sm:$0xf] %v807
      %936 = vst [vmem:[%s172 + $0x1c8] sm:$0xf] %v808
      %937 = vst [vmem:[%s172 + $0x1cc] sm:$0xf] %v809
      %938 = vst [vmem:[%s172 + $0x1d0] sm:$0xf] %v810
      %939 = vst [vmem:[%s172 + $0x1d4] sm:$0xf] %v811
      %940 = vst [vmem:[%s172 + $0x1d8] sm:$0xf] %v812
      %941 = vst [vmem:[%s172 + $0x1dc] sm:$0xf] %v813
      %942 = vst [vmem:[%s172 + $0x1e0] sm:$0xf] %v814
      %943 = vst [vmem:[%s172 + $0x1e4] sm:$0xf] %v815
      %944 = vst [vmem:[%s172 + $0x1e8] sm:$0xf] %v816
      %945 = vst [vmem:[%s172 + $0x1ec] sm:$0xf] %v817
      %946 = vst [vmem:[%s172 + $0x1f0] sm:$0xf] %v818
      %947 = vst [vmem:[%s172 + $0x1f4] sm:$0xf] %v819
      %948 = vst [vmem:[%s172 + $0x1f8] sm:$0xf] %v820
      %949 = vst [vmem:[%s172 + $0x1fc] sm:$0xf] %v821
      %s950 = smul.u32 128, %s14
      %p951 = scmp.lt.s32.totalorder %s950, 255
      %s952 = scalar_select %p951, %s950, 255
      %s953 = smul.addr %s952, 4
      %s954 = scalar_lea.vmem %s3, %s953
      // Predicated region
      $region33: #{forward.21} parent=31 // pred_check
        %p955 = pneg %p100
      $region34: #{forward.21} parent=31 // pred_check_branch
        %957 = sbr.rel (%p955) target = $region36
      $region35: #{forward.21} parent=31 // pred_region
        %s958 = smul.u32 128, %s14
      $region36: #{forward.21} parent=31 // pred_fallthru
        _
    $region32: #{forward.21} parent=5 // pred_fallthru
      _
    %p959 = scmp.le.s32.totalorder 2, %s9
    // Predicated region
    $region37: #{forward.21} parent=5 // pred_check
      %p960 = pneg %p959
    $region38: #{forward.21} parent=5 // pred_check_branch
      %962 = sbr.rel (%p960) target = $region40
    $region39: #{forward.21} parent=5 // pred_region
      %s963 = ssub.s32 %s9, 2
      // Predicated region
      $region41: #{forward.21} parent=39 // pred_check
        %p964 = pneg %p106
      $region42: #{forward.21} parent=39 // pred_check_branch
        %966 = sbr.rel (%p964) target = $region44
      $region43: #{forward.21} parent=39 // pred_region
        %s967 = smul.u32 128, %s15
        %p968 = scmp.lt.s32.totalorder %s967, 255
        %s969 = scalar_select %p968, %s967, 255
        %s970 = smul.addr %s969, 4
        %s971 = scalar_lea.vmem %s3, %s970
      $region44: #{forward.21} parent=39 // pred_fallthru
        _
    $region40: #{forward.21} parent=5 // pred_fallthru
      _
  $region6: #{forward.21} parent=0 // loop_footer
    %s13 = sadd.s32 1, %s9
  $region7: #{forward.21} parent=0 // loop_footer_branch
    %8 = sbr.rel target = $region3
  $region8: #{forward.21} parent=0 // loop_exit
    _

// kernel: forward.22
$region0: #{forward.22}
  #allocation0 [shape = 'u32[]', space=smem, size = 0x4, offset = 0x4, fixed_abs, tag = 'smem constant byte address 0x4 - core index']
  #allocation1 [shape = 'u32[72,128]{1,0:T(1,128)}', space=vmem, size = 0x9000, scoped, tag = 'internal scratch']
  %s0 = inlined_call_operand.vmem [shape: bf16[2560,128], index: 0, kind: input, shape index: {}]
  %s1 = inlined_call_operand.vmem [shape: bf16[128,128], index: 1, kind: input, shape index: {}]
  %s2 = inlined_call_operand.vmem [shape: bf16[2560,128], index: 2, kind: output, shape index: {}]
  %s3 = sld [smem:[#allocation0]]
  $region41: #{forward.22} parent=0
    _
  %s5 = ssub.s32 1, %s3
  %s6 = scalar_select 0, %s5, %s3
  loop: start=0, step=1, limit=7
  $region2: #{forward.22} parent=0 // loop_pre_header
    _
  $region3: #{forward.22} parent=0 // loop_header
    %s8 = sphi 0, %s12
    %p9 = scmp.ge.s32.totalorder %s8, 7
    %s18 = sphi 0, %s20
    %s21 = sphi 0, %s18
    %s22 = sphi 0, %s21
    %s38 = sphi 0, %s22
    %s42 = sphi 0, %s42
    %s44 = sphi 0, %s42
    %s45 = sphi 0, %s44
    %s59 = sphi 0, %s45
    %s65 = sphi 0, %s67
    %s68 = sphi 0, %s65
    %s69 = sphi 0, %s68
    %s85 = sphi 0, %s69
  $region4: #{forward.22} parent=0 // loop_header_branch
    %11 = sbr.rel (%p9) target = $region8
  $region5: #{forward.22} parent=0 // loop_body
    %s13 = ssub.s32 %s8, 1
    %s14 = ssub.s32 %s8, 2
    %s15 = sadd.s32 %s8, 1
    %s16 = ssub.s32 %s8, %s15
    %p17 = scmp.eq.s32.totalorder %s16, 0
    %s19 = sadd.s32 %s18, 1
    %s20 = scalar_select %p17, %s18, %s19
    %p23 = pneg %p17
    %p24 = scmp.eq.s32.totalorder %s8, 4
    %p25 = por %p23, %p24
    %p26 = scmp.ne.s32.totalorder %s18, %s21
    %p27 = scmp.eq.s32.totalorder %s8, 0
    %p28 = por %p26, %p27
    %p29 = scmp.ne.s32.totalorder %s18, %s21
    %p30 = scmp.eq.s32.totalorder %s13, 4
    %p31 = por %p29, %p30
    %p32 = scmp.ne.s32.totalorder %s21, %s22
    %p33 = scmp.eq.s32.totalorder %s13, 0
    %p34 = por %p32, %p33
    %p35 = scmp.ne.s32.totalorder %s21, %s22
    %p36 = scmp.eq.s32.totalorder %s14, 4
    %p37 = por %p35, %p36
    %p39 = scmp.ne.s32.totalorder %s22, %s38
    %p40 = scmp.eq.s32.totalorder %s14, 0
    %p41 = por %p39, %p40
    %s43 = sadd.s32 %s42, 1
    %p46 = scmp.eq.s32.totalorder %s8, 4
    %p47 = scmp.ne.s32.totalorder %s42, %s44
    %p48 = scmp.eq.s32.totalorder %s8, 0
    %p49 = por %p47, %p48
    %p50 = scmp.ne.s32.totalorder %s42, %s44
    %p51 = scmp.eq.s32.totalorder %s13, 4
    %p52 = por %p50, %p51
    %p53 = scmp.ne.s32.totalorder %s44, %s45
    %p54 = scmp.eq.s32.totalorder %s13, 0
    %p55 = por %p53, %p54
    %p56 = scmp.ne.s32.totalorder %s44, %s45
    %p57 = scmp.eq.s32.totalorder %s14, 4
    %p58 = por %p56, %p57
    %p60 = scmp.ne.s32.totalorder %s45, %s59
    %p61 = scmp.eq.s32.totalorder %s14, 0
    %p62 = por %p60, %p61
    %s63 = ssub.s32 %s8, %s15
    %p64 = scmp.eq.s32.totalorder %s63, 0
    %s66 = sadd.s32 %s65, 1
    %s67 = scalar_select %p64, %s65, %s66
    %p70 = pneg %p64
    %p71 = scmp.eq.s32.totalorder %s8, 4
    %p72 = por %p70, %p71
    %p73 = scmp.ne.s32.totalorder %s65, %s68
    %p74 = scmp.eq.s32.totalorder %s8, 0
    %p75 = por %p73, %p74
    %p76 = scmp.ne.s32.totalorder %s65, %s68
    %p77 = scmp.eq.s32.totalorder %s13, 4
    %p78 = por %p76, %p77
    %p79 = scmp.ne.s32.totalorder %s68, %s69
    %p80 = scmp.eq.s32.totalorder %s13, 0
    %p81 = por %p79, %p80
    %p82 = scmp.ne.s32.totalorder %s68, %s69
    %p83 = scmp.eq.s32.totalorder %s14, 4
    %p84 = por %p82, %p83
    %p86 = scmp.ne.s32.totalorder %s69, %s85
    %p87 = scmp.eq.s32.totalorder %s14, 0
    %p88 = por %p86, %p87
    %p89 = scmp.le.s32.totalorder 1, %s8
    %p90 = scmp.lt.s32.totalorder %s8, 6
    %p91 = pnand %p89, %p90
    %p92 = pneg %p91
    // Predicated region
    $region9: #{forward.22} parent=5 // pred_check
      _
    $region10: #{forward.22} parent=5 // pred_check_branch
      %94 = sbr.rel (%p91) target = $region12
    $region11: #{forward.22} parent=5 // pred_region
      %s95 = ssub.s32 %s8, 1
      // Predicated region
      $region13: #{forward.22} parent=11 // pred_check
        %p96 = pneg %p55
      $region14: #{forward.22} parent=11 // pred_check_branch
        %98 = sbr.rel (%p96) target = $region16
      $region15: #{forward.22} parent=11 // pred_region
        _
      $region16: #{forward.22} parent=11 // pred_fallthru
        _
    $region12: #{forward.22} parent=5 // pred_fallthru
      _
    %p99 = scmp.lt.s32.totalorder %s8, 5
    // Predicated region
    $region17: #{forward.22} parent=5 // pred_check
      %p100 = pneg %p99
    $region18: #{forward.22} parent=5 // pred_check_branch
      %102 = sbr.rel (%p100) target = $region20
    $region19: #{forward.22} parent=5 // pred_region
      // Predicated region
      $region21: #{forward.22} parent=19 // pred_check
        %p103 = pneg %p28
      $region22: #{forward.22} parent=19 // pred_check_branch
        %105 = sbr.rel (%p103) target = $region24
      $region23: #{forward.22} parent=19 // pred_region
        %s106 = smul.u32 64, %s8
        %p107 = scmp.lt.s32.totalorder %s106, 319
        %s108 = scalar_select %p107, %s106, 319
        %s109 = smul.addr %s108, 4
        %s110 = scalar_lea.vmem %s0, %s109
        %s111 = smul.u32 64, %s8
      $region24: #{forward.22} parent=19 // pred_fallthru
        _
    $region20: #{forward.22} parent=5 // pred_fallthru
      _
    %p112 = scmp.le.s32.totalorder 1, %s8
    %p113 = scmp.lt.s32.totalorder %s8, 6
    %p114 = pnand %p112, %p113
    %p115 = pneg %p114
    // Predicated region
    $region25: #{forward.22} parent=5 // pred_check
      _
    $region26: #{forward.22} parent=5 // pred_check_branch
      %117 = sbr.rel (%p114) target = $region28
    $region27: #{forward.22} parent=5 // pred_region
      %s118 = ssub.s32 %s8, 1
      %s119 = smul.u32 64, %s13
      %p120 = scmp.lt.s32.totalorder %s119, 319
      %s121 = scalar_select %p120, %s119, 319
      %s122 = smul.addr %s121, 4
      %s123 = scalar_lea.vmem %s0, %s122
      %p124 = pneg %p34
      %p125 = pneg %p31
      %p126 = pneg %p55
      %p127 = pneg %p52
      %p128 = pneg %p81
      %p129 = pneg %p78
      %s130 = smul.u32 64, %s13
      %p131 = scmp.lt.s32.totalorder %s130, 319
      %s132 = scalar_select %p131, %s130, 319
      %s133 = smul.addr %s132, 4
      %s134 = scalar_lea.vmem %s2, %s133
      %s135 = smul.u32 64, %s13
      %p136 = scmp.lt.s32.totalorder %s135, 319
      %s137 = scalar_select %p136, %s135, 319
      %s138 = smul.addr %s137, 4
      %s139 = scalar_lea.vmem %s0, %s138
      %s140 = smul.u32 64, %s13
      %s141 = smul.u32 64, %s13
      %p142 = scmp.lt.s32.totalorder %s141, 319
      %s143 = scalar_select %p142, %s141, 319
      %s144 = smul.addr %s143, 4
      %s145 = scalar_lea.vmem %s2, %s144
      %s146 = smul.u32 64, %s13
      %v147 = vld [vmem:[%s139] sm:$0xf]
      %v148 = vld [vmem:[%s139 + $0x4] sm:$0xf]
      %v149 = vld [vmem:[%s139 + $0x8] sm:$0xf]
      %v150 = vld [vmem:[%s139 + $0xc] sm:$0xf]
      %v151 = vld [vmem:[%s139 + $0x10] sm:$0xf]
      %v152 = vld [vmem:[%s139 + $0x14] sm:$0xf]
      %v153 = vld [vmem:[%s139 + $0x18] sm:$0xf]
      %v154 = vld [vmem:[%s139 + $0x1c] sm:$0xf]
      %v155 = vld [vmem:[%s139 + $0x20] sm:$0xf]
      %v156 = vld [vmem:[%s139 + $0x24] sm:$0xf]
      %v157 = vld [vmem:[%s139 + $0x28] sm:$0xf]
      %v158 = vld [vmem:[%s139 + $0x2c] sm:$0xf]
      %v159 = vld [vmem:[%s139 + $0x30] sm:$0xf]
      %v160 = vld [vmem:[%s139 + $0x34] sm:$0xf]
      %v161 = vld [vmem:[%s139 + $0x38] sm:$0xf]
      %v162 = vld [vmem:[%s139 + $0x3c] sm:$0xf]
      %v163 = vld [vmem:[%s139 + $0x40] sm:$0xf]
      %v164 = vld [vmem:[%s139 + $0x44] sm:$0xf]
      %v165 = vld [vmem:[%s139 + $0x48] sm:$0xf]
      %v166 = vld [vmem:[%s139 + $0x4c] sm:$0xf]
      %v167 = vld [vmem:[%s139 + $0x50] sm:$0xf]
      %v168 = vld [vmem:[%s139 + $0x54] sm:$0xf]
      %v169 = vld [vmem:[%s139 + $0x58] sm:$0xf]
      %v170 = vld [vmem:[%s139 + $0x5c] sm:$0xf]
      %v171 = vld [vmem:[%s139 + $0x60] sm:$0xf]
      %v172 = vld [vmem:[%s139 + $0x64] sm:$0xf]
      %v173 = vld [vmem:[%s139 + $0x68] sm:$0xf]
      %v174 = vld [vmem:[%s139 + $0x6c] sm:$0xf]
      %v175 = vld [vmem:[%s139 + $0x70] sm:$0xf]
      %v176 = vld [vmem:[%s139 + $0x74] sm:$0xf]
      %v177 = vld [vmem:[%s139 + $0x78] sm:$0xf]
      %v178 = vld [vmem:[%s139 + $0x7c] sm:$0xf]
      %v179 = vld [vmem:[%s139 + $0x80] sm:$0xf]
      %v180 = vld [vmem:[%s139 + $0x84] sm:$0xf]
      %v181 = vld [vmem:[%s139 + $0x88] sm:$0xf]
      %v182 = vld [vmem:[%s139 + $0x8c] sm:$0xf]
      %v183 = vld [vmem:[%s139 + $0x90] sm:$0xf]
      %v184 = vld [vmem:[%s139 + $0x94] sm:$0xf]
      %v185 = vld [vmem:[%s139 + $0x98] sm:$0xf]
      %v186 = vld [vmem:[%s139 + $0x9c] sm:$0xf]
      %v187 = vld [vmem:[%s139 + $0xa0] sm:$0xf]
      %v188 = vld [vmem:[%s139 + $0xa4] sm:$0xf]
      %v189 = vld [vmem:[%s139 + $0xa8] sm:$0xf]
      %v190 = vld [vmem:[%s139 + $0xac] sm:$0xf]
      %v191 = vld [vmem:[%s139 + $0xb0] sm:$0xf]
      %v192 = vld [vmem:[%s139 + $0xb4] sm:$0xf]
      %v193 = vld [vmem:[%s139 + $0xb8] sm:$0xf]
      %v194 = vld [vmem:[%s139 + $0xbc] sm:$0xf]
      %v195 = vld [vmem:[%s139 + $0xc0] sm:$0xf]
      %v196 = vld [vmem:[%s139 + $0xc4] sm:$0xf]
      %v197 = vld [vmem:[%s139 + $0xc8] sm:$0xf]
      %v198 = vld [vmem:[%s139 + $0xcc] sm:$0xf]
      %v199 = vld [vmem:[%s139 + $0xd0] sm:$0xf]
      %v200 = vld [vmem:[%s139 + $0xd4] sm:$0xf]
      %v201 = vld [vmem:[%s139 + $0xd8] sm:$0xf]
      %v202 = vld [vmem:[%s139 + $0xdc] sm:$0xf]
      %v203 = vld [vmem:[%s139 + $0xe0] sm:$0xf]
      %v204 = vld [vmem:[%s139 + $0xe4] sm:$0xf]
      %v205 = vld [vmem:[%s139 + $0xe8] sm:$0xf]
      %v206 = vld [vmem:[%s139 + $0xec] sm:$0xf]
      %v207 = vld [vmem:[%s139 + $0xf0] sm:$0xf]
      %v208 = vld [vmem:[%s139 + $0xf4] sm:$0xf]
      %v209 = vld [vmem:[%s139 + $0xf8] sm:$0xf]
      %v210 = vld [vmem:[%s139 + $0xfc] sm:$0xf]
      %v211 = vld [vmem:[%s1] sm:$0xf]
      %v212 = vld [vmem:[%s1 + $0x4] sm:$0xf]
      %v213 = vld [vmem:[%s1 + $0x8] sm:$0xf]
      %v214 = vld [vmem:[%s1 + $0xc] sm:$0xf]
      %v215 = vld [vmem:[%s1 + $0x10] sm:$0xf]
      %v216 = vld [vmem:[%s1 + $0x14] sm:$0xf]
      %v217 = vld [vmem:[%s1 + $0x18] sm:$0xf]
      %v218 = vld [vmem:[%s1 + $0x1c] sm:$0xf]
      %v219 = vld [vmem:[%s1 + $0x20] sm:$0xf]
      %v220 = vld [vmem:[%s1 + $0x24] sm:$0xf]
      %v221 = vld [vmem:[%s1 + $0x28] sm:$0xf]
      %v222 = vld [vmem:[%s1 + $0x2c] sm:$0xf]
      %v223 = vld [vmem:[%s1 + $0x30] sm:$0xf]
      %v224 = vld [vmem:[%s1 + $0x34] sm:$0xf]
      %v225 = vld [vmem:[%s1 + $0x38] sm:$0xf]
      %v226 = vld [vmem:[%s1 + $0x3c] sm:$0xf]
      %v291 = vunpack.c.l.b16 %v147
      %v292 = vunpack.c.l.b16 %v148
      %v293 = vunpack.c.l.b16 %v149
      %v294 = vunpack.c.l.b16 %v150
      %v295 = vunpack.c.l.b16 %v151
      %v296 = vunpack.c.l.b16 %v152
      %v297 = vunpack.c.l.b16 %v153
      %v298 = vunpack.c.l.b16 %v154
      %v299 = vunpack.c.l.b16 %v155
      %v300 = vunpack.c.l.b16 %v156
      %v301 = vunpack.c.l.b16 %v157
      %v302 = vunpack.c.l.b16 %v158
      %v303 = vunpack.c.l.b16 %v159
      %v304 = vunpack.c.l.b16 %v160
      %v305 = vunpack.c.l.b16 %v161
      %v306 = vunpack.c.l.b16 %v162
      %v307 = vunpack.c.l.b16 %v163
      %v308 = vunpack.c.l.b16 %v164
      %v309 = vunpack.c.l.b16 %v165
      %v310 = vunpack.c.l.b16 %v166
      %v311 = vunpack.c.l.b16 %v167
      %v312 = vunpack.c.l.b16 %v168
      %v313 = vunpack.c.l.b16 %v169
      %v314 = vunpack.c.l.b16 %v170
      %v315 = vunpack.c.l.b16 %v171
      %v316 = vunpack.c.l.b16 %v172
      %v317 = vunpack.c.l.b16 %v173
      %v318 = vunpack.c.l.b16 %v174
      %v319 = vunpack.c.l.b16 %v175
      %v320 = vunpack.c.l.b16 %v176
      %v321 = vunpack.c.l.b16 %v177
      %v322 = vunpack.c.l.b16 %v178
      %v323 = vunpack.c.l.b16 %v179
      %v324 = vunpack.c.l.b16 %v180
      %v325 = vunpack.c.l.b16 %v181
      %v326 = vunpack.c.l.b16 %v182
      %v327 = vunpack.c.l.b16 %v183
      %v328 = vunpack.c.l.b16 %v184
      %v329 = vunpack.c.l.b16 %v185
      %v330 = vunpack.c.l.b16 %v186
      %v331 = vunpack.c.l.b16 %v187
      %v332 = vunpack.c.l.b16 %v188
      %v333 = vunpack.c.l.b16 %v189
      %v334 = vunpack.c.l.b16 %v190
      %v335 = vunpack.c.l.b16 %v191
      %v336 = vunpack.c.l.b16 %v192
      %v337 = vunpack.c.l.b16 %v193
      %v338 = vunpack.c.l.b16 %v194
      %v339 = vunpack.c.l.b16 %v195
      %v340 = vunpack.c.l.b16 %v196
      %v341 = vunpack.c.l.b16 %v197
      %v342 = vunpack.c.l.b16 %v198
      %v343 = vunpack.c.l.b16 %v199
      %v344 = vunpack.c.l.b16 %v200
      %v345 = vunpack.c.l.b16 %v201
      %v346 = vunpack.c.l.b16 %v202
      %v347 = vunpack.c.l.b16 %v203
      %v348 = vunpack.c.l.b16 %v204
      %v349 = vunpack.c.l.b16 %v205
      %v350 = vunpack.c.l.b16 %v206
      %v351 = vunpack.c.l.b16 %v207
      %v352 = vunpack.c.l.b16 %v208
      %v353 = vunpack.c.l.b16 %v209
      %v354 = vunpack.c.l.b16 %v210
      %v355 = vpack.c.b16 %v292, %v291
      %v356 = vpack.c.b16 %v294, %v293
      %v357 = vpack.c.b16 %v296, %v295
      %v358 = vpack.c.b16 %v298, %v297
      %v359 = vpack.c.b16 %v300, %v299
      %v360 = vpack.c.b16 %v302, %v301
      %v361 = vpack.c.b16 %v304, %v303
      %v362 = vpack.c.b16 %v306, %v305
      %v363 = vpack.c.b16 %v308, %v307
      %v364 = vpack.c.b16 %v310, %v309
      %v365 = vpack.c.b16 %v312, %v311
      %v366 = vpack.c.b16 %v314, %v313
      %v367 = vpack.c.b16 %v316, %v315
      %v368 = vpack.c.b16 %v318, %v317
      %v369 = vpack.c.b16 %v320, %v319
      %v370 = vpack.c.b16 %v322, %v321
      %v371 = vpack.c.b16 %v324, %v323
      %v372 = vpack.c.b16 %v326, %v325
      %v373 = vpack.c.b16 %v328, %v327
      %v374 = vpack.c.b16 %v330, %v329
      %v375 = vpack.c.b16 %v332, %v331
      %v376 = vpack.c.b16 %v334, %v333
      %v377 = vpack.c.b16 %v336, %v335
      %v378 = vpack.c.b16 %v338, %v337
      %v379 = vpack.c.b16 %v340, %v339
      %v380 = vpack.c.b16 %v342, %v341
      %v381 = vpack.c.b16 %v344, %v343
      %v382 = vpack.c.b16 %v346, %v345
      %v383 = vpack.c.b16 %v348, %v347
      %v384 = vpack.c.b16 %v350, %v349
      %v385 = vpack.c.b16 %v352, %v351
      %v386 = vpack.c.b16 %v354, %v353
      %v435 = vunpack.c.l.b16 %v211
      %v436 = vunpack.c.l.b16 %v212
      %v437 = vunpack.c.l.b16 %v213
      %v438 = vunpack.c.l.b16 %v214
      %v439 = vunpack.c.l.b16 %v215
      %v440 = vunpack.c.l.b16 %v216
      %v441 = vunpack.c.l.b16 %v217
      %v442 = vunpack.c.l.b16 %v218
      %v443 = vunpack.c.l.b16 %v219
      %v444 = vunpack.c.l.b16 %v220
      %v445 = vunpack.c.l.b16 %v221
      %v446 = vunpack.c.l.b16 %v222
      %v447 = vunpack.c.l.b16 %v223
      %v448 = vunpack.c.l.b16 %v224
      %v449 = vunpack.c.l.b16 %v225
      %v450 = vunpack.c.l.b16 %v226
      %v451 = vpack.c.b16 %v436, %v435
      %v452 = vpack.c.b16 %v438, %v437
      %v453 = vpack.c.b16 %v440, %v439
      %v454 = vpack.c.b16 %v442, %v441
      %v455 = vpack.c.b16 %v444, %v443
      %v456 = vpack.c.b16 %v446, %v445
      %v457 = vpack.c.b16 %v448, %v447
      %v458 = vpack.c.b16 %v450, %v449
      %467 = vmatpush.bf16.msra.mxu0 %v458
      %468 = vmatpush.bf16.msra.mxu0 %v457
      %469 = vmatpush.bf16.msra.mxu0 %v456
      %470 = vmatpush.bf16.msra.mxu0 %v455
      %471 = vmatpush.bf16.msra.mxu0 %v454
      %472 = vmatpush.bf16.msra.mxu0 %v453
      %473 = vmatpush.bf16.msra.mxu0 %v452
      %474 = vmatpush.bf16.msra.mxu0 %v451
      %475 = vmatmul.bf16.gmra.mxu0 %v355
      %v476 = vpop.f32.mrf.mxu0
      %v477 = vadd.f32 0.0, %v476
      %v478 = vpop.f32.mrf.mxu0
      %v479 = vadd.f32 0.0, %v478
      %480 = vmatmul.bf16.gmra.mxu0 %v356
      %v481 = vpop.f32.mrf.mxu0
      %v482 = vadd.f32 0.0, %v481
      %v483 = vpop.f32.mrf.mxu0
      %v484 = vadd.f32 0.0, %v483
      %485 = vmatmul.bf16.gmra.mxu0 %v357
      %v486 = vpop.f32.mrf.mxu0
      %v487 = vadd.f32 0.0, %v486
      %v488 = vpop.f32.mrf.mxu0
      %v489 = vadd.f32 0.0, %v488
      %490 = vmatmul.bf16.gmra.mxu0 %v358
      %v491 = vpop.f32.mrf.mxu0
      %v492 = vadd.f32 0.0, %v491
      %v493 = vpop.f32.mrf.mxu0
      %v494 = vadd.f32 0.0, %v493
      %495 = vmatmul.bf16.gmra.mxu0 %v359
      %v496 = vpop.f32.mrf.mxu0
      %v497 = vadd.f32 0.0, %v496
      %v498 = vpop.f32.mrf.mxu0
      %v499 = vadd.f32 0.0, %v498
      %500 = vmatmul.bf16.gmra.mxu0 %v360
      %v501 = vpop.f32.mrf.mxu0
      %v502 = vadd.f32 0.0, %v501
      %v503 = vpop.f32.mrf.mxu0
      %v504 = vadd.f32 0.0, %v503
      %505 = vmatmul.bf16.gmra.mxu0 %v361
      %v506 = vpop.f32.mrf.mxu0
      %v507 = vadd.f32 0.0, %v506
      %v508 = vpop.f32.mrf.mxu0
      %v509 = vadd.f32 0.0, %v508
      %510 = vmatmul.bf16.gmra.mxu0 %v362
      %v511 = vpop.f32.mrf.mxu0
      %v512 = vadd.f32 0.0, %v511
      %v513 = vpop.f32.mrf.mxu0
      %v514 = vadd.f32 0.0, %v513
      %515 = vmatmul.bf16.gmra.mxu0 %v363
      %v516 = vpop.f32.mrf.mxu0
      %v517 = vadd.f32 0.0, %v516
      %v518 = vpop.f32.mrf.mxu0
      %v519 = vadd.f32 0.0, %v518
      %520 = vmatmul.bf16.gmra.mxu0 %v364
      %v521 = vpop.f32.mrf.mxu0
      %v522 = vadd.f32 0.0, %v521
      %v523 = vpop.f32.mrf.mxu0
      %v524 = vadd.f32 0.0, %v523
      %525 = vmatmul.bf16.gmra.mxu0 %v365
      %v526 = vpop.f32.mrf.mxu0
      %v527 = vadd.f32 0.0, %v526
      %v528 = vpop.f32.mrf.mxu0
      %v529 = vadd.f32 0.0, %v528
      %530 = vmatmul.bf16.gmra.mxu0 %v366
      %v531 = vpop.f32.mrf.mxu0
      %v532 = vadd.f32 0.0, %v531
      %v533 = vpop.f32.mrf.mxu0
      %v534 = vadd.f32 0.0, %v533
      %535 = vmatmul.bf16.gmra.mxu0 %v367
      %v536 = vpop.f32.mrf.mxu0
      %v537 = vadd.f32 0.0, %v536
      %v538 = vpop.f32.mrf.mxu0
      %v539 = vadd.f32 0.0, %v538
      %540 = vmatmul.bf16.gmra.mxu0 %v368
      %v541 = vpop.f32.mrf.mxu0
      %v542 = vadd.f32 0.0, %v541
      %v543 = vpop.f32.mrf.mxu0
      %v544 = vadd.f32 0.0, %v543
      %545 = vmatmul.bf16.gmra.mxu0 %v369
      %v546 = vpop.f32.mrf.mxu0
      %v547 = vadd.f32 0.0, %v546
      %v548 = vpop.f32.mrf.mxu0
      %v549 = vadd.f32 0.0, %v548
      %550 = vmatmul.bf16.gmra.mxu0 %v370
      %v551 = vpop.f32.mrf.mxu0
      %v552 = vadd.f32 0.0, %v551
      %v553 = vpop.f32.mrf.mxu0
      %v554 = vadd.f32 0.0, %v553
      %555 = vmatmul.bf16.gmra.mxu0 %v371
      %v556 = vpop.f32.mrf.mxu0
      %v557 = vadd.f32 0.0, %v556
      %v558 = vpop.f32.mrf.mxu0
      %v559 = vadd.f32 0.0, %v558
      %560 = vmatmul.bf16.gmra.mxu0 %v372
      %v561 = vpop.f32.mrf.mxu0
      %v562 = vadd.f32 0.0, %v561
      %v563 = vpop.f32.mrf.mxu0
      %v564 = vadd.f32 0.0, %v563
      %565 = vmatmul.bf16.gmra.mxu0 %v373
      %v566 = vpop.f32.mrf.mxu0
      %v567 = vadd.f32 0.0, %v566
      %v568 = vpop.f32.mrf.mxu0
      %v569 = vadd.f32 0.0, %v568
      %570 = vmatmul.bf16.gmra.mxu0 %v374
      %v571 = vpop.f32.mrf.mxu0
      %v572 = vadd.f32 0.0, %v571
      %v573 = vpop.f32.mrf.mxu0
      %v574 = vadd.f32 0.0, %v573
      %575 = vmatmul.bf16.gmra.mxu0 %v375
      %v576 = vpop.f32.mrf.mxu0
      %v577 = vadd.f32 0.0, %v576
      %v578 = vpop.f32.mrf.mxu0
      %v579 = vadd.f32 0.0, %v578
      %580 = vmatmul.bf16.gmra.mxu0 %v376
      %v581 = vpop.f32.mrf.mxu0
      %v582 = vadd.f32 0.0, %v581
      %v583 = vpop.f32.mrf.mxu0
      %v584 = vadd.f32 0.0, %v583
      %585 = vmatmul.bf16.gmra.mxu0 %v377
      %v586 = vpop.f32.mrf.mxu0
      %v587 = vadd.f32 0.0, %v586
      %v588 = vpop.f32.mrf.mxu0
      %v589 = vadd.f32 0.0, %v588
      %590 = vmatmul.bf16.gmra.mxu0 %v378
      %v591 = vpop.f32.mrf.mxu0
      %v592 = vadd.f32 0.0, %v591
      %v593 = vpop.f32.mrf.mxu0
      %v594 = vadd.f32 0.0, %v593
      %595 = vmatmul.bf16.gmra.mxu0 %v379
      %v596 = vpop.f32.mrf.mxu0
      %v597 = vadd.f32 0.0, %v596
      %v598 = vpop.f32.mrf.mxu0
      %v599 = vadd.f32 0.0, %v598
      %600 = vmatmul.bf16.gmra.mxu0 %v380
      %v601 = vpop.f32.mrf.mxu0
      %v602 = vadd.f32 0.0, %v601
      %v603 = vpop.f32.mrf.mxu0
      %v604 = vadd.f32 0.0, %v603
      %605 = vmatmul.bf16.gmra.mxu0 %v381
      %v606 = vpop.f32.mrf.mxu0
      %v607 = vadd.f32 0.0, %v606
      %v608 = vpop.f32.mrf.mxu0
      %v609 = vadd.f32 0.0, %v608
      %610 = vmatmul.bf16.gmra.mxu0 %v382
      %v611 = vpop.f32.mrf.mxu0
      %v612 = vadd.f32 0.0, %v611
      %v613 = vpop.f32.mrf.mxu0
      %v614 = vadd.f32 0.0, %v613
      %615 = vmatmul.bf16.gmra.mxu0 %v383
      %v616 = vpop.f32.mrf.mxu0
      %v617 = vadd.f32 0.0, %v616
      %v618 = vpop.f32.mrf.mxu0
      %v619 = vadd.f32 0.0, %v618
      %620 = vmatmul.bf16.gmra.mxu0 %v384
      %v621 = vpop.f32.mrf.mxu0
      %v622 = vadd.f32 0.0, %v621
      %v623 = vpop.f32.mrf.mxu0
      %v624 = vadd.f32 0.0, %v623
      %625 = vmatmul.bf16.gmra.mxu0 %v385
      %v626 = vpop.f32.mrf.mxu0
      %v627 = vadd.f32 0.0, %v626
      %v628 = vpop.f32.mrf.mxu0
      %v629 = vadd.f32 0.0, %v628
      %630 = vmatmul.bf16.gmra.mxu0 %v386
      %v631 = vpop.f32.mrf.mxu0
      %v632 = vadd.f32 0.0, %v631
      %v633 = vpop.f32.mrf.mxu0
      %v634 = vadd.f32 0.0, %v633
      %635 = vdwg.mxu0
      %v636 = vpack.c.bf16 %v477, %v477
      %v637 = vpack.c.bf16 %v479, %v479
      %v638 = vpack.c.bf16 %v482, %v482
      %v639 = vpack.c.bf16 %v484, %v484
      %v640 = vpack.c.bf16 %v487, %v487
      %v641 = vpack.c.bf16 %v489, %v489
      %v642 = vpack.c.bf16 %v492, %v492
      %v643 = vpack.c.bf16 %v494, %v494
      %v644 = vpack.c.bf16 %v497, %v497
      %v645 = vpack.c.bf16 %v499, %v499
      %v646 = vpack.c.bf16 %v502, %v502
      %v647 = vpack.c.bf16 %v504, %v504
      %v648 = vpack.c.bf16 %v507, %v507
      %v649 = vpack.c.bf16 %v509, %v509
      %v650 = vpack.c.bf16 %v512, %v512
      %v651 = vpack.c.bf16 %v514, %v514
      %v652 = vpack.c.bf16 %v517, %v517
      %v653 = vpack.c.bf16 %v519, %v519
      %v654 = vpack.c.bf16 %v522, %v522
      %v655 = vpack.c.bf16 %v524, %v524
      %v656 = vpack.c.bf16 %v527, %v527
      %v657 = vpack.c.bf16 %v529, %v529
      %v658 = vpack.c.bf16 %v532, %v532
      %v659 = vpack.c.bf16 %v534, %v534
      %v660 = vpack.c.bf16 %v537, %v537
      %v661 = vpack.c.bf16 %v539, %v539
      %v662 = vpack.c.bf16 %v542, %v542
      %v663 = vpack.c.bf16 %v544, %v544
      %v664 = vpack.c.bf16 %v547, %v547
      %v665 = vpack.c.bf16 %v549, %v549
      %v666 = vpack.c.bf16 %v552, %v552
      %v667 = vpack.c.bf16 %v554, %v554
      %v668 = vpack.c.bf16 %v557, %v557
      %v669 = vpack.c.bf16 %v559, %v559
      %v670 = vpack.c.bf16 %v562, %v562
      %v671 = vpack.c.bf16 %v564, %v564
      %v672 = vpack.c.bf16 %v567, %v567
      %v673 = vpack.c.bf16 %v569, %v569
      %v674 = vpack.c.bf16 %v572, %v572
      %v675 = vpack.c.bf16 %v574, %v574
      %v676 = vpack.c.bf16 %v577, %v577
      %v677 = vpack.c.bf16 %v579, %v579
      %v678 = vpack.c.bf16 %v582, %v582
      %v679 = vpack.c.bf16 %v584, %v584
      %v680 = vpack.c.bf16 %v587, %v587
      %v681 = vpack.c.bf16 %v589, %v589
      %v682 = vpack.c.bf16 %v592, %v592
      %v683 = vpack.c.bf16 %v594, %v594
      %v684 = vpack.c.bf16 %v597, %v597
      %v685 = vpack.c.bf16 %v599, %v599
      %v686 = vpack.c.bf16 %v602, %v602
      %v687 = vpack.c.bf16 %v604, %v604
      %v688 = vpack.c.bf16 %v607, %v607
      %v689 = vpack.c.bf16 %v609, %v609
      %v690 = vpack.c.bf16 %v612, %v612
      %v691 = vpack.c.bf16 %v614, %v614
      %v692 = vpack.c.bf16 %v617, %v617
      %v693 = vpack.c.bf16 %v619, %v619
      %v694 = vpack.c.bf16 %v622, %v622
      %v695 = vpack.c.bf16 %v624, %v624
      %v696 = vpack.c.bf16 %v627, %v627
      %v697 = vpack.c.bf16 %v629, %v629
      %v698 = vpack.c.bf16 %v632, %v632
      %v699 = vpack.c.bf16 %v634, %v634
      %700 = vst [vmem:[%s145] sm:$0xf] %v636
      %701 = vst [vmem:[%s145 + $0x4] sm:$0xf] %v637
      %702 = vst [vmem:[%s145 + $0x8] sm:$0xf] %v638
      %703 = vst [vmem:[%s145 + $0xc] sm:$0xf] %v639
      %704 = vst [vmem:[%s145 + $0x10] sm:$0xf] %v640
      %705 = vst [vmem:[%s145 + $0x14] sm:$0xf] %v641
      %706 = vst [vmem:[%s145 + $0x18] sm:$0xf] %v642
      %707 = vst [vmem:[%s145 + $0x1c] sm:$0xf] %v643
      %708 = vst [vmem:[%s145 + $0x20] sm:$0xf] %v644
      %709 = vst [vmem:[%s145 + $0x24] sm:$0xf] %v645
      %710 = vst [vmem:[%s145 + $0x28] sm:$0xf] %v646
      %711 = vst [vmem:[%s145 + $0x2c] sm:$0xf] %v647
      %712 = vst [vmem:[%s145 + $0x30] sm:$0xf] %v648
      %713 = vst [vmem:[%s145 + $0x34] sm:$0xf] %v649
      %714 = vst [vmem:[%s145 + $0x38] sm:$0xf] %v650
      %715 = vst [vmem:[%s145 + $0x3c] sm:$0xf] %v651
      %716 = vst [vmem:[%s145 + $0x40] sm:$0xf] %v652
      %717 = vst [vmem:[%s145 + $0x44] sm:$0xf] %v653
      %718 = vst [vmem:[%s145 + $0x48] sm:$0xf] %v654
      %719 = vst [vmem:[%s145 + $0x4c] sm:$0xf] %v655
      %720 = vst [vmem:[%s145 + $0x50] sm:$0xf] %v656
      %721 = vst [vmem:[%s145 + $0x54] sm:$0xf] %v657
      %722 = vst [vmem:[%s145 + $0x58] sm:$0xf] %v658
      %723 = vst [vmem:[%s145 + $0x5c] sm:$0xf] %v659
      %724 = vst [vmem:[%s145 + $0x60] sm:$0xf] %v660
      %725 = vst [vmem:[%s145 + $0x64] sm:$0xf] %v661
      %726 = vst [vmem:[%s145 + $0x68] sm:$0xf] %v662
      %727 = vst [vmem:[%s145 + $0x6c] sm:$0xf] %v663
      %728 = vst [vmem:[%s145 + $0x70] sm:$0xf] %v664
      %729 = vst [vmem:[%s145 + $0x74] sm:$0xf] %v665
      %730 = vst [vmem:[%s145 + $0x78] sm:$0xf] %v666
      %731 = vst [vmem:[%s145 + $0x7c] sm:$0xf] %v667
      %732 = vst [vmem:[%s145 + $0x80] sm:$0xf] %v668
      %733 = vst [vmem:[%s145 + $0x84] sm:$0xf] %v669
      %734 = vst [vmem:[%s145 + $0x88] sm:$0xf] %v670
      %735 = vst [vmem:[%s145 + $0x8c] sm:$0xf] %v671
      %736 = vst [vmem:[%s145 + $0x90] sm:$0xf] %v672
      %737 = vst [vmem:[%s145 + $0x94] sm:$0xf] %v673
      %738 = vst [vmem:[%s145 + $0x98] sm:$0xf] %v674
      %739 = vst [vmem:[%s145 + $0x9c] sm:$0xf] %v675
      %740 = vst [vmem:[%s145 + $0xa0] sm:$0xf] %v676
      %741 = vst [vmem:[%s145 + $0xa4] sm:$0xf] %v677
      %742 = vst [vmem:[%s145 + $0xa8] sm:$0xf] %v678
      %743 = vst [vmem:[%s145 + $0xac] sm:$0xf] %v679
      %744 = vst [vmem:[%s145 + $0xb0] sm:$0xf] %v680
      %745 = vst [vmem:[%s145 + $0xb4] sm:$0xf] %v681
      %746 = vst [vmem:[%s145 + $0xb8] sm:$0xf] %v682
      %747 = vst [vmem:[%s145 + $0xbc] sm:$0xf] %v683
      %748 = vst [vmem:[%s145 + $0xc0] sm:$0xf] %v684
      %749 = vst [vmem:[%s145 + $0xc4] sm:$0xf] %v685
      %750 = vst [vmem:[%s145 + $0xc8] sm:$0xf] %v686
      %751 = vst [vmem:[%s145 + $0xcc] sm:$0xf] %v687
      %752 = vst [vmem:[%s145 + $0xd0] sm:$0xf] %v688
      %753 = vst [vmem:[%s145 + $0xd4] sm:$0xf] %v689
      %754 = vst [vmem:[%s145 + $0xd8] sm:$0xf] %v690
      %755 = vst [vmem:[%s145 + $0xdc] sm:$0xf] %v691
      %756 = vst [vmem:[%s145 + $0xe0] sm:$0xf] %v692
      %757 = vst [vmem:[%s145 + $0xe4] sm:$0xf] %v693
      %758 = vst [vmem:[%s145 + $0xe8] sm:$0xf] %v694
      %759 = vst [vmem:[%s145 + $0xec] sm:$0xf] %v695
      %760 = vst [vmem:[%s145 + $0xf0] sm:$0xf] %v696
      %761 = vst [vmem:[%s145 + $0xf4] sm:$0xf] %v697
      %762 = vst [vmem:[%s145 + $0xf8] sm:$0xf] %v698
      %763 = vst [vmem:[%s145 + $0xfc] sm:$0xf] %v699
      %s764 = smul.u32 64, %s13
      %p765 = scmp.lt.s32.totalorder %s764, 319
      %s766 = scalar_select %p765, %s764, 319
      %s767 = smul.addr %s766, 4
      %s768 = scalar_lea.vmem %s2, %s767
      // Predicated region
      $region29: #{forward.22} parent=27 // pred_check
        %p769 = pneg %p78
      $region30: #{forward.22} parent=27 // pred_check_branch
        %771 = sbr.rel (%p769) target = $region32
      $region31: #{forward.22} parent=27 // pred_region
        %s772 = smul.u32 64, %s13
      $region32: #{forward.22} parent=27 // pred_fallthru
        _
    $region28: #{forward.22} parent=5 // pred_fallthru
      _
    %p773 = scmp.le.s32.totalorder 2, %s8
    // Predicated region
    $region33: #{forward.22} parent=5 // pred_check
      %p774 = pneg %p773
    $region34: #{forward.22} parent=5 // pred_check_branch
      %776 = sbr.rel (%p774) target = $region36
    $region35: #{forward.22} parent=5 // pred_region
      %s777 = ssub.s32 %s8, 2
      // Predicated region
      $region37: #{forward.22} parent=35 // pred_check
        %p778 = pneg %p84
      $region38: #{forward.22} parent=35 // pred_check_branch
        %780 = sbr.rel (%p778) target = $region40
      $region39: #{forward.22} parent=35 // pred_region
        %s781 = smul.u32 64, %s14
        %p782 = scmp.lt.s32.totalorder %s781, 319
        %s783 = scalar_select %p782, %s781, 319
        %s784 = smul.addr %s783, 4
        %s785 = scalar_lea.vmem %s2, %s784
      $region40: #{forward.22} parent=35 // pred_fallthru
        _
    $region36: #{forward.22} parent=5 // pred_fallthru
      _
  $region6: #{forward.22} parent=0 // loop_footer
    %s12 = sadd.s32 1, %s8
  $region7: #{forward.22} parent=0 // loop_footer_branch
    %7 = sbr.rel target = $region3
  $region8: #{forward.22} parent=0 // loop_exit
    _

// kernel: forward.23
$region0: #{forward.23}
  #allocation0 [shape = 'u32[]', space=smem, size = 0x4, offset = 0x4, fixed_abs, tag = 'smem constant byte address 0x4 - core index']
  #allocation1 [shape = 'u32[72,128]{1,0:T(1,128)}', space=vmem, size = 0x9000, scoped, tag = 'internal scratch']
  %s0 = inlined_call_operand.vmem [shape: bf16[18432,128], index: 0, kind: input, shape index: {}]
  %s1 = inlined_call_operand.vmem [shape: bf16[128,128], index: 1, kind: input, shape index: {}]
  %s2 = inlined_call_operand.vmem [shape: f32[18432,128], index: 2, kind: output, shape index: {}]
  %s3 = sld [smem:[#allocation0]]
  $region41: #{forward.23} parent=0
    _
  %s5 = ssub.s32 1, %s3
  %s6 = scalar_select 0, %s5, %s3
  loop: start=0, step=1, limit=38
  $region2: #{forward.23} parent=0 // loop_pre_header
    _
  $region3: #{forward.23} parent=0 // loop_header
    %s8 = sphi 0, %s12
    %p9 = scmp.ge.s32.totalorder %s8, 38
    %s18 = sphi 0, %s20
    %s21 = sphi 0, %s18
    %s22 = sphi 0, %s21
    %s38 = sphi 0, %s22
    %s42 = sphi 0, %s42
    %s44 = sphi 0, %s42
    %s45 = sphi 0, %s44
    %s59 = sphi 0, %s45
    %s65 = sphi 0, %s67
    %s68 = sphi 0, %s65
    %s69 = sphi 0, %s68
    %s85 = sphi 0, %s69
  $region4: #{forward.23} parent=0 // loop_header_branch
    %11 = sbr.rel (%p9) target = $region8
  $region5: #{forward.23} parent=0 // loop_body
    %s13 = ssub.s32 %s8, 1
    %s14 = ssub.s32 %s8, 2
    %s15 = sadd.s32 %s8, 1
    %s16 = ssub.s32 %s8, %s15
    %p17 = scmp.eq.s32.totalorder %s16, 0
    %s19 = sadd.s32 %s18, 1
    %s20 = scalar_select %p17, %s18, %s19
    %p23 = pneg %p17
    %p24 = scmp.eq.s32.totalorder %s8, 35
    %p25 = por %p23, %p24
    %p26 = scmp.ne.s32.totalorder %s18, %s21
    %p27 = scmp.eq.s32.totalorder %s8, 0
    %p28 = por %p26, %p27
    %p29 = scmp.ne.s32.totalorder %s18, %s21
    %p30 = scmp.eq.s32.totalorder %s13, 35
    %p31 = por %p29, %p30
    %p32 = scmp.ne.s32.totalorder %s21, %s22
    %p33 = scmp.eq.s32.totalorder %s13, 0
    %p34 = por %p32, %p33
    %p35 = scmp.ne.s32.totalorder %s21, %s22
    %p36 = scmp.eq.s32.totalorder %s14, 35
    %p37 = por %p35, %p36
    %p39 = scmp.ne.s32.totalorder %s22, %s38
    %p40 = scmp.eq.s32.totalorder %s14, 0
    %p41 = por %p39, %p40
    %s43 = sadd.s32 %s42, 1
    %p46 = scmp.eq.s32.totalorder %s8, 35
    %p47 = scmp.ne.s32.totalorder %s42, %s44
    %p48 = scmp.eq.s32.totalorder %s8, 0
    %p49 = por %p47, %p48
    %p50 = scmp.ne.s32.totalorder %s42, %s44
    %p51 = scmp.eq.s32.totalorder %s13, 35
    %p52 = por %p50, %p51
    %p53 = scmp.ne.s32.totalorder %s44, %s45
    %p54 = scmp.eq.s32.totalorder %s13, 0
    %p55 = por %p53, %p54
    %p56 = scmp.ne.s32.totalorder %s44, %s45
    %p57 = scmp.eq.s32.totalorder %s14, 35
    %p58 = por %p56, %p57
    %p60 = scmp.ne.s32.totalorder %s45, %s59
    %p61 = scmp.eq.s32.totalorder %s14, 0
    %p62 = por %p60, %p61
    %s63 = ssub.s32 %s8, %s15
    %p64 = scmp.eq.s32.totalorder %s63, 0
    %s66 = sadd.s32 %s65, 1
    %s67 = scalar_select %p64, %s65, %s66
    %p70 = pneg %p64
    %p71 = scmp.eq.s32.totalorder %s8, 35
    %p72 = por %p70, %p71
    %p73 = scmp.ne.s32.totalorder %s65, %s68
    %p74 = scmp.eq.s32.totalorder %s8, 0
    %p75 = por %p73, %p74
    %p76 = scmp.ne.s32.totalorder %s65, %s68
    %p77 = scmp.eq.s32.totalorder %s13, 35
    %p78 = por %p76, %p77
    %p79 = scmp.ne.s32.totalorder %s68, %s69
    %p80 = scmp.eq.s32.totalorder %s13, 0
    %p81 = por %p79, %p80
    %p82 = scmp.ne.s32.totalorder %s68, %s69
    %p83 = scmp.eq.s32.totalorder %s14, 35
    %p84 = por %p82, %p83
    %p86 = scmp.ne.s32.totalorder %s69, %s85
    %p87 = scmp.eq.s32.totalorder %s14, 0
    %p88 = por %p86, %p87
    %p89 = scmp.le.s32.totalorder 1, %s8
    %p90 = scmp.lt.s32.totalorder %s8, 37
    %p91 = pnand %p89, %p90
    %p92 = pneg %p91
    // Predicated region
    $region9: #{forward.23} parent=5 // pred_check
      _
    $region10: #{forward.23} parent=5 // pred_check_branch
      %94 = sbr.rel (%p91) target = $region12
    $region11: #{forward.23} parent=5 // pred_region
      %s95 = ssub.s32 %s8, 1
      // Predicated region
      $region13: #{forward.23} parent=11 // pred_check
        %p96 = pneg %p55
      $region14: #{forward.23} parent=11 // pred_check_branch
        %98 = sbr.rel (%p96) target = $region16
      $region15: #{forward.23} parent=11 // pred_region
        _
      $region16: #{forward.23} parent=11 // pred_fallthru
        _
    $region12: #{forward.23} parent=5 // pred_fallthru
      _
    %p99 = scmp.lt.s32.totalorder %s8, 36
    // Predicated region
    $region17: #{forward.23} parent=5 // pred_check
      %p100 = pneg %p99
    $region18: #{forward.23} parent=5 // pred_check_branch
      %102 = sbr.rel (%p100) target = $region20
    $region19: #{forward.23} parent=5 // pred_region
      // Predicated region
      $region21: #{forward.23} parent=19 // pred_check
        %p103 = pneg %p28
      $region22: #{forward.23} parent=19 // pred_check_branch
        %105 = sbr.rel (%p103) target = $region24
      $region23: #{forward.23} parent=19 // pred_region
        %s106 = smul.u32 64, %s8
        %p107 = scmp.lt.s32.totalorder %s106, 2303
        %s108 = scalar_select %p107, %s106, 2303
        %s109 = smul.addr %s108, 4
        %s110 = scalar_lea.vmem %s0, %s109
        %s111 = smul.u32 64, %s8
      $region24: #{forward.23} parent=19 // pred_fallthru
        _
    $region20: #{forward.23} parent=5 // pred_fallthru
      _
    %p112 = scmp.le.s32.totalorder 1, %s8
    %p113 = scmp.lt.s32.totalorder %s8, 37
    %p114 = pnand %p112, %p113
    %p115 = pneg %p114
    // Predicated region
    $region25: #{forward.23} parent=5 // pred_check
      _
    $region26: #{forward.23} parent=5 // pred_check_branch
      %117 = sbr.rel (%p114) target = $region28
    $region27: #{forward.23} parent=5 // pred_region
      %s118 = ssub.s32 %s8, 1
      %s119 = smul.u32 64, %s13
      %p120 = scmp.lt.s32.totalorder %s119, 2303
      %s121 = scalar_select %p120, %s119, 2303
      %s122 = smul.addr %s121, 4
      %s123 = scalar_lea.vmem %s0, %s122
      %p124 = pneg %p34
      %p125 = pneg %p31
      %p126 = pneg %p55
      %p127 = pneg %p52
      %p128 = pneg %p81
      %p129 = pneg %p78
      %s130 = smul.u32 64, %s13
      %p131 = scmp.lt.s32.totalorder %s130, 2303
      %s132 = scalar_select %p131, %s130, 2303
      %s133 = smul.addr %s132, 8
      %s134 = scalar_lea.vmem %s2, %s133
      %s135 = smul.u32 64, %s13
      %p136 = scmp.lt.s32.totalorder %s135, 2303
      %s137 = scalar_select %p136, %s135, 2303
      %s138 = smul.addr %s137, 4
      %s139 = scalar_lea.vmem %s0, %s138
      %s140 = smul.u32 64, %s13
      %s141 = smul.u32 64, %s13
      %p142 = scmp.lt.s32.totalorder %s141, 2303
      %s143 = scalar_select %p142, %s141, 2303
      %s144 = smul.addr %s143, 8
      %s145 = scalar_lea.vmem %s2, %s144
      %s146 = smul.u32 64, %s13
      %v147 = vld [vmem:[%s139] sm:$0xf]
      %v148 = vld [vmem:[%s139 + $0x4] sm:$0xf]
      %v149 = vld [vmem:[%s139 + $0x8] sm:$0xf]
      %v150 = vld [vmem:[%s139 + $0xc] sm:$0xf]
      %v151 = vld [vmem:[%s139 + $0x10] sm:$0xf]
      %v152 = vld [vmem:[%s139 + $0x14] sm:$0xf]
      %v153 = vld [vmem:[%s139 + $0x18] sm:$0xf]
      %v154 = vld [vmem:[%s139 + $0x1c] sm:$0xf]
      %v155 = vld [vmem:[%s139 + $0x20] sm:$0xf]
      %v156 = vld [vmem:[%s139 + $0x24] sm:$0xf]
      %v157 = vld [vmem:[%s139 + $0x28] sm:$0xf]
      %v158 = vld [vmem:[%s139 + $0x2c] sm:$0xf]
      %v159 = vld [vmem:[%s139 + $0x30] sm:$0xf]
      %v160 = vld [vmem:[%s139 + $0x34] sm:$0xf]
      %v161 = vld [vmem:[%s139 + $0x38] sm:$0xf]
      %v162 = vld [vmem:[%s139 + $0x3c] sm:$0xf]
      %v163 = vld [vmem:[%s139 + $0x40] sm:$0xf]
      %v164 = vld [vmem:[%s139 + $0x44] sm:$0xf]
      %v165 = vld [vmem:[%s139 + $0x48] sm:$0xf]
      %v166 = vld [vmem:[%s139 + $0x4c] sm:$0xf]
      %v167 = vld [vmem:[%s139 + $0x50] sm:$0xf]
      %v168 = vld [vmem:[%s139 + $0x54] sm:$0xf]
      %v169 = vld [vmem:[%s139 + $0x58] sm:$0xf]
      %v170 = vld [vmem:[%s139 + $0x5c] sm:$0xf]
      %v171 = vld [vmem:[%s139 + $0x60] sm:$0xf]
      %v172 = vld [vmem:[%s139 + $0x64] sm:$0xf]
      %v173 = vld [vmem:[%s139 + $0x68] sm:$0xf]
      %v174 = vld [vmem:[%s139 + $0x6c] sm:$0xf]
      %v175 = vld [vmem:[%s139 + $0x70] sm:$0xf]
      %v176 = vld [vmem:[%s139 + $0x74] sm:$0xf]
      %v177 = vld [vmem:[%s139 + $0x78] sm:$0xf]
      %v178 = vld [vmem:[%s139 + $0x7c] sm:$0xf]
      %v179 = vld [vmem:[%s139 + $0x80] sm:$0xf]
      %v180 = vld [vmem:[%s139 + $0x84] sm:$0xf]
      %v181 = vld [vmem:[%s139 + $0x88] sm:$0xf]
      %v182 = vld [vmem:[%s139 + $0x8c] sm:$0xf]
      %v183 = vld [vmem:[%s139 + $0x90] sm:$0xf]
      %v184 = vld [vmem:[%s139 + $0x94] sm:$0xf]
      %v185 = vld [vmem:[%s139 + $0x98] sm:$0xf]
      %v186 = vld [vmem:[%s139 + $0x9c] sm:$0xf]
      %v187 = vld [vmem:[%s139 + $0xa0] sm:$0xf]
      %v188 = vld [vmem:[%s139 + $0xa4] sm:$0xf]
      %v189 = vld [vmem:[%s139 + $0xa8] sm:$0xf]
      %v190 = vld [vmem:[%s139 + $0xac] sm:$0xf]
      %v191 = vld [vmem:[%s139 + $0xb0] sm:$0xf]
      %v192 = vld [vmem:[%s139 + $0xb4] sm:$0xf]
      %v193 = vld [vmem:[%s139 + $0xb8] sm:$0xf]
      %v194 = vld [vmem:[%s139 + $0xbc] sm:$0xf]
      %v195 = vld [vmem:[%s139 + $0xc0] sm:$0xf]
      %v196 = vld [vmem:[%s139 + $0xc4] sm:$0xf]
      %v197 = vld [vmem:[%s139 + $0xc8] sm:$0xf]
      %v198 = vld [vmem:[%s139 + $0xcc] sm:$0xf]
      %v199 = vld [vmem:[%s139 + $0xd0] sm:$0xf]
      %v200 = vld [vmem:[%s139 + $0xd4] sm:$0xf]
      %v201 = vld [vmem:[%s139 + $0xd8] sm:$0xf]
      %v202 = vld [vmem:[%s139 + $0xdc] sm:$0xf]
      %v203 = vld [vmem:[%s139 + $0xe0] sm:$0xf]
      %v204 = vld [vmem:[%s139 + $0xe4] sm:$0xf]
      %v205 = vld [vmem:[%s139 + $0xe8] sm:$0xf]
      %v206 = vld [vmem:[%s139 + $0xec] sm:$0xf]
      %v207 = vld [vmem:[%s139 + $0xf0] sm:$0xf]
      %v208 = vld [vmem:[%s139 + $0xf4] sm:$0xf]
      %v209 = vld [vmem:[%s139 + $0xf8] sm:$0xf]
      %v210 = vld [vmem:[%s139 + $0xfc] sm:$0xf]
      %v211 = vld [vmem:[%s1] sm:$0xf]
      %v212 = vld [vmem:[%s1 + $0x4] sm:$0xf]
      %v213 = vld [vmem:[%s1 + $0x8] sm:$0xf]
      %v214 = vld [vmem:[%s1 + $0xc] sm:$0xf]
      %v215 = vld [vmem:[%s1 + $0x10] sm:$0xf]
      %v216 = vld [vmem:[%s1 + $0x14] sm:$0xf]
      %v217 = vld [vmem:[%s1 + $0x18] sm:$0xf]
      %v218 = vld [vmem:[%s1 + $0x1c] sm:$0xf]
      %v219 = vld [vmem:[%s1 + $0x20] sm:$0xf]
      %v220 = vld [vmem:[%s1 + $0x24] sm:$0xf]
      %v221 = vld [vmem:[%s1 + $0x28] sm:$0xf]
      %v222 = vld [vmem:[%s1 + $0x2c] sm:$0xf]
      %v223 = vld [vmem:[%s1 + $0x30] sm:$0xf]
      %v224 = vld [vmem:[%s1 + $0x34] sm:$0xf]
      %v225 = vld [vmem:[%s1 + $0x38] sm:$0xf]
      %v226 = vld [vmem:[%s1 + $0x3c] sm:$0xf]
      %v291 = vunpack.c.l.b16 %v147
      %v292 = vunpack.c.l.b16 %v148
      %v293 = vunpack.c.l.b16 %v149
      %v294 = vunpack.c.l.b16 %v150
      %v295 = vunpack.c.l.b16 %v151
      %v296 = vunpack.c.l.b16 %v152
      %v297 = vunpack.c.l.b16 %v153
      %v298 = vunpack.c.l.b16 %v154
      %v299 = vunpack.c.l.b16 %v155
      %v300 = vunpack.c.l.b16 %v156
      %v301 = vunpack.c.l.b16 %v157
      %v302 = vunpack.c.l.b16 %v158
      %v303 = vunpack.c.l.b16 %v159
      %v304 = vunpack.c.l.b16 %v160
      %v305 = vunpack.c.l.b16 %v161
      %v306 = vunpack.c.l.b16 %v162
      %v307 = vunpack.c.l.b16 %v163
      %v308 = vunpack.c.l.b16 %v164
      %v309 = vunpack.c.l.b16 %v165
      %v310 = vunpack.c.l.b16 %v166
      %v311 = vunpack.c.l.b16 %v167
      %v312 = vunpack.c.l.b16 %v168
      %v313 = vunpack.c.l.b16 %v169
      %v314 = vunpack.c.l.b16 %v170
      %v315 = vunpack.c.l.b16 %v171
      %v316 = vunpack.c.l.b16 %v172
      %v317 = vunpack.c.l.b16 %v173
      %v318 = vunpack.c.l.b16 %v174
      %v319 = vunpack.c.l.b16 %v175
      %v320 = vunpack.c.l.b16 %v176
      %v321 = vunpack.c.l.b16 %v177
      %v322 = vunpack.c.l.b16 %v178
      %v323 = vunpack.c.l.b16 %v179
      %v324 = vunpack.c.l.b16 %v180
      %v325 = vunpack.c.l.b16 %v181
      %v326 = vunpack.c.l.b16 %v182
      %v327 = vunpack.c.l.b16 %v183
      %v328 = vunpack.c.l.b16 %v184
      %v329 = vunpack.c.l.b16 %v185
      %v330 = vunpack.c.l.b16 %v186
      %v331 = vunpack.c.l.b16 %v187
      %v332 = vunpack.c.l.b16 %v188
      %v333 = vunpack.c.l.b16 %v189
      %v334 = vunpack.c.l.b16 %v190
      %v335 = vunpack.c.l.b16 %v191
      %v336 = vunpack.c.l.b16 %v192
      %v337 = vunpack.c.l.b16 %v193
      %v338 = vunpack.c.l.b16 %v194
      %v339 = vunpack.c.l.b16 %v195
      %v340 = vunpack.c.l.b16 %v196
      %v341 = vunpack.c.l.b16 %v197
      %v342 = vunpack.c.l.b16 %v198
      %v343 = vunpack.c.l.b16 %v199
      %v344 = vunpack.c.l.b16 %v200
      %v345 = vunpack.c.l.b16 %v201
      %v346 = vunpack.c.l.b16 %v202
      %v347 = vunpack.c.l.b16 %v203
      %v348 = vunpack.c.l.b16 %v204
      %v349 = vunpack.c.l.b16 %v205
      %v350 = vunpack.c.l.b16 %v206
      %v351 = vunpack.c.l.b16 %v207
      %v352 = vunpack.c.l.b16 %v208
      %v353 = vunpack.c.l.b16 %v209
      %v354 = vunpack.c.l.b16 %v210
      %v355 = vpack.c.b16 %v292, %v291
      %v356 = vpack.c.b16 %v294, %v293
      %v357 = vpack.c.b16 %v296, %v295
      %v358 = vpack.c.b16 %v298, %v297
      %v359 = vpack.c.b16 %v300, %v299
      %v360 = vpack.c.b16 %v302, %v301
      %v361 = vpack.c.b16 %v304, %v303
      %v362 = vpack.c.b16 %v306, %v305
      %v363 = vpack.c.b16 %v308, %v307
      %v364 = vpack.c.b16 %v310, %v309
      %v365 = vpack.c.b16 %v312, %v311
      %v366 = vpack.c.b16 %v314, %v313
      %v367 = vpack.c.b16 %v316, %v315
      %v368 = vpack.c.b16 %v318, %v317
      %v369 = vpack.c.b16 %v320, %v319
      %v370 = vpack.c.b16 %v322, %v321
      %v371 = vpack.c.b16 %v324, %v323
      %v372 = vpack.c.b16 %v326, %v325
      %v373 = vpack.c.b16 %v328, %v327
      %v374 = vpack.c.b16 %v330, %v329
      %v375 = vpack.c.b16 %v332, %v331
      %v376 = vpack.c.b16 %v334, %v333
      %v377 = vpack.c.b16 %v336, %v335
      %v378 = vpack.c.b16 %v338, %v337
      %v379 = vpack.c.b16 %v340, %v339
      %v380 = vpack.c.b16 %v342, %v341
      %v381 = vpack.c.b16 %v344, %v343
      %v382 = vpack.c.b16 %v346, %v345
      %v383 = vpack.c.b16 %v348, %v347
      %v384 = vpack.c.b16 %v350, %v349
      %v385 = vpack.c.b16 %v352, %v351
      %v386 = vpack.c.b16 %v354, %v353
      %v435 = vunpack.c.l.b16 %v211
      %v436 = vunpack.c.l.b16 %v212
      %v437 = vunpack.c.l.b16 %v213
      %v438 = vunpack.c.l.b16 %v214
      %v439 = vunpack.c.l.b16 %v215
      %v440 = vunpack.c.l.b16 %v216
      %v441 = vunpack.c.l.b16 %v217
      %v442 = vunpack.c.l.b16 %v218
      %v443 = vunpack.c.l.b16 %v219
      %v444 = vunpack.c.l.b16 %v220
      %v445 = vunpack.c.l.b16 %v221
      %v446 = vunpack.c.l.b16 %v222
      %v447 = vunpack.c.l.b16 %v223
      %v448 = vunpack.c.l.b16 %v224
      %v449 = vunpack.c.l.b16 %v225
      %v450 = vunpack.c.l.b16 %v226
      %v451 = vpack.c.b16 %v436, %v435
      %v452 = vpack.c.b16 %v438, %v437
      %v453 = vpack.c.b16 %v440, %v439
      %v454 = vpack.c.b16 %v442, %v441
      %v455 = vpack.c.b16 %v444, %v443
      %v456 = vpack.c.b16 %v446, %v445
      %v457 = vpack.c.b16 %v448, %v447
      %v458 = vpack.c.b16 %v450, %v449
      %467 = vmatpush.bf16.msra.mxu0 %v458
      %468 = vmatpush.bf16.msra.mxu0 %v457
      %469 = vmatpush.bf16.msra.mxu0 %v456
      %470 = vmatpush.bf16.msra.mxu0 %v455
      %471 = vmatpush.bf16.msra.mxu0 %v454
      %472 = vmatpush.bf16.msra.mxu0 %v453
      %473 = vmatpush.bf16.msra.mxu0 %v452
      %474 = vmatpush.bf16.msra.mxu0 %v451
      %475 = vmatmul.bf16.gmra.mxu0 %v355
      %v476 = vpop.f32.mrf.mxu0
      %v477 = vadd.f32 0.0, %v476
      %v478 = vpop.f32.mrf.mxu0
      %v479 = vadd.f32 0.0, %v478
      %480 = vmatmul.bf16.gmra.mxu0 %v356
      %v481 = vpop.f32.mrf.mxu0
      %v482 = vadd.f32 0.0, %v481
      %v483 = vpop.f32.mrf.mxu0
      %v484 = vadd.f32 0.0, %v483
      %485 = vmatmul.bf16.gmra.mxu0 %v357
      %v486 = vpop.f32.mrf.mxu0
      %v487 = vadd.f32 0.0, %v486
      %v488 = vpop.f32.mrf.mxu0
      %v489 = vadd.f32 0.0, %v488
      %490 = vmatmul.bf16.gmra.mxu0 %v358
      %v491 = vpop.f32.mrf.mxu0
      %v492 = vadd.f32 0.0, %v491
      %v493 = vpop.f32.mrf.mxu0
      %v494 = vadd.f32 0.0, %v493
      %495 = vmatmul.bf16.gmra.mxu0 %v359
      %v496 = vpop.f32.mrf.mxu0
      %v497 = vadd.f32 0.0, %v496
      %v498 = vpop.f32.mrf.mxu0
      %v499 = vadd.f32 0.0, %v498
      %500 = vmatmul.bf16.gmra.mxu0 %v360
      %v501 = vpop.f32.mrf.mxu0
      %v502 = vadd.f32 0.0, %v501
      %v503 = vpop.f32.mrf.mxu0
      %v504 = vadd.f32 0.0, %v503
      %505 = vmatmul.bf16.gmra.mxu0 %v361
      %v506 = vpop.f32.mrf.mxu0
      %v507 = vadd.f32 0.0, %v506
      %v508 = vpop.f32.mrf.mxu0
      %v509 = vadd.f32 0.0, %v508
      %510 = vmatmul.bf16.gmra.mxu0 %v362
      %v511 = vpop.f32.mrf.mxu0
      %v512 = vadd.f32 0.0, %v511
      %v513 = vpop.f32.mrf.mxu0
      %v514 = vadd.f32 0.0, %v513
      %515 = vmatmul.bf16.gmra.mxu0 %v363
      %v516 = vpop.f32.mrf.mxu0
      %v517 = vadd.f32 0.0, %v516
      %v518 = vpop.f32.mrf.mxu0
      %v519 = vadd.f32 0.0, %v518
      %520 = vmatmul.bf16.gmra.mxu0 %v364
      %v521 = vpop.f32.mrf.mxu0
      %v522 = vadd.f32 0.0, %v521
      %v523 = vpop.f32.mrf.mxu0
      %v524 = vadd.f32 0.0, %v523
      %525 = vmatmul.bf16.gmra.mxu0 %v365
      %v526 = vpop.f32.mrf.mxu0
      %v527 = vadd.f32 0.0, %v526
      %v528 = vpop.f32.mrf.mxu0
      %v529 = vadd.f32 0.0, %v528
      %530 = vmatmul.bf16.gmra.mxu0 %v366
      %v531 = vpop.f32.mrf.mxu0
      %v532 = vadd.f32 0.0, %v531
      %v533 = vpop.f32.mrf.mxu0
      %v534 = vadd.f32 0.0, %v533
      %535 = vmatmul.bf16.gmra.mxu0 %v367
      %v536 = vpop.f32.mrf.mxu0
      %v537 = vadd.f32 0.0, %v536
      %v538 = vpop.f32.mrf.mxu0
      %v539 = vadd.f32 0.0, %v538
      %540 = vmatmul.bf16.gmra.mxu0 %v368
      %v541 = vpop.f32.mrf.mxu0
      %v542 = vadd.f32 0.0, %v541
      %v543 = vpop.f32.mrf.mxu0
      %v544 = vadd.f32 0.0, %v543
      %545 = vmatmul.bf16.gmra.mxu0 %v369
      %v546 = vpop.f32.mrf.mxu0
      %v547 = vadd.f32 0.0, %v546
      %v548 = vpop.f32.mrf.mxu0
      %v549 = vadd.f32 0.0, %v548
      %550 = vmatmul.bf16.gmra.mxu0 %v370
      %v551 = vpop.f32.mrf.mxu0
      %v552 = vadd.f32 0.0, %v551
      %v553 = vpop.f32.mrf.mxu0
      %v554 = vadd.f32 0.0, %v553
      %555 = vmatmul.bf16.gmra.mxu0 %v371
      %v556 = vpop.f32.mrf.mxu0
      %v557 = vadd.f32 0.0, %v556
      %v558 = vpop.f32.mrf.mxu0
      %v559 = vadd.f32 0.0, %v558
      %560 = vmatmul.bf16.gmra.mxu0 %v372
      %v561 = vpop.f32.mrf.mxu0
      %v562 = vadd.f32 0.0, %v561
      %v563 = vpop.f32.mrf.mxu0
      %v564 = vadd.f32 0.0, %v563
      %565 = vmatmul.bf16.gmra.mxu0 %v373
      %v566 = vpop.f32.mrf.mxu0
      %v567 = vadd.f32 0.0, %v566
      %v568 = vpop.f32.mrf.mxu0
      %v569 = vadd.f32 0.0, %v568
      %570 = vmatmul.bf16.gmra.mxu0 %v374
      %v571 = vpop.f32.mrf.mxu0
      %v572 = vadd.f32 0.0, %v571
      %v573 = vpop.f32.mrf.mxu0
      %v574 = vadd.f32 0.0, %v573
      %575 = vmatmul.bf16.gmra.mxu0 %v375
      %v576 = vpop.f32.mrf.mxu0
      %v577 = vadd.f32 0.0, %v576
      %v578 = vpop.f32.mrf.mxu0
      %v579 = vadd.f32 0.0, %v578
      %580 = vmatmul.bf16.gmra.mxu0 %v376
      %v581 = vpop.f32.mrf.mxu0
      %v582 = vadd.f32 0.0, %v581
      %v583 = vpop.f32.mrf.mxu0
      %v584 = vadd.f32 0.0, %v583
      %585 = vmatmul.bf16.gmra.mxu0 %v377
      %v586 = vpop.f32.mrf.mxu0
      %v587 = vadd.f32 0.0, %v586
      %v588 = vpop.f32.mrf.mxu0
      %v589 = vadd.f32 0.0, %v588
      %590 = vmatmul.bf16.gmra.mxu0 %v378
      %v591 = vpop.f32.mrf.mxu0
      %v592 = vadd.f32 0.0, %v591
      %v593 = vpop.f32.mrf.mxu0
      %v594 = vadd.f32 0.0, %v593
      %595 = vmatmul.bf16.gmra.mxu0 %v379
      %v596 = vpop.f32.mrf.mxu0
      %v597 = vadd.f32 0.0, %v596
      %v598 = vpop.f32.mrf.mxu0
      %v599 = vadd.f32 0.0, %v598
      %600 = vmatmul.bf16.gmra.mxu0 %v380
      %v601 = vpop.f32.mrf.mxu0
      %v602 = vadd.f32 0.0, %v601
      %v603 = vpop.f32.mrf.mxu0
      %v604 = vadd.f32 0.0, %v603
      %605 = vmatmul.bf16.gmra.mxu0 %v381
      %v606 = vpop.f32.mrf.mxu0
      %v607 = vadd.f32 0.0, %v606
      %v608 = vpop.f32.mrf.mxu0
      %v609 = vadd.f32 0.0, %v608
      %610 = vmatmul.bf16.gmra.mxu0 %v382
      %v611 = vpop.f32.mrf.mxu0
      %v612 = vadd.f32 0.0, %v611
      %v613 = vpop.f32.mrf.mxu0
      %v614 = vadd.f32 0.0, %v613
      %615 = vmatmul.bf16.gmra.mxu0 %v383
      %v616 = vpop.f32.mrf.mxu0
      %v617 = vadd.f32 0.0, %v616
      %v618 = vpop.f32.mrf.mxu0
      %v619 = vadd.f32 0.0, %v618
      %620 = vmatmul.bf16.gmra.mxu0 %v384
      %v621 = vpop.f32.mrf.mxu0
      %v622 = vadd.f32 0.0, %v621
      %v623 = vpop.f32.mrf.mxu0
      %v624 = vadd.f32 0.0, %v623
      %625 = vmatmul.bf16.gmra.mxu0 %v385
      %v626 = vpop.f32.mrf.mxu0
      %v627 = vadd.f32 0.0, %v626
      %v628 = vpop.f32.mrf.mxu0
      %v629 = vadd.f32 0.0, %v628
      %630 = vmatmul.bf16.gmra.mxu0 %v386
      %v631 = vpop.f32.mrf.mxu0
      %v632 = vadd.f32 0.0, %v631
      %v633 = vpop.f32.mrf.mxu0
      %v634 = vadd.f32 0.0, %v633
      %635 = vdwg.mxu0
      %v636 = vtanh.pop %v477
      %v637 = vtanh.pop %v479
      %v638 = vtanh.pop %v482
      %v639 = vtanh.pop %v484
      %v640 = vtanh.pop %v487
      %v641 = vtanh.pop %v489
      %v642 = vtanh.pop %v492
      %v643 = vtanh.pop %v494
      %v644 = vtanh.pop %v497
      %v645 = vtanh.pop %v499
      %v646 = vtanh.pop %v502
      %v647 = vtanh.pop %v504
      %v648 = vtanh.pop %v507
      %v649 = vtanh.pop %v509
      %v650 = vtanh.pop %v512
      %v651 = vtanh.pop %v514
      %v652 = vtanh.pop %v517
      %v653 = vtanh.pop %v519
      %v654 = vtanh.pop %v522
      %v655 = vtanh.pop %v524
      %v656 = vtanh.pop %v527
      %v657 = vtanh.pop %v529
      %v658 = vtanh.pop %v532
      %v659 = vtanh.pop %v534
      %v660 = vtanh.pop %v537
      %v661 = vtanh.pop %v539
      %v662 = vtanh.pop %v542
      %v663 = vtanh.pop %v544
      %v664 = vtanh.pop %v547
      %v665 = vtanh.pop %v549
      %v666 = vtanh.pop %v552
      %v667 = vtanh.pop %v554
      %v668 = vtanh.pop %v557
      %v669 = vtanh.pop %v559
      %v670 = vtanh.pop %v562
      %v671 = vtanh.pop %v564
      %v672 = vtanh.pop %v567
      %v673 = vtanh.pop %v569
      %v674 = vtanh.pop %v572
      %v675 = vtanh.pop %v574
      %v676 = vtanh.pop %v577
      %v677 = vtanh.pop %v579
      %v678 = vtanh.pop %v582
      %v679 = vtanh.pop %v584
      %v680 = vtanh.pop %v587
      %v681 = vtanh.pop %v589
      %v682 = vtanh.pop %v592
      %v683 = vtanh.pop %v594
      %v684 = vtanh.pop %v597
      %v685 = vtanh.pop %v599
      %v686 = vtanh.pop %v602
      %v687 = vtanh.pop %v604
      %v688 = vtanh.pop %v607
      %v689 = vtanh.pop %v609
      %v690 = vtanh.pop %v612
      %v691 = vtanh.pop %v614
      %v692 = vtanh.pop %v617
      %v693 = vtanh.pop %v619
      %v694 = vtanh.pop %v622
      %v695 = vtanh.pop %v624
      %v696 = vtanh.pop %v627
      %v697 = vtanh.pop %v629
      %v698 = vtanh.pop %v632
      %v699 = vtanh.pop %v634
      %700 = vst [vmem:[%s145] sm:$0xff] %v636
      %701 = vst [vmem:[%s145 + $0x8] sm:$0xff] %v637
      %702 = vst [vmem:[%s145 + $0x10] sm:$0xff] %v638
      %703 = vst [vmem:[%s145 + $0x18] sm:$0xff] %v639
      %704 = vst [vmem:[%s145 + $0x20] sm:$0xff] %v640
      %705 = vst [vmem:[%s145 + $0x28] sm:$0xff] %v641
      %706 = vst [vmem:[%s145 + $0x30] sm:$0xff] %v642
      %707 = vst [vmem:[%s145 + $0x38] sm:$0xff] %v643
      %708 = vst [vmem:[%s145 + $0x40] sm:$0xff] %v644
      %709 = vst [vmem:[%s145 + $0x48] sm:$0xff] %v645
      %710 = vst [vmem:[%s145 + $0x50] sm:$0xff] %v646
      %711 = vst [vmem:[%s145 + $0x58] sm:$0xff] %v647
      %712 = vst [vmem:[%s145 + $0x60] sm:$0xff] %v648
      %713 = vst [vmem:[%s145 + $0x68] sm:$0xff] %v649
      %714 = vst [vmem:[%s145 + $0x70] sm:$0xff] %v650
      %715 = vst [vmem:[%s145 + $0x78] sm:$0xff] %v651
      %716 = vst [vmem:[%s145 + $0x80] sm:$0xff] %v652
      %717 = vst [vmem:[%s145 + $0x88] sm:$0xff] %v653
      %718 = vst [vmem:[%s145 + $0x90] sm:$0xff] %v654
      %719 = vst [vmem:[%s145 + $0x98] sm:$0xff] %v655
      %720 = vst [vmem:[%s145 + $0xa0] sm:$0xff] %v656
      %721 = vst [vmem:[%s145 + $0xa8] sm:$0xff] %v657
      %722 = vst [vmem:[%s145 + $0xb0] sm:$0xff] %v658
      %723 = vst [vmem:[%s145 + $0xb8] sm:$0xff] %v659
      %724 = vst [vmem:[%s145 + $0xc0] sm:$0xff] %v660
      %725 = vst [vmem:[%s145 + $0xc8] sm:$0xff] %v661
      %726 = vst [vmem:[%s145 + $0xd0] sm:$0xff] %v662
      %727 = vst [vmem:[%s145 + $0xd8] sm:$0xff] %v663
      %728 = vst [vmem:[%s145 + $0xe0] sm:$0xff] %v664
      %729 = vst [vmem:[%s145 + $0xe8] sm:$0xff] %v665
      %730 = vst [vmem:[%s145 + $0xf0] sm:$0xff] %v666
      %731 = vst [vmem:[%s145 + $0xf8] sm:$0xff] %v667
      %732 = vst [vmem:[%s145 + $0x100] sm:$0xff] %v668
      %733 = vst [vmem:[%s145 + $0x108] sm:$0xff] %v669
      %734 = vst [vmem:[%s145 + $0x110] sm:$0xff] %v670
      %735 = vst [vmem:[%s145 + $0x118] sm:$0xff] %v671
      %736 = vst [vmem:[%s145 + $0x120] sm:$0xff] %v672
      %737 = vst [vmem:[%s145 + $0x128] sm:$0xff] %v673
      %738 = vst [vmem:[%s145 + $0x130] sm:$0xff] %v674
      %739 = vst [vmem:[%s145 + $0x138] sm:$0xff] %v675
      %740 = vst [vmem:[%s145 + $0x140] sm:$0xff] %v676
      %741 = vst [vmem:[%s145 + $0x148] sm:$0xff] %v677
      %742 = vst [vmem:[%s145 + $0x150] sm:$0xff] %v678
      %743 = vst [vmem:[%s145 + $0x158] sm:$0xff] %v679
      %744 = vst [vmem:[%s145 + $0x160] sm:$0xff] %v680
      %745 = vst [vmem:[%s145 + $0x168] sm:$0xff] %v681
      %746 = vst [vmem:[%s145 + $0x170] sm:$0xff] %v682
      %747 = vst [vmem:[%s145 + $0x178] sm:$0xff] %v683
      %748 = vst [vmem:[%s145 + $0x180] sm:$0xff] %v684
      %749 = vst [vmem:[%s145 + $0x188] sm:$0xff] %v685
      %750 = vst [vmem:[%s145 + $0x190] sm:$0xff] %v686
      %751 = vst [vmem:[%s145 + $0x198] sm:$0xff] %v687
      %752 = vst [vmem:[%s145 + $0x1a0] sm:$0xff] %v688
      %753 = vst [vmem:[%s145 + $0x1a8] sm:$0xff] %v689
      %754 = vst [vmem:[%s145 + $0x1b0] sm:$0xff] %v690
      %755 = vst [vmem:[%s145 + $0x1b8] sm:$0xff] %v691
      %756 = vst [vmem:[%s145 + $0x1c0] sm:$0xff] %v692
      %757 = vst [vmem:[%s145 + $0x1c8] sm:$0xff] %v693
      %758 = vst [vmem:[%s145 + $0x1d0] sm:$0xff] %v694
      %759 = vst [vmem:[%s145 + $0x1d8] sm:$0xff] %v695
      %760 = vst [vmem:[%s145 + $0x1e0] sm:$0xff] %v696
      %761 = vst [vmem:[%s145 + $0x1e8] sm:$0xff] %v697
      %762 = vst [vmem:[%s145 + $0x1f0] sm:$0xff] %v698
      %763 = vst [vmem:[%s145 + $0x1f8] sm:$0xff] %v699
      %s764 = smul.u32 64, %s13
      %p765 = scmp.lt.s32.totalorder %s764, 2303
      %s766 = scalar_select %p765, %s764, 2303
      %s767 = smul.addr %s766, 8
      %s768 = scalar_lea.vmem %s2, %s767
      // Predicated region
      $region29: #{forward.23} parent=27 // pred_check
        %p769 = pneg %p78
      $region30: #{forward.23} parent=27 // pred_check_branch
        %771 = sbr.rel (%p769) target = $region32
      $region31: #{forward.23} parent=27 // pred_region
        %s772 = smul.u32 64, %s13
      $region32: #{forward.23} parent=27 // pred_fallthru
        _
    $region28: #{forward.23} parent=5 // pred_fallthru
      _
    %p773 = scmp.le.s32.totalorder 2, %s8
    // Predicated region
    $region33: #{forward.23} parent=5 // pred_check
      %p774 = pneg %p773
    $region34: #{forward.23} parent=5 // pred_check_branch
      %776 = sbr.rel (%p774) target = $region36
    $region35: #{forward.23} parent=5 // pred_region
      %s777 = ssub.s32 %s8, 2
      // Predicated region
      $region37: #{forward.23} parent=35 // pred_check
        %p778 = pneg %p84
      $region38: #{forward.23} parent=35 // pred_check_branch
        %780 = sbr.rel (%p778) target = $region40
      $region39: #{forward.23} parent=35 // pred_region
        %s781 = smul.u32 64, %s14
        %p782 = scmp.lt.s32.totalorder %s781, 2303
        %s783 = scalar_select %p782, %s781, 2303
        %s784 = smul.addr %s783, 8
        %s785 = scalar_lea.vmem %s2, %s784
      $region40: #{forward.23} parent=35 // pred_fallthru
        _
    $region36: #{forward.23} parent=5 // pred_fallthru
      _
  $region6: #{forward.23} parent=0 // loop_footer
    %s12 = sadd.s32 1, %s8
  $region7: #{forward.23} parent=0 // loop_footer_branch
    %7 = sbr.rel target = $region3
  $region8: #{forward.23} parent=0 // loop_exit
    _

</llo_original>
